<compile_context>
chip_gen: v5e
topology: v5e:2x2
jax: 0.10.0
libtpu: 0.0.40
codegen_flags: <defaults>
</compile_context>

<pallas_src>
import functools

import jax
import jax.numpy as jnp
from jax.experimental import pallas as pl
from jax.experimental.pallas import tpu as pltpu


def _round_up(x, m):
    return ((x + m - 1) // m) * m


# ----------------------------------------------------------------------------
# Fused Pallas kernel: whole TinyVGG forward for a block of B images per step.
# ----------------------------------------------------------------------------
def _tinyvgg_kernel(x_ref, w1_ref, b1_ref, w2_ref, b2_ref,
                    r1e_ref, r1o_ref, s1e_ref, s1o_ref, pm1_ref,
                    w3_ref, b3_ref, w4_ref, b4_ref,
                    r2e_ref, r2o_ref, s2e_ref, s2o_ref, pm2_ref,
                    wfc_ref, bfc_ref,
                    o_ref,
                    p1_ref, p2_ref, p3_ref):
    f32, bf16 = jnp.float32, jnp.bfloat16
    B = o_ref.shape[0]

    def banded_conv_relu(src_ref, w_ref, b_ref, m):
        """relu(bias + sum_kh src[kh:kh+m] @ w[kh]) : same-padded 3x3 conv, f32 acc."""
        acc = jnp.dot(src_ref[0:m, :], w_ref[0], preferred_element_type=f32)
        acc = acc + jnp.dot(src_ref[1:m + 1, :], w_ref[1], preferred_element_type=f32)
        acc = acc + jnp.dot(src_ref[2:m + 2, :], w_ref[2], preferred_element_type=f32)
        return jnp.maximum(acc + b_ref[...], 0.0)

    def maxpool2x2(a, re_ref, ro_ref, se_ref, so_ref):
        """2x2/2 pool: even/odd lane-selection matmuls + max, then row-selection + max."""
        uc = jnp.maximum(jnp.dot(a, re_ref[...], preferred_element_type=f32),
                         jnp.dot(a, ro_ref[...], preferred_element_type=f32)).astype(bf16)
        return jnp.maximum(jnp.dot(se_ref[...], uc, preferred_element_type=f32),
                           jnp.dot(so_ref[...], uc, preferred_element_type=f32))

    R1, L1 = p1_ref.shape            # (B*30, 256)
    R2, L2 = p2_ref.shape            # (B*16, 128)
    m1, m2 = R1 - 2, R2 - 2

    # ---- block_1: conv -> relu -> conv -> relu -> maxpool (all in VMEM) ----
    a1 = banded_conv_relu(x_ref, w1_ref, b1_ref, m1)                    # (m1, L1) f32
    p1_ref[0:1, :] = jnp.zeros((1, L1), bf16)                           # guard rows: redone
    p1_ref[R1 - 1:R1, :] = jnp.zeros((1, L1), bf16)                     # every step (megacore-safe)
    p1_ref[1:R1 - 1, :] = (a1 * pm1_ref[...]).astype(bf16)              # zero inter-image pad rows
    a2 = banded_conv_relu(p1_ref, w2_ref, b2_ref, m1).astype(bf16)
    p2_ref[...] = maxpool2x2(a2, r1e_ref, r1o_ref, s1e_ref, s1o_ref).astype(bf16)

    # ---- block_2: conv -> relu -> conv -> relu -> maxpool ----
    a3 = banded_conv_relu(p2_ref, w3_ref, b3_ref, m2)                   # (m2, L2) f32
    p3_ref[0:1, :] = jnp.zeros((1, L2), bf16)
    p3_ref[R2 - 1:R2, :] = jnp.zeros((1, L2), bf16)
    p3_ref[1:R2 - 1, :] = (a3 * pm2_ref[...]).astype(bf16)
    a4 = banded_conv_relu(p3_ref, w4_ref, b4_ref, m2).astype(bf16)
    pool2 = maxpool2x2(a4, r2e_ref, r2o_ref, s2e_ref, s2o_ref).astype(bf16)  # (7*B, Lf) h-major

    # ---- classifier: NCHW flatten folded into per-row FC weights + Linear ----
    acc = jnp.dot(pool2[0:B, :], wfc_ref[0], preferred_element_type=f32)
    for h in range(1, wfc_ref.shape[0]):
        acc = acc + jnp.dot(pool2[h * B:(h + 1) * B, :], wfc_ref[h],
                            preferred_element_type=f32)
    o_ref[...] = (acc + bfc_ref[...]).astype(o_ref.dtype)


# ----------------------------------------------------------------------------
# One-time parameter preparation (all layout plumbing lives here).
# ----------------------------------------------------------------------------
def _band_weights(w_oihw, W):
    """OIHW 3x3 conv weights -> 3 banded matrices of shape (W*Cin, W*Cout)."""
    Cout, Cin, KH, KW = w_oihw.shape
    wt = jnp.transpose(w_oihw, (2, 3, 1, 0))              # (KH, KW, Cin, Cout)
    w_in = jnp.arange(W)[:, None]
    w_out = jnp.arange(W)[None, :]
    kw = w_in - w_out + 1                                 # (W, W)
    valid = ((kw >= 0) & (kw < KW)).astype(w_oihw.dtype)
    kw_c = jnp.clip(kw, 0, KW - 1)
    bands = []
    for kh in range(KH):
        b = wt[kh][kw_c] * valid[:, :, None, None]        # (W, W, Cin, Cout)
        b = jnp.transpose(b, (0, 2, 1, 3)).reshape(W * Cin, W * Cout)
        bands.append(b)
    return jnp.stack(bands, axis=0)                       # (3, W*Cin, W*Cout)


def _pool_col_mats(W_in, C):
    """Lane-selection matrices picking even / odd w columns (channel-preserving)."""
    W_out = W_in // 2
    w_in = jnp.arange(W_in)[:, None]
    w_out = jnp.arange(W_out)[None, :]
    even = (w_in == 2 * w_out).astype(jnp.float32)
    odd = (w_in == 2 * w_out + 1).astype(jnp.float32)
    eyec = jnp.eye(C, dtype=jnp.float32)
    return jnp.kron(even, eyec), jnp.kron(odd, eyec)      # (W_in*C, W_out*C)


def _pool_row_sel_padded(B, S_in, H_out, S_out):
    """(B*S_out, B*S_in-2) even/odd row selection; output rows in padded layout
    (zero rows at each image's pad positions)."""
    R_in = B * S_in - 2
    q = jnp.arange(B * S_out)
    img = q // S_out
    p = q % S_out
    valid = (p >= 1) & (p <= H_out)
    h = jnp.clip(p - 1, 0, H_out - 1)
    je = img * S_in + 2 * h
    cols = jnp.arange(R_in)[None, :]
    even = (valid[:, None] & (cols == je[:, None])).astype(jnp.float32)
    odd = (valid[:, None] & (cols == je[:, None] + 1)).astype(jnp.float32)
    return even, odd


def _pool_row_sel_hmajor(B, S_in, H_out):
    """(H_out*B, B*S_in-2) even/odd row selection; output row h*B + i (h-major,
    contiguous B-row blocks per spatial row -> FC slices are contiguous)."""
    R_in = B * S_in - 2
    q = jnp.arange(H_out * B)
    h = q // B
    img = q % B
    je = img * S_in + 2 * h
    cols = jnp.arange(R_in)[None, :]
    even = (cols == je[:, None]).astype(jnp.float32)
    odd = (cols == je[:, None] + 1).astype(jnp.float32)
    return even, odd


def _pad_row_mask(B, S):
    """(B*S-2, 1) 0/1 mask: 1 at data rows, 0 at inter-image pad rows (candidate coords)."""
    j = jnp.arange(B * S - 2)
    br = (j + 1) % S
    keep = (br != 0) & (br != S - 1)
    return keep.astype(jnp.float32)[:, None]


def _fc_weights(wfc, C, Hf, Wf):
    """PyTorch Linear weight (O, C*Hf*Wf) with NCHW flatten -> per-row (Hf, Wf*C, O)."""
    n_out = wfc.shape[0]
    w = wfc.reshape(n_out, C, Hf, Wf)                     # (O, c, h, w)
    w = jnp.transpose(w, (2, 3, 1, 0))                    # (h, w, c, O)
    return w.reshape(Hf, Wf * C, n_out)                   # row index = w*C + c


def _tiled_bias(b, W):
    return jnp.tile(b, W).reshape(1, W * b.shape[0])      # lane index = w*C + c


def _pad2(a, rows, cols, dtype):
    pad = [(0, 0)] * (a.ndim - 2) + [(0, rows - a.shape[-2]), (0, cols - a.shape[-1])]
    return jnp.pad(a, pad).astype(dtype)


def prepare_params(p, block_b, H=28, W=28):
    """PyTorch-layout params -> kernel-layout params (call once, outside forward)."""
    B = block_b
    C, Cin = p["w1"].shape[0], p["w1"].shape[1]
    n_classes = p["wfc"].shape[0]
    H2, W2 = H // 2, W // 2
    Hf, Wf = H2 // 2, W2 // 2
    S1, S2 = H + 2, H2 + 2
    bf16, f32 = jnp.bfloat16, jnp.float32

    Lin = _round_up(W * Cin, 128)     # 128
    L1 = _round_up(W * C, 128)        # 256
    L2 = _round_up(W2 * C, 128)       # 128
    Lf = _round_up(Wf * C, 64)        # 64
    Lo = _round_up(n_classes, 128)    # 128

    r1e, r1o = _pool_col_mats(W, C)
    s1e, s1o = _pool_row_sel_padded(B, S1, H2, S2)
    r2e, r2o = _pool_col_mats(W2, C)
    s2e, s2o = _pool_row_sel_hmajor(B, S2, Hf)

    return (
        _pad2(_band_weights(p["w1"], W), Lin, L1, bf16),
        _pad2(_tiled_bias(p["b1"], W), 1, L1, f32),
        _pad2(_band_weights(p["w2"], W), L1, L1, bf16),
        _pad2(_tiled_bias(p["b2"], W), 1, L1, f32),
        _pad2(r1e, L1, L2, bf16), _pad2(r1o, L1, L2, bf16),
        s1e.astype(bf16), s1o.astype(bf16),
        _pad_row_mask(B, S1),
        _pad2(_band_weights(p["w3"], W2), L2, L2, bf16),
        _pad2(_tiled_bias(p["b3"], W2), 1, L2, f32),
        _pad2(_band_weights(p["w4"], W2), L2, L2, bf16),
        _pad2(_tiled_bias(p["b4"], W2), 1, L2, f32),
        _pad2(r2e, L2, Lf, bf16), _pad2(r2o, L2, Lf, bf16),
        s2e.astype(bf16), s2o.astype(bf16),
        _pad_row_mask(B, S2),
        _pad2(_fc_weights(p["wfc"], C, Hf, Wf), Lf, Lo, bf16),
        _pad2(p["bfc"].reshape(1, -1), 1, Lo, f32),
    )


# ----------------------------------------------------------------------------
# Forward: a single fused pallas_call, B images per grid step.
# ----------------------------------------------------------------------------
@functools.partial(jax.jit, static_argnames=("block_b", "n_classes"))
def forward(x_nchw, prepped, block_b, n_classes):
    (w1b, b1, w2b, b2, r1e, r1o, s1e, s1o, pm1,
     w3b, b3, w4b, b4, r2e, r2o, s2e, s2o, pm2, wfc, bfc) = prepped

    N, Cin, H, W = x_nchw.shape
    B = block_b
    S1, S2 = H + 2, H // 2 + 2
    Lin, L1 = w1b.shape[1], w1b.shape[2]
    L2 = w3b.shape[2]
    Lo = bfc.shape[1]
    n_steps = -(-N // B)
    Npad = n_steps * B
    assert s1e.shape == (B * S2, B * S1 - 2), "prepped params built with a different block_b"

    # NCHW -> (N, H, W*Cin); pad batch -> Npad, rows -> S1 (1 top / 1 bottom pad),
    # lanes -> Lin; cast to bf16.  Row padding = the conv's vertical zero padding.
    x = jnp.transpose(x_nchw, (0, 2, 3, 1)).reshape(N, H, W * Cin)
    x = jnp.pad(x, ((0, Npad - N), (1, 1), (0, Lin - W * Cin))).astype(jnp.bfloat16)
    x2d = x.reshape(Npad * S1, Lin)

    def _full(a):
        zeros = (0,) * a.ndim
        return pl.BlockSpec(a.shape, lambda n, _z=zeros: _z)

    out = pl.pallas_call(
        _tinyvgg_kernel,
        out_shape=jax.ShapeDtypeStruct((Npad, Lo), jnp.float32),
        grid=(n_steps,),
        in_specs=[pl.BlockSpec((B * S1, Lin), lambda n: (n, 0))] + [_full(a) for a in prepped],
        out_specs=pl.BlockSpec((B, Lo), lambda n: (n, 0)),
        scratch_shapes=[
            pltpu.VMEM((B * S1, L1), jnp.bfloat16),   # padded relu(conv1)
            pltpu.VMEM((B * S2, L2), jnp.bfloat16),   # padded pool1 output
            pltpu.VMEM((B * S2, L2), jnp.bfloat16),   # padded relu(conv3)
        ],
        compiler_params=pltpu.CompilerParams(dimension_semantics=("parallel",)),
    )(x2d, *prepped)
    return out[:N, :n_classes]


# ----------------------------------------------------------------------------
# Pure-JAX (XLA) reference mirroring the PyTorch module, and param init.
# ----------------------------------------------------------------------------
def reference_forward(x_nchw, p):
    def conv(x, w, b):
        y = jax.lax.conv_general_dilated(
            x, w, window_strides=(1, 1), padding=((1, 1), (1, 1)),
            dimension_numbers=("NCHW", "OIHW", "NCHW"))
        return y + b[None, :, None, None]

    def pool(x):
        return jax.lax.reduce_window(
            x, -jnp.inf, jax.lax.max, (1, 1, 2, 2), (1, 1, 2, 2), "VALID")

    relu = lambda t: jnp.maximum(t, 0.0)
    x = pool(relu(conv(relu(conv(x_nchw, p["w1"], p["b1"])), p["w2"], p["b2"])))
    x = pool(relu(conv(relu(conv(x, p["w3"], p["b3"])), p["w4"], p["b4"])))
    x = x.reshape(x.shape[0], -1)
    return x @ p["wfc"].T + p["bfc"]


def init_params(key, input_shape, hidden_units, output_shape):
    ks = jax.random.split(key, 10)
    s = 0.1
    return {
        "w1": jax.random.normal(ks[0], (hidden_units, input_shape, 3, 3), jnp.float32) * s,
        "b1": jax.random.normal(ks[1], (hidden_units,), jnp.float32) * s,
        "w2": jax.random.normal(ks[2], (hidden_units, hidden_units, 3, 3), jnp.float32) * s,
        "b2": jax.random.normal(ks[3], (hidden_units,), jnp.float32) * s,
        "w3": jax.random.normal(ks[4], (hidden_units, hidden_units, 3, 3), jnp.float32) * s,
        "b3": jax.random.normal(ks[5], (hidden_units,), jnp.float32) * s,
        "w4": jax.random.normal(ks[6], (hidden_units, hidden_units, 3, 3), jnp.float32) * s,
        "b4": jax.random.normal(ks[7], (hidden_units,), jnp.float32) * s,
        "wfc": jax.random.normal(ks[8], (output_shape, hidden_units * 7 * 7), jnp.float32) * s,
        "bfc": jax.random.normal(ks[9], (output_shape,), jnp.float32) * s,
    }


if __name__ == "__main__":
    key = jax.random.PRNGKey(0)
    kx, kp = jax.random.split(key)

    # FashionMNIST-consistent shapes (classifier expects hidden*7*7 -> 28x28 input).
    N, Cin, H, W = 2, 1, 28, 28
    hidden_units, n_classes = 8, 10
    BLOCK_B = 8                                    # images per grid step

    x = jax.random.normal(kx, (N, Cin, H, W), jnp.float32)
    params = init_params(kp, Cin, hidden_units, n_classes)

    prepped = prepare_params(params, block_b=BLOCK_B, H=H, W=W)   # one-time weight prep
    y = forward(x, prepped, block_b=BLOCK_B, n_classes=n_classes)
    y = jax.block_until_ready(y)

    assert y.shape == (N, n_classes), y.shape
    y_ref = reference_forward(x, params)
    max_err = float(jnp.max(jnp.abs(y - y_ref)))
    assert jnp.allclose(y, y_ref, atol=2e-2, rtol=2e-2), f"max_err={max_err}"

    print("KERNEL_OK")
</pallas_src>

<mosaic_0001>
module attributes {stable_mosaic.version = 11 : i64} {
  func.func @_tinyvgg_kernel(%arg0: i32, %arg1: memref<240x128xbf16, #tpu.memory_space<vmem>>, %arg2: memref<3x128x256xbf16, #tpu.memory_space<vmem>>, %arg3: memref<1x256xf32, #tpu.memory_space<vmem>>, %arg4: memref<3x256x256xbf16, #tpu.memory_space<vmem>>, %arg5: memref<1x256xf32, #tpu.memory_space<vmem>>, %arg6: memref<256x128xbf16, #tpu.memory_space<vmem>>, %arg7: memref<256x128xbf16, #tpu.memory_space<vmem>>, %arg8: memref<128x238xbf16, #tpu.memory_space<vmem>>, %arg9: memref<128x238xbf16, #tpu.memory_space<vmem>>, %arg10: memref<238x1xf32, #tpu.memory_space<vmem>>, %arg11: memref<3x128x128xbf16, #tpu.memory_space<vmem>>, %arg12: memref<1x128xf32, #tpu.memory_space<vmem>>, %arg13: memref<3x128x128xbf16, #tpu.memory_space<vmem>>, %arg14: memref<1x128xf32, #tpu.memory_space<vmem>>, %arg15: memref<128x64xbf16, #tpu.memory_space<vmem>>, %arg16: memref<128x64xbf16, #tpu.memory_space<vmem>>, %arg17: memref<56x126xbf16, #tpu.memory_space<vmem>>, %arg18: memref<56x126xbf16, #tpu.memory_space<vmem>>, %arg19: memref<126x1xf32, #tpu.memory_space<vmem>>, %arg20: memref<7x64x128xbf16, #tpu.memory_space<vmem>>, %arg21: memref<1x128xf32, #tpu.memory_space<vmem>>, %arg22: memref<8x128xf32, #tpu.memory_space<vmem>>, %arg23: memref<240x256xbf16, #tpu.memory_space<vmem>>, %arg24: memref<128x128xbf16, #tpu.memory_space<vmem>>, %arg25: memref<128x128xbf16, #tpu.memory_space<vmem>>) attributes {dimension_semantics = [#tpu.dimension_semantics<parallel>], iteration_bounds = array<i64: 1>, scalar_prefetch = 0 : i64, scratch_operands = 3 : i64, tpu.core_type = #tpu.core_type<tc>, window_params = [{transform_indices = @transform_0, window_bounds = array<i64: 240, 128>}, {pipeline_mode = #tpu.pipeline_mode<synchronous>, transform_indices = @transform_1, window_bounds = array<i64: 3, 128, 256>}, {pipeline_mode = #tpu.pipeline_mode<synchronous>, transform_indices = @transform_2, window_bounds = array<i64: 1, 256>}, {pipeline_mode = #tpu.pipeline_mode<synchronous>, transform_indices = @transform_3, window_bounds = array<i64: 3, 256, 256>}, {pipeline_mode = #tpu.pipeline_mode<synchronous>, transform_indices = @transform_4, window_bounds = array<i64: 1, 256>}, {pipeline_mode = #tpu.pipeline_mode<synchronous>, transform_indices = @transform_5, window_bounds = array<i64: 256, 128>}, {pipeline_mode = #tpu.pipeline_mode<synchronous>, transform_indices = @transform_6, window_bounds = array<i64: 256, 128>}, {pipeline_mode = #tpu.pipeline_mode<synchronous>, transform_indices = @transform_7, window_bounds = array<i64: 128, 238>}, {pipeline_mode = #tpu.pipeline_mode<synchronous>, transform_indices = @transform_8, window_bounds = array<i64: 128, 238>}, {pipeline_mode = #tpu.pipeline_mode<synchronous>, transform_indices = @transform_9, window_bounds = array<i64: 238, 1>}, {pipeline_mode = #tpu.pipeline_mode<synchronous>, transform_indices = @transform_10, window_bounds = array<i64: 3, 128, 128>}, {pipeline_mode = #tpu.pipeline_mode<synchronous>, transform_indices = @transform_11, window_bounds = array<i64: 1, 128>}, {pipeline_mode = #tpu.pipeline_mode<synchronous>, transform_indices = @transform_12, window_bounds = array<i64: 3, 128, 128>}, {pipeline_mode = #tpu.pipeline_mode<synchronous>, transform_indices = @transform_13, window_bounds = array<i64: 1, 128>}, {pipeline_mode = #tpu.pipeline_mode<synchronous>, transform_indices = @transform_14, window_bounds = array<i64: 128, 64>}, {pipeline_mode = #tpu.pipeline_mode<synchronous>, transform_indices = @transform_15, window_bounds = array<i64: 128, 64>}, {pipeline_mode = #tpu.pipeline_mode<synchronous>, transform_indices = @transform_16, window_bounds = array<i64: 56, 126>}, {pipeline_mode = #tpu.pipeline_mode<synchronous>, transform_indices = @transform_17, window_bounds = array<i64: 56, 126>}, {pipeline_mode = #tpu.pipeline_mode<synchronous>, transform_indices = @transform_18, window_bounds = array<i64: 126, 1>}, {pipeline_mode = #tpu.pipeline_mode<synchronous>, transform_indices = @transform_19, window_bounds = array<i64: 7, 64, 128>}, {pipeline_mode = #tpu.pipeline_mode<synchronous>, transform_indices = @transform_20, window_bounds = array<i64: 1, 128>}, {transform_indices = @transform_21, window_bounds = array<i64: 8, 128>}]} {
    %c0 = arith.constant 0 : index
    %c0_0 = arith.constant 0 : index
    %0 = vector.load %arg1[%c0, %c0_0] : memref<240x128xbf16, #tpu.memory_space<vmem>>, vector<238x128xbf16>
    %c0_1 = arith.constant 0 : index
    %c0_2 = arith.constant 0 : index
    %c0_3 = arith.constant 0 : index
    %1 = vector.load %arg2[%c0_1, %c0_2, %c0_3] : memref<3x128x256xbf16, #tpu.memory_space<vmem>>, vector<1x128x256xbf16>
    %2 = vector.shape_cast %1 : vector<1x128x256xbf16> to vector<128x256xbf16>
    %cst = arith.constant dense<0.000000e+00> : vector<238x256xf32>
    %3 = tpu.matmul %0, %2, %cst {dimension_numbers = #tpu.dot_dimension_numbers<[1], [0], [0], [1], [0, 0, 1, 1], [], []>} : vector<238x128xbf16>, vector<128x256xbf16>, vector<238x256xf32> -> vector<238x256xf32>
    %c1 = arith.constant 1 : index
    %c0_4 = arith.constant 0 : index
    %4 = vector.load %arg1[%c1, %c0_4] : memref<240x128xbf16, #tpu.memory_space<vmem>>, vector<238x128xbf16>
    %c1_5 = arith.constant 1 : index
    %c0_6 = arith.constant 0 : index
    %c0_7 = arith.constant 0 : index
    %5 = vector.load %arg2[%c1_5, %c0_6, %c0_7] : memref<3x128x256xbf16, #tpu.memory_space<vmem>>, vector<1x128x256xbf16>
    %6 = vector.shape_cast %5 : vector<1x128x256xbf16> to vector<128x256xbf16>
    %cst_8 = arith.constant dense<0.000000e+00> : vector<238x256xf32>
    %7 = tpu.matmul %4, %6, %cst_8 {dimension_numbers = #tpu.dot_dimension_numbers<[1], [0], [0], [1], [0, 0, 1, 1], [], []>} : vector<238x128xbf16>, vector<128x256xbf16>, vector<238x256xf32> -> vector<238x256xf32>
    %8 = arith.addf %3, %7 : vector<238x256xf32>
    %c2 = arith.constant 2 : index
    %c0_9 = arith.constant 0 : index
    %9 = vector.load %arg1[%c2, %c0_9] : memref<240x128xbf16, #tpu.memory_space<vmem>>, vector<238x128xbf16>
    %c2_10 = arith.constant 2 : index
    %c0_11 = arith.constant 0 : index
    %c0_12 = arith.constant 0 : index
    %10 = vector.load %arg2[%c2_10, %c0_11, %c0_12] : memref<3x128x256xbf16, #tpu.memory_space<vmem>>, vector<1x128x256xbf16>
    %11 = vector.shape_cast %10 : vector<1x128x256xbf16> to vector<128x256xbf16>
    %cst_13 = arith.constant dense<0.000000e+00> : vector<238x256xf32>
    %12 = tpu.matmul %9, %11, %cst_13 {dimension_numbers = #tpu.dot_dimension_numbers<[1], [0], [0], [1], [0, 0, 1, 1], [], []>} : vector<238x128xbf16>, vector<128x256xbf16>, vector<238x256xf32> -> vector<238x256xf32>
    %13 = arith.addf %8, %12 : vector<238x256xf32>
    %c0_14 = arith.constant 0 : index
    %c0_15 = arith.constant 0 : index
    %14 = vector.load %arg3[%c0_14, %c0_15] : memref<1x256xf32, #tpu.memory_space<vmem>>, vector<1x256xf32>
    %15 = vector.broadcast %14 : vector<1x256xf32> to vector<238x256xf32>
    %16 = arith.addf %13, %15 : vector<238x256xf32>
    %cst_16 = arith.constant 0.000000e+00 : f32
    %17 = vector.broadcast %cst_16 : f32 to vector<238x256xf32>
    %18 = arith.maximumf %16, %17 : vector<238x256xf32>
    %cst_17 = arith.constant 0.000000e+00 : bf16
    %19 = vector.broadcast %cst_17 : bf16 to vector<1x256xbf16>
    %c0_18 = arith.constant 0 : index
    %c0_19 = arith.constant 0 : index
    %20 = vector.load %arg23[%c0_18, %c0_19] : memref<240x256xbf16, #tpu.memory_space<vmem>>, vector<1x256xbf16>
    tpu.vector_store %arg23[%c0_18, %c0_19], %19 {strides = array<i32>} : memref<240x256xbf16, #tpu.memory_space<vmem>>, vector<1x256xbf16>,
    %cst_20 = arith.constant 0.000000e+00 : bf16
    %21 = vector.broadcast %cst_20 : bf16 to vector<1x256xbf16>
    %c239 = arith.constant 239 : index
    %c0_21 = arith.constant 0 : index
    %22 = vector.load %arg23[%c239, %c0_21] : memref<240x256xbf16, #tpu.memory_space<vmem>>, vector<1x256xbf16>
    tpu.vector_store %arg23[%c239, %c0_21], %21 {strides = array<i32>} : memref<240x256xbf16, #tpu.memory_space<vmem>>, vector<1x256xbf16>,
    %c0_22 = arith.constant 0 : index
    %c0_23 = arith.constant 0 : index
    %23 = vector.load %arg10[%c0_22, %c0_23] : memref<238x1xf32, #tpu.memory_space<vmem>>, vector<238x1xf32>
    %24 = vector.broadcast %23 : vector<238x1xf32> to vector<238x256xf32>
    %25 = arith.mulf %18, %24 : vector<238x256xf32>
    %26 = arith.truncf %25 : vector<238x256xf32> to vector<238x256xbf16>
    %c1_24 = arith.constant 1 : index
    %c0_25 = arith.constant 0 : index
    %27 = vector.load %arg23[%c1_24, %c0_25] : memref<240x256xbf16, #tpu.memory_space<vmem>>, vector<238x256xbf16>
    tpu.vector_store %arg23[%c1_24, %c0_25], %26 {strides = array<i32>} : memref<240x256xbf16, #tpu.memory_space<vmem>>, vector<238x256xbf16>,
    %c0_26 = arith.constant 0 : index
    %c0_27 = arith.constant 0 : index
    %28 = vector.load %arg23[%c0_26, %c0_27] : memref<240x256xbf16, #tpu.memory_space<vmem>>, vector<238x256xbf16>
    %c0_28 = arith.constant 0 : index
    %c0_29 = arith.constant 0 : index
    %c0_30 = arith.constant 0 : index
    %29 = vector.load %arg4[%c0_28, %c0_29, %c0_30] : memref<3x256x256xbf16, #tpu.memory_space<vmem>>, vector<1x256x256xbf16>
    %30 = vector.shape_cast %29 : vector<1x256x256xbf16> to vector<256x256xbf16>
    %cst_31 = arith.constant dense<0.000000e+00> : vector<238x256xf32>
    %31 = tpu.matmul %28, %30, %cst_31 {dimension_numbers = #tpu.dot_dimension_numbers<[1], [0], [0], [1], [0, 0, 1, 1], [], []>} : vector<238x256xbf16>, vector<256x256xbf16>, vector<238x256xf32> -> vector<238x256xf32>
    %c1_32 = arith.constant 1 : index
    %c0_33 = arith.constant 0 : index
    %32 = vector.load %arg23[%c1_32, %c0_33] : memref<240x256xbf16, #tpu.memory_space<vmem>>, vector<238x256xbf16>
    %c1_34 = arith.constant 1 : index
    %c0_35 = arith.constant 0 : index
    %c0_36 = arith.constant 0 : index
    %33 = vector.load %arg4[%c1_34, %c0_35, %c0_36] : memref<3x256x256xbf16, #tpu.memory_space<vmem>>, vector<1x256x256xbf16>
    %34 = vector.shape_cast %33 : vector<1x256x256xbf16> to vector<256x256xbf16>
    %cst_37 = arith.constant dense<0.000000e+00> : vector<238x256xf32>
    %35 = tpu.matmul %32, %34, %cst_37 {dimension_numbers = #tpu.dot_dimension_numbers<[1], [0], [0], [1], [0, 0, 1, 1], [], []>} : vector<238x256xbf16>, vector<256x256xbf16>, vector<238x256xf32> -> vector<238x256xf32>
    %36 = arith.addf %31, %35 : vector<238x256xf32>
    %c2_38 = arith.constant 2 : index
    %c0_39 = arith.constant 0 : index
    %37 = vector.load %arg23[%c2_38, %c0_39] : memref<240x256xbf16, #tpu.memory_space<vmem>>, vector<238x256xbf16>
    %c2_40 = arith.constant 2 : index
    %c0_41 = arith.constant 0 : index
    %c0_42 = arith.constant 0 : index
    %38 = vector.load %arg4[%c2_40, %c0_41, %c0_42] : memref<3x256x256xbf16, #tpu.memory_space<vmem>>, vector<1x256x256xbf16>
    %39 = vector.shape_cast %38 : vector<1x256x256xbf16> to vector<256x256xbf16>
    %cst_43 = arith.constant dense<0.000000e+00> : vector<238x256xf32>
    %40 = tpu.matmul %37, %39, %cst_43 {dimension_numbers = #tpu.dot_dimension_numbers<[1], [0], [0], [1], [0, 0, 1, 1], [], []>} : vector<238x256xbf16>, vector<256x256xbf16>, vector<238x256xf32> -> vector<238x256xf32>
    %41 = arith.addf %36, %40 : vector<238x256xf32>
    %c0_44 = arith.constant 0 : index
    %c0_45 = arith.constant 0 : index
    %42 = vector.load %arg5[%c0_44, %c0_45] : memref<1x256xf32, #tpu.memory_space<vmem>>, vector<1x256xf32>
    %43 = vector.broadcast %42 : vector<1x256xf32> to vector<238x256xf32>
    %44 = arith.addf %41, %43 : vector<238x256xf32>
    %cst_46 = arith.constant 0.000000e+00 : f32
    %45 = vector.broadcast %cst_46 : f32 to vector<238x256xf32>
    %46 = arith.maximumf %44, %45 : vector<238x256xf32>
    %47 = arith.truncf %46 : vector<238x256xf32> to vector<238x256xbf16>
    %c0_47 = arith.constant 0 : index
    %c0_48 = arith.constant 0 : index
    %48 = vector.load %arg6[%c0_47, %c0_48] : memref<256x128xbf16, #tpu.memory_space<vmem>>, vector<256x128xbf16>
    %cst_49 = arith.constant dense<0.000000e+00> : vector<238x128xf32>
    %49 = tpu.matmul %47, %48, %cst_49 {dimension_numbers = #tpu.dot_dimension_numbers<[1], [0], [0], [1], [0, 0, 1, 1], [], []>} : vector<238x256xbf16>, vector<256x128xbf16>, vector<238x128xf32> -> vector<238x128xf32>
    %c0_50 = arith.constant 0 : index
    %c0_51 = arith.constant 0 : index
    %50 = vector.load %arg7[%c0_50, %c0_51] : memref<256x128xbf16, #tpu.memory_space<vmem>>, vector<256x128xbf16>
    %cst_52 = arith.constant dense<0.000000e+00> : vector<238x128xf32>
    %51 = tpu.matmul %47, %50, %cst_52 {dimension_numbers = #tpu.dot_dimension_numbers<[1], [0], [0], [1], [0, 0, 1, 1], [], []>} : vector<238x256xbf16>, vector<256x128xbf16>, vector<238x128xf32> -> vector<238x128xf32>
    %52 = arith.maximumf %49, %51 : vector<238x128xf32>
    %53 = arith.truncf %52 : vector<238x128xf32> to vector<238x128xbf16>
    %c0_53 = arith.constant 0 : index
    %c0_54 = arith.constant 0 : index
    %54 = vector.load %arg8[%c0_53, %c0_54] : memref<128x238xbf16, #tpu.memory_space<vmem>>, vector<128x238xbf16>
    %cst_55 = arith.constant dense<0.000000e+00> : vector<128x128xf32>
    %55 = tpu.matmul %54, %53, %cst_55 {dimension_numbers = #tpu.dot_dimension_numbers<[1], [0], [0], [1], [0, 0, 1, 1], [], []>} : vector<128x238xbf16>, vector<238x128xbf16>, vector<128x128xf32> -> vector<128x128xf32>
    %c0_56 = arith.constant 0 : index
    %c0_57 = arith.constant 0 : index
    %56 = vector.load %arg9[%c0_56, %c0_57] : memref<128x238xbf16, #tpu.memory_space<vmem>>, vector<128x238xbf16>
    %cst_58 = arith.constant dense<0.000000e+00> : vector<128x128xf32>
    %57 = tpu.matmul %56, %53, %cst_58 {dimension_numbers = #tpu.dot_dimension_numbers<[1], [0], [0], [1], [0, 0, 1, 1], [], []>} : vector<128x238xbf16>, vector<238x128xbf16>, vector<128x128xf32> -> vector<128x128xf32>
    %58 = arith.maximumf %55, %57 : vector<128x128xf32>
    %59 = arith.truncf %58 : vector<128x128xf32> to vector<128x128xbf16>
    %c0_59 = arith.constant 0 : index
    %c0_60 = arith.constant 0 : index
    %60 = vector.load %arg24[%c0_59, %c0_60] : memref<128x128xbf16, #tpu.memory_space<vmem>>, vector<128x128xbf16>
    tpu.vector_store %arg24[%c0_59, %c0_60], %59 {strides = array<i32>} : memref<128x128xbf16, #tpu.memory_space<vmem>>, vector<128x128xbf16>,
    %c0_61 = arith.constant 0 : index
    %c0_62 = arith.constant 0 : index
    %61 = vector.load %arg24[%c0_61, %c0_62] : memref<128x128xbf16, #tpu.memory_space<vmem>>, vector<126x128xbf16>
    %c0_63 = arith.constant 0 : index
    %c0_64 = arith.constant 0 : index
    %c0_65 = arith.constant 0 : index
    %62 = vector.load %arg11[%c0_63, %c0_64, %c0_65] : memref<3x128x128xbf16, #tpu.memory_space<vmem>>, vector<1x128x128xbf16>
    %63 = vector.shape_cast %62 : vector<1x128x128xbf16> to vector<128x128xbf16>
    %cst_66 = arith.constant dense<0.000000e+00> : vector<126x128xf32>
    %64 = tpu.matmul %61, %63, %cst_66 {dimension_numbers = #tpu.dot_dimension_numbers<[1], [0], [0], [1], [0, 0, 1, 1], [], []>} : vector<126x128xbf16>, vector<128x128xbf16>, vector<126x128xf32> -> vector<126x128xf32>
    %c1_67 = arith.constant 1 : index
    %c0_68 = arith.constant 0 : index
    %65 = vector.load %arg24[%c1_67, %c0_68] : memref<128x128xbf16, #tpu.memory_space<vmem>>, vector<126x128xbf16>
    %c1_69 = arith.constant 1 : index
    %c0_70 = arith.constant 0 : index
    %c0_71 = arith.constant 0 : index
    %66 = vector.load %arg11[%c1_69, %c0_70, %c0_71] : memref<3x128x128xbf16, #tpu.memory_space<vmem>>, vector<1x128x128xbf16>
    %67 = vector.shape_cast %66 : vector<1x128x128xbf16> to vector<128x128xbf16>
    %cst_72 = arith.constant dense<0.000000e+00> : vector<126x128xf32>
    %68 = tpu.matmul %65, %67, %cst_72 {dimension_numbers = #tpu.dot_dimension_numbers<[1], [0], [0], [1], [0, 0, 1, 1], [], []>} : vector<126x128xbf16>, vector<128x128xbf16>, vector<126x128xf32> -> vector<126x128xf32>
    %69 = arith.addf %64, %68 : vector<126x128xf32>
    %c2_73 = arith.constant 2 : index
    %c0_74 = arith.constant 0 : index
    %70 = vector.load %arg24[%c2_73, %c0_74] : memref<128x128xbf16, #tpu.memory_space<vmem>>, vector<126x128xbf16>
    %c2_75 = arith.constant 2 : index
    %c0_76 = arith.constant 0 : index
    %c0_77 = arith.constant 0 : index
    %71 = vector.load %arg11[%c2_75, %c0_76, %c0_77] : memref<3x128x128xbf16, #tpu.memory_space<vmem>>, vector<1x128x128xbf16>
    %72 = vector.shape_cast %71 : vector<1x128x128xbf16> to vector<128x128xbf16>
    %cst_78 = arith.constant dense<0.000000e+00> : vector<126x128xf32>
    %73 = tpu.matmul %70, %72, %cst_78 {dimension_numbers = #tpu.dot_dimension_numbers<[1], [0], [0], [1], [0, 0, 1, 1], [], []>} : vector<126x128xbf16>, vector<128x128xbf16>, vector<126x128xf32> -> vector<126x128xf32>
    %74 = arith.addf %69, %73 : vector<126x128xf32>
    %c0_79 = arith.constant 0 : index
    %c0_80 = arith.constant 0 : index
    %75 = vector.load %arg12[%c0_79, %c0_80] : memref<1x128xf32, #tpu.memory_space<vmem>>, vector<1x128xf32>
    %76 = vector.broadcast %75 : vector<1x128xf32> to vector<126x128xf32>
    %77 = arith.addf %74, %76 : vector<126x128xf32>
    %cst_81 = arith.constant 0.000000e+00 : f32
    %78 = vector.broadcast %cst_81 : f32 to vector<126x128xf32>
    %79 = arith.maximumf %77, %78 : vector<126x128xf32>
    %cst_82 = arith.constant 0.000000e+00 : bf16
    %80 = vector.broadcast %cst_82 : bf16 to vector<1x128xbf16>
    %c0_83 = arith.constant 0 : index
    %c0_84 = arith.constant 0 : index
    %81 = vector.load %arg25[%c0_83, %c0_84] : memref<128x128xbf16, #tpu.memory_space<vmem>>, vector<1x128xbf16>
    tpu.vector_store %arg25[%c0_83, %c0_84], %80 {strides = array<i32>} : memref<128x128xbf16, #tpu.memory_space<vmem>>, vector<1x128xbf16>,
    %cst_85 = arith.constant 0.000000e+00 : bf16
    %82 = vector.broadcast %cst_85 : bf16 to vector<1x128xbf16>
    %c127 = arith.constant 127 : index
    %c0_86 = arith.constant 0 : index
    %83 = vector.load %arg25[%c127, %c0_86] : memref<128x128xbf16, #tpu.memory_space<vmem>>, vector<1x128xbf16>
    tpu.vector_store %arg25[%c127, %c0_86], %82 {strides = array<i32>} : memref<128x128xbf16, #tpu.memory_space<vmem>>, vector<1x128xbf16>,
    %c0_87 = arith.constant 0 : index
    %c0_88 = arith.constant 0 : index
    %84 = vector.load %arg19[%c0_87, %c0_88] : memref<126x1xf32, #tpu.memory_space<vmem>>, vector<126x1xf32>
    %85 = vector.broadcast %84 : vector<126x1xf32> to vector<126x128xf32>
    %86 = arith.mulf %79, %85 : vector<126x128xf32>
    %87 = arith.truncf %86 : vector<126x128xf32> to vector<126x128xbf16>
    %c1_89 = arith.constant 1 : index
    %c0_90 = arith.constant 0 : index
    %88 = vector.load %arg25[%c1_89, %c0_90] : memref<128x128xbf16, #tpu.memory_space<vmem>>, vector<126x128xbf16>
    tpu.vector_store %arg25[%c1_89, %c0_90], %87 {strides = array<i32>} : memref<128x128xbf16, #tpu.memory_space<vmem>>, vector<126x128xbf16>,
    %c0_91 = arith.constant 0 : index
    %c0_92 = arith.constant 0 : index
    %89 = vector.load %arg25[%c0_91, %c0_92] : memref<128x128xbf16, #tpu.memory_space<vmem>>, vector<126x128xbf16>
    %c0_93 = arith.constant 0 : index
    %c0_94 = arith.constant 0 : index
    %c0_95 = arith.constant 0 : index
    %90 = vector.load %arg13[%c0_93, %c0_94, %c0_95] : memref<3x128x128xbf16, #tpu.memory_space<vmem>>, vector<1x128x128xbf16>
    %91 = vector.shape_cast %90 : vector<1x128x128xbf16> to vector<128x128xbf16>
    %cst_96 = arith.constant dense<0.000000e+00> : vector<126x128xf32>
    %92 = tpu.matmul %89, %91, %cst_96 {dimension_numbers = #tpu.dot_dimension_numbers<[1], [0], [0], [1], [0, 0, 1, 1], [], []>} : vector<126x128xbf16>, vector<128x128xbf16>, vector<126x128xf32> -> vector<126x128xf32>
    %c1_97 = arith.constant 1 : index
    %c0_98 = arith.constant 0 : index
    %93 = vector.load %arg25[%c1_97, %c0_98] : memref<128x128xbf16, #tpu.memory_space<vmem>>, vector<126x128xbf16>
    %c1_99 = arith.constant 1 : index
    %c0_100 = arith.constant 0 : index
    %c0_101 = arith.constant 0 : index
    %94 = vector.load %arg13[%c1_99, %c0_100, %c0_101] : memref<3x128x128xbf16, #tpu.memory_space<vmem>>, vector<1x128x128xbf16>
    %95 = vector.shape_cast %94 : vector<1x128x128xbf16> to vector<128x128xbf16>
    %cst_102 = arith.constant dense<0.000000e+00> : vector<126x128xf32>
    %96 = tpu.matmul %93, %95, %cst_102 {dimension_numbers = #tpu.dot_dimension_numbers<[1], [0], [0], [1], [0, 0, 1, 1], [], []>} : vector<126x128xbf16>, vector<128x128xbf16>, vector<126x128xf32> -> vector<126x128xf32>
    %97 = arith.addf %92, %96 : vector<126x128xf32>
    %c2_103 = arith.constant 2 : index
    %c0_104 = arith.constant 0 : index
    %98 = vector.load %arg25[%c2_103, %c0_104] : memref<128x128xbf16, #tpu.memory_space<vmem>>, vector<126x128xbf16>
    %c2_105 = arith.constant 2 : index
    %c0_106 = arith.constant 0 : index
    %c0_107 = arith.constant 0 : index
    %99 = vector.load %arg13[%c2_105, %c0_106, %c0_107] : memref<3x128x128xbf16, #tpu.memory_space<vmem>>, vector<1x128x128xbf16>
    %100 = vector.shape_cast %99 : vector<1x128x128xbf16> to vector<128x128xbf16>
    %cst_108 = arith.constant dense<0.000000e+00> : vector<126x128xf32>
    %101 = tpu.matmul %98, %100, %cst_108 {dimension_numbers = #tpu.dot_dimension_numbers<[1], [0], [0], [1], [0, 0, 1, 1], [], []>} : vector<126x128xbf16>, vector<128x128xbf16>, vector<126x128xf32> -> vector<126x128xf32>
    %102 = arith.addf %97, %101 : vector<126x128xf32>
    %c0_109 = arith.constant 0 : index
    %c0_110 = arith.constant 0 : index
    %103 = vector.load %arg14[%c0_109, %c0_110] : memref<1x128xf32, #tpu.memory_space<vmem>>, vector<1x128xf32>
    %104 = vector.broadcast %103 : vector<1x128xf32> to vector<126x128xf32>
    %105 = arith.addf %102, %104 : vector<126x128xf32>
    %cst_111 = arith.constant 0.000000e+00 : f32
    %106 = vector.broadcast %cst_111 : f32 to vector<126x128xf32>
    %107 = arith.maximumf %105, %106 : vector<126x128xf32>
    %108 = arith.truncf %107 : vector<126x128xf32> to vector<126x128xbf16>
    %c0_112 = arith.constant 0 : index
    %c0_113 = arith.constant 0 : index
    %109 = vector.load %arg15[%c0_112, %c0_113] : memref<128x64xbf16, #tpu.memory_space<vmem>>, vector<128x64xbf16>
    %cst_114 = arith.constant dense<0.000000e+00> : vector<126x64xf32>
    %110 = tpu.matmul %108, %109, %cst_114 {dimension_numbers = #tpu.dot_dimension_numbers<[1], [0], [0], [1], [0, 0, 1, 1], [], []>} : vector<126x128xbf16>, vector<128x64xbf16>, vector<126x64xf32> -> vector<126x64xf32>
    %c0_115 = arith.constant 0 : index
    %c0_116 = arith.constant 0 : index
    %111 = vector.load %arg16[%c0_115, %c0_116] : memref<128x64xbf16, #tpu.memory_space<vmem>>, vector<128x64xbf16>
    %cst_117 = arith.constant dense<0.000000e+00> : vector<126x64xf32>
    %112 = tpu.matmul %108, %111, %cst_117 {dimension_numbers = #tpu.dot_dimension_numbers<[1], [0], [0], [1], [0, 0, 1, 1], [], []>} : vector<126x128xbf16>, vector<128x64xbf16>, vector<126x64xf32> -> vector<126x64xf32>
    %113 = arith.maximumf %110, %112 : vector<126x64xf32>
    %114 = arith.truncf %113 : vector<126x64xf32> to vector<126x64xbf16>
    %c0_118 = arith.constant 0 : index
    %c0_119 = arith.constant 0 : index
    %115 = vector.load %arg17[%c0_118, %c0_119] : memref<56x126xbf16, #tpu.memory_space<vmem>>, vector<56x126xbf16>
    %cst_120 = arith.constant dense<0.000000e+00> : vector<56x64xf32>
    %116 = tpu.matmul %115, %114, %cst_120 {dimension_numbers = #tpu.dot_dimension_numbers<[1], [0], [0], [1], [0, 0, 1, 1], [], []>} : vector<56x126xbf16>, vector<126x64xbf16>, vector<56x64xf32> -> vector<56x64xf32>
    %c0_121 = arith.constant 0 : index
    %c0_122 = arith.constant 0 : index
    %117 = vector.load %arg18[%c0_121, %c0_122] : memref<56x126xbf16, #tpu.memory_space<vmem>>, vector<56x126xbf16>
    %cst_123 = arith.constant dense<0.000000e+00> : vector<56x64xf32>
    %118 = tpu.matmul %117, %114, %cst_123 {dimension_numbers = #tpu.dot_dimension_numbers<[1], [0], [0], [1], [0, 0, 1, 1], [], []>} : vector<56x126xbf16>, vector<126x64xbf16>, vector<56x64xf32> -> vector<56x64xf32>
    %119 = arith.maximumf %116, %118 : vector<56x64xf32>
    %120 = arith.truncf %119 : vector<56x64xf32> to vector<56x64xbf16>
    %121 = vector.extract_strided_slice %120 {offsets = [0, 0], sizes = [8, 64], strides = [1, 1]} : vector<56x64xbf16> to vector<8x64xbf16>
    %c0_124 = arith.constant 0 : index
    %c0_125 = arith.constant 0 : index
    %c0_126 = arith.constant 0 : index
    %122 = vector.load %arg20[%c0_124, %c0_125, %c0_126] : memref<7x64x128xbf16, #tpu.memory_space<vmem>>, vector<1x64x128xbf16>
    %123 = vector.shape_cast %122 : vector<1x64x128xbf16> to vector<64x128xbf16>
    %cst_127 = arith.constant dense<0.000000e+00> : vector<8x128xf32>
    %124 = tpu.matmul %121, %123, %cst_127 {dimension_numbers = #tpu.dot_dimension_numbers<[1], [0], [0], [1], [0, 0, 1, 1], [], []>} : vector<8x64xbf16>, vector<64x128xbf16>, vector<8x128xf32> -> vector<8x128xf32>
    %125 = vector.extract_strided_slice %120 {offsets = [8, 0], sizes = [8, 64], strides = [1, 1]} : vector<56x64xbf16> to vector<8x64xbf16>
    %c1_128 = arith.constant 1 : index
    %c0_129 = arith.constant 0 : index
    %c0_130 = arith.constant 0 : index
    %126 = vector.load %arg20[%c1_128, %c0_129, %c0_130] : memref<7x64x128xbf16, #tpu.memory_space<vmem>>, vector<1x64x128xbf16>
    %127 = vector.shape_cast %126 : vector<1x64x128xbf16> to vector<64x128xbf16>
    %cst_131 = arith.constant dense<0.000000e+00> : vector<8x128xf32>
    %128 = tpu.matmul %125, %127, %cst_131 {dimension_numbers = #tpu.dot_dimension_numbers<[1], [0], [0], [1], [0, 0, 1, 1], [], []>} : vector<8x64xbf16>, vector<64x128xbf16>, vector<8x128xf32> -> vector<8x128xf32>
    %129 = arith.addf %124, %128 : vector<8x128xf32>
    %130 = vector.extract_strided_slice %120 {offsets = [16, 0], sizes = [8, 64], strides = [1, 1]} : vector<56x64xbf16> to vector<8x64xbf16>
    %c2_132 = arith.constant 2 : index
    %c0_133 = arith.constant 0 : index
    %c0_134 = arith.constant 0 : index
    %131 = vector.load %arg20[%c2_132, %c0_133, %c0_134] : memref<7x64x128xbf16, #tpu.memory_space<vmem>>, vector<1x64x128xbf16>
    %132 = vector.shape_cast %131 : vector<1x64x128xbf16> to vector<64x128xbf16>
    %cst_135 = arith.constant dense<0.000000e+00> : vector<8x128xf32>
    %133 = tpu.matmul %130, %132, %cst_135 {dimension_numbers = #tpu.dot_dimension_numbers<[1], [0], [0], [1], [0, 0, 1, 1], [], []>} : vector<8x64xbf16>, vector<64x128xbf16>, vector<8x128xf32> -> vector<8x128xf32>
    %134 = arith.addf %129, %133 : vector<8x128xf32>
    %135 = vector.extract_strided_slice %120 {offsets = [24, 0], sizes = [8, 64], strides = [1, 1]} : vector<56x64xbf16> to vector<8x64xbf16>
    %c3 = arith.constant 3 : index
    %c0_136 = arith.constant 0 : index
    %c0_137 = arith.constant 0 : index
    %136 = vector.load %arg20[%c3, %c0_136, %c0_137] : memref<7x64x128xbf16, #tpu.memory_space<vmem>>, vector<1x64x128xbf16>
    %137 = vector.shape_cast %136 : vector<1x64x128xbf16> to vector<64x128xbf16>
    %cst_138 = arith.constant dense<0.000000e+00> : vector<8x128xf32>
    %138 = tpu.matmul %135, %137, %cst_138 {dimension_numbers = #tpu.dot_dimension_numbers<[1], [0], [0], [1], [0, 0, 1, 1], [], []>} : vector<8x64xbf16>, vector<64x128xbf16>, vector<8x128xf32> -> vector<8x128xf32>
    %139 = arith.addf %134, %138 : vector<8x128xf32>
    %140 = vector.extract_strided_slice %120 {offsets = [32, 0], sizes = [8, 64], strides = [1, 1]} : vector<56x64xbf16> to vector<8x64xbf16>
    %c4 = arith.constant 4 : index
    %c0_139 = arith.constant 0 : index
    %c0_140 = arith.constant 0 : index
    %141 = vector.load %arg20[%c4, %c0_139, %c0_140] : memref<7x64x128xbf16, #tpu.memory_space<vmem>>, vector<1x64x128xbf16>
    %142 = vector.shape_cast %141 : vector<1x64x128xbf16> to vector<64x128xbf16>
    %cst_141 = arith.constant dense<0.000000e+00> : vector<8x128xf32>
    %143 = tpu.matmul %140, %142, %cst_141 {dimension_numbers = #tpu.dot_dimension_numbers<[1], [0], [0], [1], [0, 0, 1, 1], [], []>} : vector<8x64xbf16>, vector<64x128xbf16>, vector<8x128xf32> -> vector<8x128xf32>
    %144 = arith.addf %139, %143 : vector<8x128xf32>
    %145 = vector.extract_strided_slice %120 {offsets = [40, 0], sizes = [8, 64], strides = [1, 1]} : vector<56x64xbf16> to vector<8x64xbf16>
    %c5 = arith.constant 5 : index
    %c0_142 = arith.constant 0 : index
    %c0_143 = arith.constant 0 : index
    %146 = vector.load %arg20[%c5, %c0_142, %c0_143] : memref<7x64x128xbf16, #tpu.memory_space<vmem>>, vector<1x64x128xbf16>
    %147 = vector.shape_cast %146 : vector<1x64x128xbf16> to vector<64x128xbf16>
    %cst_144 = arith.constant dense<0.000000e+00> : vector<8x128xf32>
    %148 = tpu.matmul %145, %147, %cst_144 {dimension_numbers = #tpu.dot_dimension_numbers<[1], [0], [0], [1], [0, 0, 1, 1], [], []>} : vector<8x64xbf16>, vector<64x128xbf16>, vector<8x128xf32> -> vector<8x128xf32>
    %149 = arith.addf %144, %148 : vector<8x128xf32>
    %150 = vector.extract_strided_slice %120 {offsets = [48, 0], sizes = [8, 64], strides = [1, 1]} : vector<56x64xbf16> to vector<8x64xbf16>
    %c6 = arith.constant 6 : index
    %c0_145 = arith.constant 0 : index
    %c0_146 = arith.constant 0 : index
    %151 = vector.load %arg20[%c6, %c0_145, %c0_146] : memref<7x64x128xbf16, #tpu.memory_space<vmem>>, vector<1x64x128xbf16>
    %152 = vector.shape_cast %151 : vector<1x64x128xbf16> to vector<64x128xbf16>
    %cst_147 = arith.constant dense<0.000000e+00> : vector<8x128xf32>
    %153 = tpu.matmul %150, %152, %cst_147 {dimension_numbers = #tpu.dot_dimension_numbers<[1], [0], [0], [1], [0, 0, 1, 1], [], []>} : vector<8x64xbf16>, vector<64x128xbf16>, vector<8x128xf32> -> vector<8x128xf32>
    %154 = arith.addf %149, %153 : vector<8x128xf32>
    %c0_148 = arith.constant 0 : index
    %c0_149 = arith.constant 0 : index
    %155 = vector.load %arg21[%c0_148, %c0_149] : memref<1x128xf32, #tpu.memory_space<vmem>>, vector<1x128xf32>
    %156 = vector.broadcast %155 : vector<1x128xf32> to vector<8x128xf32>
    %157 = arith.addf %154, %156 : vector<8x128xf32>
    %c0_150 = arith.constant 0 : index
    %c0_151 = arith.constant 0 : index
    %158 = vector.load %arg22[%c0_150, %c0_151] : memref<8x128xf32, #tpu.memory_space<vmem>>, vector<8x128xf32>
    tpu.vector_store %arg22[%c0_150, %c0_151], %157 {strides = array<i32>} : memref<8x128xf32, #tpu.memory_space<vmem>>, vector<8x128xf32>,
    return
  }
  func.func @transform_0(%arg0: i32) -> (i32, i32) {
    %c0_i32 = arith.constant 0 : i32
    %c0_i32_0 = arith.constant 0 : i32
    return %arg0, %c0_i32 : i32, i32
  }
  func.func @transform_1(%arg0: i32) -> (i32, i32, i32) {
    %c0_i32 = arith.constant 0 : i32
    %c0_i32_0 = arith.constant 0 : i32
    %c0_i32_1 = arith.constant 0 : i32
    %c0_i32_2 = arith.constant 0 : i32
    return %c0_i32, %c0_i32_0, %c0_i32_1 : i32, i32, i32
  }
  func.func @transform_2(%arg0: i32) -> (i32, i32) {
    %c0_i32 = arith.constant 0 : i32
    %c0_i32_0 = arith.constant 0 : i32
    %c0_i32_1 = arith.constant 0 : i32
    return %c0_i32, %c0_i32_0 : i32, i32
  }
  func.func @transform_3(%arg0: i32) -> (i32, i32, i32) {
    %c0_i32 = arith.constant 0 : i32
    %c0_i32_0 = arith.constant 0 : i32
    %c0_i32_1 = arith.constant 0 : i32
    %c0_i32_2 = arith.constant 0 : i32
    return %c0_i32, %c0_i32_0, %c0_i32_1 : i32, i32, i32
  }
  func.func @transform_4(%arg0: i32) -> (i32, i32) {
    %c0_i32 = arith.constant 0 : i32
    %c0_i32_0 = arith.constant 0 : i32
    %c0_i32_1 = arith.constant 0 : i32
    return %c0_i32, %c0_i32_0 : i32, i32
  }
  func.func @transform_5(%arg0: i32) -> (i32, i32) {
    %c0_i32 = arith.constant 0 : i32
    %c0_i32_0 = arith.constant 0 : i32
    %c0_i32_1 = arith.constant 0 : i32
    return %c0_i32, %c0_i32_0 : i32, i32
  }
  func.func @transform_6(%arg0: i32) -> (i32, i32) {
    %c0_i32 = arith.constant 0 : i32
    %c0_i32_0 = arith.constant 0 : i32
    %c0_i32_1 = arith.constant 0 : i32
    return %c0_i32, %c0_i32_0 : i32, i32
  }
  func.func @transform_7(%arg0: i32) -> (i32, i32) {
    %c0_i32 = arith.constant 0 : i32
    %c0_i32_0 = arith.constant 0 : i32
    %c0_i32_1 = arith.constant 0 : i32
    return %c0_i32, %c0_i32_0 : i32, i32
  }
  func.func @transform_8(%arg0: i32) -> (i32, i32) {
    %c0_i32 = arith.constant 0 : i32
    %c0_i32_0 = arith.constant 0 : i32
    %c0_i32_1 = arith.constant 0 : i32
    return %c0_i32, %c0_i32_0 : i32, i32
  }
  func.func @transform_9(%arg0: i32) -> (i32, i32) {
    %c0_i32 = arith.constant 0 : i32
    %c0_i32_0 = arith.constant 0 : i32
    %c0_i32_1 = arith.constant 0 : i32
    return %c0_i32, %c0_i32_0 : i32, i32
  }
  func.func @transform_10(%arg0: i32) -> (i32, i32, i32) {
    %c0_i32 = arith.constant 0 : i32
    %c0_i32_0 = arith.constant 0 : i32
    %c0_i32_1 = arith.constant 0 : i32
    %c0_i32_2 = arith.constant 0 : i32
    return %c0_i32, %c0_i32_0, %c0_i32_1 : i32, i32, i32
  }
  func.func @transform_11(%arg0: i32) -> (i32, i32) {
    %c0_i32 = arith.constant 0 : i32
    %c0_i32_0 = arith.constant 0 : i32
    %c0_i32_1 = arith.constant 0 : i32
    return %c0_i32, %c0_i32_0 : i32, i32
  }
  func.func @transform_12(%arg0: i32) -> (i32, i32, i32) {
    %c0_i32 = arith.constant 0 : i32
    %c0_i32_0 = arith.constant 0 : i32
    %c0_i32_1 = arith.constant 0 : i32
    %c0_i32_2 = arith.constant 0 : i32
    return %c0_i32, %c0_i32_0, %c0_i32_1 : i32, i32, i32
  }
  func.func @transform_13(%arg0: i32) -> (i32, i32) {
    %c0_i32 = arith.constant 0 : i32
    %c0_i32_0 = arith.constant 0 : i32
    %c0_i32_1 = arith.constant 0 : i32
    return %c0_i32, %c0_i32_0 : i32, i32
  }
  func.func @transform_14(%arg0: i32) -> (i32, i32) {
    %c0_i32 = arith.constant 0 : i32
    %c0_i32_0 = arith.constant 0 : i32
    %c0_i32_1 = arith.constant 0 : i32
    return %c0_i32, %c0_i32_0 : i32, i32
  }
  func.func @transform_15(%arg0: i32) -> (i32, i32) {
    %c0_i32 = arith.constant 0 : i32
    %c0_i32_0 = arith.constant 0 : i32
    %c0_i32_1 = arith.constant 0 : i32
    return %c0_i32, %c0_i32_0 : i32, i32
  }
  func.func @transform_16(%arg0: i32) -> (i32, i32) {
    %c0_i32 = arith.constant 0 : i32
    %c0_i32_0 = arith.constant 0 : i32
    %c0_i32_1 = arith.constant 0 : i32
    return %c0_i32, %c0_i32_0 : i32, i32
  }
  func.func @transform_17(%arg0: i32) -> (i32, i32) {
    %c0_i32 = arith.constant 0 : i32
    %c0_i32_0 = arith.constant 0 : i32
    %c0_i32_1 = arith.constant 0 : i32
    return %c0_i32, %c0_i32_0 : i32, i32
  }
  func.func @transform_18(%arg0: i32) -> (i32, i32) {
    %c0_i32 = arith.constant 0 : i32
    %c0_i32_0 = arith.constant 0 : i32
    %c0_i32_1 = arith.constant 0 : i32
    return %c0_i32, %c0_i32_0 : i32, i32
  }
  func.func @transform_19(%arg0: i32) -> (i32, i32, i32) {
    %c0_i32 = arith.constant 0 : i32
    %c0_i32_0 = arith.constant 0 : i32
    %c0_i32_1 = arith.constant 0 : i32
    %c0_i32_2 = arith.constant 0 : i32
    return %c0_i32, %c0_i32_0, %c0_i32_1 : i32, i32, i32
  }
  func.func @transform_20(%arg0: i32) -> (i32, i32) {
    %c0_i32 = arith.constant 0 : i32
    %c0_i32_0 = arith.constant 0 : i32
    %c0_i32_1 = arith.constant 0 : i32
    return %c0_i32, %c0_i32_0 : i32, i32
  }
  func.func @transform_21(%arg0: i32) -> (i32, i32) {
    %c0_i32 = arith.constant 0 : i32
    %c0_i32_0 = arith.constant 0 : i32
    return %arg0, %c0_i32 : i32, i32
  }
}

</mosaic_0001>

<llo_original>
// kernel: forward.1
$region0: #{forward.1}
  #allocation0 [shape = 'u32[]', space=smem, size = 0x4, offset = 0x4, fixed_abs, tag = 'smem constant byte address 0x4 - core index']
  #allocation1 [shape = 'u32[72,128]{1,0:T(1,128)}', space=vmem, size = 0x9000, scoped, tag = 'internal scratch']
  #allocation2 [shape = 'bf16[240,256]{1,0:T(8,128)(2,1)}', space=vmem, size = 0x1e000, scoped, tag = 'scratch operand']
  #allocation3 [shape = 'bf16[128,128]{1,0:T(8,128)(2,1)}', space=vmem, size = 0x8000, scoped, tag = 'scratch operand']
  #allocation4 [shape = 'bf16[128,128]{1,0:T(8,128)(2,1)}', space=vmem, size = 0x8000, scoped, tag = 'scratch operand']
  %s0 = inlined_call_operand.vmem [shape: bf16[240,128], index: 0, kind: input, shape index: {}]
  %s1 = inlined_call_operand.vmem [shape: bf16[3,128,256], index: 1, kind: input, shape index: {}]
  %s2 = inlined_call_operand.vmem [shape: f32[1,256], index: 2, kind: input, shape index: {}]
  %s3 = inlined_call_operand.hbm [shape: bf16[3,256,256], index: 3, kind: input, shape index: {}]
  %s4 = inlined_call_operand.vmem [shape: f32[1,256], index: 4, kind: input, shape index: {}]
  %s5 = inlined_call_operand.vmem [shape: bf16[256,128], index: 5, kind: input, shape index: {}]
  %s6 = inlined_call_operand.vmem [shape: bf16[256,128], index: 6, kind: input, shape index: {}]
  %s7 = inlined_call_operand.vmem [shape: bf16[128,238], index: 7, kind: input, shape index: {}]
  %s8 = inlined_call_operand.vmem [shape: bf16[128,238], index: 8, kind: input, shape index: {}]
  %s9 = inlined_call_operand.vmem [shape: f32[238,1], index: 9, kind: input, shape index: {}]
  %s10 = inlined_call_operand.vmem [shape: bf16[3,128,128], index: 10, kind: input, shape index: {}]
  %s11 = inlined_call_operand.vmem [shape: f32[1,128], index: 11, kind: input, shape index: {}]
  %s12 = inlined_call_operand.vmem [shape: bf16[3,128,128], index: 12, kind: input, shape index: {}]
  %s13 = inlined_call_operand.vmem [shape: f32[1,128], index: 13, kind: input, shape index: {}]
  %s14 = inlined_call_operand.vmem [shape: bf16[128,64], index: 14, kind: input, shape index: {}]
  %s15 = inlined_call_operand.vmem [shape: bf16[128,64], index: 15, kind: input, shape index: {}]
  %s16 = inlined_call_operand.vmem [shape: bf16[56,126], index: 16, kind: input, shape index: {}]
  %s17 = inlined_call_operand.vmem [shape: bf16[56,126], index: 17, kind: input, shape index: {}]
  %s18 = inlined_call_operand.vmem [shape: f32[126,1], index: 18, kind: input, shape index: {}]
  %s19 = inlined_call_operand.vmem [shape: bf16[7,64,128], index: 19, kind: input, shape index: {}]
  %s20 = inlined_call_operand.vmem [shape: f32[1,128], index: 20, kind: input, shape index: {}]
  %s21 = inlined_call_operand.vmem [shape: f32[8,128], index: 21, kind: output, shape index: {}]
  %s22 = sld [smem:[#allocation0]]
  $region98: #{forward.1} parent=0
    _
  %s24 = ssub.s32 1, %s22
  %s25 = scalar_select 0, %s24, %s22
  $region1: #{forward.1} parent=0
    #allocation5 [shape = 'u8[393216]{0}', space=vmem, size = 0x60000, scoped, tag = 'input window, operand 3, single buffered']
    #allocation6 [shape = 's32[1]{0}', space=sflag, size = 0x4, scoped, tag = 'scoped memory for forward.1']
    %26 = vsyncpa [#allocation6], 0
    // Predicated region
    $region2: #{forward.1} parent=1 // pred_check
      _
    $region3: #{forward.1} parent=1 // pred_check_branch
      %28 = sbr.rel (0) target = $region5
    $region4: #{forward.1} parent=1 // pred_region
      _
    $region5: #{forward.1} parent=1 // pred_fallthru
      _
    // Predicated region
    $region6: #{forward.1} parent=1 // pred_check
      _
    $region7: #{forward.1} parent=1 // pred_check_branch
      %30 = sbr.rel (0) target = $region9
    $region8: #{forward.1} parent=1 // pred_region
      _
    $region9: #{forward.1} parent=1 // pred_fallthru
      _
    // Predicated region
    $region10: #{forward.1} parent=1 // pred_check
      _
    $region11: #{forward.1} parent=1 // pred_check_branch
      %32 = sbr.rel (0) target = $region13
    $region12: #{forward.1} parent=1 // pred_region
      _
    $region13: #{forward.1} parent=1 // pred_fallthru
      _
    // Predicated region
    $region14: #{forward.1} parent=1 // pred_check
      _
    $region15: #{forward.1} parent=1 // pred_check_branch
      %34 = sbr.rel (0) target = $region17
    $region16: #{forward.1} parent=1 // pred_region
      %36 = vsyncadd [#allocation6], 0
      %s37 = sshll.u32 %s3, 4
      %s38 = int_to_ptr.hbm [resolvable:$true] %s37
      %s39 = sshll.u32 [#allocation5], 4
      %s40 = int_to_ptr.vmem [resolvable:$true] %s39
      %45 = dma.hbm_to_vmem [thread:$0]  %s38, 12288, %s40, [#allocation6], 128, 128, 8
    $region17: #{forward.1} parent=1 // pred_fallthru
      _
    // Predicated region
    $region18: #{forward.1} parent=1 // pred_check
      _
    $region19: #{forward.1} parent=1 // pred_check_branch
      %47 = sbr.rel (0) target = $region21
    $region20: #{forward.1} parent=1 // pred_region
      _
    $region21: #{forward.1} parent=1 // pred_fallthru
      _
    // Predicated region
    $region22: #{forward.1} parent=1 // pred_check
      _
    $region23: #{forward.1} parent=1 // pred_check_branch
      %49 = sbr.rel (0) target = $region25
    $region24: #{forward.1} parent=1 // pred_region
      _
    $region25: #{forward.1} parent=1 // pred_fallthru
      _
    // Predicated region
    $region26: #{forward.1} parent=1 // pred_check
      _
    $region27: #{forward.1} parent=1 // pred_check_branch
      %51 = sbr.rel (0) target = $region29
    $region28: #{forward.1} parent=1 // pred_region
      _
    $region29: #{forward.1} parent=1 // pred_fallthru
      _
    // Predicated region
    $region30: #{forward.1} parent=1 // pred_check
      _
    $region31: #{forward.1} parent=1 // pred_check_branch
      %53 = sbr.rel (0) target = $region33
    $region32: #{forward.1} parent=1 // pred_region
      _
    $region33: #{forward.1} parent=1 // pred_fallthru
      _
    // Predicated region
    $region34: #{forward.1} parent=1 // pred_check
      _
    $region35: #{forward.1} parent=1 // pred_check_branch
      %55 = sbr.rel (0) target = $region37
    $region36: #{forward.1} parent=1 // pred_region
      _
    $region37: #{forward.1} parent=1 // pred_fallthru
      _
    // Predicated region
    $region38: #{forward.1} parent=1 // pred_check
      _
    $region39: #{forward.1} parent=1 // pred_check_branch
      %57 = sbr.rel (0) target = $region41
    $region40: #{forward.1} parent=1 // pred_region
      _
    $region41: #{forward.1} parent=1 // pred_fallthru
      _
    // Predicated region
    $region42: #{forward.1} parent=1 // pred_check
      _
    $region43: #{forward.1} parent=1 // pred_check_branch
      %59 = sbr.rel (0) target = $region45
    $region44: #{forward.1} parent=1 // pred_region
      _
    $region45: #{forward.1} parent=1 // pred_fallthru
      _
    // Predicated region
    $region46: #{forward.1} parent=1 // pred_check
      _
    $region47: #{forward.1} parent=1 // pred_check_branch
      %61 = sbr.rel (0) target = $region49
    $region48: #{forward.1} parent=1 // pred_region
      _
    $region49: #{forward.1} parent=1 // pred_fallthru
      _
    // Predicated region
    $region50: #{forward.1} parent=1 // pred_check
      _
    $region51: #{forward.1} parent=1 // pred_check_branch
      %63 = sbr.rel (0) target = $region53
    $region52: #{forward.1} parent=1 // pred_region
      _
    $region53: #{forward.1} parent=1 // pred_fallthru
      _
    // Predicated region
    $region54: #{forward.1} parent=1 // pred_check
      _
    $region55: #{forward.1} parent=1 // pred_check_branch
      %65 = sbr.rel (0) target = $region57
    $region56: #{forward.1} parent=1 // pred_region
      _
    $region57: #{forward.1} parent=1 // pred_fallthru
      _
    // Predicated region
    $region58: #{forward.1} parent=1 // pred_check
      _
    $region59: #{forward.1} parent=1 // pred_check_branch
      %67 = sbr.rel (0) target = $region61
    $region60: #{forward.1} parent=1 // pred_region
      _
    $region61: #{forward.1} parent=1 // pred_fallthru
      _
    // Predicated region
    $region62: #{forward.1} parent=1 // pred_check
      _
    $region63: #{forward.1} parent=1 // pred_check_branch
      %69 = sbr.rel (0) target = $region65
    $region64: #{forward.1} parent=1 // pred_region
      _
    $region65: #{forward.1} parent=1 // pred_fallthru
      _
    // Predicated region
    $region66: #{forward.1} parent=1 // pred_check
      _
    $region67: #{forward.1} parent=1 // pred_check_branch
      %71 = sbr.rel (0) target = $region69
    $region68: #{forward.1} parent=1 // pred_region
      _
    $region69: #{forward.1} parent=1 // pred_fallthru
      _
    // Predicated region
    $region70: #{forward.1} parent=1 // pred_check
      _
    $region71: #{forward.1} parent=1 // pred_check_branch
      %73 = sbr.rel (0) target = $region73
    $region72: #{forward.1} parent=1 // pred_region
      _
    $region73: #{forward.1} parent=1 // pred_fallthru
      _
    // Predicated region
    $region74: #{forward.1} parent=1 // pred_check
      _
    $region75: #{forward.1} parent=1 // pred_check_branch
      %75 = sbr.rel (0) target = $region77
    $region76: #{forward.1} parent=1 // pred_region
      _
    $region77: #{forward.1} parent=1 // pred_fallthru
      _
    // Predicated region
    $region78: #{forward.1} parent=1 // pred_check
      _
    $region79: #{forward.1} parent=1 // pred_check_branch
      %77 = sbr.rel (0) target = $region81
    $region80: #{forward.1} parent=1 // pred_region
      _
    $region81: #{forward.1} parent=1 // pred_fallthru
      _
    // Predicated region
    $region82: #{forward.1} parent=1 // pred_check
      _
    $region83: #{forward.1} parent=1 // pred_check_branch
      %79 = sbr.rel (0) target = $region85
    $region84: #{forward.1} parent=1 // pred_region
      _
    $region85: #{forward.1} parent=1 // pred_fallthru
      _
    // Predicated region
    $region86: #{forward.1} parent=1 // pred_check
      _
    $region87: #{forward.1} parent=1 // pred_check_branch
      %81 = sbr.rel (0) target = $region89
    $region88: #{forward.1} parent=1 // pred_region
      %83 = dma.done [#allocation6], 12288
    $region89: #{forward.1} parent=1 // pred_fallthru
      _
    %v85 = vld [vmem:[%s0] sm:$0xf]
    %v86 = vld [vmem:[%s0 + $0x4] sm:$0xf]
    %v87 = vld [vmem:[%s0 + $0x8] sm:$0xf]
    %v88 = vld [vmem:[%s0 + $0xc] sm:$0xf]
    %v89 = vld [vmem:[%s0 + $0x10] sm:$0xf]
    %v90 = vld [vmem:[%s0 + $0x14] sm:$0xf]
    %v91 = vld [vmem:[%s0 + $0x18] sm:$0xf]
    %v92 = vld [vmem:[%s0 + $0x1c] sm:$0xf]
    %v93 = vld [vmem:[%s0 + $0x20] sm:$0xf]
    %v94 = vld [vmem:[%s0 + $0x24] sm:$0xf]
    %v95 = vld [vmem:[%s0 + $0x28] sm:$0xf]
    %v96 = vld [vmem:[%s0 + $0x2c] sm:$0xf]
    %v97 = vld [vmem:[%s0 + $0x30] sm:$0xf]
    %v98 = vld [vmem:[%s0 + $0x34] sm:$0xf]
    %v99 = vld [vmem:[%s0 + $0x38] sm:$0xf]
    %v100 = vld [vmem:[%s0 + $0x3c] sm:$0xf]
    %v101 = vld [vmem:[%s0 + $0x40] sm:$0xf]
    %v102 = vld [vmem:[%s0 + $0x44] sm:$0xf]
    %v103 = vld [vmem:[%s0 + $0x48] sm:$0xf]
    %v104 = vld [vmem:[%s0 + $0x4c] sm:$0xf]
    %v105 = vld [vmem:[%s0 + $0x50] sm:$0xf]
    %v106 = vld [vmem:[%s0 + $0x54] sm:$0xf]
    %v107 = vld [vmem:[%s0 + $0x58] sm:$0xf]
    %v108 = vld [vmem:[%s0 + $0x5c] sm:$0xf]
    %v109 = vld [vmem:[%s0 + $0x60] sm:$0xf]
    %v110 = vld [vmem:[%s0 + $0x64] sm:$0xf]
    %v111 = vld [vmem:[%s0 + $0x68] sm:$0xf]
    %v112 = vld [vmem:[%s0 + $0x6c] sm:$0xf]
    %v113 = vld [vmem:[%s0 + $0x70] sm:$0xf]
    %v114 = vld [vmem:[%s0 + $0x74] sm:$0x7]
    %v115 = vld [vmem:[%s1] sm:$0xff]
    %v116 = vld [vmem:[%s1 + $0x8] sm:$0xff]
    %v117 = vld [vmem:[%s1 + $0x10] sm:$0xff]
    %v118 = vld [vmem:[%s1 + $0x18] sm:$0xff]
    %v119 = vld [vmem:[%s1 + $0x20] sm:$0xff]
    %v120 = vld [vmem:[%s1 + $0x28] sm:$0xff]
    %v121 = vld [vmem:[%s1 + $0x30] sm:$0xff]
    %v122 = vld [vmem:[%s1 + $0x38] sm:$0xff]
    %v123 = vld [vmem:[%s1 + $0x40] sm:$0xff]
    %v124 = vld [vmem:[%s1 + $0x48] sm:$0xff]
    %v125 = vld [vmem:[%s1 + $0x50] sm:$0xff]
    %v126 = vld [vmem:[%s1 + $0x58] sm:$0xff]
    %v127 = vld [vmem:[%s1 + $0x60] sm:$0xff]
    %v128 = vld [vmem:[%s1 + $0x68] sm:$0xff]
    %v129 = vld [vmem:[%s1 + $0x70] sm:$0xff]
    %v130 = vld [vmem:[%s1 + $0x78] sm:$0xff]
    %v131 = vld [vmem:[%s0 + $0x74] sm:$0xf]
    %s132 = scalar_lea.vmem %s1, 128
    %v133 = vld [vmem:[%s132] sm:$0xff]
    %v134 = vld [vmem:[%s132 + $0x8] sm:$0xff]
    %v135 = vld [vmem:[%s132 + $0x10] sm:$0xff]
    %v136 = vld [vmem:[%s132 + $0x18] sm:$0xff]
    %v137 = vld [vmem:[%s132 + $0x20] sm:$0xff]
    %v138 = vld [vmem:[%s132 + $0x28] sm:$0xff]
    %v139 = vld [vmem:[%s132 + $0x30] sm:$0xff]
    %v140 = vld [vmem:[%s132 + $0x38] sm:$0xff]
    %v141 = vld [vmem:[%s132 + $0x40] sm:$0xff]
    %v142 = vld [vmem:[%s132 + $0x48] sm:$0xff]
    %v143 = vld [vmem:[%s132 + $0x50] sm:$0xff]
    %v144 = vld [vmem:[%s132 + $0x58] sm:$0xff]
    %v145 = vld [vmem:[%s132 + $0x60] sm:$0xff]
    %v146 = vld [vmem:[%s132 + $0x68] sm:$0xff]
    %v147 = vld [vmem:[%s132 + $0x70] sm:$0xff]
    %v148 = vld [vmem:[%s132 + $0x78] sm:$0xff]
    %v179 = vunpack.c.l.b16 %v85
    %v180 = vunpack.c.l.b16 %v86
    %v181 = vunpack.c.l.b16 %v87
    %v182 = vunpack.c.l.b16 %v88
    %v183 = vunpack.c.l.b16 %v89
    %v184 = vunpack.c.l.b16 %v90
    %v185 = vunpack.c.l.b16 %v91
    %v186 = vunpack.c.l.b16 %v92
    %v187 = vunpack.c.l.b16 %v93
    %v188 = vunpack.c.l.b16 %v94
    %v189 = vunpack.c.l.b16 %v95
    %v190 = vunpack.c.l.b16 %v96
    %v191 = vunpack.c.l.b16 %v97
    %v192 = vunpack.c.l.b16 %v98
    %v193 = vunpack.c.l.b16 %v99
    %v194 = vunpack.c.l.b16 %v100
    %v195 = vunpack.c.l.b16 %v101
    %v196 = vunpack.c.l.b16 %v102
    %v197 = vunpack.c.l.b16 %v103
    %v198 = vunpack.c.l.b16 %v104
    %v199 = vunpack.c.l.b16 %v105
    %v200 = vunpack.c.l.b16 %v106
    %v201 = vunpack.c.l.b16 %v107
    %v202 = vunpack.c.l.b16 %v108
    %v203 = vunpack.c.l.b16 %v109
    %v204 = vunpack.c.l.b16 %v110
    %v205 = vunpack.c.l.b16 %v111
    %v206 = vunpack.c.l.b16 %v112
    %v207 = vunpack.c.l.b16 %v113
    %v208 = vunpack.c.l.b16 %v131
    %v209 = vpack.c.b16 %v180, %v179
    %v210 = vpack.c.b16 %v182, %v181
    %v211 = vpack.c.b16 %v184, %v183
    %v212 = vpack.c.b16 %v186, %v185
    %v213 = vpack.c.b16 %v188, %v187
    %v214 = vpack.c.b16 %v190, %v189
    %v215 = vpack.c.b16 %v192, %v191
    %v216 = vpack.c.b16 %v194, %v193
    %v217 = vpack.c.b16 %v196, %v195
    %v218 = vpack.c.b16 %v198, %v197
    %v219 = vpack.c.b16 %v200, %v199
    %v220 = vpack.c.b16 %v202, %v201
    %v221 = vpack.c.b16 %v204, %v203
    %v222 = vpack.c.b16 %v206, %v205
    %v223 = vpack.c.b16 %v208, %v207
    %vm224 = vsmask.f32 7424
    %v226 = vshrl.u32 %v209, 16
    %v228 = vshll.u32 %v209, 16
    %v230 = vrot.slane %v228, 1
    %v231 = vor.u32 %v226, %v230
    %v233 = vshll.u32 %v210, 16
    %v235 = vrot.slane %v233, 1
    %v236 = vsel %vm224, %v231, %v235
    %v237 = vshrl.u32 %v210, 16
    %v239 = vor.u32 %v237, %v235
    %v241 = vshll.u32 %v211, 16
    %v243 = vrot.slane %v241, 1
    %v244 = vsel %vm224, %v239, %v243
    %v245 = vshrl.u32 %v211, 16
    %v247 = vor.u32 %v245, %v243
    %v249 = vshll.u32 %v212, 16
    %v251 = vrot.slane %v249, 1
    %v252 = vsel %vm224, %v247, %v251
    %v253 = vshrl.u32 %v212, 16
    %v255 = vor.u32 %v253, %v251
    %v257 = vshll.u32 %v213, 16
    %v259 = vrot.slane %v257, 1
    %v260 = vsel %vm224, %v255, %v259
    %v261 = vshrl.u32 %v213, 16
    %v263 = vor.u32 %v261, %v259
    %v265 = vshll.u32 %v214, 16
    %v267 = vrot.slane %v265, 1
    %v268 = vsel %vm224, %v263, %v267
    %v269 = vshrl.u32 %v214, 16
    %v271 = vor.u32 %v269, %v267
    %v273 = vshll.u32 %v215, 16
    %v275 = vrot.slane %v273, 1
    %v276 = vsel %vm224, %v271, %v275
    %v277 = vshrl.u32 %v215, 16
    %v279 = vor.u32 %v277, %v275
    %v281 = vshll.u32 %v216, 16
    %v283 = vrot.slane %v281, 1
    %v284 = vsel %vm224, %v279, %v283
    %v285 = vshrl.u32 %v216, 16
    %v287 = vor.u32 %v285, %v283
    %v289 = vshll.u32 %v217, 16
    %v291 = vrot.slane %v289, 1
    %v292 = vsel %vm224, %v287, %v291
    %v293 = vshrl.u32 %v217, 16
    %v295 = vor.u32 %v293, %v291
    %v297 = vshll.u32 %v218, 16
    %v299 = vrot.slane %v297, 1
    %v300 = vsel %vm224, %v295, %v299
    %v301 = vshrl.u32 %v218, 16
    %v303 = vor.u32 %v301, %v299
    %v305 = vshll.u32 %v219, 16
    %v307 = vrot.slane %v305, 1
    %v308 = vsel %vm224, %v303, %v307
    %v309 = vshrl.u32 %v219, 16
    %v311 = vor.u32 %v309, %v307
    %v313 = vshll.u32 %v220, 16
    %v315 = vrot.slane %v313, 1
    %v316 = vsel %vm224, %v311, %v315
    %v317 = vshrl.u32 %v220, 16
    %v319 = vor.u32 %v317, %v315
    %v321 = vshll.u32 %v221, 16
    %v323 = vrot.slane %v321, 1
    %v324 = vsel %vm224, %v319, %v323
    %v325 = vshrl.u32 %v221, 16
    %v327 = vor.u32 %v325, %v323
    %v329 = vshll.u32 %v222, 16
    %v331 = vrot.slane %v329, 1
    %v332 = vsel %vm224, %v327, %v331
    %v333 = vshrl.u32 %v222, 16
    %v335 = vor.u32 %v333, %v331
    %v337 = vshll.u32 %v223, 16
    %v339 = vrot.slane %v337, 1
    %v340 = vsel %vm224, %v335, %v339
    %v341 = vshrl.u32 %v223, 16
    %v343 = vor.u32 %v341, %v339
    %v375 = vunpack.c.l.b16 %v133
    %v376 = vunpack.c.h.b16 %v133
    %v377 = vunpack.c.l.b16 %v134
    %v378 = vunpack.c.h.b16 %v134
    %v379 = vunpack.c.l.b16 %v135
    %v380 = vunpack.c.h.b16 %v135
    %v381 = vunpack.c.l.b16 %v136
    %v382 = vunpack.c.h.b16 %v136
    %v383 = vunpack.c.l.b16 %v137
    %v384 = vunpack.c.h.b16 %v137
    %v385 = vunpack.c.l.b16 %v138
    %v386 = vunpack.c.h.b16 %v138
    %v387 = vunpack.c.l.b16 %v139
    %v388 = vunpack.c.h.b16 %v139
    %v389 = vunpack.c.l.b16 %v140
    %v390 = vunpack.c.h.b16 %v140
    %v391 = vunpack.c.l.b16 %v141
    %v392 = vunpack.c.h.b16 %v141
    %v393 = vunpack.c.l.b16 %v142
    %v394 = vunpack.c.h.b16 %v142
    %v395 = vunpack.c.l.b16 %v143
    %v396 = vunpack.c.h.b16 %v143
    %v397 = vunpack.c.l.b16 %v144
    %v398 = vunpack.c.h.b16 %v144
    %v399 = vunpack.c.l.b16 %v145
    %v400 = vunpack.c.h.b16 %v145
    %v401 = vunpack.c.l.b16 %v146
    %v402 = vunpack.c.h.b16 %v146
    %v403 = vunpack.c.l.b16 %v147
    %v404 = vunpack.c.h.b16 %v147
    %v405 = vunpack.c.l.b16 %v148
    %v406 = vunpack.c.h.b16 %v148
    %v407 = vpack.c.b16 %v377, %v375
    %v408 = vpack.c.b16 %v378, %v376
    %v409 = vpack.c.b16 %v381, %v379
    %v410 = vpack.c.b16 %v382, %v380
    %v411 = vpack.c.b16 %v385, %v383
    %v412 = vpack.c.b16 %v386, %v384
    %v413 = vpack.c.b16 %v389, %v387
    %v414 = vpack.c.b16 %v390, %v388
    %v415 = vpack.c.b16 %v393, %v391
    %v416 = vpack.c.b16 %v394, %v392
    %v417 = vpack.c.b16 %v397, %v395
    %v418 = vpack.c.b16 %v398, %v396
    %v419 = vpack.c.b16 %v401, %v399
    %v420 = vpack.c.b16 %v402, %v400
    %v421 = vpack.c.b16 %v405, %v403
    %v422 = vpack.c.b16 %v406, %v404
    %439 = vmatpush.bf16.msra.mxu0 %v421
    %440 = vmatpush.bf16.msra.mxu0 %v419
    %441 = vmatpush.bf16.msra.mxu0 %v417
    %442 = vmatpush.bf16.msra.mxu0 %v415
    %443 = vmatpush.bf16.msra.mxu0 %v413
    %444 = vmatpush.bf16.msra.mxu0 %v411
    %445 = vmatpush.bf16.msra.mxu0 %v409
    %446 = vmatpush.bf16.msra.mxu0 %v407
    %447 = vmatmul.bf16.gmra.mxu0 %v236
    %v448 = vpop.f32.mrf.mxu0
    %v449 = vadd.f32 0.0, %v448
    %v450 = vpop.f32.mrf.mxu0
    %v451 = vadd.f32 0.0, %v450
    %452 = vmatmul.bf16.gmra.mxu0 %v244
    %v453 = vpop.f32.mrf.mxu0
    %v454 = vadd.f32 0.0, %v453
    %v455 = vpop.f32.mrf.mxu0
    %v456 = vadd.f32 0.0, %v455
    %457 = vmatmul.bf16.gmra.mxu0 %v252
    %v458 = vpop.f32.mrf.mxu0
    %v459 = vadd.f32 0.0, %v458
    %v460 = vpop.f32.mrf.mxu0
    %v461 = vadd.f32 0.0, %v460
    %462 = vmatmul.bf16.gmra.mxu0 %v260
    %v463 = vpop.f32.mrf.mxu0
    %v464 = vadd.f32 0.0, %v463
    %v465 = vpop.f32.mrf.mxu0
    %v466 = vadd.f32 0.0, %v465
    %467 = vmatmul.bf16.gmra.mxu0 %v268
    %v468 = vpop.f32.mrf.mxu0
    %v469 = vadd.f32 0.0, %v468
    %v470 = vpop.f32.mrf.mxu0
    %v471 = vadd.f32 0.0, %v470
    %472 = vmatmul.bf16.gmra.mxu0 %v276
    %v473 = vpop.f32.mrf.mxu0
    %v474 = vadd.f32 0.0, %v473
    %v475 = vpop.f32.mrf.mxu0
    %v476 = vadd.f32 0.0, %v475
    %477 = vmatmul.bf16.gmra.mxu0 %v284
    %v478 = vpop.f32.mrf.mxu0
    %v479 = vadd.f32 0.0, %v478
    %v480 = vpop.f32.mrf.mxu0
    %v481 = vadd.f32 0.0, %v480
    %482 = vmatmul.bf16.gmra.mxu0 %v292
    %v483 = vpop.f32.mrf.mxu0
    %v484 = vadd.f32 0.0, %v483
    %v485 = vpop.f32.mrf.mxu0
    %v486 = vadd.f32 0.0, %v485
    %487 = vmatmul.bf16.gmra.mxu0 %v300
    %v488 = vpop.f32.mrf.mxu0
    %v489 = vadd.f32 0.0, %v488
    %v490 = vpop.f32.mrf.mxu0
    %v491 = vadd.f32 0.0, %v490
    %492 = vmatmul.bf16.gmra.mxu0 %v308
    %v493 = vpop.f32.mrf.mxu0
    %v494 = vadd.f32 0.0, %v493
    %v495 = vpop.f32.mrf.mxu0
    %v496 = vadd.f32 0.0, %v495
    %497 = vmatmul.bf16.gmra.mxu0 %v316
    %v498 = vpop.f32.mrf.mxu0
    %v499 = vadd.f32 0.0, %v498
    %v500 = vpop.f32.mrf.mxu0
    %v501 = vadd.f32 0.0, %v500
    %502 = vmatmul.bf16.gmra.mxu0 %v324
    %v503 = vpop.f32.mrf.mxu0
    %v504 = vadd.f32 0.0, %v503
    %v505 = vpop.f32.mrf.mxu0
    %v506 = vadd.f32 0.0, %v505
    %507 = vmatmul.bf16.gmra.mxu0 %v332
    %v508 = vpop.f32.mrf.mxu0
    %v509 = vadd.f32 0.0, %v508
    %v510 = vpop.f32.mrf.mxu0
    %v511 = vadd.f32 0.0, %v510
    %512 = vmatmul.bf16.gmra.mxu0 %v340
    %v513 = vpop.f32.mrf.mxu0
    %v514 = vadd.f32 0.0, %v513
    %v515 = vpop.f32.mrf.mxu0
    %v516 = vadd.f32 0.0, %v515
    %517 = vmatmul.bf16.gmra.mxu0 %v343
    %v518 = vpop.f32.mrf.mxu0
    %v519 = vadd.f32 0.0, %v518
    %v520 = vpop.f32.mrf.mxu0
    %v521 = vadd.f32 0.0, %v520
    %522 = vdwg.mxu0
    %523 = vmatpush.bf16.msra.mxu0 %v422
    %524 = vmatpush.bf16.msra.mxu0 %v420
    %525 = vmatpush.bf16.msra.mxu0 %v418
    %526 = vmatpush.bf16.msra.mxu0 %v416
    %527 = vmatpush.bf16.msra.mxu0 %v414
    %528 = vmatpush.bf16.msra.mxu0 %v412
    %529 = vmatpush.bf16.msra.mxu0 %v410
    %530 = vmatpush.bf16.msra.mxu0 %v408
    %531 = vmatmul.bf16.gmra.mxu0 %v236
    %v532 = vpop.f32.mrf.mxu0
    %v533 = vadd.f32 0.0, %v532
    %v534 = vpop.f32.mrf.mxu0
    %v535 = vadd.f32 0.0, %v534
    %536 = vmatmul.bf16.gmra.mxu0 %v244
    %v537 = vpop.f32.mrf.mxu0
    %v538 = vadd.f32 0.0, %v537
    %v539 = vpop.f32.mrf.mxu0
    %v540 = vadd.f32 0.0, %v539
    %541 = vmatmul.bf16.gmra.mxu0 %v252
    %v542 = vpop.f32.mrf.mxu0
    %v543 = vadd.f32 0.0, %v542
    %v544 = vpop.f32.mrf.mxu0
    %v545 = vadd.f32 0.0, %v544
    %546 = vmatmul.bf16.gmra.mxu0 %v260
    %v547 = vpop.f32.mrf.mxu0
    %v548 = vadd.f32 0.0, %v547
    %v549 = vpop.f32.mrf.mxu0
    %v550 = vadd.f32 0.0, %v549
    %551 = vmatmul.bf16.gmra.mxu0 %v268
    %v552 = vpop.f32.mrf.mxu0
    %v553 = vadd.f32 0.0, %v552
    %v554 = vpop.f32.mrf.mxu0
    %v555 = vadd.f32 0.0, %v554
    %556 = vmatmul.bf16.gmra.mxu0 %v276
    %v557 = vpop.f32.mrf.mxu0
    %v558 = vadd.f32 0.0, %v557
    %v559 = vpop.f32.mrf.mxu0
    %v560 = vadd.f32 0.0, %v559
    %561 = vmatmul.bf16.gmra.mxu0 %v284
    %v562 = vpop.f32.mrf.mxu0
    %v563 = vadd.f32 0.0, %v562
    %v564 = vpop.f32.mrf.mxu0
    %v565 = vadd.f32 0.0, %v564
    %566 = vmatmul.bf16.gmra.mxu0 %v292
    %v567 = vpop.f32.mrf.mxu0
    %v568 = vadd.f32 0.0, %v567
    %v569 = vpop.f32.mrf.mxu0
    %v570 = vadd.f32 0.0, %v569
    %571 = vmatmul.bf16.gmra.mxu0 %v300
    %v572 = vpop.f32.mrf.mxu0
    %v573 = vadd.f32 0.0, %v572
    %v574 = vpop.f32.mrf.mxu0
    %v575 = vadd.f32 0.0, %v574
    %576 = vmatmul.bf16.gmra.mxu0 %v308
    %v577 = vpop.f32.mrf.mxu0
    %v578 = vadd.f32 0.0, %v577
    %v579 = vpop.f32.mrf.mxu0
    %v580 = vadd.f32 0.0, %v579
    %581 = vmatmul.bf16.gmra.mxu0 %v316
    %v582 = vpop.f32.mrf.mxu0
    %v583 = vadd.f32 0.0, %v582
    %v584 = vpop.f32.mrf.mxu0
    %v585 = vadd.f32 0.0, %v584
    %586 = vmatmul.bf16.gmra.mxu0 %v324
    %v587 = vpop.f32.mrf.mxu0
    %v588 = vadd.f32 0.0, %v587
    %v589 = vpop.f32.mrf.mxu0
    %v590 = vadd.f32 0.0, %v589
    %591 = vmatmul.bf16.gmra.mxu0 %v332
    %v592 = vpop.f32.mrf.mxu0
    %v593 = vadd.f32 0.0, %v592
    %v594 = vpop.f32.mrf.mxu0
    %v595 = vadd.f32 0.0, %v594
    %596 = vmatmul.bf16.gmra.mxu0 %v340
    %v597 = vpop.f32.mrf.mxu0
    %v598 = vadd.f32 0.0, %v597
    %v599 = vpop.f32.mrf.mxu0
    %v600 = vadd.f32 0.0, %v599
    %601 = vmatmul.bf16.gmra.mxu0 %v343
    %v602 = vpop.f32.mrf.mxu0
    %v603 = vadd.f32 0.0, %v602
    %v604 = vpop.f32.mrf.mxu0
    %v605 = vadd.f32 0.0, %v604
    %606 = vdwg.mxu0
    %v608 = vunpack.c.l.b16 %v114
    %v609 = vpack.c.b16 %v608, %v207
    %v641 = vunpack.c.l.b16 %v115
    %v642 = vunpack.c.h.b16 %v115
    %v643 = vunpack.c.l.b16 %v116
    %v644 = vunpack.c.h.b16 %v116
    %v645 = vunpack.c.l.b16 %v117
    %v646 = vunpack.c.h.b16 %v117
    %v647 = vunpack.c.l.b16 %v118
    %v648 = vunpack.c.h.b16 %v118
    %v649 = vunpack.c.l.b16 %v119
    %v650 = vunpack.c.h.b16 %v119
    %v651 = vunpack.c.l.b16 %v120
    %v652 = vunpack.c.h.b16 %v120
    %v653 = vunpack.c.l.b16 %v121
    %v654 = vunpack.c.h.b16 %v121
    %v655 = vunpack.c.l.b16 %v122
    %v656 = vunpack.c.h.b16 %v122
    %v657 = vunpack.c.l.b16 %v123
    %v658 = vunpack.c.h.b16 %v123
    %v659 = vunpack.c.l.b16 %v124
    %v660 = vunpack.c.h.b16 %v124
    %v661 = vunpack.c.l.b16 %v125
    %v662 = vunpack.c.h.b16 %v125
    %v663 = vunpack.c.l.b16 %v126
    %v664 = vunpack.c.h.b16 %v126
    %v665 = vunpack.c.l.b16 %v127
    %v666 = vunpack.c.h.b16 %v127
    %v667 = vunpack.c.l.b16 %v128
    %v668 = vunpack.c.h.b16 %v128
    %v669 = vunpack.c.l.b16 %v129
    %v670 = vunpack.c.h.b16 %v129
    %v671 = vunpack.c.l.b16 %v130
    %v672 = vunpack.c.h.b16 %v130
    %v673 = vpack.c.b16 %v643, %v641
    %v674 = vpack.c.b16 %v644, %v642
    %v675 = vpack.c.b16 %v647, %v645
    %v676 = vpack.c.b16 %v648, %v646
    %v677 = vpack.c.b16 %v651, %v649
    %v678 = vpack.c.b16 %v652, %v650
    %v679 = vpack.c.b16 %v655, %v653
    %v680 = vpack.c.b16 %v656, %v654
    %v681 = vpack.c.b16 %v659, %v657
    %v682 = vpack.c.b16 %v660, %v658
    %v683 = vpack.c.b16 %v663, %v661
    %v684 = vpack.c.b16 %v664, %v662
    %v685 = vpack.c.b16 %v667, %v665
    %v686 = vpack.c.b16 %v668, %v666
    %v687 = vpack.c.b16 %v671, %v669
    %v688 = vpack.c.b16 %v672, %v670
    %705 = vmatpush.bf16.msra.mxu0 %v687
    %706 = vmatpush.bf16.msra.mxu0 %v685
    %707 = vmatpush.bf16.msra.mxu0 %v683
    %708 = vmatpush.bf16.msra.mxu0 %v681
    %709 = vmatpush.bf16.msra.mxu0 %v679
    %710 = vmatpush.bf16.msra.mxu0 %v677
    %711 = vmatpush.bf16.msra.mxu0 %v675
    %712 = vmatpush.bf16.msra.mxu0 %v673
    %713 = vmatmul.bf16.gmra.mxu0 %v209
    %v714 = vpop.f32.mrf.mxu0
    %v715 = vadd.f32 %v449, %v714
    %v716 = vpop.f32.mrf.mxu0
    %v717 = vadd.f32 %v451, %v716
    %718 = vmatmul.bf16.gmra.mxu0 %v210
    %v719 = vpop.f32.mrf.mxu0
    %v720 = vadd.f32 %v454, %v719
    %v721 = vpop.f32.mrf.mxu0
    %v722 = vadd.f32 %v456, %v721
    %723 = vmatmul.bf16.gmra.mxu0 %v211
    %v724 = vpop.f32.mrf.mxu0
    %v725 = vadd.f32 %v459, %v724
    %v726 = vpop.f32.mrf.mxu0
    %v727 = vadd.f32 %v461, %v726
    %728 = vmatmul.bf16.gmra.mxu0 %v212
    %v729 = vpop.f32.mrf.mxu0
    %v730 = vadd.f32 %v464, %v729
    %v731 = vpop.f32.mrf.mxu0
    %v732 = vadd.f32 %v466, %v731
    %733 = vmatmul.bf16.gmra.mxu0 %v213
    %v734 = vpop.f32.mrf.mxu0
    %v735 = vadd.f32 %v469, %v734
    %v736 = vpop.f32.mrf.mxu0
    %v737 = vadd.f32 %v471, %v736
    %738 = vmatmul.bf16.gmra.mxu0 %v214
    %v739 = vpop.f32.mrf.mxu0
    %v740 = vadd.f32 %v474, %v739
    %v741 = vpop.f32.mrf.mxu0
    %v742 = vadd.f32 %v476, %v741
    %743 = vmatmul.bf16.gmra.mxu0 %v215
    %v744 = vpop.f32.mrf.mxu0
    %v745 = vadd.f32 %v479, %v744
    %v746 = vpop.f32.mrf.mxu0
    %v747 = vadd.f32 %v481, %v746
    %748 = vmatmul.bf16.gmra.mxu0 %v216
    %v749 = vpop.f32.mrf.mxu0
    %v750 = vadd.f32 %v484, %v749
    %v751 = vpop.f32.mrf.mxu0
    %v752 = vadd.f32 %v486, %v751
    %753 = vmatmul.bf16.gmra.mxu0 %v217
    %v754 = vpop.f32.mrf.mxu0
    %v755 = vadd.f32 %v489, %v754
    %v756 = vpop.f32.mrf.mxu0
    %v757 = vadd.f32 %v491, %v756
    %758 = vmatmul.bf16.gmra.mxu0 %v218
    %v759 = vpop.f32.mrf.mxu0
    %v760 = vadd.f32 %v494, %v759
    %v761 = vpop.f32.mrf.mxu0
    %v762 = vadd.f32 %v496, %v761
    %763 = vmatmul.bf16.gmra.mxu0 %v219
    %v764 = vpop.f32.mrf.mxu0
    %v765 = vadd.f32 %v499, %v764
    %v766 = vpop.f32.mrf.mxu0
    %v767 = vadd.f32 %v501, %v766
    %768 = vmatmul.bf16.gmra.mxu0 %v220
    %v769 = vpop.f32.mrf.mxu0
    %v770 = vadd.f32 %v504, %v769
    %v771 = vpop.f32.mrf.mxu0
    %v772 = vadd.f32 %v506, %v771
    %773 = vmatmul.bf16.gmra.mxu0 %v221
    %v774 = vpop.f32.mrf.mxu0
    %v775 = vadd.f32 %v509, %v774
    %v776 = vpop.f32.mrf.mxu0
    %v777 = vadd.f32 %v511, %v776
    %778 = vmatmul.bf16.gmra.mxu0 %v222
    %v779 = vpop.f32.mrf.mxu0
    %v780 = vadd.f32 %v514, %v779
    %v781 = vpop.f32.mrf.mxu0
    %v782 = vadd.f32 %v516, %v781
    %783 = vmatmul.bf16.gmra.mxu0 %v609
    %v784 = vpop.f32.mrf.mxu0
    %v785 = vadd.f32 %v519, %v784
    %v786 = vpop.f32.mrf.mxu0
    %v787 = vadd.f32 %v521, %v786
    %788 = vdwg.mxu0
    %789 = vmatpush.bf16.msra.mxu0 %v688
    %790 = vmatpush.bf16.msra.mxu0 %v686
    %791 = vmatpush.bf16.msra.mxu0 %v684
    %792 = vmatpush.bf16.msra.mxu0 %v682
    %793 = vmatpush.bf16.msra.mxu0 %v680
    %794 = vmatpush.bf16.msra.mxu0 %v678
    %795 = vmatpush.bf16.msra.mxu0 %v676
    %796 = vmatpush.bf16.msra.mxu0 %v674
    %797 = vmatmul.bf16.gmra.mxu0 %v209
    %v798 = vpop.f32.mrf.mxu0
    %v799 = vadd.f32 %v533, %v798
    %v800 = vpop.f32.mrf.mxu0
    %v801 = vadd.f32 %v535, %v800
    %802 = vmatmul.bf16.gmra.mxu0 %v210
    %v803 = vpop.f32.mrf.mxu0
    %v804 = vadd.f32 %v538, %v803
    %v805 = vpop.f32.mrf.mxu0
    %v806 = vadd.f32 %v540, %v805
    %807 = vmatmul.bf16.gmra.mxu0 %v211
    %v808 = vpop.f32.mrf.mxu0
    %v809 = vadd.f32 %v543, %v808
    %v810 = vpop.f32.mrf.mxu0
    %v811 = vadd.f32 %v545, %v810
    %812 = vmatmul.bf16.gmra.mxu0 %v212
    %v813 = vpop.f32.mrf.mxu0
    %v814 = vadd.f32 %v548, %v813
    %v815 = vpop.f32.mrf.mxu0
    %v816 = vadd.f32 %v550, %v815
    %817 = vmatmul.bf16.gmra.mxu0 %v213
    %v818 = vpop.f32.mrf.mxu0
    %v819 = vadd.f32 %v553, %v818
    %v820 = vpop.f32.mrf.mxu0
    %v821 = vadd.f32 %v555, %v820
    %822 = vmatmul.bf16.gmra.mxu0 %v214
    %v823 = vpop.f32.mrf.mxu0
    %v824 = vadd.f32 %v558, %v823
    %v825 = vpop.f32.mrf.mxu0
    %v826 = vadd.f32 %v560, %v825
    %827 = vmatmul.bf16.gmra.mxu0 %v215
    %v828 = vpop.f32.mrf.mxu0
    %v829 = vadd.f32 %v563, %v828
    %v830 = vpop.f32.mrf.mxu0
    %v831 = vadd.f32 %v565, %v830
    %832 = vmatmul.bf16.gmra.mxu0 %v216
    %v833 = vpop.f32.mrf.mxu0
    %v834 = vadd.f32 %v568, %v833
    %v835 = vpop.f32.mrf.mxu0
    %v836 = vadd.f32 %v570, %v835
    %837 = vmatmul.bf16.gmra.mxu0 %v217
    %v838 = vpop.f32.mrf.mxu0
    %v839 = vadd.f32 %v573, %v838
    %v840 = vpop.f32.mrf.mxu0
    %v841 = vadd.f32 %v575, %v840
    %842 = vmatmul.bf16.gmra.mxu0 %v218
    %v843 = vpop.f32.mrf.mxu0
    %v844 = vadd.f32 %v578, %v843
    %v845 = vpop.f32.mrf.mxu0
    %v846 = vadd.f32 %v580, %v845
    %847 = vmatmul.bf16.gmra.mxu0 %v219
    %v848 = vpop.f32.mrf.mxu0
    %v849 = vadd.f32 %v583, %v848
    %v850 = vpop.f32.mrf.mxu0
    %v851 = vadd.f32 %v585, %v850
    %852 = vmatmul.bf16.gmra.mxu0 %v220
    %v853 = vpop.f32.mrf.mxu0
    %v854 = vadd.f32 %v588, %v853
    %v855 = vpop.f32.mrf.mxu0
    %v856 = vadd.f32 %v590, %v855
    %857 = vmatmul.bf16.gmra.mxu0 %v221
    %v858 = vpop.f32.mrf.mxu0
    %v859 = vadd.f32 %v593, %v858
    %v860 = vpop.f32.mrf.mxu0
    %v861 = vadd.f32 %v595, %v860
    %862 = vmatmul.bf16.gmra.mxu0 %v222
    %v863 = vpop.f32.mrf.mxu0
    %v864 = vadd.f32 %v598, %v863
    %v865 = vpop.f32.mrf.mxu0
    %v866 = vadd.f32 %v600, %v865
    %867 = vmatmul.bf16.gmra.mxu0 %v609
    %v868 = vpop.f32.mrf.mxu0
    %v869 = vadd.f32 %v603, %v868
    %v870 = vpop.f32.mrf.mxu0
    %v871 = vadd.f32 %v605, %v870
    %872 = vdwg.mxu0
    %v873 = vld [vmem:[%s0] sm:$0xe]
    %s874 = scalar_lea.vmem %s1, 256
    %v875 = vld [vmem:[%s874] sm:$0xff]
    %v876 = vld [vmem:[%s874 + $0x8] sm:$0xff]
    %v877 = vld [vmem:[%s874 + $0x10] sm:$0xff]
    %v878 = vld [vmem:[%s874 + $0x18] sm:$0xff]
    %v879 = vld [vmem:[%s874 + $0x20] sm:$0xff]
    %v880 = vld [vmem:[%s874 + $0x28] sm:$0xff]
    %v881 = vld [vmem:[%s874 + $0x30] sm:$0xff]
    %v882 = vld [vmem:[%s874 + $0x38] sm:$0xff]
    %v883 = vld [vmem:[%s874 + $0x40] sm:$0xff]
    %v884 = vld [vmem:[%s874 + $0x48] sm:$0xff]
    %v885 = vld [vmem:[%s874 + $0x50] sm:$0xff]
    %v886 = vld [vmem:[%s874 + $0x58] sm:$0xff]
    %v887 = vld [vmem:[%s874 + $0x60] sm:$0xff]
    %v888 = vld [vmem:[%s874 + $0x68] sm:$0xff]
    %v889 = vld [vmem:[%s874 + $0x70] sm:$0xff]
    %v890 = vld [vmem:[%s874 + $0x78] sm:$0xff]
    %v892 = vunpack.c.l.b16 %v873
    %v893 = vpack.c.b16 %v180, %v892
    %vm894 = vcmask 1046528
    %v895 = vrot.slane %v893, 1
    %v896 = vrot.slane %v210, 1
    %v897 = vsel %vm894, %v895, %v896
    %v898 = vrot.slane %v211, 1
    %v899 = vsel %vm894, %v896, %v898
    %v900 = vrot.slane %v212, 1
    %v901 = vsel %vm894, %v898, %v900
    %v902 = vrot.slane %v213, 1
    %v903 = vsel %vm894, %v900, %v902
    %v904 = vrot.slane %v214, 1
    %v905 = vsel %vm894, %v902, %v904
    %v906 = vrot.slane %v215, 1
    %v907 = vsel %vm894, %v904, %v906
    %v908 = vrot.slane %v216, 1
    %v909 = vsel %vm894, %v906, %v908
    %v910 = vrot.slane %v217, 1
    %v911 = vsel %vm894, %v908, %v910
    %v912 = vrot.slane %v218, 1
    %v913 = vsel %vm894, %v910, %v912
    %v914 = vrot.slane %v219, 1
    %v915 = vsel %vm894, %v912, %v914
    %v916 = vrot.slane %v220, 1
    %v917 = vsel %vm894, %v914, %v916
    %v918 = vrot.slane %v221, 1
    %v919 = vsel %vm894, %v916, %v918
    %v920 = vrot.slane %v222, 1
    %v921 = vsel %vm894, %v918, %v920
    %v922 = vrot.slane %v223, 1
    %v923 = vsel %vm894, %v920, %v922
    %v955 = vunpack.c.l.b16 %v875
    %v956 = vunpack.c.h.b16 %v875
    %v957 = vunpack.c.l.b16 %v876
    %v958 = vunpack.c.h.b16 %v876
    %v959 = vunpack.c.l.b16 %v877
    %v960 = vunpack.c.h.b16 %v877
    %v961 = vunpack.c.l.b16 %v878
    %v962 = vunpack.c.h.b16 %v878
    %v963 = vunpack.c.l.b16 %v879
    %v964 = vunpack.c.h.b16 %v879
    %v965 = vunpack.c.l.b16 %v880
    %v966 = vunpack.c.h.b16 %v880
    %v967 = vunpack.c.l.b16 %v881
    %v968 = vunpack.c.h.b16 %v881
    %v969 = vunpack.c.l.b16 %v882
    %v970 = vunpack.c.h.b16 %v882
    %v971 = vunpack.c.l.b16 %v883
    %v972 = vunpack.c.h.b16 %v883
    %v973 = vunpack.c.l.b16 %v884
    %v974 = vunpack.c.h.b16 %v884
    %v975 = vunpack.c.l.b16 %v885
    %v976 = vunpack.c.h.b16 %v885
    %v977 = vunpack.c.l.b16 %v886
    %v978 = vunpack.c.h.b16 %v886
    %v979 = vunpack.c.l.b16 %v887
    %v980 = vunpack.c.h.b16 %v887
    %v981 = vunpack.c.l.b16 %v888
    %v982 = vunpack.c.h.b16 %v888
    %v983 = vunpack.c.l.b16 %v889
    %v984 = vunpack.c.h.b16 %v889
    %v985 = vunpack.c.l.b16 %v890
    %v986 = vunpack.c.h.b16 %v890
    %v987 = vpack.c.b16 %v957, %v955
    %v988 = vpack.c.b16 %v958, %v956
    %v989 = vpack.c.b16 %v961, %v959
    %v990 = vpack.c.b16 %v962, %v960
    %v991 = vpack.c.b16 %v965, %v963
    %v992 = vpack.c.b16 %v966, %v964
    %v993 = vpack.c.b16 %v969, %v967
    %v994 = vpack.c.b16 %v970, %v968
    %v995 = vpack.c.b16 %v973, %v971
    %v996 = vpack.c.b16 %v974, %v972
    %v997 = vpack.c.b16 %v977, %v975
    %v998 = vpack.c.b16 %v978, %v976
    %v999 = vpack.c.b16 %v981, %v979
    %v1000 = vpack.c.b16 %v982, %v980
    %v1001 = vpack.c.b16 %v985, %v983
    %v1002 = vpack.c.b16 %v986, %v984
    %1019 = vmatpush.bf16.msra.mxu0 %v1001
    %1020 = vmatpush.bf16.msra.mxu0 %v999
    %1021 = vmatpush.bf16.msra.mxu0 %v997
    %1022 = vmatpush.bf16.msra.mxu0 %v995
    %1023 = vmatpush.bf16.msra.mxu0 %v993
    %1024 = vmatpush.bf16.msra.mxu0 %v991
    %1025 = vmatpush.bf16.msra.mxu0 %v989
    %1026 = vmatpush.bf16.msra.mxu0 %v987
    %1027 = vmatmul.bf16.gmra.mxu0 %v897
    %v1028 = vpop.f32.mrf.mxu0
    %v1029 = vadd.f32 0.0, %v1028
    %v1030 = vpop.f32.mrf.mxu0
    %v1031 = vadd.f32 0.0, %v1030
    %1032 = vmatmul.bf16.gmra.mxu0 %v899
    %v1033 = vpop.f32.mrf.mxu0
    %v1034 = vadd.f32 0.0, %v1033
    %v1035 = vpop.f32.mrf.mxu0
    %v1036 = vadd.f32 0.0, %v1035
    %1037 = vmatmul.bf16.gmra.mxu0 %v901
    %v1038 = vpop.f32.mrf.mxu0
    %v1039 = vadd.f32 0.0, %v1038
    %v1040 = vpop.f32.mrf.mxu0
    %v1041 = vadd.f32 0.0, %v1040
    %1042 = vmatmul.bf16.gmra.mxu0 %v903
    %v1043 = vpop.f32.mrf.mxu0
    %v1044 = vadd.f32 0.0, %v1043
    %v1045 = vpop.f32.mrf.mxu0
    %v1046 = vadd.f32 0.0, %v1045
    %1047 = vmatmul.bf16.gmra.mxu0 %v905
    %v1048 = vpop.f32.mrf.mxu0
    %v1049 = vadd.f32 0.0, %v1048
    %v1050 = vpop.f32.mrf.mxu0
    %v1051 = vadd.f32 0.0, %v1050
    %1052 = vmatmul.bf16.gmra.mxu0 %v907
    %v1053 = vpop.f32.mrf.mxu0
    %v1054 = vadd.f32 0.0, %v1053
    %v1055 = vpop.f32.mrf.mxu0
    %v1056 = vadd.f32 0.0, %v1055
    %1057 = vmatmul.bf16.gmra.mxu0 %v909
    %v1058 = vpop.f32.mrf.mxu0
    %v1059 = vadd.f32 0.0, %v1058
    %v1060 = vpop.f32.mrf.mxu0
    %v1061 = vadd.f32 0.0, %v1060
    %1062 = vmatmul.bf16.gmra.mxu0 %v911
    %v1063 = vpop.f32.mrf.mxu0
    %v1064 = vadd.f32 0.0, %v1063
    %v1065 = vpop.f32.mrf.mxu0
    %v1066 = vadd.f32 0.0, %v1065
    %1067 = vmatmul.bf16.gmra.mxu0 %v913
    %v1068 = vpop.f32.mrf.mxu0
    %v1069 = vadd.f32 0.0, %v1068
    %v1070 = vpop.f32.mrf.mxu0
    %v1071 = vadd.f32 0.0, %v1070
    %1072 = vmatmul.bf16.gmra.mxu0 %v915
    %v1073 = vpop.f32.mrf.mxu0
    %v1074 = vadd.f32 0.0, %v1073
    %v1075 = vpop.f32.mrf.mxu0
    %v1076 = vadd.f32 0.0, %v1075
    %1077 = vmatmul.bf16.gmra.mxu0 %v917
    %v1078 = vpop.f32.mrf.mxu0
    %v1079 = vadd.f32 0.0, %v1078
    %v1080 = vpop.f32.mrf.mxu0
    %v1081 = vadd.f32 0.0, %v1080
    %1082 = vmatmul.bf16.gmra.mxu0 %v919
    %v1083 = vpop.f32.mrf.mxu0
    %v1084 = vadd.f32 0.0, %v1083
    %v1085 = vpop.f32.mrf.mxu0
    %v1086 = vadd.f32 0.0, %v1085
    %1087 = vmatmul.bf16.gmra.mxu0 %v921
    %v1088 = vpop.f32.mrf.mxu0
    %v1089 = vadd.f32 0.0, %v1088
    %v1090 = vpop.f32.mrf.mxu0
    %v1091 = vadd.f32 0.0, %v1090
    %1092 = vmatmul.bf16.gmra.mxu0 %v923
    %v1093 = vpop.f32.mrf.mxu0
    %v1094 = vadd.f32 0.0, %v1093
    %v1095 = vpop.f32.mrf.mxu0
    %v1096 = vadd.f32 0.0, %v1095
    %1097 = vmatmul.bf16.gmra.mxu0 %v922
    %v1098 = vpop.f32.mrf.mxu0
    %v1099 = vadd.f32 0.0, %v1098
    %v1100 = vpop.f32.mrf.mxu0
    %v1101 = vadd.f32 0.0, %v1100
    %1102 = vdwg.mxu0
    %1103 = vmatpush.bf16.msra.mxu0 %v1002
    %1104 = vmatpush.bf16.msra.mxu0 %v1000
    %1105 = vmatpush.bf16.msra.mxu0 %v998
    %1106 = vmatpush.bf16.msra.mxu0 %v996
    %1107 = vmatpush.bf16.msra.mxu0 %v994
    %1108 = vmatpush.bf16.msra.mxu0 %v992
    %1109 = vmatpush.bf16.msra.mxu0 %v990
    %1110 = vmatpush.bf16.msra.mxu0 %v988
    %1111 = vmatmul.bf16.gmra.mxu0 %v897
    %v1112 = vpop.f32.mrf.mxu0
    %v1113 = vadd.f32 0.0, %v1112
    %v1114 = vpop.f32.mrf.mxu0
    %v1115 = vadd.f32 0.0, %v1114
    %1116 = vmatmul.bf16.gmra.mxu0 %v899
    %v1117 = vpop.f32.mrf.mxu0
    %v1118 = vadd.f32 0.0, %v1117
    %v1119 = vpop.f32.mrf.mxu0
    %v1120 = vadd.f32 0.0, %v1119
    %1121 = vmatmul.bf16.gmra.mxu0 %v901
    %v1122 = vpop.f32.mrf.mxu0
    %v1123 = vadd.f32 0.0, %v1122
    %v1124 = vpop.f32.mrf.mxu0
    %v1125 = vadd.f32 0.0, %v1124
    %1126 = vmatmul.bf16.gmra.mxu0 %v903
    %v1127 = vpop.f32.mrf.mxu0
    %v1128 = vadd.f32 0.0, %v1127
    %v1129 = vpop.f32.mrf.mxu0
    %v1130 = vadd.f32 0.0, %v1129
    %1131 = vmatmul.bf16.gmra.mxu0 %v905
    %v1132 = vpop.f32.mrf.mxu0
    %v1133 = vadd.f32 0.0, %v1132
    %v1134 = vpop.f32.mrf.mxu0
    %v1135 = vadd.f32 0.0, %v1134
    %1136 = vmatmul.bf16.gmra.mxu0 %v907
    %v1137 = vpop.f32.mrf.mxu0
    %v1138 = vadd.f32 0.0, %v1137
    %v1139 = vpop.f32.mrf.mxu0
    %v1140 = vadd.f32 0.0, %v1139
    %1141 = vmatmul.bf16.gmra.mxu0 %v909
    %v1142 = vpop.f32.mrf.mxu0
    %v1143 = vadd.f32 0.0, %v1142
    %v1144 = vpop.f32.mrf.mxu0
    %v1145 = vadd.f32 0.0, %v1144
    %1146 = vmatmul.bf16.gmra.mxu0 %v911
    %v1147 = vpop.f32.mrf.mxu0
    %v1148 = vadd.f32 0.0, %v1147
    %v1149 = vpop.f32.mrf.mxu0
    %v1150 = vadd.f32 0.0, %v1149
    %1151 = vmatmul.bf16.gmra.mxu0 %v913
    %v1152 = vpop.f32.mrf.mxu0
    %v1153 = vadd.f32 0.0, %v1152
    %v1154 = vpop.f32.mrf.mxu0
    %v1155 = vadd.f32 0.0, %v1154
    %1156 = vmatmul.bf16.gmra.mxu0 %v915
    %v1157 = vpop.f32.mrf.mxu0
    %v1158 = vadd.f32 0.0, %v1157
    %v1159 = vpop.f32.mrf.mxu0
    %v1160 = vadd.f32 0.0, %v1159
    %1161 = vmatmul.bf16.gmra.mxu0 %v917
    %v1162 = vpop.f32.mrf.mxu0
    %v1163 = vadd.f32 0.0, %v1162
    %v1164 = vpop.f32.mrf.mxu0
    %v1165 = vadd.f32 0.0, %v1164
    %1166 = vmatmul.bf16.gmra.mxu0 %v919
    %v1167 = vpop.f32.mrf.mxu0
    %v1168 = vadd.f32 0.0, %v1167
    %v1169 = vpop.f32.mrf.mxu0
    %v1170 = vadd.f32 0.0, %v1169
    %1171 = vmatmul.bf16.gmra.mxu0 %v921
    %v1172 = vpop.f32.mrf.mxu0
    %v1173 = vadd.f32 0.0, %v1172
    %v1174 = vpop.f32.mrf.mxu0
    %v1175 = vadd.f32 0.0, %v1174
    %1176 = vmatmul.bf16.gmra.mxu0 %v923
    %v1177 = vpop.f32.mrf.mxu0
    %v1178 = vadd.f32 0.0, %v1177
    %v1179 = vpop.f32.mrf.mxu0
    %v1180 = vadd.f32 0.0, %v1179
    %1181 = vmatmul.bf16.gmra.mxu0 %v922
    %v1182 = vpop.f32.mrf.mxu0
    %v1183 = vadd.f32 0.0, %v1182
    %v1184 = vpop.f32.mrf.mxu0
    %v1185 = vadd.f32 0.0, %v1184
    %1186 = vdwg.mxu0
    %v1187 = vadd.f32 %v715, %v1029
    %v1188 = vadd.f32 %v799, %v1113
    %v1189 = vadd.f32 %v717, %v1031
    %v1190 = vadd.f32 %v801, %v1115
    %v1191 = vadd.f32 %v720, %v1034
    %v1192 = vadd.f32 %v804, %v1118
    %v1193 = vadd.f32 %v722, %v1036
    %v1194 = vadd.f32 %v806, %v1120
    %v1195 = vadd.f32 %v725, %v1039
    %v1196 = vadd.f32 %v809, %v1123
    %v1197 = vadd.f32 %v727, %v1041
    %v1198 = vadd.f32 %v811, %v1125
    %v1199 = vadd.f32 %v730, %v1044
    %v1200 = vadd.f32 %v814, %v1128
    %v1201 = vadd.f32 %v732, %v1046
    %v1202 = vadd.f32 %v816, %v1130
    %v1203 = vadd.f32 %v735, %v1049
    %v1204 = vadd.f32 %v819, %v1133
    %v1205 = vadd.f32 %v737, %v1051
    %v1206 = vadd.f32 %v821, %v1135
    %v1207 = vadd.f32 %v740, %v1054
    %v1208 = vadd.f32 %v824, %v1138
    %v1209 = vadd.f32 %v742, %v1056
    %v1210 = vadd.f32 %v826, %v1140
    %v1211 = vadd.f32 %v745, %v1059
    %v1212 = vadd.f32 %v829, %v1143
    %v1213 = vadd.f32 %v747, %v1061
    %v1214 = vadd.f32 %v831, %v1145
    %v1215 = vadd.f32 %v750, %v1064
    %v1216 = vadd.f32 %v834, %v1148
    %v1217 = vadd.f32 %v752, %v1066
    %v1218 = vadd.f32 %v836, %v1150
    %v1219 = vadd.f32 %v755, %v1069
    %v1220 = vadd.f32 %v839, %v1153
    %v1221 = vadd.f32 %v757, %v1071
    %v1222 = vadd.f32 %v841, %v1155
    %v1223 = vadd.f32 %v760, %v1074
    %v1224 = vadd.f32 %v844, %v1158
    %v1225 = vadd.f32 %v762, %v1076
    %v1226 = vadd.f32 %v846, %v1160
    %v1227 = vadd.f32 %v765, %v1079
    %v1228 = vadd.f32 %v849, %v1163
    %v1229 = vadd.f32 %v767, %v1081
    %v1230 = vadd.f32 %v851, %v1165
    %v1231 = vadd.f32 %v770, %v1084
    %v1232 = vadd.f32 %v854, %v1168
    %v1233 = vadd.f32 %v772, %v1086
    %v1234 = vadd.f32 %v856, %v1170
    %v1235 = vadd.f32 %v775, %v1089
    %v1236 = vadd.f32 %v859, %v1173
    %v1237 = vadd.f32 %v777, %v1091
    %v1238 = vadd.f32 %v861, %v1175
    %v1239 = vadd.f32 %v780, %v1094
    %v1240 = vadd.f32 %v864, %v1178
    %v1241 = vadd.f32 %v782, %v1096
    %v1242 = vadd.f32 %v866, %v1180
    %v1243 = vadd.f32 %v785, %v1099
    %v1244 = vadd.f32 %v869, %v1183
    %v1245 = vadd.f32 %v787, %v1101
    %v1246 = vadd.f32 %v871, %v1185
    %v1247 = vld [vmem:[%s2] sm:$0x3]
    %v1249 = vperm.slane %v1247, 0
    %v1250 = vperm.slane %v1247, 1
    %v1253 = vadd.f32 %v1187, %v1249
    %v1254 = vadd.f32 %v1188, %v1250
    %v1255 = vadd.f32 %v1189, %v1249
    %v1256 = vadd.f32 %v1190, %v1250
    %v1257 = vadd.f32 %v1191, %v1249
    %v1258 = vadd.f32 %v1192, %v1250
    %v1259 = vadd.f32 %v1193, %v1249
    %v1260 = vadd.f32 %v1194, %v1250
    %v1261 = vadd.f32 %v1195, %v1249
    %v1262 = vadd.f32 %v1196, %v1250
    %v1263 = vadd.f32 %v1197, %v1249
    %v1264 = vadd.f32 %v1198, %v1250
    %v1265 = vadd.f32 %v1199, %v1249
    %v1266 = vadd.f32 %v1200, %v1250
    %v1267 = vadd.f32 %v1201, %v1249
    %v1268 = vadd.f32 %v1202, %v1250
    %v1269 = vadd.f32 %v1203, %v1249
    %v1270 = vadd.f32 %v1204, %v1250
    %v1271 = vadd.f32 %v1205, %v1249
    %v1272 = vadd.f32 %v1206, %v1250
    %v1273 = vadd.f32 %v1207, %v1249
    %v1274 = vadd.f32 %v1208, %v1250
    %v1275 = vadd.f32 %v1209, %v1249
    %v1276 = vadd.f32 %v1210, %v1250
    %v1277 = vadd.f32 %v1211, %v1249
    %v1278 = vadd.f32 %v1212, %v1250
    %v1279 = vadd.f32 %v1213, %v1249
    %v1280 = vadd.f32 %v1214, %v1250
    %v1281 = vadd.f32 %v1215, %v1249
    %v1282 = vadd.f32 %v1216, %v1250
    %v1283 = vadd.f32 %v1217, %v1249
    %v1284 = vadd.f32 %v1218, %v1250
    %v1285 = vadd.f32 %v1219, %v1249
    %v1286 = vadd.f32 %v1220, %v1250
    %v1287 = vadd.f32 %v1221, %v1249
    %v1288 = vadd.f32 %v1222, %v1250
    %v1289 = vadd.f32 %v1223, %v1249
    %v1290 = vadd.f32 %v1224, %v1250
    %v1291 = vadd.f32 %v1225, %v1249
    %v1292 = vadd.f32 %v1226, %v1250
    %v1293 = vadd.f32 %v1227, %v1249
    %v1294 = vadd.f32 %v1228, %v1250
    %v1295 = vadd.f32 %v1229, %v1249
    %v1296 = vadd.f32 %v1230, %v1250
    %v1297 = vadd.f32 %v1231, %v1249
    %v1298 = vadd.f32 %v1232, %v1250
    %v1299 = vadd.f32 %v1233, %v1249
    %v1300 = vadd.f32 %v1234, %v1250
    %v1301 = vadd.f32 %v1235, %v1249
    %v1302 = vadd.f32 %v1236, %v1250
    %v1303 = vadd.f32 %v1237, %v1249
    %v1304 = vadd.f32 %v1238, %v1250
    %v1305 = vadd.f32 %v1239, %v1249
    %v1306 = vadd.f32 %v1240, %v1250
    %v1307 = vadd.f32 %v1241, %v1249
    %v1308 = vadd.f32 %v1242, %v1250
    %v1309 = vadd.f32 %v1243, %v1249
    %v1310 = vadd.f32 %v1244, %v1250
    %v1311 = vadd.f32 %v1245, %v1249
    %v1312 = vadd.f32 %v1246, %v1250
    %v1313 = vmax.f32 %v1253, 0.0
    %v1314 = vmax.f32 %v1254, 0.0
    %v1315 = vmax.f32 %v1255, 0.0
    %v1316 = vmax.f32 %v1256, 0.0
    %v1317 = vmax.f32 %v1257, 0.0
    %v1318 = vmax.f32 %v1258, 0.0
    %v1319 = vmax.f32 %v1259, 0.0
    %v1320 = vmax.f32 %v1260, 0.0
    %v1321 = vmax.f32 %v1261, 0.0
    %v1322 = vmax.f32 %v1262, 0.0
    %v1323 = vmax.f32 %v1263, 0.0
    %v1324 = vmax.f32 %v1264, 0.0
    %v1325 = vmax.f32 %v1265, 0.0
    %v1326 = vmax.f32 %v1266, 0.0
    %v1327 = vmax.f32 %v1267, 0.0
    %v1328 = vmax.f32 %v1268, 0.0
    %v1329 = vmax.f32 %v1269, 0.0
    %v1330 = vmax.f32 %v1270, 0.0
    %v1331 = vmax.f32 %v1271, 0.0
    %v1332 = vmax.f32 %v1272, 0.0
    %v1333 = vmax.f32 %v1273, 0.0
    %v1334 = vmax.f32 %v1274, 0.0
    %v1335 = vmax.f32 %v1275, 0.0
    %v1336 = vmax.f32 %v1276, 0.0
    %v1337 = vmax.f32 %v1277, 0.0
    %v1338 = vmax.f32 %v1278, 0.0
    %v1339 = vmax.f32 %v1279, 0.0
    %v1340 = vmax.f32 %v1280, 0.0
    %v1341 = vmax.f32 %v1281, 0.0
    %v1342 = vmax.f32 %v1282, 0.0
    %v1343 = vmax.f32 %v1283, 0.0
    %v1344 = vmax.f32 %v1284, 0.0
    %v1345 = vmax.f32 %v1285, 0.0
    %v1346 = vmax.f32 %v1286, 0.0
    %v1347 = vmax.f32 %v1287, 0.0
    %v1348 = vmax.f32 %v1288, 0.0
    %v1349 = vmax.f32 %v1289, 0.0
    %v1350 = vmax.f32 %v1290, 0.0
    %v1351 = vmax.f32 %v1291, 0.0
    %v1352 = vmax.f32 %v1292, 0.0
    %v1353 = vmax.f32 %v1293, 0.0
    %v1354 = vmax.f32 %v1294, 0.0
    %v1355 = vmax.f32 %v1295, 0.0
    %v1356 = vmax.f32 %v1296, 0.0
    %v1357 = vmax.f32 %v1297, 0.0
    %v1358 = vmax.f32 %v1298, 0.0
    %v1359 = vmax.f32 %v1299, 0.0
    %v1360 = vmax.f32 %v1300, 0.0
    %v1361 = vmax.f32 %v1301, 0.0
    %v1362 = vmax.f32 %v1302, 0.0
    %v1363 = vmax.f32 %v1303, 0.0
    %v1364 = vmax.f32 %v1304, 0.0
    %v1365 = vmax.f32 %v1305, 0.0
    %v1366 = vmax.f32 %v1306, 0.0
    %v1367 = vmax.f32 %v1307, 0.0
    %v1368 = vmax.f32 %v1308, 0.0
    %v1369 = vmax.f32 %v1309, 0.0
    %v1370 = vmax.f32 %v1310, 0.0
    %v1371 = vmax.f32 %v1311, 0.0
    %v1372 = vmax.f32 %v1312, 0.0
    %vm1373 = vcmask 1040384
    %vm1374 = vsmask.f32 256
    %vm1375 = vmand %vm1373, %vm1374
    %vm1376 = vcmask 1044484
    %vm1377 = vsmask.f32 4352
    %vm1378 = vmand %vm1376, %vm1377
    %vm1379 = vmor %vm1378, %vm1375
    %v1380 = vld [vmem:[#allocation2] sm:$0x11]
    %v1381 = vsel %vm1379, 0, %v1380
    %1382 = vst [vmem:[#allocation2] sm:$0x11] %v1381
    %vm1383 = vcmask 1043459
    %vm1384 = vsmask.f32 7950
    %vm1385 = vmand %vm1383, %vm1384
    %vm1386 = vcmask 1047559
    %vm1387 = vsmask.f32 7966
    %vm1388 = vmand %vm1386, %vm1387
    %vm1389 = vmor %vm1388, %vm1385
    %v1390 = vld [vmem:[#allocation2 + $0xe8] sm:$0x88]
    %v1391 = vsel %vm1389, 0, %v1390
    %1392 = vst [vmem:[#allocation2 + $0xe8] sm:$0x88] %v1391
    %v1393 = vld [vmem:[%s9] sm:$0xff]
    %v1394 = vld [vmem:[%s9 + $0x8] sm:$0xff]
    %v1395 = vld [vmem:[%s9 + $0x10] sm:$0xff]
    %v1396 = vld [vmem:[%s9 + $0x18] sm:$0xff]
    %v1397 = vld [vmem:[%s9 + $0x20] sm:$0xff]
    %v1398 = vld [vmem:[%s9 + $0x28] sm:$0xff]
    %v1399 = vld [vmem:[%s9 + $0x30] sm:$0xff]
    %v1400 = vld [vmem:[%s9 + $0x38] sm:$0xff]
    %v1401 = vld [vmem:[%s9 + $0x40] sm:$0xff]
    %v1402 = vld [vmem:[%s9 + $0x48] sm:$0xff]
    %v1403 = vld [vmem:[%s9 + $0x50] sm:$0xff]
    %v1404 = vld [vmem:[%s9 + $0x58] sm:$0xff]
    %v1405 = vld [vmem:[%s9 + $0x60] sm:$0xff]
    %v1406 = vld [vmem:[%s9 + $0x68] sm:$0xff]
    %v1407 = vld [vmem:[%s9 + $0x70] sm:$0xff]
    %v1408 = vld [vmem:[%s9 + $0x78] sm:$0xff]
    %v1409 = vld [vmem:[%s9 + $0x80] sm:$0xff]
    %v1410 = vld [vmem:[%s9 + $0x88] sm:$0xff]
    %v1411 = vld [vmem:[%s9 + $0x90] sm:$0xff]
    %v1412 = vld [vmem:[%s9 + $0x98] sm:$0xff]
    %v1413 = vld [vmem:[%s9 + $0xa0] sm:$0xff]
    %v1414 = vld [vmem:[%s9 + $0xa8] sm:$0xff]
    %v1415 = vld [vmem:[%s9 + $0xb0] sm:$0xff]
    %v1416 = vld [vmem:[%s9 + $0xb8] sm:$0xff]
    %v1417 = vld [vmem:[%s9 + $0xc0] sm:$0xff]
    %v1418 = vld [vmem:[%s9 + $0xc8] sm:$0xff]
    %v1419 = vld [vmem:[%s9 + $0xd0] sm:$0xff]
    %v1420 = vld [vmem:[%s9 + $0xd8] sm:$0xff]
    %v1421 = vld [vmem:[%s9 + $0xe0] sm:$0xff]
    %v1422 = vld [vmem:[%s9 + $0xe8] sm:$0x3f]
    %1424 = vset.pattern.permute.xlu0 0
    %1425 = vperm.xlu0 %1424, %v1393
    %v1426 = vpop.permute.xlu0 %1425
    %1429 = vset.pattern.permute.xlu0 0
    %1430 = vperm.xlu0 %1429, %v1394
    %v1431 = vpop.permute.xlu0 %1430
    %1434 = vset.pattern.permute.xlu0 0
    %1435 = vperm.xlu0 %1434, %v1395
    %v1436 = vpop.permute.xlu0 %1435
    %1439 = vset.pattern.permute.xlu0 0
    %1440 = vperm.xlu0 %1439, %v1396
    %v1441 = vpop.permute.xlu0 %1440
    %1444 = vset.pattern.permute.xlu0 0
    %1445 = vperm.xlu0 %1444, %v1397
    %v1446 = vpop.permute.xlu0 %1445
    %1449 = vset.pattern.permute.xlu0 0
    %1450 = vperm.xlu0 %1449, %v1398
    %v1451 = vpop.permute.xlu0 %1450
    %1454 = vset.pattern.permute.xlu0 0
    %1455 = vperm.xlu0 %1454, %v1399
    %v1456 = vpop.permute.xlu0 %1455
    %1459 = vset.pattern.permute.xlu0 0
    %1460 = vperm.xlu0 %1459, %v1400
    %v1461 = vpop.permute.xlu0 %1460
    %1464 = vset.pattern.permute.xlu0 0
    %1465 = vperm.xlu0 %1464, %v1401
    %v1466 = vpop.permute.xlu0 %1465
    %1469 = vset.pattern.permute.xlu0 0
    %1470 = vperm.xlu0 %1469, %v1402
    %v1471 = vpop.permute.xlu0 %1470
    %1474 = vset.pattern.permute.xlu0 0
    %1475 = vperm.xlu0 %1474, %v1403
    %v1476 = vpop.permute.xlu0 %1475
    %1479 = vset.pattern.permute.xlu0 0
    %1480 = vperm.xlu0 %1479, %v1404
    %v1481 = vpop.permute.xlu0 %1480
    %1484 = vset.pattern.permute.xlu0 0
    %1485 = vperm.xlu0 %1484, %v1405
    %v1486 = vpop.permute.xlu0 %1485
    %1489 = vset.pattern.permute.xlu0 0
    %1490 = vperm.xlu0 %1489, %v1406
    %v1491 = vpop.permute.xlu0 %1490
    %1494 = vset.pattern.permute.xlu0 0
    %1495 = vperm.xlu0 %1494, %v1407
    %v1496 = vpop.permute.xlu0 %1495
    %1499 = vset.pattern.permute.xlu0 0
    %1500 = vperm.xlu0 %1499, %v1408
    %v1501 = vpop.permute.xlu0 %1500
    %1504 = vset.pattern.permute.xlu0 0
    %1505 = vperm.xlu0 %1504, %v1409
    %v1506 = vpop.permute.xlu0 %1505
    %1509 = vset.pattern.permute.xlu0 0
    %1510 = vperm.xlu0 %1509, %v1410
    %v1511 = vpop.permute.xlu0 %1510
    %1514 = vset.pattern.permute.xlu0 0
    %1515 = vperm.xlu0 %1514, %v1411
    %v1516 = vpop.permute.xlu0 %1515
    %1519 = vset.pattern.permute.xlu0 0
    %1520 = vperm.xlu0 %1519, %v1412
    %v1521 = vpop.permute.xlu0 %1520
    %1524 = vset.pattern.permute.xlu0 0
    %1525 = vperm.xlu0 %1524, %v1413
    %v1526 = vpop.permute.xlu0 %1525
    %1529 = vset.pattern.permute.xlu0 0
    %1530 = vperm.xlu0 %1529, %v1414
    %v1531 = vpop.permute.xlu0 %1530
    %1534 = vset.pattern.permute.xlu0 0
    %1535 = vperm.xlu0 %1534, %v1415
    %v1536 = vpop.permute.xlu0 %1535
    %1539 = vset.pattern.permute.xlu0 0
    %1540 = vperm.xlu0 %1539, %v1416
    %v1541 = vpop.permute.xlu0 %1540
    %1544 = vset.pattern.permute.xlu0 0
    %1545 = vperm.xlu0 %1544, %v1417
    %v1546 = vpop.permute.xlu0 %1545
    %1549 = vset.pattern.permute.xlu0 0
    %1550 = vperm.xlu0 %1549, %v1418
    %v1551 = vpop.permute.xlu0 %1550
    %1554 = vset.pattern.permute.xlu0 0
    %1555 = vperm.xlu0 %1554, %v1419
    %v1556 = vpop.permute.xlu0 %1555
    %1559 = vset.pattern.permute.xlu0 0
    %1560 = vperm.xlu0 %1559, %v1420
    %v1561 = vpop.permute.xlu0 %1560
    %1564 = vset.pattern.permute.xlu0 0
    %1565 = vperm.xlu0 %1564, %v1421
    %v1566 = vpop.permute.xlu0 %1565
    %1569 = vset.pattern.permute.xlu0 0
    %1570 = vperm.xlu0 %1569, %v1422
    %v1571 = vpop.permute.xlu0 %1570
    %v1573 = vmul.f32 %v1313, %v1426
    %v1574 = vmul.f32 %v1314, %v1426
    %v1575 = vmul.f32 %v1315, %v1431
    %v1576 = vmul.f32 %v1316, %v1431
    %v1577 = vmul.f32 %v1317, %v1436
    %v1578 = vmul.f32 %v1318, %v1436
    %v1579 = vmul.f32 %v1319, %v1441
    %v1580 = vmul.f32 %v1320, %v1441
    %v1581 = vmul.f32 %v1321, %v1446
    %v1582 = vmul.f32 %v1322, %v1446
    %v1583 = vmul.f32 %v1323, %v1451
    %v1584 = vmul.f32 %v1324, %v1451
    %v1585 = vmul.f32 %v1325, %v1456
    %v1586 = vmul.f32 %v1326, %v1456
    %v1587 = vmul.f32 %v1327, %v1461
    %v1588 = vmul.f32 %v1328, %v1461
    %v1589 = vmul.f32 %v1329, %v1466
    %v1590 = vmul.f32 %v1330, %v1466
    %v1591 = vmul.f32 %v1331, %v1471
    %v1592 = vmul.f32 %v1332, %v1471
    %v1593 = vmul.f32 %v1333, %v1476
    %v1594 = vmul.f32 %v1334, %v1476
    %v1595 = vmul.f32 %v1335, %v1481
    %v1596 = vmul.f32 %v1336, %v1481
    %v1597 = vmul.f32 %v1337, %v1486
    %v1598 = vmul.f32 %v1338, %v1486
    %v1599 = vmul.f32 %v1339, %v1491
    %v1600 = vmul.f32 %v1340, %v1491
    %v1601 = vmul.f32 %v1341, %v1496
    %v1602 = vmul.f32 %v1342, %v1496
    %v1603 = vmul.f32 %v1343, %v1501
    %v1604 = vmul.f32 %v1344, %v1501
    %v1605 = vmul.f32 %v1345, %v1506
    %v1606 = vmul.f32 %v1346, %v1506
    %v1607 = vmul.f32 %v1347, %v1511
    %v1608 = vmul.f32 %v1348, %v1511
    %v1609 = vmul.f32 %v1349, %v1516
    %v1610 = vmul.f32 %v1350, %v1516
    %v1611 = vmul.f32 %v1351, %v1521
    %v1612 = vmul.f32 %v1352, %v1521
    %v1613 = vmul.f32 %v1353, %v1526
    %v1614 = vmul.f32 %v1354, %v1526
    %v1615 = vmul.f32 %v1355, %v1531
    %v1616 = vmul.f32 %v1356, %v1531
    %v1617 = vmul.f32 %v1357, %v1536
    %v1618 = vmul.f32 %v1358, %v1536
    %v1619 = vmul.f32 %v1359, %v1541
    %v1620 = vmul.f32 %v1360, %v1541
    %v1621 = vmul.f32 %v1361, %v1546
    %v1622 = vmul.f32 %v1362, %v1546
    %v1623 = vmul.f32 %v1363, %v1551
    %v1624 = vmul.f32 %v1364, %v1551
    %v1625 = vmul.f32 %v1365, %v1556
    %v1626 = vmul.f32 %v1366, %v1556
    %v1627 = vmul.f32 %v1367, %v1561
    %v1628 = vmul.f32 %v1368, %v1561
    %v1629 = vmul.f32 %v1369, %v1566
    %v1630 = vmul.f32 %v1370, %v1566
    %v1631 = vmul.f32 %v1371, %v1571
    %v1632 = vmul.f32 %v1372, %v1571
    %v1633 = vpack.c.bf16 %v1574, %v1573
    %v1634 = vpack.c.bf16 %v1576, %v1575
    %v1635 = vpack.c.bf16 %v1578, %v1577
    %v1636 = vpack.c.bf16 %v1580, %v1579
    %v1637 = vpack.c.bf16 %v1582, %v1581
    %v1638 = vpack.c.bf16 %v1584, %v1583
    %v1639 = vpack.c.bf16 %v1586, %v1585
    %v1640 = vpack.c.bf16 %v1588, %v1587
    %v1641 = vpack.c.bf16 %v1590, %v1589
    %v1642 = vpack.c.bf16 %v1592, %v1591
    %v1643 = vpack.c.bf16 %v1594, %v1593
    %v1644 = vpack.c.bf16 %v1596, %v1595
    %v1645 = vpack.c.bf16 %v1598, %v1597
    %v1646 = vpack.c.bf16 %v1600, %v1599
    %v1647 = vpack.c.bf16 %v1602, %v1601
    %v1648 = vpack.c.bf16 %v1604, %v1603
    %v1649 = vpack.c.bf16 %v1606, %v1605
    %v1650 = vpack.c.bf16 %v1608, %v1607
    %v1651 = vpack.c.bf16 %v1610, %v1609
    %v1652 = vpack.c.bf16 %v1612, %v1611
    %v1653 = vpack.c.bf16 %v1614, %v1613
    %v1654 = vpack.c.bf16 %v1616, %v1615
    %v1655 = vpack.c.bf16 %v1618, %v1617
    %v1656 = vpack.c.bf16 %v1620, %v1619
    %v1657 = vpack.c.bf16 %v1622, %v1621
    %v1658 = vpack.c.bf16 %v1624, %v1623
    %v1659 = vpack.c.bf16 %v1626, %v1625
    %v1660 = vpack.c.bf16 %v1628, %v1627
    %v1661 = vpack.c.bf16 %v1630, %v1629
    %v1662 = vpack.c.bf16 %v1632, %v1631
    %vm1663 = vsmask.f32 4368
    %vm1664 = vmor %vm1374, %vm1663
    %v1666 = vshrl.u32 %v1633, 16
    %v1668 = vrot.slane %v1666, 7
    %v1669 = vshll.u32 %v1633, 16
    %v1671 = vor.u32 %v1668, %v1669
    %v1672 = vrot.slane %v1668, 4
    %v1674 = vshrl.u32 %v1634, 16
    %v1676 = vrot.slane %v1674, 7
    %v1677 = vshll.u32 %v1634, 16
    %v1679 = vor.u32 %v1676, %v1677
    %v1680 = vsel %vm1664, %v1672, %v1679
    %v1681 = vrot.slane %v1676, 4
    %v1683 = vshrl.u32 %v1635, 16
    %v1685 = vrot.slane %v1683, 7
    %v1686 = vshll.u32 %v1635, 16
    %v1688 = vor.u32 %v1685, %v1686
    %v1689 = vsel %vm1664, %v1681, %v1688
    %v1690 = vrot.slane %v1685, 4
    %v1692 = vshrl.u32 %v1636, 16
    %v1694 = vrot.slane %v1692, 7
    %v1695 = vshll.u32 %v1636, 16
    %v1697 = vor.u32 %v1694, %v1695
    %v1698 = vsel %vm1664, %v1690, %v1697
    %v1699 = vrot.slane %v1694, 4
    %v1701 = vshrl.u32 %v1637, 16
    %v1703 = vrot.slane %v1701, 7
    %v1704 = vshll.u32 %v1637, 16
    %v1706 = vor.u32 %v1703, %v1704
    %v1707 = vsel %vm1664, %v1699, %v1706
    %v1708 = vrot.slane %v1703, 4
    %v1710 = vshrl.u32 %v1638, 16
    %v1712 = vrot.slane %v1710, 7
    %v1713 = vshll.u32 %v1638, 16
    %v1715 = vor.u32 %v1712, %v1713
    %v1716 = vsel %vm1664, %v1708, %v1715
    %v1717 = vrot.slane %v1712, 4
    %v1719 = vshrl.u32 %v1639, 16
    %v1721 = vrot.slane %v1719, 7
    %v1722 = vshll.u32 %v1639, 16
    %v1724 = vor.u32 %v1721, %v1722
    %v1725 = vsel %vm1664, %v1717, %v1724
    %v1726 = vrot.slane %v1721, 4
    %v1728 = vshrl.u32 %v1640, 16
    %v1730 = vrot.slane %v1728, 7
    %v1731 = vshll.u32 %v1640, 16
    %v1733 = vor.u32 %v1730, %v1731
    %v1734 = vsel %vm1664, %v1726, %v1733
    %v1735 = vrot.slane %v1730, 4
    %v1737 = vshrl.u32 %v1641, 16
    %v1739 = vrot.slane %v1737, 7
    %v1740 = vshll.u32 %v1641, 16
    %v1742 = vor.u32 %v1739, %v1740
    %v1743 = vsel %vm1664, %v1735, %v1742
    %v1744 = vrot.slane %v1739, 4
    %v1746 = vshrl.u32 %v1642, 16
    %v1748 = vrot.slane %v1746, 7
    %v1749 = vshll.u32 %v1642, 16
    %v1751 = vor.u32 %v1748, %v1749
    %v1752 = vsel %vm1664, %v1744, %v1751
    %v1753 = vrot.slane %v1748, 4
    %v1755 = vshrl.u32 %v1643, 16
    %v1757 = vrot.slane %v1755, 7
    %v1758 = vshll.u32 %v1643, 16
    %v1760 = vor.u32 %v1757, %v1758
    %v1761 = vsel %vm1664, %v1753, %v1760
    %v1762 = vrot.slane %v1757, 4
    %v1764 = vshrl.u32 %v1644, 16
    %v1766 = vrot.slane %v1764, 7
    %v1767 = vshll.u32 %v1644, 16
    %v1769 = vor.u32 %v1766, %v1767
    %v1770 = vsel %vm1664, %v1762, %v1769
    %v1771 = vrot.slane %v1766, 4
    %v1773 = vshrl.u32 %v1645, 16
    %v1775 = vrot.slane %v1773, 7
    %v1776 = vshll.u32 %v1645, 16
    %v1778 = vor.u32 %v1775, %v1776
    %v1779 = vsel %vm1664, %v1771, %v1778
    %v1780 = vrot.slane %v1775, 4
    %v1782 = vshrl.u32 %v1646, 16
    %v1784 = vrot.slane %v1782, 7
    %v1785 = vshll.u32 %v1646, 16
    %v1787 = vor.u32 %v1784, %v1785
    %v1788 = vsel %vm1664, %v1780, %v1787
    %v1789 = vrot.slane %v1784, 4
    %v1791 = vshrl.u32 %v1647, 16
    %v1793 = vrot.slane %v1791, 7
    %v1794 = vshll.u32 %v1647, 16
    %v1796 = vor.u32 %v1793, %v1794
    %v1797 = vsel %vm1664, %v1789, %v1796
    %v1798 = vrot.slane %v1793, 4
    %v1800 = vshrl.u32 %v1648, 16
    %v1802 = vrot.slane %v1800, 7
    %v1803 = vshll.u32 %v1648, 16
    %v1805 = vor.u32 %v1802, %v1803
    %v1806 = vsel %vm1664, %v1798, %v1805
    %v1807 = vrot.slane %v1802, 4
    %v1809 = vshrl.u32 %v1649, 16
    %v1811 = vrot.slane %v1809, 7
    %v1812 = vshll.u32 %v1649, 16
    %v1814 = vor.u32 %v1811, %v1812
    %v1815 = vsel %vm1664, %v1807, %v1814
    %v1816 = vrot.slane %v1811, 4
    %v1818 = vshrl.u32 %v1650, 16
    %v1820 = vrot.slane %v1818, 7
    %v1821 = vshll.u32 %v1650, 16
    %v1823 = vor.u32 %v1820, %v1821
    %v1824 = vsel %vm1664, %v1816, %v1823
    %v1825 = vrot.slane %v1820, 4
    %v1827 = vshrl.u32 %v1651, 16
    %v1829 = vrot.slane %v1827, 7
    %v1830 = vshll.u32 %v1651, 16
    %v1832 = vor.u32 %v1829, %v1830
    %v1833 = vsel %vm1664, %v1825, %v1832
    %v1834 = vrot.slane %v1829, 4
    %v1836 = vshrl.u32 %v1652, 16
    %v1838 = vrot.slane %v1836, 7
    %v1839 = vshll.u32 %v1652, 16
    %v1841 = vor.u32 %v1838, %v1839
    %v1842 = vsel %vm1664, %v1834, %v1841
    %v1843 = vrot.slane %v1838, 4
    %v1845 = vshrl.u32 %v1653, 16
    %v1847 = vrot.slane %v1845, 7
    %v1848 = vshll.u32 %v1653, 16
    %v1850 = vor.u32 %v1847, %v1848
    %v1851 = vsel %vm1664, %v1843, %v1850
    %v1852 = vrot.slane %v1847, 4
    %v1854 = vshrl.u32 %v1654, 16
    %v1856 = vrot.slane %v1854, 7
    %v1857 = vshll.u32 %v1654, 16
    %v1859 = vor.u32 %v1856, %v1857
    %v1860 = vsel %vm1664, %v1852, %v1859
    %v1861 = vrot.slane %v1856, 4
    %v1863 = vshrl.u32 %v1655, 16
    %v1865 = vrot.slane %v1863, 7
    %v1866 = vshll.u32 %v1655, 16
    %v1868 = vor.u32 %v1865, %v1866
    %v1869 = vsel %vm1664, %v1861, %v1868
    %v1870 = vrot.slane %v1865, 4
    %v1872 = vshrl.u32 %v1656, 16
    %v1874 = vrot.slane %v1872, 7
    %v1875 = vshll.u32 %v1656, 16
    %v1877 = vor.u32 %v1874, %v1875
    %v1878 = vsel %vm1664, %v1870, %v1877
    %v1879 = vrot.slane %v1874, 4
    %v1881 = vshrl.u32 %v1657, 16
    %v1883 = vrot.slane %v1881, 7
    %v1884 = vshll.u32 %v1657, 16
    %v1886 = vor.u32 %v1883, %v1884
    %v1887 = vsel %vm1664, %v1879, %v1886
    %v1888 = vrot.slane %v1883, 4
    %v1890 = vshrl.u32 %v1658, 16
    %v1892 = vrot.slane %v1890, 7
    %v1893 = vshll.u32 %v1658, 16
    %v1895 = vor.u32 %v1892, %v1893
    %v1896 = vsel %vm1664, %v1888, %v1895
    %v1897 = vrot.slane %v1892, 4
    %v1899 = vshrl.u32 %v1659, 16
    %v1901 = vrot.slane %v1899, 7
    %v1902 = vshll.u32 %v1659, 16
    %v1904 = vor.u32 %v1901, %v1902
    %v1905 = vsel %vm1664, %v1897, %v1904
    %v1906 = vrot.slane %v1901, 4
    %v1908 = vshrl.u32 %v1660, 16
    %v1910 = vrot.slane %v1908, 7
    %v1911 = vshll.u32 %v1660, 16
    %v1913 = vor.u32 %v1910, %v1911
    %v1914 = vsel %vm1664, %v1906, %v1913
    %v1915 = vrot.slane %v1910, 4
    %v1917 = vshrl.u32 %v1661, 16
    %v1919 = vrot.slane %v1917, 7
    %v1920 = vshll.u32 %v1661, 16
    %v1922 = vor.u32 %v1919, %v1920
    %v1923 = vsel %vm1664, %v1915, %v1922
    %v1924 = vrot.slane %v1919, 4
    %v1926 = vshrl.u32 %v1662, 16
    %v1928 = vrot.slane %v1926, 7
    %v1929 = vshll.u32 %v1662, 16
    %v1931 = vor.u32 %v1928, %v1929
    %v1932 = vsel %vm1664, %v1924, %v1931
    %vm1963 = vcmask 1043456
    %vm1964 = vsmask.f32 7938
    %vm1965 = vmand %vm1963, %vm1964
    %vm1966 = vcmask 1047556
    %vm1967 = vsmask.f32 7954
    %vm1968 = vmand %vm1966, %vm1967
    %vm1969 = vmor %vm1968, %vm1965
    %v1970 = vld [vmem:[#allocation2] sm:$0xff]
    %v1971 = vsel %vm1969, %v1671, %v1970
    %1972 = vst [vmem:[#allocation2] sm:$0xff] %v1971
    %1973 = vst [vmem:[#allocation2 + $0x8] sm:$0xff] %v1680
    %1974 = vst [vmem:[#allocation2 + $0x10] sm:$0xff] %v1689
    %1975 = vst [vmem:[#allocation2 + $0x18] sm:$0xff] %v1698
    %1976 = vst [vmem:[#allocation2 + $0x20] sm:$0xff] %v1707
    %1977 = vst [vmem:[#allocation2 + $0x28] sm:$0xff] %v1716
    %1978 = vst [vmem:[#allocation2 + $0x30] sm:$0xff] %v1725
    %1979 = vst [vmem:[#allocation2 + $0x38] sm:$0xff] %v1734
    %1980 = vst [vmem:[#allocation2 + $0x40] sm:$0xff] %v1743
    %1981 = vst [vmem:[#allocation2 + $0x48] sm:$0xff] %v1752
    %1982 = vst [vmem:[#allocation2 + $0x50] sm:$0xff] %v1761
    %1983 = vst [vmem:[#allocation2 + $0x58] sm:$0xff] %v1770
    %1984 = vst [vmem:[#allocation2 + $0x60] sm:$0xff] %v1779
    %1985 = vst [vmem:[#allocation2 + $0x68] sm:$0xff] %v1788
    %1986 = vst [vmem:[#allocation2 + $0x70] sm:$0xff] %v1797
    %1987 = vst [vmem:[#allocation2 + $0x78] sm:$0xff] %v1806
    %1988 = vst [vmem:[#allocation2 + $0x80] sm:$0xff] %v1815
    %1989 = vst [vmem:[#allocation2 + $0x88] sm:$0xff] %v1824
    %1990 = vst [vmem:[#allocation2 + $0x90] sm:$0xff] %v1833
    %1991 = vst [vmem:[#allocation2 + $0x98] sm:$0xff] %v1842
    %1992 = vst [vmem:[#allocation2 + $0xa0] sm:$0xff] %v1851
    %1993 = vst [vmem:[#allocation2 + $0xa8] sm:$0xff] %v1860
    %1994 = vst [vmem:[#allocation2 + $0xb0] sm:$0xff] %v1869
    %1995 = vst [vmem:[#allocation2 + $0xb8] sm:$0xff] %v1878
    %1996 = vst [vmem:[#allocation2 + $0xc0] sm:$0xff] %v1887
    %1997 = vst [vmem:[#allocation2 + $0xc8] sm:$0xff] %v1896
    %1998 = vst [vmem:[#allocation2 + $0xd0] sm:$0xff] %v1905
    %1999 = vst [vmem:[#allocation2 + $0xd8] sm:$0xff] %v1914
    %2000 = vst [vmem:[#allocation2 + $0xe0] sm:$0xff] %v1923
    %vm2001 = vsmask.f32 3328
    %vm2002 = vmand %vm1963, %vm2001
    %vm2003 = vmand %vm1966, %vm224
    %vm2004 = vmor %vm2003, %vm2002
    %v2005 = vld [vmem:[#allocation2 + $0xe8] sm:$0xff]
    %v2006 = vsel %vm2004, %v1932, %v2005
    %2007 = vst [vmem:[#allocation2 + $0xe8] sm:$0xff] %v2006
    %v2008 = vld [vmem:[#allocation2] sm:$0xff]
    %v2009 = vld [vmem:[#allocation2 + $0x8] sm:$0xff]
    %v2010 = vld [vmem:[#allocation2 + $0x10] sm:$0xff]
    %v2011 = vld [vmem:[#allocation2 + $0x18] sm:$0xff]
    %v2012 = vld [vmem:[#allocation2 + $0x20] sm:$0xff]
    %v2013 = vld [vmem:[#allocation2 + $0x28] sm:$0xff]
    %v2014 = vld [vmem:[#allocation2 + $0x30] sm:$0xff]
    %v2015 = vld [vmem:[#allocation2 + $0x38] sm:$0xff]
    %v2016 = vld [vmem:[#allocation2 + $0x40] sm:$0xff]
    %v2017 = vld [vmem:[#allocation2 + $0x48] sm:$0xff]
    %v2018 = vld [vmem:[#allocation2 + $0x50] sm:$0xff]
    %v2019 = vld [vmem:[#allocation2 + $0x58] sm:$0xff]
    %v2020 = vld [vmem:[#allocation2 + $0x60] sm:$0xff]
    %v2021 = vld [vmem:[#allocation2 + $0x68] sm:$0xff]
    %v2022 = vld [vmem:[#allocation2 + $0x70] sm:$0xff]
    %v2023 = vld [vmem:[#allocation2 + $0x78] sm:$0xff]
    %v2024 = vld [vmem:[#allocation2 + $0x80] sm:$0xff]
    %v2025 = vld [vmem:[#allocation2 + $0x88] sm:$0xff]
    %v2026 = vld [vmem:[#allocation2 + $0x90] sm:$0xff]
    %v2027 = vld [vmem:[#allocation2 + $0x98] sm:$0xff]
    %v2028 = vld [vmem:[#allocation2 + $0xa0] sm:$0xff]
    %v2029 = vld [vmem:[#allocation2 + $0xa8] sm:$0xff]
    %v2030 = vld [vmem:[#allocation2 + $0xb0] sm:$0xff]
    %v2031 = vld [vmem:[#allocation2 + $0xb8] sm:$0xff]
    %v2032 = vld [vmem:[#allocation2 + $0xc0] sm:$0xff]
    %v2033 = vld [vmem:[#allocation2 + $0xc8] sm:$0xff]
    %v2034 = vld [vmem:[#allocation2 + $0xd0] sm:$0xff]
    %v2035 = vld [vmem:[#allocation2 + $0xd8] sm:$0xff]
    %v2036 = vld [vmem:[#allocation2 + $0xe0] sm:$0xff]
    %v2037 = vld [vmem:[#allocation2 + $0xe8] sm:$0x77]
    %v2038 = vld [vmem:[#allocation5] sm:$0xff]
    %v2039 = vld [vmem:[#allocation5 + $0x8] sm:$0xff]
    %v2040 = vld [vmem:[#allocation5 + $0x10] sm:$0xff]
    %v2041 = vld [vmem:[#allocation5 + $0x18] sm:$0xff]
    %v2042 = vld [vmem:[#allocation5 + $0x20] sm:$0xff]
    %v2043 = vld [vmem:[#allocation5 + $0x28] sm:$0xff]
    %v2044 = vld [vmem:[#allocation5 + $0x30] sm:$0xff]
    %v2045 = vld [vmem:[#allocation5 + $0x38] sm:$0xff]
    %v2046 = vld [vmem:[#allocation5 + $0x40] sm:$0xff]
    %v2047 = vld [vmem:[#allocation5 + $0x48] sm:$0xff]
    %v2048 = vld [vmem:[#allocation5 + $0x50] sm:$0xff]
    %v2049 = vld [vmem:[#allocation5 + $0x58] sm:$0xff]
    %v2050 = vld [vmem:[#allocation5 + $0x60] sm:$0xff]
    %v2051 = vld [vmem:[#allocation5 + $0x68] sm:$0xff]
    %v2052 = vld [vmem:[#allocation5 + $0x70] sm:$0xff]
    %v2053 = vld [vmem:[#allocation5 + $0x78] sm:$0xff]
    %v2054 = vld [vmem:[#allocation5 + $0x80] sm:$0xff]
    %v2055 = vld [vmem:[#allocation5 + $0x88] sm:$0xff]
    %v2056 = vld [vmem:[#allocation5 + $0x90] sm:$0xff]
    %v2057 = vld [vmem:[#allocation5 + $0x98] sm:$0xff]
    %v2058 = vld [vmem:[#allocation5 + $0xa0] sm:$0xff]
    %v2059 = vld [vmem:[#allocation5 + $0xa8] sm:$0xff]
    %v2060 = vld [vmem:[#allocation5 + $0xb0] sm:$0xff]
    %v2061 = vld [vmem:[#allocation5 + $0xb8] sm:$0xff]
    %v2062 = vld [vmem:[#allocation5 + $0xc0] sm:$0xff]
    %v2063 = vld [vmem:[#allocation5 + $0xc8] sm:$0xff]
    %v2064 = vld [vmem:[#allocation5 + $0xd0] sm:$0xff]
    %v2065 = vld [vmem:[#allocation5 + $0xd8] sm:$0xff]
    %v2066 = vld [vmem:[#allocation5 + $0xe0] sm:$0xff]
    %v2067 = vld [vmem:[#allocation5 + $0xe8] sm:$0xff]
    %v2068 = vld [vmem:[#allocation5 + $0xf0] sm:$0xff]
    %v2069 = vld [vmem:[#allocation5 + $0xf8] sm:$0xff]
    %v2070 = vld [vmem:[#allocation2 + $0xe8] sm:$0xff]
    %s2071 = scalar_lea.vmem [#allocation5], 256
    %v2072 = vld [vmem:[%s2071] sm:$0xff]
    %v2073 = vld [vmem:[%s2071 + $0x8] sm:$0xff]
    %v2074 = vld [vmem:[%s2071 + $0x10] sm:$0xff]
    %v2075 = vld [vmem:[%s2071 + $0x18] sm:$0xff]
    %v2076 = vld [vmem:[%s2071 + $0x20] sm:$0xff]
    %v2077 = vld [vmem:[%s2071 + $0x28] sm:$0xff]
    %v2078 = vld [vmem:[%s2071 + $0x30] sm:$0xff]
    %v2079 = vld [vmem:[%s2071 + $0x38] sm:$0xff]
    %v2080 = vld [vmem:[%s2071 + $0x40] sm:$0xff]
    %v2081 = vld [vmem:[%s2071 + $0x48] sm:$0xff]
    %v2082 = vld [vmem:[%s2071 + $0x50] sm:$0xff]
    %v2083 = vld [vmem:[%s2071 + $0x58] sm:$0xff]
    %v2084 = vld [vmem:[%s2071 + $0x60] sm:$0xff]
    %v2085 = vld [vmem:[%s2071 + $0x68] sm:$0xff]
    %v2086 = vld [vmem:[%s2071 + $0x70] sm:$0xff]
    %v2087 = vld [vmem:[%s2071 + $0x78] sm:$0xff]
    %v2088 = vld [vmem:[%s2071 + $0x80] sm:$0xff]
    %v2089 = vld [vmem:[%s2071 + $0x88] sm:$0xff]
    %v2090 = vld [vmem:[%s2071 + $0x90] sm:$0xff]
    %v2091 = vld [vmem:[%s2071 + $0x98] sm:$0xff]
    %v2092 = vld [vmem:[%s2071 + $0xa0] sm:$0xff]
    %v2093 = vld [vmem:[%s2071 + $0xa8] sm:$0xff]
    %v2094 = vld [vmem:[%s2071 + $0xb0] sm:$0xff]
    %v2095 = vld [vmem:[%s2071 + $0xb8] sm:$0xff]
    %v2096 = vld [vmem:[%s2071 + $0xc0] sm:$0xff]
    %v2097 = vld [vmem:[%s2071 + $0xc8] sm:$0xff]
    %v2098 = vld [vmem:[%s2071 + $0xd0] sm:$0xff]
    %v2099 = vld [vmem:[%s2071 + $0xd8] sm:$0xff]
    %v2100 = vld [vmem:[%s2071 + $0xe0] sm:$0xff]
    %v2101 = vld [vmem:[%s2071 + $0xe8] sm:$0xff]
    %v2102 = vld [vmem:[%s2071 + $0xf0] sm:$0xff]
    %v2103 = vld [vmem:[%s2071 + $0xf8] sm:$0xff]
    %v2134 = vunpack.c.l.b16 %v2008
    %v2135 = vunpack.c.h.b16 %v2008
    %v2136 = vunpack.c.l.b16 %v2009
    %v2137 = vunpack.c.h.b16 %v2009
    %v2138 = vunpack.c.l.b16 %v2010
    %v2139 = vunpack.c.h.b16 %v2010
    %v2140 = vunpack.c.l.b16 %v2011
    %v2141 = vunpack.c.h.b16 %v2011
    %v2142 = vunpack.c.l.b16 %v2012
    %v2143 = vunpack.c.h.b16 %v2012
    %v2144 = vunpack.c.l.b16 %v2013
    %v2145 = vunpack.c.h.b16 %v2013
    %v2146 = vunpack.c.l.b16 %v2014
    %v2147 = vunpack.c.h.b16 %v2014
    %v2148 = vunpack.c.l.b16 %v2015
    %v2149 = vunpack.c.h.b16 %v2015
    %v2150 = vunpack.c.l.b16 %v2016
    %v2151 = vunpack.c.h.b16 %v2016
    %v2152 = vunpack.c.l.b16 %v2017
    %v2153 = vunpack.c.h.b16 %v2017
    %v2154 = vunpack.c.l.b16 %v2018
    %v2155 = vunpack.c.h.b16 %v2018
    %v2156 = vunpack.c.l.b16 %v2019
    %v2157 = vunpack.c.h.b16 %v2019
    %v2158 = vunpack.c.l.b16 %v2020
    %v2159 = vunpack.c.h.b16 %v2020
    %v2160 = vunpack.c.l.b16 %v2021
    %v2161 = vunpack.c.h.b16 %v2021
    %v2162 = vunpack.c.l.b16 %v2022
    %v2163 = vunpack.c.h.b16 %v2022
    %v2164 = vunpack.c.l.b16 %v2023
    %v2165 = vunpack.c.h.b16 %v2023
    %v2166 = vunpack.c.l.b16 %v2024
    %v2167 = vunpack.c.h.b16 %v2024
    %v2168 = vunpack.c.l.b16 %v2025
    %v2169 = vunpack.c.h.b16 %v2025
    %v2170 = vunpack.c.l.b16 %v2026
    %v2171 = vunpack.c.h.b16 %v2026
    %v2172 = vunpack.c.l.b16 %v2027
    %v2173 = vunpack.c.h.b16 %v2027
    %v2174 = vunpack.c.l.b16 %v2028
    %v2175 = vunpack.c.h.b16 %v2028
    %v2176 = vunpack.c.l.b16 %v2029
    %v2177 = vunpack.c.h.b16 %v2029
    %v2178 = vunpack.c.l.b16 %v2030
    %v2179 = vunpack.c.h.b16 %v2030
    %v2180 = vunpack.c.l.b16 %v2031
    %v2181 = vunpack.c.h.b16 %v2031
    %v2182 = vunpack.c.l.b16 %v2032
    %v2183 = vunpack.c.h.b16 %v2032
    %v2184 = vunpack.c.l.b16 %v2033
    %v2185 = vunpack.c.h.b16 %v2033
    %v2186 = vunpack.c.l.b16 %v2034
    %v2187 = vunpack.c.h.b16 %v2034
    %v2188 = vunpack.c.l.b16 %v2035
    %v2189 = vunpack.c.h.b16 %v2035
    %v2190 = vunpack.c.l.b16 %v2036
    %v2191 = vunpack.c.h.b16 %v2036
    %v2192 = vunpack.c.l.b16 %v2070
    %v2193 = vunpack.c.h.b16 %v2070
    %v2194 = vpack.c.b16 %v2136, %v2134
    %v2195 = vpack.c.b16 %v2137, %v2135
    %v2196 = vpack.c.b16 %v2140, %v2138
    %v2197 = vpack.c.b16 %v2141, %v2139
    %v2198 = vpack.c.b16 %v2144, %v2142
    %v2199 = vpack.c.b16 %v2145, %v2143
    %v2200 = vpack.c.b16 %v2148, %v2146
    %v2201 = vpack.c.b16 %v2149, %v2147
    %v2202 = vpack.c.b16 %v2152, %v2150
    %v2203 = vpack.c.b16 %v2153, %v2151
    %v2204 = vpack.c.b16 %v2156, %v2154
    %v2205 = vpack.c.b16 %v2157, %v2155
    %v2206 = vpack.c.b16 %v2160, %v2158
    %v2207 = vpack.c.b16 %v2161, %v2159
    %v2208 = vpack.c.b16 %v2164, %v2162
    %v2209 = vpack.c.b16 %v2165, %v2163
    %v2210 = vpack.c.b16 %v2168, %v2166
    %v2211 = vpack.c.b16 %v2169, %v2167
    %v2212 = vpack.c.b16 %v2172, %v2170
    %v2213 = vpack.c.b16 %v2173, %v2171
    %v2214 = vpack.c.b16 %v2176, %v2174
    %v2215 = vpack.c.b16 %v2177, %v2175
    %v2216 = vpack.c.b16 %v2180, %v2178
    %v2217 = vpack.c.b16 %v2181, %v2179
    %v2218 = vpack.c.b16 %v2184, %v2182
    %v2219 = vpack.c.b16 %v2185, %v2183
    %v2220 = vpack.c.b16 %v2188, %v2186
    %v2221 = vpack.c.b16 %v2189, %v2187
    %v2222 = vpack.c.b16 %v2192, %v2190
    %v2223 = vpack.c.b16 %v2193, %v2191
    %v2225 = vshrl.u32 %v2194, 16
    %v2227 = vshll.u32 %v2194, 16
    %v2229 = vrot.slane %v2227, 1
    %v2230 = vor.u32 %v2225, %v2229
    %v2232 = vshll.u32 %v2196, 16
    %v2234 = vrot.slane %v2232, 1
    %v2235 = vsel %vm224, %v2230, %v2234
    %v2237 = vshrl.u32 %v2195, 16
    %v2239 = vshll.u32 %v2195, 16
    %v2241 = vrot.slane %v2239, 1
    %v2242 = vor.u32 %v2237, %v2241
    %v2244 = vshll.u32 %v2197, 16
    %v2246 = vrot.slane %v2244, 1
    %v2247 = vsel %vm224, %v2242, %v2246
    %v2248 = vshrl.u32 %v2196, 16
    %v2250 = vor.u32 %v2248, %v2234
    %v2252 = vshll.u32 %v2198, 16
    %v2254 = vrot.slane %v2252, 1
    %v2255 = vsel %vm224, %v2250, %v2254
    %v2256 = vshrl.u32 %v2197, 16
    %v2258 = vor.u32 %v2256, %v2246
    %v2260 = vshll.u32 %v2199, 16
    %v2262 = vrot.slane %v2260, 1
    %v2263 = vsel %vm224, %v2258, %v2262
    %v2264 = vshrl.u32 %v2198, 16
    %v2266 = vor.u32 %v2264, %v2254
    %v2268 = vshll.u32 %v2200, 16
    %v2270 = vrot.slane %v2268, 1
    %v2271 = vsel %vm224, %v2266, %v2270
    %v2272 = vshrl.u32 %v2199, 16
    %v2274 = vor.u32 %v2272, %v2262
    %v2276 = vshll.u32 %v2201, 16
    %v2278 = vrot.slane %v2276, 1
    %v2279 = vsel %vm224, %v2274, %v2278
    %v2280 = vshrl.u32 %v2200, 16
    %v2282 = vor.u32 %v2280, %v2270
    %v2284 = vshll.u32 %v2202, 16
    %v2286 = vrot.slane %v2284, 1
    %v2287 = vsel %vm224, %v2282, %v2286
    %v2288 = vshrl.u32 %v2201, 16
    %v2290 = vor.u32 %v2288, %v2278
    %v2292 = vshll.u32 %v2203, 16
    %v2294 = vrot.slane %v2292, 1
    %v2295 = vsel %vm224, %v2290, %v2294
    %v2296 = vshrl.u32 %v2202, 16
    %v2298 = vor.u32 %v2296, %v2286
    %v2300 = vshll.u32 %v2204, 16
    %v2302 = vrot.slane %v2300, 1
    %v2303 = vsel %vm224, %v2298, %v2302
    %v2304 = vshrl.u32 %v2203, 16
    %v2306 = vor.u32 %v2304, %v2294
    %v2308 = vshll.u32 %v2205, 16
    %v2310 = vrot.slane %v2308, 1
    %v2311 = vsel %vm224, %v2306, %v2310
    %v2312 = vshrl.u32 %v2204, 16
    %v2314 = vor.u32 %v2312, %v2302
    %v2316 = vshll.u32 %v2206, 16
    %v2318 = vrot.slane %v2316, 1
    %v2319 = vsel %vm224, %v2314, %v2318
    %v2320 = vshrl.u32 %v2205, 16
    %v2322 = vor.u32 %v2320, %v2310
    %v2324 = vshll.u32 %v2207, 16
    %v2326 = vrot.slane %v2324, 1
    %v2327 = vsel %vm224, %v2322, %v2326
    %v2328 = vshrl.u32 %v2206, 16
    %v2330 = vor.u32 %v2328, %v2318
    %v2332 = vshll.u32 %v2208, 16
    %v2334 = vrot.slane %v2332, 1
    %v2335 = vsel %vm224, %v2330, %v2334
    %v2336 = vshrl.u32 %v2207, 16
    %v2338 = vor.u32 %v2336, %v2326
    %v2340 = vshll.u32 %v2209, 16
    %v2342 = vrot.slane %v2340, 1
    %v2343 = vsel %vm224, %v2338, %v2342
    %v2344 = vshrl.u32 %v2208, 16
    %v2346 = vor.u32 %v2344, %v2334
    %v2348 = vshll.u32 %v2210, 16
    %v2350 = vrot.slane %v2348, 1
    %v2351 = vsel %vm224, %v2346, %v2350
    %v2352 = vshrl.u32 %v2209, 16
    %v2354 = vor.u32 %v2352, %v2342
    %v2356 = vshll.u32 %v2211, 16
    %v2358 = vrot.slane %v2356, 1
    %v2359 = vsel %vm224, %v2354, %v2358
    %v2360 = vshrl.u32 %v2210, 16
    %v2362 = vor.u32 %v2360, %v2350
    %v2364 = vshll.u32 %v2212, 16
    %v2366 = vrot.slane %v2364, 1
    %v2367 = vsel %vm224, %v2362, %v2366
    %v2368 = vshrl.u32 %v2211, 16
    %v2370 = vor.u32 %v2368, %v2358
    %v2372 = vshll.u32 %v2213, 16
    %v2374 = vrot.slane %v2372, 1
    %v2375 = vsel %vm224, %v2370, %v2374
    %v2376 = vshrl.u32 %v2212, 16
    %v2378 = vor.u32 %v2376, %v2366
    %v2380 = vshll.u32 %v2214, 16
    %v2382 = vrot.slane %v2380, 1
    %v2383 = vsel %vm224, %v2378, %v2382
    %v2384 = vshrl.u32 %v2213, 16
    %v2386 = vor.u32 %v2384, %v2374
    %v2388 = vshll.u32 %v2215, 16
    %v2390 = vrot.slane %v2388, 1
    %v2391 = vsel %vm224, %v2386, %v2390
    %v2392 = vshrl.u32 %v2214, 16
    %v2394 = vor.u32 %v2392, %v2382
    %v2396 = vshll.u32 %v2216, 16
    %v2398 = vrot.slane %v2396, 1
    %v2399 = vsel %vm224, %v2394, %v2398
    %v2400 = vshrl.u32 %v2215, 16
    %v2402 = vor.u32 %v2400, %v2390
    %v2404 = vshll.u32 %v2217, 16
    %v2406 = vrot.slane %v2404, 1
    %v2407 = vsel %vm224, %v2402, %v2406
    %v2408 = vshrl.u32 %v2216, 16
    %v2410 = vor.u32 %v2408, %v2398
    %v2412 = vshll.u32 %v2218, 16
    %v2414 = vrot.slane %v2412, 1
    %v2415 = vsel %vm224, %v2410, %v2414
    %v2416 = vshrl.u32 %v2217, 16
    %v2418 = vor.u32 %v2416, %v2406
    %v2420 = vshll.u32 %v2219, 16
    %v2422 = vrot.slane %v2420, 1
    %v2423 = vsel %vm224, %v2418, %v2422
    %v2424 = vshrl.u32 %v2218, 16
    %v2426 = vor.u32 %v2424, %v2414
    %v2428 = vshll.u32 %v2220, 16
    %v2430 = vrot.slane %v2428, 1
    %v2431 = vsel %vm224, %v2426, %v2430
    %v2432 = vshrl.u32 %v2219, 16
    %v2434 = vor.u32 %v2432, %v2422
    %v2436 = vshll.u32 %v2221, 16
    %v2438 = vrot.slane %v2436, 1
    %v2439 = vsel %vm224, %v2434, %v2438
    %v2440 = vshrl.u32 %v2220, 16
    %v2442 = vor.u32 %v2440, %v2430
    %v2444 = vshll.u32 %v2222, 16
    %v2446 = vrot.slane %v2444, 1
    %v2447 = vsel %vm224, %v2442, %v2446
    %v2448 = vshrl.u32 %v2221, 16
    %v2450 = vor.u32 %v2448, %v2438
    %v2452 = vshll.u32 %v2223, 16
    %v2454 = vrot.slane %v2452, 1
    %v2455 = vsel %vm224, %v2450, %v2454
    %v2456 = vshrl.u32 %v2222, 16
    %v2458 = vor.u32 %v2456, %v2446
    %v2459 = vshrl.u32 %v2223, 16
    %v2461 = vor.u32 %v2459, %v2454
    %v2524 = vunpack.c.l.b16 %v2072
    %v2525 = vunpack.c.h.b16 %v2072
    %v2526 = vunpack.c.l.b16 %v2073
    %v2527 = vunpack.c.h.b16 %v2073
    %v2528 = vunpack.c.l.b16 %v2074
    %v2529 = vunpack.c.h.b16 %v2074
    %v2530 = vunpack.c.l.b16 %v2075
    %v2531 = vunpack.c.h.b16 %v2075
    %v2532 = vunpack.c.l.b16 %v2076
    %v2533 = vunpack.c.h.b16 %v2076
    %v2534 = vunpack.c.l.b16 %v2077
    %v2535 = vunpack.c.h.b16 %v2077
    %v2536 = vunpack.c.l.b16 %v2078
    %v2537 = vunpack.c.h.b16 %v2078
    %v2538 = vunpack.c.l.b16 %v2079
    %v2539 = vunpack.c.h.b16 %v2079
    %v2540 = vunpack.c.l.b16 %v2080
    %v2541 = vunpack.c.h.b16 %v2080
    %v2542 = vunpack.c.l.b16 %v2081
    %v2543 = vunpack.c.h.b16 %v2081
    %v2544 = vunpack.c.l.b16 %v2082
    %v2545 = vunpack.c.h.b16 %v2082
    %v2546 = vunpack.c.l.b16 %v2083
    %v2547 = vunpack.c.h.b16 %v2083
    %v2548 = vunpack.c.l.b16 %v2084
    %v2549 = vunpack.c.h.b16 %v2084
    %v2550 = vunpack.c.l.b16 %v2085
    %v2551 = vunpack.c.h.b16 %v2085
    %v2552 = vunpack.c.l.b16 %v2086
    %v2553 = vunpack.c.h.b16 %v2086
    %v2554 = vunpack.c.l.b16 %v2087
    %v2555 = vunpack.c.h.b16 %v2087
    %v2556 = vunpack.c.l.b16 %v2088
    %v2557 = vunpack.c.h.b16 %v2088
    %v2558 = vunpack.c.l.b16 %v2089
    %v2559 = vunpack.c.h.b16 %v2089
    %v2560 = vunpack.c.l.b16 %v2090
    %v2561 = vunpack.c.h.b16 %v2090
    %v2562 = vunpack.c.l.b16 %v2091
    %v2563 = vunpack.c.h.b16 %v2091
    %v2564 = vunpack.c.l.b16 %v2092
    %v2565 = vunpack.c.h.b16 %v2092
    %v2566 = vunpack.c.l.b16 %v2093
    %v2567 = vunpack.c.h.b16 %v2093
    %v2568 = vunpack.c.l.b16 %v2094
    %v2569 = vunpack.c.h.b16 %v2094
    %v2570 = vunpack.c.l.b16 %v2095
    %v2571 = vunpack.c.h.b16 %v2095
    %v2572 = vunpack.c.l.b16 %v2096
    %v2573 = vunpack.c.h.b16 %v2096
    %v2574 = vunpack.c.l.b16 %v2097
    %v2575 = vunpack.c.h.b16 %v2097
    %v2576 = vunpack.c.l.b16 %v2098
    %v2577 = vunpack.c.h.b16 %v2098
    %v2578 = vunpack.c.l.b16 %v2099
    %v2579 = vunpack.c.h.b16 %v2099
    %v2580 = vunpack.c.l.b16 %v2100
    %v2581 = vunpack.c.h.b16 %v2100
    %v2582 = vunpack.c.l.b16 %v2101
    %v2583 = vunpack.c.h.b16 %v2101
    %v2584 = vunpack.c.l.b16 %v2102
    %v2585 = vunpack.c.h.b16 %v2102
    %v2586 = vunpack.c.l.b16 %v2103
    %v2587 = vunpack.c.h.b16 %v2103
    %v2588 = vpack.c.b16 %v2526, %v2524
    %v2589 = vpack.c.b16 %v2527, %v2525
    %v2590 = vpack.c.b16 %v2530, %v2528
    %v2591 = vpack.c.b16 %v2531, %v2529
    %v2592 = vpack.c.b16 %v2534, %v2532
    %v2593 = vpack.c.b16 %v2535, %v2533
    %v2594 = vpack.c.b16 %v2538, %v2536
    %v2595 = vpack.c.b16 %v2539, %v2537
    %v2596 = vpack.c.b16 %v2542, %v2540
    %v2597 = vpack.c.b16 %v2543, %v2541
    %v2598 = vpack.c.b16 %v2546, %v2544
    %v2599 = vpack.c.b16 %v2547, %v2545
    %v2600 = vpack.c.b16 %v2550, %v2548
    %v2601 = vpack.c.b16 %v2551, %v2549
    %v2602 = vpack.c.b16 %v2554, %v2552
    %v2603 = vpack.c.b16 %v2555, %v2553
    %v2604 = vpack.c.b16 %v2558, %v2556
    %v2605 = vpack.c.b16 %v2559, %v2557
    %v2606 = vpack.c.b16 %v2562, %v2560
    %v2607 = vpack.c.b16 %v2563, %v2561
    %v2608 = vpack.c.b16 %v2566, %v2564
    %v2609 = vpack.c.b16 %v2567, %v2565
    %v2610 = vpack.c.b16 %v2570, %v2568
    %v2611 = vpack.c.b16 %v2571, %v2569
    %v2612 = vpack.c.b16 %v2574, %v2572
    %v2613 = vpack.c.b16 %v2575, %v2573
    %v2614 = vpack.c.b16 %v2578, %v2576
    %v2615 = vpack.c.b16 %v2579, %v2577
    %v2616 = vpack.c.b16 %v2582, %v2580
    %v2617 = vpack.c.b16 %v2583, %v2581
    %v2618 = vpack.c.b16 %v2586, %v2584
    %v2619 = vpack.c.b16 %v2587, %v2585
    %2652 = vmatpush.bf16.msra.mxu0 %v2602
    %2653 = vmatpush.bf16.msra.mxu0 %v2600
    %2654 = vmatpush.bf16.msra.mxu0 %v2598
    %2655 = vmatpush.bf16.msra.mxu0 %v2596
    %2656 = vmatpush.bf16.msra.mxu0 %v2594
    %2657 = vmatpush.bf16.msra.mxu0 %v2592
    %2658 = vmatpush.bf16.msra.mxu0 %v2590
    %2659 = vmatpush.bf16.msra.mxu0 %v2588
    %2660 = vmatmul.bf16.gmra.mxu0 %v2235
    %v2661 = vpop.f32.mrf.mxu0
    %v2662 = vadd.f32 0.0, %v2661
    %v2663 = vpop.f32.mrf.mxu0
    %v2664 = vadd.f32 0.0, %v2663
    %2665 = vmatmul.bf16.gmra.mxu0 %v2255
    %v2666 = vpop.f32.mrf.mxu0
    %v2667 = vadd.f32 0.0, %v2666
    %v2668 = vpop.f32.mrf.mxu0
    %v2669 = vadd.f32 0.0, %v2668
    %2670 = vmatmul.bf16.gmra.mxu0 %v2271
    %v2671 = vpop.f32.mrf.mxu0
    %v2672 = vadd.f32 0.0, %v2671
    %v2673 = vpop.f32.mrf.mxu0
    %v2674 = vadd.f32 0.0, %v2673
    %2675 = vmatmul.bf16.gmra.mxu0 %v2287
    %v2676 = vpop.f32.mrf.mxu0
    %v2677 = vadd.f32 0.0, %v2676
    %v2678 = vpop.f32.mrf.mxu0
    %v2679 = vadd.f32 0.0, %v2678
    %2680 = vmatmul.bf16.gmra.mxu0 %v2303
    %v2681 = vpop.f32.mrf.mxu0
    %v2682 = vadd.f32 0.0, %v2681
    %v2683 = vpop.f32.mrf.mxu0
    %v2684 = vadd.f32 0.0, %v2683
    %2685 = vmatmul.bf16.gmra.mxu0 %v2319
    %v2686 = vpop.f32.mrf.mxu0
    %v2687 = vadd.f32 0.0, %v2686
    %v2688 = vpop.f32.mrf.mxu0
    %v2689 = vadd.f32 0.0, %v2688
    %2690 = vmatmul.bf16.gmra.mxu0 %v2335
    %v2691 = vpop.f32.mrf.mxu0
    %v2692 = vadd.f32 0.0, %v2691
    %v2693 = vpop.f32.mrf.mxu0
    %v2694 = vadd.f32 0.0, %v2693
    %2695 = vmatmul.bf16.gmra.mxu0 %v2351
    %v2696 = vpop.f32.mrf.mxu0
    %v2697 = vadd.f32 0.0, %v2696
    %v2698 = vpop.f32.mrf.mxu0
    %v2699 = vadd.f32 0.0, %v2698
    %2700 = vmatmul.bf16.gmra.mxu0 %v2367
    %v2701 = vpop.f32.mrf.mxu0
    %v2702 = vadd.f32 0.0, %v2701
    %v2703 = vpop.f32.mrf.mxu0
    %v2704 = vadd.f32 0.0, %v2703
    %2705 = vmatmul.bf16.gmra.mxu0 %v2383
    %v2706 = vpop.f32.mrf.mxu0
    %v2707 = vadd.f32 0.0, %v2706
    %v2708 = vpop.f32.mrf.mxu0
    %v2709 = vadd.f32 0.0, %v2708
    %2710 = vmatmul.bf16.gmra.mxu0 %v2399
    %v2711 = vpop.f32.mrf.mxu0
    %v2712 = vadd.f32 0.0, %v2711
    %v2713 = vpop.f32.mrf.mxu0
    %v2714 = vadd.f32 0.0, %v2713
    %2715 = vmatmul.bf16.gmra.mxu0 %v2415
    %v2716 = vpop.f32.mrf.mxu0
    %v2717 = vadd.f32 0.0, %v2716
    %v2718 = vpop.f32.mrf.mxu0
    %v2719 = vadd.f32 0.0, %v2718
    %2720 = vmatmul.bf16.gmra.mxu0 %v2431
    %v2721 = vpop.f32.mrf.mxu0
    %v2722 = vadd.f32 0.0, %v2721
    %v2723 = vpop.f32.mrf.mxu0
    %v2724 = vadd.f32 0.0, %v2723
    %2725 = vmatmul.bf16.gmra.mxu0 %v2447
    %v2726 = vpop.f32.mrf.mxu0
    %v2727 = vadd.f32 0.0, %v2726
    %v2728 = vpop.f32.mrf.mxu0
    %v2729 = vadd.f32 0.0, %v2728
    %2730 = vmatmul.bf16.gmra.mxu0 %v2458
    %v2731 = vpop.f32.mrf.mxu0
    %v2732 = vadd.f32 0.0, %v2731
    %v2733 = vpop.f32.mrf.mxu0
    %v2734 = vadd.f32 0.0, %v2733
    %2735 = vdwg.mxu0
    %2736 = vmatpush.bf16.msra.mxu0 %v2618
    %2737 = vmatpush.bf16.msra.mxu0 %v2616
    %2738 = vmatpush.bf16.msra.mxu0 %v2614
    %2739 = vmatpush.bf16.msra.mxu0 %v2612
    %2740 = vmatpush.bf16.msra.mxu0 %v2610
    %2741 = vmatpush.bf16.msra.mxu0 %v2608
    %2742 = vmatpush.bf16.msra.mxu0 %v2606
    %2743 = vmatpush.bf16.msra.mxu0 %v2604
    %2744 = vmatmul.bf16.gmra.mxu0 %v2247
    %v2745 = vpop.f32.mrf.mxu0
    %v2746 = vadd.f32 %v2662, %v2745
    %v2747 = vpop.f32.mrf.mxu0
    %v2748 = vadd.f32 %v2664, %v2747
    %2749 = vmatmul.bf16.gmra.mxu0 %v2263
    %v2750 = vpop.f32.mrf.mxu0
    %v2751 = vadd.f32 %v2667, %v2750
    %v2752 = vpop.f32.mrf.mxu0
    %v2753 = vadd.f32 %v2669, %v2752
    %2754 = vmatmul.bf16.gmra.mxu0 %v2279
    %v2755 = vpop.f32.mrf.mxu0
    %v2756 = vadd.f32 %v2672, %v2755
    %v2757 = vpop.f32.mrf.mxu0
    %v2758 = vadd.f32 %v2674, %v2757
    %2759 = vmatmul.bf16.gmra.mxu0 %v2295
    %v2760 = vpop.f32.mrf.mxu0
    %v2761 = vadd.f32 %v2677, %v2760
    %v2762 = vpop.f32.mrf.mxu0
    %v2763 = vadd.f32 %v2679, %v2762
    %2764 = vmatmul.bf16.gmra.mxu0 %v2311
    %v2765 = vpop.f32.mrf.mxu0
    %v2766 = vadd.f32 %v2682, %v2765
    %v2767 = vpop.f32.mrf.mxu0
    %v2768 = vadd.f32 %v2684, %v2767
    %2769 = vmatmul.bf16.gmra.mxu0 %v2327
    %v2770 = vpop.f32.mrf.mxu0
    %v2771 = vadd.f32 %v2687, %v2770
    %v2772 = vpop.f32.mrf.mxu0
    %v2773 = vadd.f32 %v2689, %v2772
    %2774 = vmatmul.bf16.gmra.mxu0 %v2343
    %v2775 = vpop.f32.mrf.mxu0
    %v2776 = vadd.f32 %v2692, %v2775
    %v2777 = vpop.f32.mrf.mxu0
    %v2778 = vadd.f32 %v2694, %v2777
    %2779 = vmatmul.bf16.gmra.mxu0 %v2359
    %v2780 = vpop.f32.mrf.mxu0
    %v2781 = vadd.f32 %v2697, %v2780
    %v2782 = vpop.f32.mrf.mxu0
    %v2783 = vadd.f32 %v2699, %v2782
    %2784 = vmatmul.bf16.gmra.mxu0 %v2375
    %v2785 = vpop.f32.mrf.mxu0
    %v2786 = vadd.f32 %v2702, %v2785
    %v2787 = vpop.f32.mrf.mxu0
    %v2788 = vadd.f32 %v2704, %v2787
    %2789 = vmatmul.bf16.gmra.mxu0 %v2391
    %v2790 = vpop.f32.mrf.mxu0
    %v2791 = vadd.f32 %v2707, %v2790
    %v2792 = vpop.f32.mrf.mxu0
    %v2793 = vadd.f32 %v2709, %v2792
    %2794 = vmatmul.bf16.gmra.mxu0 %v2407
    %v2795 = vpop.f32.mrf.mxu0
    %v2796 = vadd.f32 %v2712, %v2795
    %v2797 = vpop.f32.mrf.mxu0
    %v2798 = vadd.f32 %v2714, %v2797
    %2799 = vmatmul.bf16.gmra.mxu0 %v2423
    %v2800 = vpop.f32.mrf.mxu0
    %v2801 = vadd.f32 %v2717, %v2800
    %v2802 = vpop.f32.mrf.mxu0
    %v2803 = vadd.f32 %v2719, %v2802
    %2804 = vmatmul.bf16.gmra.mxu0 %v2439
    %v2805 = vpop.f32.mrf.mxu0
    %v2806 = vadd.f32 %v2722, %v2805
    %v2807 = vpop.f32.mrf.mxu0
    %v2808 = vadd.f32 %v2724, %v2807
    %2809 = vmatmul.bf16.gmra.mxu0 %v2455
    %v2810 = vpop.f32.mrf.mxu0
    %v2811 = vadd.f32 %v2727, %v2810
    %v2812 = vpop.f32.mrf.mxu0
    %v2813 = vadd.f32 %v2729, %v2812
    %2814 = vmatmul.bf16.gmra.mxu0 %v2461
    %v2815 = vpop.f32.mrf.mxu0
    %v2816 = vadd.f32 %v2732, %v2815
    %v2817 = vpop.f32.mrf.mxu0
    %v2818 = vadd.f32 %v2734, %v2817
    %2819 = vdwg.mxu0
    %2820 = vmatpush.bf16.msra.mxu0 %v2603
    %2821 = vmatpush.bf16.msra.mxu0 %v2601
    %2822 = vmatpush.bf16.msra.mxu0 %v2599
    %2823 = vmatpush.bf16.msra.mxu0 %v2597
    %2824 = vmatpush.bf16.msra.mxu0 %v2595
    %2825 = vmatpush.bf16.msra.mxu0 %v2593
    %2826 = vmatpush.bf16.msra.mxu0 %v2591
    %2827 = vmatpush.bf16.msra.mxu0 %v2589
    %2828 = vmatmul.bf16.gmra.mxu0 %v2235
    %v2829 = vpop.f32.mrf.mxu0
    %v2830 = vadd.f32 0.0, %v2829
    %v2831 = vpop.f32.mrf.mxu0
    %v2832 = vadd.f32 0.0, %v2831
    %2833 = vmatmul.bf16.gmra.mxu0 %v2255
    %v2834 = vpop.f32.mrf.mxu0
    %v2835 = vadd.f32 0.0, %v2834
    %v2836 = vpop.f32.mrf.mxu0
    %v2837 = vadd.f32 0.0, %v2836
    %2838 = vmatmul.bf16.gmra.mxu0 %v2271
    %v2839 = vpop.f32.mrf.mxu0
    %v2840 = vadd.f32 0.0, %v2839
    %v2841 = vpop.f32.mrf.mxu0
    %v2842 = vadd.f32 0.0, %v2841
    %2843 = vmatmul.bf16.gmra.mxu0 %v2287
    %v2844 = vpop.f32.mrf.mxu0
    %v2845 = vadd.f32 0.0, %v2844
    %v2846 = vpop.f32.mrf.mxu0
    %v2847 = vadd.f32 0.0, %v2846
    %2848 = vmatmul.bf16.gmra.mxu0 %v2303
    %v2849 = vpop.f32.mrf.mxu0
    %v2850 = vadd.f32 0.0, %v2849
    %v2851 = vpop.f32.mrf.mxu0
    %v2852 = vadd.f32 0.0, %v2851
    %2853 = vmatmul.bf16.gmra.mxu0 %v2319
    %v2854 = vpop.f32.mrf.mxu0
    %v2855 = vadd.f32 0.0, %v2854
    %v2856 = vpop.f32.mrf.mxu0
    %v2857 = vadd.f32 0.0, %v2856
    %2858 = vmatmul.bf16.gmra.mxu0 %v2335
    %v2859 = vpop.f32.mrf.mxu0
    %v2860 = vadd.f32 0.0, %v2859
    %v2861 = vpop.f32.mrf.mxu0
    %v2862 = vadd.f32 0.0, %v2861
    %2863 = vmatmul.bf16.gmra.mxu0 %v2351
    %v2864 = vpop.f32.mrf.mxu0
    %v2865 = vadd.f32 0.0, %v2864
    %v2866 = vpop.f32.mrf.mxu0
    %v2867 = vadd.f32 0.0, %v2866
    %2868 = vmatmul.bf16.gmra.mxu0 %v2367
    %v2869 = vpop.f32.mrf.mxu0
    %v2870 = vadd.f32 0.0, %v2869
    %v2871 = vpop.f32.mrf.mxu0
    %v2872 = vadd.f32 0.0, %v2871
    %2873 = vmatmul.bf16.gmra.mxu0 %v2383
    %v2874 = vpop.f32.mrf.mxu0
    %v2875 = vadd.f32 0.0, %v2874
    %v2876 = vpop.f32.mrf.mxu0
    %v2877 = vadd.f32 0.0, %v2876
    %2878 = vmatmul.bf16.gmra.mxu0 %v2399
    %v2879 = vpop.f32.mrf.mxu0
    %v2880 = vadd.f32 0.0, %v2879
    %v2881 = vpop.f32.mrf.mxu0
    %v2882 = vadd.f32 0.0, %v2881
    %2883 = vmatmul.bf16.gmra.mxu0 %v2415
    %v2884 = vpop.f32.mrf.mxu0
    %v2885 = vadd.f32 0.0, %v2884
    %v2886 = vpop.f32.mrf.mxu0
    %v2887 = vadd.f32 0.0, %v2886
    %2888 = vmatmul.bf16.gmra.mxu0 %v2431
    %v2889 = vpop.f32.mrf.mxu0
    %v2890 = vadd.f32 0.0, %v2889
    %v2891 = vpop.f32.mrf.mxu0
    %v2892 = vadd.f32 0.0, %v2891
    %2893 = vmatmul.bf16.gmra.mxu0 %v2447
    %v2894 = vpop.f32.mrf.mxu0
    %v2895 = vadd.f32 0.0, %v2894
    %v2896 = vpop.f32.mrf.mxu0
    %v2897 = vadd.f32 0.0, %v2896
    %2898 = vmatmul.bf16.gmra.mxu0 %v2458
    %v2899 = vpop.f32.mrf.mxu0
    %v2900 = vadd.f32 0.0, %v2899
    %v2901 = vpop.f32.mrf.mxu0
    %v2902 = vadd.f32 0.0, %v2901
    %2903 = vdwg.mxu0
    %2904 = vmatpush.bf16.msra.mxu0 %v2619
    %2905 = vmatpush.bf16.msra.mxu0 %v2617
    %2906 = vmatpush.bf16.msra.mxu0 %v2615
    %2907 = vmatpush.bf16.msra.mxu0 %v2613
    %2908 = vmatpush.bf16.msra.mxu0 %v2611
    %2909 = vmatpush.bf16.msra.mxu0 %v2609
    %2910 = vmatpush.bf16.msra.mxu0 %v2607
    %2911 = vmatpush.bf16.msra.mxu0 %v2605
    %2912 = vmatmul.bf16.gmra.mxu0 %v2247
    %v2913 = vpop.f32.mrf.mxu0
    %v2914 = vadd.f32 %v2830, %v2913
    %v2915 = vpop.f32.mrf.mxu0
    %v2916 = vadd.f32 %v2832, %v2915
    %2917 = vmatmul.bf16.gmra.mxu0 %v2263
    %v2918 = vpop.f32.mrf.mxu0
    %v2919 = vadd.f32 %v2835, %v2918
    %v2920 = vpop.f32.mrf.mxu0
    %v2921 = vadd.f32 %v2837, %v2920
    %2922 = vmatmul.bf16.gmra.mxu0 %v2279
    %v2923 = vpop.f32.mrf.mxu0
    %v2924 = vadd.f32 %v2840, %v2923
    %v2925 = vpop.f32.mrf.mxu0
    %v2926 = vadd.f32 %v2842, %v2925
    %2927 = vmatmul.bf16.gmra.mxu0 %v2295
    %v2928 = vpop.f32.mrf.mxu0
    %v2929 = vadd.f32 %v2845, %v2928
    %v2930 = vpop.f32.mrf.mxu0
    %v2931 = vadd.f32 %v2847, %v2930
    %2932 = vmatmul.bf16.gmra.mxu0 %v2311
    %v2933 = vpop.f32.mrf.mxu0
    %v2934 = vadd.f32 %v2850, %v2933
    %v2935 = vpop.f32.mrf.mxu0
    %v2936 = vadd.f32 %v2852, %v2935
    %2937 = vmatmul.bf16.gmra.mxu0 %v2327
    %v2938 = vpop.f32.mrf.mxu0
    %v2939 = vadd.f32 %v2855, %v2938
    %v2940 = vpop.f32.mrf.mxu0
    %v2941 = vadd.f32 %v2857, %v2940
    %2942 = vmatmul.bf16.gmra.mxu0 %v2343
    %v2943 = vpop.f32.mrf.mxu0
    %v2944 = vadd.f32 %v2860, %v2943
    %v2945 = vpop.f32.mrf.mxu0
    %v2946 = vadd.f32 %v2862, %v2945
    %2947 = vmatmul.bf16.gmra.mxu0 %v2359
    %v2948 = vpop.f32.mrf.mxu0
    %v2949 = vadd.f32 %v2865, %v2948
    %v2950 = vpop.f32.mrf.mxu0
    %v2951 = vadd.f32 %v2867, %v2950
    %2952 = vmatmul.bf16.gmra.mxu0 %v2375
    %v2953 = vpop.f32.mrf.mxu0
    %v2954 = vadd.f32 %v2870, %v2953
    %v2955 = vpop.f32.mrf.mxu0
    %v2956 = vadd.f32 %v2872, %v2955
    %2957 = vmatmul.bf16.gmra.mxu0 %v2391
    %v2958 = vpop.f32.mrf.mxu0
    %v2959 = vadd.f32 %v2875, %v2958
    %v2960 = vpop.f32.mrf.mxu0
    %v2961 = vadd.f32 %v2877, %v2960
    %2962 = vmatmul.bf16.gmra.mxu0 %v2407
    %v2963 = vpop.f32.mrf.mxu0
    %v2964 = vadd.f32 %v2880, %v2963
    %v2965 = vpop.f32.mrf.mxu0
    %v2966 = vadd.f32 %v2882, %v2965
    %2967 = vmatmul.bf16.gmra.mxu0 %v2423
    %v2968 = vpop.f32.mrf.mxu0
    %v2969 = vadd.f32 %v2885, %v2968
    %v2970 = vpop.f32.mrf.mxu0
    %v2971 = vadd.f32 %v2887, %v2970
    %2972 = vmatmul.bf16.gmra.mxu0 %v2439
    %v2973 = vpop.f32.mrf.mxu0
    %v2974 = vadd.f32 %v2890, %v2973
    %v2975 = vpop.f32.mrf.mxu0
    %v2976 = vadd.f32 %v2892, %v2975
    %2977 = vmatmul.bf16.gmra.mxu0 %v2455
    %v2978 = vpop.f32.mrf.mxu0
    %v2979 = vadd.f32 %v2895, %v2978
    %v2980 = vpop.f32.mrf.mxu0
    %v2981 = vadd.f32 %v2897, %v2980
    %2982 = vmatmul.bf16.gmra.mxu0 %v2461
    %v2983 = vpop.f32.mrf.mxu0
    %v2984 = vadd.f32 %v2900, %v2983
    %v2985 = vpop.f32.mrf.mxu0
    %v2986 = vadd.f32 %v2902, %v2985
    %2987 = vdwg.mxu0
    %v2989 = vunpack.c.l.b16 %v2037
    %v2990 = vunpack.c.h.b16 %v2037
    %v2991 = vpack.c.b16 %v2989, %v2190
    %v2992 = vpack.c.b16 %v2990, %v2191
    %v3055 = vunpack.c.l.b16 %v2038
    %v3056 = vunpack.c.h.b16 %v2038
    %v3057 = vunpack.c.l.b16 %v2039
    %v3058 = vunpack.c.h.b16 %v2039
    %v3059 = vunpack.c.l.b16 %v2040
    %v3060 = vunpack.c.h.b16 %v2040
    %v3061 = vunpack.c.l.b16 %v2041
    %v3062 = vunpack.c.h.b16 %v2041
    %v3063 = vunpack.c.l.b16 %v2042
    %v3064 = vunpack.c.h.b16 %v2042
    %v3065 = vunpack.c.l.b16 %v2043
    %v3066 = vunpack.c.h.b16 %v2043
    %v3067 = vunpack.c.l.b16 %v2044
    %v3068 = vunpack.c.h.b16 %v2044
    %v3069 = vunpack.c.l.b16 %v2045
    %v3070 = vunpack.c.h.b16 %v2045
    %v3071 = vunpack.c.l.b16 %v2046
    %v3072 = vunpack.c.h.b16 %v2046
    %v3073 = vunpack.c.l.b16 %v2047
    %v3074 = vunpack.c.h.b16 %v2047
    %v3075 = vunpack.c.l.b16 %v2048
    %v3076 = vunpack.c.h.b16 %v2048
    %v3077 = vunpack.c.l.b16 %v2049
    %v3078 = vunpack.c.h.b16 %v2049
    %v3079 = vunpack.c.l.b16 %v2050
    %v3080 = vunpack.c.h.b16 %v2050
    %v3081 = vunpack.c.l.b16 %v2051
    %v3082 = vunpack.c.h.b16 %v2051
    %v3083 = vunpack.c.l.b16 %v2052
    %v3084 = vunpack.c.h.b16 %v2052
    %v3085 = vunpack.c.l.b16 %v2053
    %v3086 = vunpack.c.h.b16 %v2053
    %v3087 = vunpack.c.l.b16 %v2054
    %v3088 = vunpack.c.h.b16 %v2054
    %v3089 = vunpack.c.l.b16 %v2055
    %v3090 = vunpack.c.h.b16 %v2055
    %v3091 = vunpack.c.l.b16 %v2056
    %v3092 = vunpack.c.h.b16 %v2056
    %v3093 = vunpack.c.l.b16 %v2057
    %v3094 = vunpack.c.h.b16 %v2057
    %v3095 = vunpack.c.l.b16 %v2058
    %v3096 = vunpack.c.h.b16 %v2058
    %v3097 = vunpack.c.l.b16 %v2059
    %v3098 = vunpack.c.h.b16 %v2059
    %v3099 = vunpack.c.l.b16 %v2060
    %v3100 = vunpack.c.h.b16 %v2060
    %v3101 = vunpack.c.l.b16 %v2061
    %v3102 = vunpack.c.h.b16 %v2061
    %v3103 = vunpack.c.l.b16 %v2062
    %v3104 = vunpack.c.h.b16 %v2062
    %v3105 = vunpack.c.l.b16 %v2063
    %v3106 = vunpack.c.h.b16 %v2063
    %v3107 = vunpack.c.l.b16 %v2064
    %v3108 = vunpack.c.h.b16 %v2064
    %v3109 = vunpack.c.l.b16 %v2065
    %v3110 = vunpack.c.h.b16 %v2065
    %v3111 = vunpack.c.l.b16 %v2066
    %v3112 = vunpack.c.h.b16 %v2066
    %v3113 = vunpack.c.l.b16 %v2067
    %v3114 = vunpack.c.h.b16 %v2067
    %v3115 = vunpack.c.l.b16 %v2068
    %v3116 = vunpack.c.h.b16 %v2068
    %v3117 = vunpack.c.l.b16 %v2069
    %v3118 = vunpack.c.h.b16 %v2069
    %v3119 = vpack.c.b16 %v3057, %v3055
    %v3120 = vpack.c.b16 %v3058, %v3056
    %v3121 = vpack.c.b16 %v3061, %v3059
    %v3122 = vpack.c.b16 %v3062, %v3060
    %v3123 = vpack.c.b16 %v3065, %v3063
    %v3124 = vpack.c.b16 %v3066, %v3064
    %v3125 = vpack.c.b16 %v3069, %v3067
    %v3126 = vpack.c.b16 %v3070, %v3068
    %v3127 = vpack.c.b16 %v3073, %v3071
    %v3128 = vpack.c.b16 %v3074, %v3072
    %v3129 = vpack.c.b16 %v3077, %v3075
    %v3130 = vpack.c.b16 %v3078, %v3076
    %v3131 = vpack.c.b16 %v3081, %v3079
    %v3132 = vpack.c.b16 %v3082, %v3080
    %v3133 = vpack.c.b16 %v3085, %v3083
    %v3134 = vpack.c.b16 %v3086, %v3084
    %v3135 = vpack.c.b16 %v3089, %v3087
    %v3136 = vpack.c.b16 %v3090, %v3088
    %v3137 = vpack.c.b16 %v3093, %v3091
    %v3138 = vpack.c.b16 %v3094, %v3092
    %v3139 = vpack.c.b16 %v3097, %v3095
    %v3140 = vpack.c.b16 %v3098, %v3096
    %v3141 = vpack.c.b16 %v3101, %v3099
    %v3142 = vpack.c.b16 %v3102, %v3100
    %v3143 = vpack.c.b16 %v3105, %v3103
    %v3144 = vpack.c.b16 %v3106, %v3104
    %v3145 = vpack.c.b16 %v3109, %v3107
    %v3146 = vpack.c.b16 %v3110, %v3108
    %v3147 = vpack.c.b16 %v3113, %v3111
    %v3148 = vpack.c.b16 %v3114, %v3112
    %v3149 = vpack.c.b16 %v3117, %v3115
    %v3150 = vpack.c.b16 %v3118, %v3116
    %3183 = vmatpush.bf16.msra.mxu0 %v3133
    %3184 = vmatpush.bf16.msra.mxu0 %v3131
    %3185 = vmatpush.bf16.msra.mxu0 %v3129
    %3186 = vmatpush.bf16.msra.mxu0 %v3127
    %3187 = vmatpush.bf16.msra.mxu0 %v3125
    %3188 = vmatpush.bf16.msra.mxu0 %v3123
    %3189 = vmatpush.bf16.msra.mxu0 %v3121
    %3190 = vmatpush.bf16.msra.mxu0 %v3119
    %3191 = vmatmul.bf16.gmra.mxu0 %v2194
    %v3192 = vpop.f32.mrf.mxu0
    %v3193 = vadd.f32 %v2746, %v3192
    %v3194 = vpop.f32.mrf.mxu0
    %v3195 = vadd.f32 %v2748, %v3194
    %3196 = vmatmul.bf16.gmra.mxu0 %v2196
    %v3197 = vpop.f32.mrf.mxu0
    %v3198 = vadd.f32 %v2751, %v3197
    %v3199 = vpop.f32.mrf.mxu0
    %v3200 = vadd.f32 %v2753, %v3199
    %3201 = vmatmul.bf16.gmra.mxu0 %v2198
    %v3202 = vpop.f32.mrf.mxu0
    %v3203 = vadd.f32 %v2756, %v3202
    %v3204 = vpop.f32.mrf.mxu0
    %v3205 = vadd.f32 %v2758, %v3204
    %3206 = vmatmul.bf16.gmra.mxu0 %v2200
    %v3207 = vpop.f32.mrf.mxu0
    %v3208 = vadd.f32 %v2761, %v3207
    %v3209 = vpop.f32.mrf.mxu0
    %v3210 = vadd.f32 %v2763, %v3209
    %3211 = vmatmul.bf16.gmra.mxu0 %v2202
    %v3212 = vpop.f32.mrf.mxu0
    %v3213 = vadd.f32 %v2766, %v3212
    %v3214 = vpop.f32.mrf.mxu0
    %v3215 = vadd.f32 %v2768, %v3214
    %3216 = vmatmul.bf16.gmra.mxu0 %v2204
    %v3217 = vpop.f32.mrf.mxu0
    %v3218 = vadd.f32 %v2771, %v3217
    %v3219 = vpop.f32.mrf.mxu0
    %v3220 = vadd.f32 %v2773, %v3219
    %3221 = vmatmul.bf16.gmra.mxu0 %v2206
    %v3222 = vpop.f32.mrf.mxu0
    %v3223 = vadd.f32 %v2776, %v3222
    %v3224 = vpop.f32.mrf.mxu0
    %v3225 = vadd.f32 %v2778, %v3224
    %3226 = vmatmul.bf16.gmra.mxu0 %v2208
    %v3227 = vpop.f32.mrf.mxu0
    %v3228 = vadd.f32 %v2781, %v3227
    %v3229 = vpop.f32.mrf.mxu0
    %v3230 = vadd.f32 %v2783, %v3229
    %3231 = vmatmul.bf16.gmra.mxu0 %v2210
    %v3232 = vpop.f32.mrf.mxu0
    %v3233 = vadd.f32 %v2786, %v3232
    %v3234 = vpop.f32.mrf.mxu0
    %v3235 = vadd.f32 %v2788, %v3234
    %3236 = vmatmul.bf16.gmra.mxu0 %v2212
    %v3237 = vpop.f32.mrf.mxu0
    %v3238 = vadd.f32 %v2791, %v3237
    %v3239 = vpop.f32.mrf.mxu0
    %v3240 = vadd.f32 %v2793, %v3239
    %3241 = vmatmul.bf16.gmra.mxu0 %v2214
    %v3242 = vpop.f32.mrf.mxu0
    %v3243 = vadd.f32 %v2796, %v3242
    %v3244 = vpop.f32.mrf.mxu0
    %v3245 = vadd.f32 %v2798, %v3244
    %3246 = vmatmul.bf16.gmra.mxu0 %v2216
    %v3247 = vpop.f32.mrf.mxu0
    %v3248 = vadd.f32 %v2801, %v3247
    %v3249 = vpop.f32.mrf.mxu0
    %v3250 = vadd.f32 %v2803, %v3249
    %3251 = vmatmul.bf16.gmra.mxu0 %v2218
    %v3252 = vpop.f32.mrf.mxu0
    %v3253 = vadd.f32 %v2806, %v3252
    %v3254 = vpop.f32.mrf.mxu0
    %v3255 = vadd.f32 %v2808, %v3254
    %3256 = vmatmul.bf16.gmra.mxu0 %v2220
    %v3257 = vpop.f32.mrf.mxu0
    %v3258 = vadd.f32 %v2811, %v3257
    %v3259 = vpop.f32.mrf.mxu0
    %v3260 = vadd.f32 %v2813, %v3259
    %3261 = vmatmul.bf16.gmra.mxu0 %v2991
    %v3262 = vpop.f32.mrf.mxu0
    %v3263 = vadd.f32 %v2816, %v3262
    %v3264 = vpop.f32.mrf.mxu0
    %v3265 = vadd.f32 %v2818, %v3264
    %3266 = vdwg.mxu0
    %3267 = vmatpush.bf16.msra.mxu0 %v3149
    %3268 = vmatpush.bf16.msra.mxu0 %v3147
    %3269 = vmatpush.bf16.msra.mxu0 %v3145
    %3270 = vmatpush.bf16.msra.mxu0 %v3143
    %3271 = vmatpush.bf16.msra.mxu0 %v3141
    %3272 = vmatpush.bf16.msra.mxu0 %v3139
    %3273 = vmatpush.bf16.msra.mxu0 %v3137
    %3274 = vmatpush.bf16.msra.mxu0 %v3135
    %3275 = vmatmul.bf16.gmra.mxu0 %v2195
    %v3276 = vpop.f32.mrf.mxu0
    %v3277 = vadd.f32 %v3193, %v3276
    %v3278 = vpop.f32.mrf.mxu0
    %v3279 = vadd.f32 %v3195, %v3278
    %3280 = vmatmul.bf16.gmra.mxu0 %v2197
    %v3281 = vpop.f32.mrf.mxu0
    %v3282 = vadd.f32 %v3198, %v3281
    %v3283 = vpop.f32.mrf.mxu0
    %v3284 = vadd.f32 %v3200, %v3283
    %3285 = vmatmul.bf16.gmra.mxu0 %v2199
    %v3286 = vpop.f32.mrf.mxu0
    %v3287 = vadd.f32 %v3203, %v3286
    %v3288 = vpop.f32.mrf.mxu0
    %v3289 = vadd.f32 %v3205, %v3288
    %3290 = vmatmul.bf16.gmra.mxu0 %v2201
    %v3291 = vpop.f32.mrf.mxu0
    %v3292 = vadd.f32 %v3208, %v3291
    %v3293 = vpop.f32.mrf.mxu0
    %v3294 = vadd.f32 %v3210, %v3293
    %3295 = vmatmul.bf16.gmra.mxu0 %v2203
    %v3296 = vpop.f32.mrf.mxu0
    %v3297 = vadd.f32 %v3213, %v3296
    %v3298 = vpop.f32.mrf.mxu0
    %v3299 = vadd.f32 %v3215, %v3298
    %3300 = vmatmul.bf16.gmra.mxu0 %v2205
    %v3301 = vpop.f32.mrf.mxu0
    %v3302 = vadd.f32 %v3218, %v3301
    %v3303 = vpop.f32.mrf.mxu0
    %v3304 = vadd.f32 %v3220, %v3303
    %3305 = vmatmul.bf16.gmra.mxu0 %v2207
    %v3306 = vpop.f32.mrf.mxu0
    %v3307 = vadd.f32 %v3223, %v3306
    %v3308 = vpop.f32.mrf.mxu0
    %v3309 = vadd.f32 %v3225, %v3308
    %3310 = vmatmul.bf16.gmra.mxu0 %v2209
    %v3311 = vpop.f32.mrf.mxu0
    %v3312 = vadd.f32 %v3228, %v3311
    %v3313 = vpop.f32.mrf.mxu0
    %v3314 = vadd.f32 %v3230, %v3313
    %3315 = vmatmul.bf16.gmra.mxu0 %v2211
    %v3316 = vpop.f32.mrf.mxu0
    %v3317 = vadd.f32 %v3233, %v3316
    %v3318 = vpop.f32.mrf.mxu0
    %v3319 = vadd.f32 %v3235, %v3318
    %3320 = vmatmul.bf16.gmra.mxu0 %v2213
    %v3321 = vpop.f32.mrf.mxu0
    %v3322 = vadd.f32 %v3238, %v3321
    %v3323 = vpop.f32.mrf.mxu0
    %v3324 = vadd.f32 %v3240, %v3323
    %3325 = vmatmul.bf16.gmra.mxu0 %v2215
    %v3326 = vpop.f32.mrf.mxu0
    %v3327 = vadd.f32 %v3243, %v3326
    %v3328 = vpop.f32.mrf.mxu0
    %v3329 = vadd.f32 %v3245, %v3328
    %3330 = vmatmul.bf16.gmra.mxu0 %v2217
    %v3331 = vpop.f32.mrf.mxu0
    %v3332 = vadd.f32 %v3248, %v3331
    %v3333 = vpop.f32.mrf.mxu0
    %v3334 = vadd.f32 %v3250, %v3333
    %3335 = vmatmul.bf16.gmra.mxu0 %v2219
    %v3336 = vpop.f32.mrf.mxu0
    %v3337 = vadd.f32 %v3253, %v3336
    %v3338 = vpop.f32.mrf.mxu0
    %v3339 = vadd.f32 %v3255, %v3338
    %3340 = vmatmul.bf16.gmra.mxu0 %v2221
    %v3341 = vpop.f32.mrf.mxu0
    %v3342 = vadd.f32 %v3258, %v3341
    %v3343 = vpop.f32.mrf.mxu0
    %v3344 = vadd.f32 %v3260, %v3343
    %3345 = vmatmul.bf16.gmra.mxu0 %v2992
    %v3346 = vpop.f32.mrf.mxu0
    %v3347 = vadd.f32 %v3263, %v3346
    %v3348 = vpop.f32.mrf.mxu0
    %v3349 = vadd.f32 %v3265, %v3348
    %3350 = vdwg.mxu0
    %3351 = vmatpush.bf16.msra.mxu0 %v3134
    %3352 = vmatpush.bf16.msra.mxu0 %v3132
    %3353 = vmatpush.bf16.msra.mxu0 %v3130
    %3354 = vmatpush.bf16.msra.mxu0 %v3128
    %3355 = vmatpush.bf16.msra.mxu0 %v3126
    %3356 = vmatpush.bf16.msra.mxu0 %v3124
    %3357 = vmatpush.bf16.msra.mxu0 %v3122
    %3358 = vmatpush.bf16.msra.mxu0 %v3120
    %3359 = vmatmul.bf16.gmra.mxu0 %v2194
    %v3360 = vpop.f32.mrf.mxu0
    %v3361 = vadd.f32 %v2914, %v3360
    %v3362 = vpop.f32.mrf.mxu0
    %v3363 = vadd.f32 %v2916, %v3362
    %3364 = vmatmul.bf16.gmra.mxu0 %v2196
    %v3365 = vpop.f32.mrf.mxu0
    %v3366 = vadd.f32 %v2919, %v3365
    %v3367 = vpop.f32.mrf.mxu0
    %v3368 = vadd.f32 %v2921, %v3367
    %3369 = vmatmul.bf16.gmra.mxu0 %v2198
    %v3370 = vpop.f32.mrf.mxu0
    %v3371 = vadd.f32 %v2924, %v3370
    %v3372 = vpop.f32.mrf.mxu0
    %v3373 = vadd.f32 %v2926, %v3372
    %3374 = vmatmul.bf16.gmra.mxu0 %v2200
    %v3375 = vpop.f32.mrf.mxu0
    %v3376 = vadd.f32 %v2929, %v3375
    %v3377 = vpop.f32.mrf.mxu0
    %v3378 = vadd.f32 %v2931, %v3377
    %3379 = vmatmul.bf16.gmra.mxu0 %v2202
    %v3380 = vpop.f32.mrf.mxu0
    %v3381 = vadd.f32 %v2934, %v3380
    %v3382 = vpop.f32.mrf.mxu0
    %v3383 = vadd.f32 %v2936, %v3382
    %3384 = vmatmul.bf16.gmra.mxu0 %v2204
    %v3385 = vpop.f32.mrf.mxu0
    %v3386 = vadd.f32 %v2939, %v3385
    %v3387 = vpop.f32.mrf.mxu0
    %v3388 = vadd.f32 %v2941, %v3387
    %3389 = vmatmul.bf16.gmra.mxu0 %v2206
    %v3390 = vpop.f32.mrf.mxu0
    %v3391 = vadd.f32 %v2944, %v3390
    %v3392 = vpop.f32.mrf.mxu0
    %v3393 = vadd.f32 %v2946, %v3392
    %3394 = vmatmul.bf16.gmra.mxu0 %v2208
    %v3395 = vpop.f32.mrf.mxu0
    %v3396 = vadd.f32 %v2949, %v3395
    %v3397 = vpop.f32.mrf.mxu0
    %v3398 = vadd.f32 %v2951, %v3397
    %3399 = vmatmul.bf16.gmra.mxu0 %v2210
    %v3400 = vpop.f32.mrf.mxu0
    %v3401 = vadd.f32 %v2954, %v3400
    %v3402 = vpop.f32.mrf.mxu0
    %v3403 = vadd.f32 %v2956, %v3402
    %3404 = vmatmul.bf16.gmra.mxu0 %v2212
    %v3405 = vpop.f32.mrf.mxu0
    %v3406 = vadd.f32 %v2959, %v3405
    %v3407 = vpop.f32.mrf.mxu0
    %v3408 = vadd.f32 %v2961, %v3407
    %3409 = vmatmul.bf16.gmra.mxu0 %v2214
    %v3410 = vpop.f32.mrf.mxu0
    %v3411 = vadd.f32 %v2964, %v3410
    %v3412 = vpop.f32.mrf.mxu0
    %v3413 = vadd.f32 %v2966, %v3412
    %3414 = vmatmul.bf16.gmra.mxu0 %v2216
    %v3415 = vpop.f32.mrf.mxu0
    %v3416 = vadd.f32 %v2969, %v3415
    %v3417 = vpop.f32.mrf.mxu0
    %v3418 = vadd.f32 %v2971, %v3417
    %3419 = vmatmul.bf16.gmra.mxu0 %v2218
    %v3420 = vpop.f32.mrf.mxu0
    %v3421 = vadd.f32 %v2974, %v3420
    %v3422 = vpop.f32.mrf.mxu0
    %v3423 = vadd.f32 %v2976, %v3422
    %3424 = vmatmul.bf16.gmra.mxu0 %v2220
    %v3425 = vpop.f32.mrf.mxu0
    %v3426 = vadd.f32 %v2979, %v3425
    %v3427 = vpop.f32.mrf.mxu0
    %v3428 = vadd.f32 %v2981, %v3427
    %3429 = vmatmul.bf16.gmra.mxu0 %v2991
    %v3430 = vpop.f32.mrf.mxu0
    %v3431 = vadd.f32 %v2984, %v3430
    %v3432 = vpop.f32.mrf.mxu0
    %v3433 = vadd.f32 %v2986, %v3432
    %3434 = vdwg.mxu0
    %3435 = vmatpush.bf16.msra.mxu0 %v3150
    %3436 = vmatpush.bf16.msra.mxu0 %v3148
    %3437 = vmatpush.bf16.msra.mxu0 %v3146
    %3438 = vmatpush.bf16.msra.mxu0 %v3144
    %3439 = vmatpush.bf16.msra.mxu0 %v3142
    %3440 = vmatpush.bf16.msra.mxu0 %v3140
    %3441 = vmatpush.bf16.msra.mxu0 %v3138
    %3442 = vmatpush.bf16.msra.mxu0 %v3136
    %3443 = vmatmul.bf16.gmra.mxu0 %v2195
    %v3444 = vpop.f32.mrf.mxu0
    %v3445 = vadd.f32 %v3361, %v3444
    %v3446 = vpop.f32.mrf.mxu0
    %v3447 = vadd.f32 %v3363, %v3446
    %3448 = vmatmul.bf16.gmra.mxu0 %v2197
    %v3449 = vpop.f32.mrf.mxu0
    %v3450 = vadd.f32 %v3366, %v3449
    %v3451 = vpop.f32.mrf.mxu0
    %v3452 = vadd.f32 %v3368, %v3451
    %3453 = vmatmul.bf16.gmra.mxu0 %v2199
    %v3454 = vpop.f32.mrf.mxu0
    %v3455 = vadd.f32 %v3371, %v3454
    %v3456 = vpop.f32.mrf.mxu0
    %v3457 = vadd.f32 %v3373, %v3456
    %3458 = vmatmul.bf16.gmra.mxu0 %v2201
    %v3459 = vpop.f32.mrf.mxu0
    %v3460 = vadd.f32 %v3376, %v3459
    %v3461 = vpop.f32.mrf.mxu0
    %v3462 = vadd.f32 %v3378, %v3461
    %3463 = vmatmul.bf16.gmra.mxu0 %v2203
    %v3464 = vpop.f32.mrf.mxu0
    %v3465 = vadd.f32 %v3381, %v3464
    %v3466 = vpop.f32.mrf.mxu0
    %v3467 = vadd.f32 %v3383, %v3466
    %3468 = vmatmul.bf16.gmra.mxu0 %v2205
    %v3469 = vpop.f32.mrf.mxu0
    %v3470 = vadd.f32 %v3386, %v3469
    %v3471 = vpop.f32.mrf.mxu0
    %v3472 = vadd.f32 %v3388, %v3471
    %3473 = vmatmul.bf16.gmra.mxu0 %v2207
    %v3474 = vpop.f32.mrf.mxu0
    %v3475 = vadd.f32 %v3391, %v3474
    %v3476 = vpop.f32.mrf.mxu0
    %v3477 = vadd.f32 %v3393, %v3476
    %3478 = vmatmul.bf16.gmra.mxu0 %v2209
    %v3479 = vpop.f32.mrf.mxu0
    %v3480 = vadd.f32 %v3396, %v3479
    %v3481 = vpop.f32.mrf.mxu0
    %v3482 = vadd.f32 %v3398, %v3481
    %3483 = vmatmul.bf16.gmra.mxu0 %v2211
    %v3484 = vpop.f32.mrf.mxu0
    %v3485 = vadd.f32 %v3401, %v3484
    %v3486 = vpop.f32.mrf.mxu0
    %v3487 = vadd.f32 %v3403, %v3486
    %3488 = vmatmul.bf16.gmra.mxu0 %v2213
    %v3489 = vpop.f32.mrf.mxu0
    %v3490 = vadd.f32 %v3406, %v3489
    %v3491 = vpop.f32.mrf.mxu0
    %v3492 = vadd.f32 %v3408, %v3491
    %3493 = vmatmul.bf16.gmra.mxu0 %v2215
    %v3494 = vpop.f32.mrf.mxu0
    %v3495 = vadd.f32 %v3411, %v3494
    %v3496 = vpop.f32.mrf.mxu0
    %v3497 = vadd.f32 %v3413, %v3496
    %3498 = vmatmul.bf16.gmra.mxu0 %v2217
    %v3499 = vpop.f32.mrf.mxu0
    %v3500 = vadd.f32 %v3416, %v3499
    %v3501 = vpop.f32.mrf.mxu0
    %v3502 = vadd.f32 %v3418, %v3501
    %3503 = vmatmul.bf16.gmra.mxu0 %v2219
    %v3504 = vpop.f32.mrf.mxu0
    %v3505 = vadd.f32 %v3421, %v3504
    %v3506 = vpop.f32.mrf.mxu0
    %v3507 = vadd.f32 %v3423, %v3506
    %3508 = vmatmul.bf16.gmra.mxu0 %v2221
    %v3509 = vpop.f32.mrf.mxu0
    %v3510 = vadd.f32 %v3426, %v3509
    %v3511 = vpop.f32.mrf.mxu0
    %v3512 = vadd.f32 %v3428, %v3511
    %3513 = vmatmul.bf16.gmra.mxu0 %v2992
    %v3514 = vpop.f32.mrf.mxu0
    %v3515 = vadd.f32 %v3431, %v3514
    %v3516 = vpop.f32.mrf.mxu0
    %v3517 = vadd.f32 %v3433, %v3516
    %3518 = vdwg.mxu0
    %v3519 = vld [vmem:[#allocation2] sm:$0xee]
    %s3520 = scalar_lea.vmem [#allocation5], 512
    %v3521 = vld [vmem:[%s3520] sm:$0xff]
    %v3522 = vld [vmem:[%s3520 + $0x8] sm:$0xff]
    %v3523 = vld [vmem:[%s3520 + $0x10] sm:$0xff]
    %v3524 = vld [vmem:[%s3520 + $0x18] sm:$0xff]
    %v3525 = vld [vmem:[%s3520 + $0x20] sm:$0xff]
    %v3526 = vld [vmem:[%s3520 + $0x28] sm:$0xff]
    %v3527 = vld [vmem:[%s3520 + $0x30] sm:$0xff]
    %v3528 = vld [vmem:[%s3520 + $0x38] sm:$0xff]
    %v3529 = vld [vmem:[%s3520 + $0x40] sm:$0xff]
    %v3530 = vld [vmem:[%s3520 + $0x48] sm:$0xff]
    %v3531 = vld [vmem:[%s3520 + $0x50] sm:$0xff]
    %v3532 = vld [vmem:[%s3520 + $0x58] sm:$0xff]
    %v3533 = vld [vmem:[%s3520 + $0x60] sm:$0xff]
    %v3534 = vld [vmem:[%s3520 + $0x68] sm:$0xff]
    %v3535 = vld [vmem:[%s3520 + $0x70] sm:$0xff]
    %v3536 = vld [vmem:[%s3520 + $0x78] sm:$0xff]
    %v3537 = vld [vmem:[%s3520 + $0x80] sm:$0xff]
    %v3538 = vld [vmem:[%s3520 + $0x88] sm:$0xff]
    %v3539 = vld [vmem:[%s3520 + $0x90] sm:$0xff]
    %v3540 = vld [vmem:[%s3520 + $0x98] sm:$0xff]
    %v3541 = vld [vmem:[%s3520 + $0xa0] sm:$0xff]
    %v3542 = vld [vmem:[%s3520 + $0xa8] sm:$0xff]
    %v3543 = vld [vmem:[%s3520 + $0xb0] sm:$0xff]
    %v3544 = vld [vmem:[%s3520 + $0xb8] sm:$0xff]
    %v3545 = vld [vmem:[%s3520 + $0xc0] sm:$0xff]
    %v3546 = vld [vmem:[%s3520 + $0xc8] sm:$0xff]
    %v3547 = vld [vmem:[%s3520 + $0xd0] sm:$0xff]
    %v3548 = vld [vmem:[%s3520 + $0xd8] sm:$0xff]
    %v3549 = vld [vmem:[%s3520 + $0xe0] sm:$0xff]
    %v3550 = vld [vmem:[%s3520 + $0xe8] sm:$0xff]
    %v3551 = vld [vmem:[%s3520 + $0xf0] sm:$0xff]
    %v3552 = vld [vmem:[%s3520 + $0xf8] sm:$0xff]
    %v3554 = vunpack.c.l.b16 %v3519
    %v3555 = vunpack.c.h.b16 %v3519
    %v3556 = vpack.c.b16 %v2136, %v3554
    %v3557 = vpack.c.b16 %v2137, %v3555
    %v3558 = vrot.slane %v3556, 1
    %v3559 = vrot.slane %v2196, 1
    %v3560 = vsel %vm894, %v3558, %v3559
    %v3561 = vrot.slane %v3557, 1
    %v3562 = vrot.slane %v2197, 1
    %v3563 = vsel %vm894, %v3561, %v3562
    %v3564 = vrot.slane %v2198, 1
    %v3565 = vsel %vm894, %v3559, %v3564
    %v3566 = vrot.slane %v2199, 1
    %v3567 = vsel %vm894, %v3562, %v3566
    %v3568 = vrot.slane %v2200, 1
    %v3569 = vsel %vm894, %v3564, %v3568
    %v3570 = vrot.slane %v2201, 1
    %v3571 = vsel %vm894, %v3566, %v3570
    %v3572 = vrot.slane %v2202, 1
    %v3573 = vsel %vm894, %v3568, %v3572
    %v3574 = vrot.slane %v2203, 1
    %v3575 = vsel %vm894, %v3570, %v3574
    %v3576 = vrot.slane %v2204, 1
    %v3577 = vsel %vm894, %v3572, %v3576
    %v3578 = vrot.slane %v2205, 1
    %v3579 = vsel %vm894, %v3574, %v3578
    %v3580 = vrot.slane %v2206, 1
    %v3581 = vsel %vm894, %v3576, %v3580
    %v3582 = vrot.slane %v2207, 1
    %v3583 = vsel %vm894, %v3578, %v3582
    %v3584 = vrot.slane %v2208, 1
    %v3585 = vsel %vm894, %v3580, %v3584
    %v3586 = vrot.slane %v2209, 1
    %v3587 = vsel %vm894, %v3582, %v3586
    %v3588 = vrot.slane %v2210, 1
    %v3589 = vsel %vm894, %v3584, %v3588
    %v3590 = vrot.slane %v2211, 1
    %v3591 = vsel %vm894, %v3586, %v3590
    %v3592 = vrot.slane %v2212, 1
    %v3593 = vsel %vm894, %v3588, %v3592
    %v3594 = vrot.slane %v2213, 1
    %v3595 = vsel %vm894, %v3590, %v3594
    %v3596 = vrot.slane %v2214, 1
    %v3597 = vsel %vm894, %v3592, %v3596
    %v3598 = vrot.slane %v2215, 1
    %v3599 = vsel %vm894, %v3594, %v3598
    %v3600 = vrot.slane %v2216, 1
    %v3601 = vsel %vm894, %v3596, %v3600
    %v3602 = vrot.slane %v2217, 1
    %v3603 = vsel %vm894, %v3598, %v3602
    %v3604 = vrot.slane %v2218, 1
    %v3605 = vsel %vm894, %v3600, %v3604
    %v3606 = vrot.slane %v2219, 1
    %v3607 = vsel %vm894, %v3602, %v3606
    %v3608 = vrot.slane %v2220, 1
    %v3609 = vsel %vm894, %v3604, %v3608
    %v3610 = vrot.slane %v2221, 1
    %v3611 = vsel %vm894, %v3606, %v3610
    %v3612 = vrot.slane %v2222, 1
    %v3613 = vsel %vm894, %v3608, %v3612
    %v3614 = vrot.slane %v2223, 1
    %v3615 = vsel %vm894, %v3610, %v3614
    %v3678 = vunpack.c.l.b16 %v3521
    %v3679 = vunpack.c.h.b16 %v3521
    %v3680 = vunpack.c.l.b16 %v3522
    %v3681 = vunpack.c.h.b16 %v3522
    %v3682 = vunpack.c.l.b16 %v3523
    %v3683 = vunpack.c.h.b16 %v3523
    %v3684 = vunpack.c.l.b16 %v3524
    %v3685 = vunpack.c.h.b16 %v3524
    %v3686 = vunpack.c.l.b16 %v3525
    %v3687 = vunpack.c.h.b16 %v3525
    %v3688 = vunpack.c.l.b16 %v3526
    %v3689 = vunpack.c.h.b16 %v3526
    %v3690 = vunpack.c.l.b16 %v3527
    %v3691 = vunpack.c.h.b16 %v3527
    %v3692 = vunpack.c.l.b16 %v3528
    %v3693 = vunpack.c.h.b16 %v3528
    %v3694 = vunpack.c.l.b16 %v3529
    %v3695 = vunpack.c.h.b16 %v3529
    %v3696 = vunpack.c.l.b16 %v3530
    %v3697 = vunpack.c.h.b16 %v3530
    %v3698 = vunpack.c.l.b16 %v3531
    %v3699 = vunpack.c.h.b16 %v3531
    %v3700 = vunpack.c.l.b16 %v3532
    %v3701 = vunpack.c.h.b16 %v3532
    %v3702 = vunpack.c.l.b16 %v3533
    %v3703 = vunpack.c.h.b16 %v3533
    %v3704 = vunpack.c.l.b16 %v3534
    %v3705 = vunpack.c.h.b16 %v3534
    %v3706 = vunpack.c.l.b16 %v3535
    %v3707 = vunpack.c.h.b16 %v3535
    %v3708 = vunpack.c.l.b16 %v3536
    %v3709 = vunpack.c.h.b16 %v3536
    %v3710 = vunpack.c.l.b16 %v3537
    %v3711 = vunpack.c.h.b16 %v3537
    %v3712 = vunpack.c.l.b16 %v3538
    %v3713 = vunpack.c.h.b16 %v3538
    %v3714 = vunpack.c.l.b16 %v3539
    %v3715 = vunpack.c.h.b16 %v3539
    %v3716 = vunpack.c.l.b16 %v3540
    %v3717 = vunpack.c.h.b16 %v3540
    %v3718 = vunpack.c.l.b16 %v3541
    %v3719 = vunpack.c.h.b16 %v3541
    %v3720 = vunpack.c.l.b16 %v3542
    %v3721 = vunpack.c.h.b16 %v3542
    %v3722 = vunpack.c.l.b16 %v3543
    %v3723 = vunpack.c.h.b16 %v3543
    %v3724 = vunpack.c.l.b16 %v3544
    %v3725 = vunpack.c.h.b16 %v3544
    %v3726 = vunpack.c.l.b16 %v3545
    %v3727 = vunpack.c.h.b16 %v3545
    %v3728 = vunpack.c.l.b16 %v3546
    %v3729 = vunpack.c.h.b16 %v3546
    %v3730 = vunpack.c.l.b16 %v3547
    %v3731 = vunpack.c.h.b16 %v3547
    %v3732 = vunpack.c.l.b16 %v3548
    %v3733 = vunpack.c.h.b16 %v3548
    %v3734 = vunpack.c.l.b16 %v3549
    %v3735 = vunpack.c.h.b16 %v3549
    %v3736 = vunpack.c.l.b16 %v3550
    %v3737 = vunpack.c.h.b16 %v3550
    %v3738 = vunpack.c.l.b16 %v3551
    %v3739 = vunpack.c.h.b16 %v3551
    %v3740 = vunpack.c.l.b16 %v3552
    %v3741 = vunpack.c.h.b16 %v3552
    %v3742 = vpack.c.b16 %v3680, %v3678
    %v3743 = vpack.c.b16 %v3681, %v3679
    %v3744 = vpack.c.b16 %v3684, %v3682
    %v3745 = vpack.c.b16 %v3685, %v3683
    %v3746 = vpack.c.b16 %v3688, %v3686
    %v3747 = vpack.c.b16 %v3689, %v3687
    %v3748 = vpack.c.b16 %v3692, %v3690
    %v3749 = vpack.c.b16 %v3693, %v3691
    %v3750 = vpack.c.b16 %v3696, %v3694
    %v3751 = vpack.c.b16 %v3697, %v3695
    %v3752 = vpack.c.b16 %v3700, %v3698
    %v3753 = vpack.c.b16 %v3701, %v3699
    %v3754 = vpack.c.b16 %v3704, %v3702
    %v3755 = vpack.c.b16 %v3705, %v3703
    %v3756 = vpack.c.b16 %v3708, %v3706
    %v3757 = vpack.c.b16 %v3709, %v3707
    %v3758 = vpack.c.b16 %v3712, %v3710
    %v3759 = vpack.c.b16 %v3713, %v3711
    %v3760 = vpack.c.b16 %v3716, %v3714
    %v3761 = vpack.c.b16 %v3717, %v3715
    %v3762 = vpack.c.b16 %v3720, %v3718
    %v3763 = vpack.c.b16 %v3721, %v3719
    %v3764 = vpack.c.b16 %v3724, %v3722
    %v3765 = vpack.c.b16 %v3725, %v3723
    %v3766 = vpack.c.b16 %v3728, %v3726
    %v3767 = vpack.c.b16 %v3729, %v3727
    %v3768 = vpack.c.b16 %v3732, %v3730
    %v3769 = vpack.c.b16 %v3733, %v3731
    %v3770 = vpack.c.b16 %v3736, %v3734
    %v3771 = vpack.c.b16 %v3737, %v3735
    %v3772 = vpack.c.b16 %v3740, %v3738
    %v3773 = vpack.c.b16 %v3741, %v3739
    %3806 = vmatpush.bf16.msra.mxu0 %v3756
    %3807 = vmatpush.bf16.msra.mxu0 %v3754
    %3808 = vmatpush.bf16.msra.mxu0 %v3752
    %3809 = vmatpush.bf16.msra.mxu0 %v3750
    %3810 = vmatpush.bf16.msra.mxu0 %v3748
    %3811 = vmatpush.bf16.msra.mxu0 %v3746
    %3812 = vmatpush.bf16.msra.mxu0 %v3744
    %3813 = vmatpush.bf16.msra.mxu0 %v3742
    %3814 = vmatmul.bf16.gmra.mxu0 %v3560
    %v3815 = vpop.f32.mrf.mxu0
    %v3816 = vadd.f32 0.0, %v3815
    %v3817 = vpop.f32.mrf.mxu0
    %v3818 = vadd.f32 0.0, %v3817
    %3819 = vmatmul.bf16.gmra.mxu0 %v3565
    %v3820 = vpop.f32.mrf.mxu0
    %v3821 = vadd.f32 0.0, %v3820
    %v3822 = vpop.f32.mrf.mxu0
    %v3823 = vadd.f32 0.0, %v3822
    %3824 = vmatmul.bf16.gmra.mxu0 %v3569
    %v3825 = vpop.f32.mrf.mxu0
    %v3826 = vadd.f32 0.0, %v3825
    %v3827 = vpop.f32.mrf.mxu0
    %v3828 = vadd.f32 0.0, %v3827
    %3829 = vmatmul.bf16.gmra.mxu0 %v3573
    %v3830 = vpop.f32.mrf.mxu0
    %v3831 = vadd.f32 0.0, %v3830
    %v3832 = vpop.f32.mrf.mxu0
    %v3833 = vadd.f32 0.0, %v3832
    %3834 = vmatmul.bf16.gmra.mxu0 %v3577
    %v3835 = vpop.f32.mrf.mxu0
    %v3836 = vadd.f32 0.0, %v3835
    %v3837 = vpop.f32.mrf.mxu0
    %v3838 = vadd.f32 0.0, %v3837
    %3839 = vmatmul.bf16.gmra.mxu0 %v3581
    %v3840 = vpop.f32.mrf.mxu0
    %v3841 = vadd.f32 0.0, %v3840
    %v3842 = vpop.f32.mrf.mxu0
    %v3843 = vadd.f32 0.0, %v3842
    %3844 = vmatmul.bf16.gmra.mxu0 %v3585
    %v3845 = vpop.f32.mrf.mxu0
    %v3846 = vadd.f32 0.0, %v3845
    %v3847 = vpop.f32.mrf.mxu0
    %v3848 = vadd.f32 0.0, %v3847
    %3849 = vmatmul.bf16.gmra.mxu0 %v3589
    %v3850 = vpop.f32.mrf.mxu0
    %v3851 = vadd.f32 0.0, %v3850
    %v3852 = vpop.f32.mrf.mxu0
    %v3853 = vadd.f32 0.0, %v3852
    %3854 = vmatmul.bf16.gmra.mxu0 %v3593
    %v3855 = vpop.f32.mrf.mxu0
    %v3856 = vadd.f32 0.0, %v3855
    %v3857 = vpop.f32.mrf.mxu0
    %v3858 = vadd.f32 0.0, %v3857
    %3859 = vmatmul.bf16.gmra.mxu0 %v3597
    %v3860 = vpop.f32.mrf.mxu0
    %v3861 = vadd.f32 0.0, %v3860
    %v3862 = vpop.f32.mrf.mxu0
    %v3863 = vadd.f32 0.0, %v3862
    %3864 = vmatmul.bf16.gmra.mxu0 %v3601
    %v3865 = vpop.f32.mrf.mxu0
    %v3866 = vadd.f32 0.0, %v3865
    %v3867 = vpop.f32.mrf.mxu0
    %v3868 = vadd.f32 0.0, %v3867
    %3869 = vmatmul.bf16.gmra.mxu0 %v3605
    %v3870 = vpop.f32.mrf.mxu0
    %v3871 = vadd.f32 0.0, %v3870
    %v3872 = vpop.f32.mrf.mxu0
    %v3873 = vadd.f32 0.0, %v3872
    %3874 = vmatmul.bf16.gmra.mxu0 %v3609
    %v3875 = vpop.f32.mrf.mxu0
    %v3876 = vadd.f32 0.0, %v3875
    %v3877 = vpop.f32.mrf.mxu0
    %v3878 = vadd.f32 0.0, %v3877
    %3879 = vmatmul.bf16.gmra.mxu0 %v3613
    %v3880 = vpop.f32.mrf.mxu0
    %v3881 = vadd.f32 0.0, %v3880
    %v3882 = vpop.f32.mrf.mxu0
    %v3883 = vadd.f32 0.0, %v3882
    %3884 = vmatmul.bf16.gmra.mxu0 %v3612
    %v3885 = vpop.f32.mrf.mxu0
    %v3886 = vadd.f32 0.0, %v3885
    %v3887 = vpop.f32.mrf.mxu0
    %v3888 = vadd.f32 0.0, %v3887
    %3889 = vdwg.mxu0
    %3890 = vmatpush.bf16.msra.mxu0 %v3772
    %3891 = vmatpush.bf16.msra.mxu0 %v3770
    %3892 = vmatpush.bf16.msra.mxu0 %v3768
    %3893 = vmatpush.bf16.msra.mxu0 %v3766
    %3894 = vmatpush.bf16.msra.mxu0 %v3764
    %3895 = vmatpush.bf16.msra.mxu0 %v3762
    %3896 = vmatpush.bf16.msra.mxu0 %v3760
    %3897 = vmatpush.bf16.msra.mxu0 %v3758
    %3898 = vmatmul.bf16.gmra.mxu0 %v3563
    %v3899 = vpop.f32.mrf.mxu0
    %v3900 = vadd.f32 %v3816, %v3899
    %v3901 = vpop.f32.mrf.mxu0
    %v3902 = vadd.f32 %v3818, %v3901
    %3903 = vmatmul.bf16.gmra.mxu0 %v3567
    %v3904 = vpop.f32.mrf.mxu0
    %v3905 = vadd.f32 %v3821, %v3904
    %v3906 = vpop.f32.mrf.mxu0
    %v3907 = vadd.f32 %v3823, %v3906
    %3908 = vmatmul.bf16.gmra.mxu0 %v3571
    %v3909 = vpop.f32.mrf.mxu0
    %v3910 = vadd.f32 %v3826, %v3909
    %v3911 = vpop.f32.mrf.mxu0
    %v3912 = vadd.f32 %v3828, %v3911
    %3913 = vmatmul.bf16.gmra.mxu0 %v3575
    %v3914 = vpop.f32.mrf.mxu0
    %v3915 = vadd.f32 %v3831, %v3914
    %v3916 = vpop.f32.mrf.mxu0
    %v3917 = vadd.f32 %v3833, %v3916
    %3918 = vmatmul.bf16.gmra.mxu0 %v3579
    %v3919 = vpop.f32.mrf.mxu0
    %v3920 = vadd.f32 %v3836, %v3919
    %v3921 = vpop.f32.mrf.mxu0
    %v3922 = vadd.f32 %v3838, %v3921
    %3923 = vmatmul.bf16.gmra.mxu0 %v3583
    %v3924 = vpop.f32.mrf.mxu0
    %v3925 = vadd.f32 %v3841, %v3924
    %v3926 = vpop.f32.mrf.mxu0
    %v3927 = vadd.f32 %v3843, %v3926
    %3928 = vmatmul.bf16.gmra.mxu0 %v3587
    %v3929 = vpop.f32.mrf.mxu0
    %v3930 = vadd.f32 %v3846, %v3929
    %v3931 = vpop.f32.mrf.mxu0
    %v3932 = vadd.f32 %v3848, %v3931
    %3933 = vmatmul.bf16.gmra.mxu0 %v3591
    %v3934 = vpop.f32.mrf.mxu0
    %v3935 = vadd.f32 %v3851, %v3934
    %v3936 = vpop.f32.mrf.mxu0
    %v3937 = vadd.f32 %v3853, %v3936
    %3938 = vmatmul.bf16.gmra.mxu0 %v3595
    %v3939 = vpop.f32.mrf.mxu0
    %v3940 = vadd.f32 %v3856, %v3939
    %v3941 = vpop.f32.mrf.mxu0
    %v3942 = vadd.f32 %v3858, %v3941
    %3943 = vmatmul.bf16.gmra.mxu0 %v3599
    %v3944 = vpop.f32.mrf.mxu0
    %v3945 = vadd.f32 %v3861, %v3944
    %v3946 = vpop.f32.mrf.mxu0
    %v3947 = vadd.f32 %v3863, %v3946
    %3948 = vmatmul.bf16.gmra.mxu0 %v3603
    %v3949 = vpop.f32.mrf.mxu0
    %v3950 = vadd.f32 %v3866, %v3949
    %v3951 = vpop.f32.mrf.mxu0
    %v3952 = vadd.f32 %v3868, %v3951
    %3953 = vmatmul.bf16.gmra.mxu0 %v3607
    %v3954 = vpop.f32.mrf.mxu0
    %v3955 = vadd.f32 %v3871, %v3954
    %v3956 = vpop.f32.mrf.mxu0
    %v3957 = vadd.f32 %v3873, %v3956
    %3958 = vmatmul.bf16.gmra.mxu0 %v3611
    %v3959 = vpop.f32.mrf.mxu0
    %v3960 = vadd.f32 %v3876, %v3959
    %v3961 = vpop.f32.mrf.mxu0
    %v3962 = vadd.f32 %v3878, %v3961
    %3963 = vmatmul.bf16.gmra.mxu0 %v3615
    %v3964 = vpop.f32.mrf.mxu0
    %v3965 = vadd.f32 %v3881, %v3964
    %v3966 = vpop.f32.mrf.mxu0
    %v3967 = vadd.f32 %v3883, %v3966
    %3968 = vmatmul.bf16.gmra.mxu0 %v3614
    %v3969 = vpop.f32.mrf.mxu0
    %v3970 = vadd.f32 %v3886, %v3969
    %v3971 = vpop.f32.mrf.mxu0
    %v3972 = vadd.f32 %v3888, %v3971
    %3973 = vdwg.mxu0
    %3974 = vmatpush.bf16.msra.mxu0 %v3757
    %3975 = vmatpush.bf16.msra.mxu0 %v3755
    %3976 = vmatpush.bf16.msra.mxu0 %v3753
    %3977 = vmatpush.bf16.msra.mxu0 %v3751
    %3978 = vmatpush.bf16.msra.mxu0 %v3749
    %3979 = vmatpush.bf16.msra.mxu0 %v3747
    %3980 = vmatpush.bf16.msra.mxu0 %v3745
    %3981 = vmatpush.bf16.msra.mxu0 %v3743
    %3982 = vmatmul.bf16.gmra.mxu0 %v3560
    %v3983 = vpop.f32.mrf.mxu0
    %v3984 = vadd.f32 0.0, %v3983
    %v3985 = vpop.f32.mrf.mxu0
    %v3986 = vadd.f32 0.0, %v3985
    %3987 = vmatmul.bf16.gmra.mxu0 %v3565
    %v3988 = vpop.f32.mrf.mxu0
    %v3989 = vadd.f32 0.0, %v3988
    %v3990 = vpop.f32.mrf.mxu0
    %v3991 = vadd.f32 0.0, %v3990
    %3992 = vmatmul.bf16.gmra.mxu0 %v3569
    %v3993 = vpop.f32.mrf.mxu0
    %v3994 = vadd.f32 0.0, %v3993
    %v3995 = vpop.f32.mrf.mxu0
    %v3996 = vadd.f32 0.0, %v3995
    %3997 = vmatmul.bf16.gmra.mxu0 %v3573
    %v3998 = vpop.f32.mrf.mxu0
    %v3999 = vadd.f32 0.0, %v3998
    %v4000 = vpop.f32.mrf.mxu0
    %v4001 = vadd.f32 0.0, %v4000
    %4002 = vmatmul.bf16.gmra.mxu0 %v3577
    %v4003 = vpop.f32.mrf.mxu0
    %v4004 = vadd.f32 0.0, %v4003
    %v4005 = vpop.f32.mrf.mxu0
    %v4006 = vadd.f32 0.0, %v4005
    %4007 = vmatmul.bf16.gmra.mxu0 %v3581
    %v4008 = vpop.f32.mrf.mxu0
    %v4009 = vadd.f32 0.0, %v4008
    %v4010 = vpop.f32.mrf.mxu0
    %v4011 = vadd.f32 0.0, %v4010
    %4012 = vmatmul.bf16.gmra.mxu0 %v3585
    %v4013 = vpop.f32.mrf.mxu0
    %v4014 = vadd.f32 0.0, %v4013
    %v4015 = vpop.f32.mrf.mxu0
    %v4016 = vadd.f32 0.0, %v4015
    %4017 = vmatmul.bf16.gmra.mxu0 %v3589
    %v4018 = vpop.f32.mrf.mxu0
    %v4019 = vadd.f32 0.0, %v4018
    %v4020 = vpop.f32.mrf.mxu0
    %v4021 = vadd.f32 0.0, %v4020
    %4022 = vmatmul.bf16.gmra.mxu0 %v3593
    %v4023 = vpop.f32.mrf.mxu0
    %v4024 = vadd.f32 0.0, %v4023
    %v4025 = vpop.f32.mrf.mxu0
    %v4026 = vadd.f32 0.0, %v4025
    %4027 = vmatmul.bf16.gmra.mxu0 %v3597
    %v4028 = vpop.f32.mrf.mxu0
    %v4029 = vadd.f32 0.0, %v4028
    %v4030 = vpop.f32.mrf.mxu0
    %v4031 = vadd.f32 0.0, %v4030
    %4032 = vmatmul.bf16.gmra.mxu0 %v3601
    %v4033 = vpop.f32.mrf.mxu0
    %v4034 = vadd.f32 0.0, %v4033
    %v4035 = vpop.f32.mrf.mxu0
    %v4036 = vadd.f32 0.0, %v4035
    %4037 = vmatmul.bf16.gmra.mxu0 %v3605
    %v4038 = vpop.f32.mrf.mxu0
    %v4039 = vadd.f32 0.0, %v4038
    %v4040 = vpop.f32.mrf.mxu0
    %v4041 = vadd.f32 0.0, %v4040
    %4042 = vmatmul.bf16.gmra.mxu0 %v3609
    %v4043 = vpop.f32.mrf.mxu0
    %v4044 = vadd.f32 0.0, %v4043
    %v4045 = vpop.f32.mrf.mxu0
    %v4046 = vadd.f32 0.0, %v4045
    %4047 = vmatmul.bf16.gmra.mxu0 %v3613
    %v4048 = vpop.f32.mrf.mxu0
    %v4049 = vadd.f32 0.0, %v4048
    %v4050 = vpop.f32.mrf.mxu0
    %v4051 = vadd.f32 0.0, %v4050
    %4052 = vmatmul.bf16.gmra.mxu0 %v3612
    %v4053 = vpop.f32.mrf.mxu0
    %v4054 = vadd.f32 0.0, %v4053
    %v4055 = vpop.f32.mrf.mxu0
    %v4056 = vadd.f32 0.0, %v4055
    %4057 = vdwg.mxu0
    %4058 = vmatpush.bf16.msra.mxu0 %v3773
    %4059 = vmatpush.bf16.msra.mxu0 %v3771
    %4060 = vmatpush.bf16.msra.mxu0 %v3769
    %4061 = vmatpush.bf16.msra.mxu0 %v3767
    %4062 = vmatpush.bf16.msra.mxu0 %v3765
    %4063 = vmatpush.bf16.msra.mxu0 %v3763
    %4064 = vmatpush.bf16.msra.mxu0 %v3761
    %4065 = vmatpush.bf16.msra.mxu0 %v3759
    %4066 = vmatmul.bf16.gmra.mxu0 %v3563
    %v4067 = vpop.f32.mrf.mxu0
    %v4068 = vadd.f32 %v3984, %v4067
    %v4069 = vpop.f32.mrf.mxu0
    %v4070 = vadd.f32 %v3986, %v4069
    %4071 = vmatmul.bf16.gmra.mxu0 %v3567
    %v4072 = vpop.f32.mrf.mxu0
    %v4073 = vadd.f32 %v3989, %v4072
    %v4074 = vpop.f32.mrf.mxu0
    %v4075 = vadd.f32 %v3991, %v4074
    %4076 = vmatmul.bf16.gmra.mxu0 %v3571
    %v4077 = vpop.f32.mrf.mxu0
    %v4078 = vadd.f32 %v3994, %v4077
    %v4079 = vpop.f32.mrf.mxu0
    %v4080 = vadd.f32 %v3996, %v4079
    %4081 = vmatmul.bf16.gmra.mxu0 %v3575
    %v4082 = vpop.f32.mrf.mxu0
    %v4083 = vadd.f32 %v3999, %v4082
    %v4084 = vpop.f32.mrf.mxu0
    %v4085 = vadd.f32 %v4001, %v4084
    %4086 = vmatmul.bf16.gmra.mxu0 %v3579
    %v4087 = vpop.f32.mrf.mxu0
    %v4088 = vadd.f32 %v4004, %v4087
    %v4089 = vpop.f32.mrf.mxu0
    %v4090 = vadd.f32 %v4006, %v4089
    %4091 = vmatmul.bf16.gmra.mxu0 %v3583
    %v4092 = vpop.f32.mrf.mxu0
    %v4093 = vadd.f32 %v4009, %v4092
    %v4094 = vpop.f32.mrf.mxu0
    %v4095 = vadd.f32 %v4011, %v4094
    %4096 = vmatmul.bf16.gmra.mxu0 %v3587
    %v4097 = vpop.f32.mrf.mxu0
    %v4098 = vadd.f32 %v4014, %v4097
    %v4099 = vpop.f32.mrf.mxu0
    %v4100 = vadd.f32 %v4016, %v4099
    %4101 = vmatmul.bf16.gmra.mxu0 %v3591
    %v4102 = vpop.f32.mrf.mxu0
    %v4103 = vadd.f32 %v4019, %v4102
    %v4104 = vpop.f32.mrf.mxu0
    %v4105 = vadd.f32 %v4021, %v4104
    %4106 = vmatmul.bf16.gmra.mxu0 %v3595
    %v4107 = vpop.f32.mrf.mxu0
    %v4108 = vadd.f32 %v4024, %v4107
    %v4109 = vpop.f32.mrf.mxu0
    %v4110 = vadd.f32 %v4026, %v4109
    %4111 = vmatmul.bf16.gmra.mxu0 %v3599
    %v4112 = vpop.f32.mrf.mxu0
    %v4113 = vadd.f32 %v4029, %v4112
    %v4114 = vpop.f32.mrf.mxu0
    %v4115 = vadd.f32 %v4031, %v4114
    %4116 = vmatmul.bf16.gmra.mxu0 %v3603
    %v4117 = vpop.f32.mrf.mxu0
    %v4118 = vadd.f32 %v4034, %v4117
    %v4119 = vpop.f32.mrf.mxu0
    %v4120 = vadd.f32 %v4036, %v4119
    %4121 = vmatmul.bf16.gmra.mxu0 %v3607
    %v4122 = vpop.f32.mrf.mxu0
    %v4123 = vadd.f32 %v4039, %v4122
    %v4124 = vpop.f32.mrf.mxu0
    %v4125 = vadd.f32 %v4041, %v4124
    %4126 = vmatmul.bf16.gmra.mxu0 %v3611
    %v4127 = vpop.f32.mrf.mxu0
    %v4128 = vadd.f32 %v4044, %v4127
    %v4129 = vpop.f32.mrf.mxu0
    %v4130 = vadd.f32 %v4046, %v4129
    %4131 = vmatmul.bf16.gmra.mxu0 %v3615
    %v4132 = vpop.f32.mrf.mxu0
    %v4133 = vadd.f32 %v4049, %v4132
    %v4134 = vpop.f32.mrf.mxu0
    %v4135 = vadd.f32 %v4051, %v4134
    %4136 = vmatmul.bf16.gmra.mxu0 %v3614
    %v4137 = vpop.f32.mrf.mxu0
    %v4138 = vadd.f32 %v4054, %v4137
    %v4139 = vpop.f32.mrf.mxu0
    %v4140 = vadd.f32 %v4056, %v4139
    %4141 = vdwg.mxu0
    %v4142 = vadd.f32 %v3277, %v3900
    %v4143 = vadd.f32 %v3445, %v4068
    %v4144 = vadd.f32 %v3279, %v3902
    %v4145 = vadd.f32 %v3447, %v4070
    %v4146 = vadd.f32 %v3282, %v3905
    %v4147 = vadd.f32 %v3450, %v4073
    %v4148 = vadd.f32 %v3284, %v3907
    %v4149 = vadd.f32 %v3452, %v4075
    %v4150 = vadd.f32 %v3287, %v3910
    %v4151 = vadd.f32 %v3455, %v4078
    %v4152 = vadd.f32 %v3289, %v3912
    %v4153 = vadd.f32 %v3457, %v4080
    %v4154 = vadd.f32 %v3292, %v3915
    %v4155 = vadd.f32 %v3460, %v4083
    %v4156 = vadd.f32 %v3294, %v3917
    %v4157 = vadd.f32 %v3462, %v4085
    %v4158 = vadd.f32 %v3297, %v3920
    %v4159 = vadd.f32 %v3465, %v4088
    %v4160 = vadd.f32 %v3299, %v3922
    %v4161 = vadd.f32 %v3467, %v4090
    %v4162 = vadd.f32 %v3302, %v3925
    %v4163 = vadd.f32 %v3470, %v4093
    %v4164 = vadd.f32 %v3304, %v3927
    %v4165 = vadd.f32 %v3472, %v4095
    %v4166 = vadd.f32 %v3307, %v3930
    %v4167 = vadd.f32 %v3475, %v4098
    %v4168 = vadd.f32 %v3309, %v3932
    %v4169 = vadd.f32 %v3477, %v4100
    %v4170 = vadd.f32 %v3312, %v3935
    %v4171 = vadd.f32 %v3480, %v4103
    %v4172 = vadd.f32 %v3314, %v3937
    %v4173 = vadd.f32 %v3482, %v4105
    %v4174 = vadd.f32 %v3317, %v3940
    %v4175 = vadd.f32 %v3485, %v4108
    %v4176 = vadd.f32 %v3319, %v3942
    %v4177 = vadd.f32 %v3487, %v4110
    %v4178 = vadd.f32 %v3322, %v3945
    %v4179 = vadd.f32 %v3490, %v4113
    %v4180 = vadd.f32 %v3324, %v3947
    %v4181 = vadd.f32 %v3492, %v4115
    %v4182 = vadd.f32 %v3327, %v3950
    %v4183 = vadd.f32 %v3495, %v4118
    %v4184 = vadd.f32 %v3329, %v3952
    %v4185 = vadd.f32 %v3497, %v4120
    %v4186 = vadd.f32 %v3332, %v3955
    %v4187 = vadd.f32 %v3500, %v4123
    %v4188 = vadd.f32 %v3334, %v3957
    %v4189 = vadd.f32 %v3502, %v4125
    %v4190 = vadd.f32 %v3337, %v3960
    %v4191 = vadd.f32 %v3505, %v4128
    %v4192 = vadd.f32 %v3339, %v3962
    %v4193 = vadd.f32 %v3507, %v4130
    %v4194 = vadd.f32 %v3342, %v3965
    %v4195 = vadd.f32 %v3510, %v4133
    %v4196 = vadd.f32 %v3344, %v3967
    %v4197 = vadd.f32 %v3512, %v4135
    %v4198 = vadd.f32 %v3347, %v3970
    %v4199 = vadd.f32 %v3515, %v4138
    %v4200 = vadd.f32 %v3349, %v3972
    %v4201 = vadd.f32 %v3517, %v4140
    %v4202 = vld [vmem:[%s4] sm:$0x3]
    %v4204 = vperm.slane %v4202, 0
    %v4205 = vperm.slane %v4202, 1
    %v4208 = vadd.f32 %v4142, %v4204
    %v4209 = vadd.f32 %v4143, %v4205
    %v4210 = vadd.f32 %v4144, %v4204
    %v4211 = vadd.f32 %v4145, %v4205
    %v4212 = vadd.f32 %v4146, %v4204
    %v4213 = vadd.f32 %v4147, %v4205
    %v4214 = vadd.f32 %v4148, %v4204
    %v4215 = vadd.f32 %v4149, %v4205
    %v4216 = vadd.f32 %v4150, %v4204
    %v4217 = vadd.f32 %v4151, %v4205
    %v4218 = vadd.f32 %v4152, %v4204
    %v4219 = vadd.f32 %v4153, %v4205
    %v4220 = vadd.f32 %v4154, %v4204
    %v4221 = vadd.f32 %v4155, %v4205
    %v4222 = vadd.f32 %v4156, %v4204
    %v4223 = vadd.f32 %v4157, %v4205
    %v4224 = vadd.f32 %v4158, %v4204
    %v4225 = vadd.f32 %v4159, %v4205
    %v4226 = vadd.f32 %v4160, %v4204
    %v4227 = vadd.f32 %v4161, %v4205
    %v4228 = vadd.f32 %v4162, %v4204
    %v4229 = vadd.f32 %v4163, %v4205
    %v4230 = vadd.f32 %v4164, %v4204
    %v4231 = vadd.f32 %v4165, %v4205
    %v4232 = vadd.f32 %v4166, %v4204
    %v4233 = vadd.f32 %v4167, %v4205
    %v4234 = vadd.f32 %v4168, %v4204
    %v4235 = vadd.f32 %v4169, %v4205
    %v4236 = vadd.f32 %v4170, %v4204
    %v4237 = vadd.f32 %v4171, %v4205
    %v4238 = vadd.f32 %v4172, %v4204
    %v4239 = vadd.f32 %v4173, %v4205
    %v4240 = vadd.f32 %v4174, %v4204
    %v4241 = vadd.f32 %v4175, %v4205
    %v4242 = vadd.f32 %v4176, %v4204
    %v4243 = vadd.f32 %v4177, %v4205
    %v4244 = vadd.f32 %v4178, %v4204
    %v4245 = vadd.f32 %v4179, %v4205
    %v4246 = vadd.f32 %v4180, %v4204
    %v4247 = vadd.f32 %v4181, %v4205
    %v4248 = vadd.f32 %v4182, %v4204
    %v4249 = vadd.f32 %v4183, %v4205
    %v4250 = vadd.f32 %v4184, %v4204
    %v4251 = vadd.f32 %v4185, %v4205
    %v4252 = vadd.f32 %v4186, %v4204
    %v4253 = vadd.f32 %v4187, %v4205
    %v4254 = vadd.f32 %v4188, %v4204
    %v4255 = vadd.f32 %v4189, %v4205
    %v4256 = vadd.f32 %v4190, %v4204
    %v4257 = vadd.f32 %v4191, %v4205
    %v4258 = vadd.f32 %v4192, %v4204
    %v4259 = vadd.f32 %v4193, %v4205
    %v4260 = vadd.f32 %v4194, %v4204
    %v4261 = vadd.f32 %v4195, %v4205
    %v4262 = vadd.f32 %v4196, %v4204
    %v4263 = vadd.f32 %v4197, %v4205
    %v4264 = vadd.f32 %v4198, %v4204
    %v4265 = vadd.f32 %v4199, %v4205
    %v4266 = vadd.f32 %v4200, %v4204
    %v4267 = vadd.f32 %v4201, %v4205
    %v4268 = vmax.f32 %v4208, 0.0
    %v4269 = vmax.f32 %v4209, 0.0
    %v4270 = vmax.f32 %v4210, 0.0
    %v4271 = vmax.f32 %v4211, 0.0
    %v4272 = vmax.f32 %v4212, 0.0
    %v4273 = vmax.f32 %v4213, 0.0
    %v4274 = vmax.f32 %v4214, 0.0
    %v4275 = vmax.f32 %v4215, 0.0
    %v4276 = vmax.f32 %v4216, 0.0
    %v4277 = vmax.f32 %v4217, 0.0
    %v4278 = vmax.f32 %v4218, 0.0
    %v4279 = vmax.f32 %v4219, 0.0
    %v4280 = vmax.f32 %v4220, 0.0
    %v4281 = vmax.f32 %v4221, 0.0
    %v4282 = vmax.f32 %v4222, 0.0
    %v4283 = vmax.f32 %v4223, 0.0
    %v4284 = vmax.f32 %v4224, 0.0
    %v4285 = vmax.f32 %v4225, 0.0
    %v4286 = vmax.f32 %v4226, 0.0
    %v4287 = vmax.f32 %v4227, 0.0
    %v4288 = vmax.f32 %v4228, 0.0
    %v4289 = vmax.f32 %v4229, 0.0
    %v4290 = vmax.f32 %v4230, 0.0
    %v4291 = vmax.f32 %v4231, 0.0
    %v4292 = vmax.f32 %v4232, 0.0
    %v4293 = vmax.f32 %v4233, 0.0
    %v4294 = vmax.f32 %v4234, 0.0
    %v4295 = vmax.f32 %v4235, 0.0
    %v4296 = vmax.f32 %v4236, 0.0
    %v4297 = vmax.f32 %v4237, 0.0
    %v4298 = vmax.f32 %v4238, 0.0
    %v4299 = vmax.f32 %v4239, 0.0
    %v4300 = vmax.f32 %v4240, 0.0
    %v4301 = vmax.f32 %v4241, 0.0
    %v4302 = vmax.f32 %v4242, 0.0
    %v4303 = vmax.f32 %v4243, 0.0
    %v4304 = vmax.f32 %v4244, 0.0
    %v4305 = vmax.f32 %v4245, 0.0
    %v4306 = vmax.f32 %v4246, 0.0
    %v4307 = vmax.f32 %v4247, 0.0
    %v4308 = vmax.f32 %v4248, 0.0
    %v4309 = vmax.f32 %v4249, 0.0
    %v4310 = vmax.f32 %v4250, 0.0
    %v4311 = vmax.f32 %v4251, 0.0
    %v4312 = vmax.f32 %v4252, 0.0
    %v4313 = vmax.f32 %v4253, 0.0
    %v4314 = vmax.f32 %v4254, 0.0
    %v4315 = vmax.f32 %v4255, 0.0
    %v4316 = vmax.f32 %v4256, 0.0
    %v4317 = vmax.f32 %v4257, 0.0
    %v4318 = vmax.f32 %v4258, 0.0
    %v4319 = vmax.f32 %v4259, 0.0
    %v4320 = vmax.f32 %v4260, 0.0
    %v4321 = vmax.f32 %v4261, 0.0
    %v4322 = vmax.f32 %v4262, 0.0
    %v4323 = vmax.f32 %v4263, 0.0
    %v4324 = vmax.f32 %v4264, 0.0
    %v4325 = vmax.f32 %v4265, 0.0
    %v4326 = vmax.f32 %v4266, 0.0
    %v4327 = vmax.f32 %v4267, 0.0
    %v4328 = vpack.c.bf16 %v4270, %v4268
    %v4329 = vpack.c.bf16 %v4271, %v4269
    %v4330 = vpack.c.bf16 %v4274, %v4272
    %v4331 = vpack.c.bf16 %v4275, %v4273
    %v4332 = vpack.c.bf16 %v4278, %v4276
    %v4333 = vpack.c.bf16 %v4279, %v4277
    %v4334 = vpack.c.bf16 %v4282, %v4280
    %v4335 = vpack.c.bf16 %v4283, %v4281
    %v4336 = vpack.c.bf16 %v4286, %v4284
    %v4337 = vpack.c.bf16 %v4287, %v4285
    %v4338 = vpack.c.bf16 %v4290, %v4288
    %v4339 = vpack.c.bf16 %v4291, %v4289
    %v4340 = vpack.c.bf16 %v4294, %v4292
    %v4341 = vpack.c.bf16 %v4295, %v4293
    %v4342 = vpack.c.bf16 %v4298, %v4296
    %v4343 = vpack.c.bf16 %v4299, %v4297
    %v4344 = vpack.c.bf16 %v4302, %v4300
    %v4345 = vpack.c.bf16 %v4303, %v4301
    %v4346 = vpack.c.bf16 %v4306, %v4304
    %v4347 = vpack.c.bf16 %v4307, %v4305
    %v4348 = vpack.c.bf16 %v4310, %v4308
    %v4349 = vpack.c.bf16 %v4311, %v4309
    %v4350 = vpack.c.bf16 %v4314, %v4312
    %v4351 = vpack.c.bf16 %v4315, %v4313
    %v4352 = vpack.c.bf16 %v4318, %v4316
    %v4353 = vpack.c.bf16 %v4319, %v4317
    %v4354 = vpack.c.bf16 %v4322, %v4320
    %v4355 = vpack.c.bf16 %v4323, %v4321
    %v4356 = vpack.c.bf16 %v4326, %v4324
    %v4357 = vpack.c.bf16 %v4327, %v4325
    %v4358 = vld [vmem:[%s5] sm:$0xf]
    %v4359 = vld [vmem:[%s5 + $0x4] sm:$0xf]
    %v4360 = vld [vmem:[%s5 + $0x8] sm:$0xf]
    %v4361 = vld [vmem:[%s5 + $0xc] sm:$0xf]
    %v4362 = vld [vmem:[%s5 + $0x10] sm:$0xf]
    %v4363 = vld [vmem:[%s5 + $0x14] sm:$0xf]
    %v4364 = vld [vmem:[%s5 + $0x18] sm:$0xf]
    %v4365 = vld [vmem:[%s5 + $0x1c] sm:$0xf]
    %v4366 = vld [vmem:[%s5 + $0x20] sm:$0xf]
    %v4367 = vld [vmem:[%s5 + $0x24] sm:$0xf]
    %v4368 = vld [vmem:[%s5 + $0x28] sm:$0xf]
    %v4369 = vld [vmem:[%s5 + $0x2c] sm:$0xf]
    %v4370 = vld [vmem:[%s5 + $0x30] sm:$0xf]
    %v4371 = vld [vmem:[%s5 + $0x34] sm:$0xf]
    %v4372 = vld [vmem:[%s5 + $0x38] sm:$0xf]
    %v4373 = vld [vmem:[%s5 + $0x3c] sm:$0xf]
    %v4374 = vld [vmem:[%s5 + $0x40] sm:$0xf]
    %v4375 = vld [vmem:[%s5 + $0x44] sm:$0xf]
    %v4376 = vld [vmem:[%s5 + $0x48] sm:$0xf]
    %v4377 = vld [vmem:[%s5 + $0x4c] sm:$0xf]
    %v4378 = vld [vmem:[%s5 + $0x50] sm:$0xf]
    %v4379 = vld [vmem:[%s5 + $0x54] sm:$0xf]
    %v4380 = vld [vmem:[%s5 + $0x58] sm:$0xf]
    %v4381 = vld [vmem:[%s5 + $0x5c] sm:$0xf]
    %v4382 = vld [vmem:[%s5 + $0x60] sm:$0xf]
    %v4383 = vld [vmem:[%s5 + $0x64] sm:$0xf]
    %v4384 = vld [vmem:[%s5 + $0x68] sm:$0xf]
    %v4385 = vld [vmem:[%s5 + $0x6c] sm:$0xf]
    %v4386 = vld [vmem:[%s5 + $0x70] sm:$0xf]
    %v4387 = vld [vmem:[%s5 + $0x74] sm:$0xf]
    %v4388 = vld [vmem:[%s5 + $0x78] sm:$0xf]
    %v4389 = vld [vmem:[%s5 + $0x7c] sm:$0xf]
    %v4422 = vunpack.c.l.b16 %v4358
    %v4423 = vunpack.c.l.b16 %v4359
    %v4424 = vunpack.c.l.b16 %v4360
    %v4425 = vunpack.c.l.b16 %v4361
    %v4426 = vunpack.c.l.b16 %v4362
    %v4427 = vunpack.c.l.b16 %v4363
    %v4428 = vunpack.c.l.b16 %v4364
    %v4429 = vunpack.c.l.b16 %v4365
    %v4430 = vunpack.c.l.b16 %v4366
    %v4431 = vunpack.c.l.b16 %v4367
    %v4432 = vunpack.c.l.b16 %v4368
    %v4433 = vunpack.c.l.b16 %v4369
    %v4434 = vunpack.c.l.b16 %v4370
    %v4435 = vunpack.c.l.b16 %v4371
    %v4436 = vunpack.c.l.b16 %v4372
    %v4437 = vunpack.c.l.b16 %v4373
    %v4438 = vunpack.c.l.b16 %v4374
    %v4439 = vunpack.c.l.b16 %v4375
    %v4440 = vunpack.c.l.b16 %v4376
    %v4441 = vunpack.c.l.b16 %v4377
    %v4442 = vunpack.c.l.b16 %v4378
    %v4443 = vunpack.c.l.b16 %v4379
    %v4444 = vunpack.c.l.b16 %v4380
    %v4445 = vunpack.c.l.b16 %v4381
    %v4446 = vunpack.c.l.b16 %v4382
    %v4447 = vunpack.c.l.b16 %v4383
    %v4448 = vunpack.c.l.b16 %v4384
    %v4449 = vunpack.c.l.b16 %v4385
    %v4450 = vunpack.c.l.b16 %v4386
    %v4451 = vunpack.c.l.b16 %v4387
    %v4452 = vunpack.c.l.b16 %v4388
    %v4453 = vunpack.c.l.b16 %v4389
    %v4454 = vpack.c.b16 %v4423, %v4422
    %v4455 = vpack.c.b16 %v4425, %v4424
    %v4456 = vpack.c.b16 %v4427, %v4426
    %v4457 = vpack.c.b16 %v4429, %v4428
    %v4458 = vpack.c.b16 %v4431, %v4430
    %v4459 = vpack.c.b16 %v4433, %v4432
    %v4460 = vpack.c.b16 %v4435, %v4434
    %v4461 = vpack.c.b16 %v4437, %v4436
    %v4462 = vpack.c.b16 %v4439, %v4438
    %v4463 = vpack.c.b16 %v4441, %v4440
    %v4464 = vpack.c.b16 %v4443, %v4442
    %v4465 = vpack.c.b16 %v4445, %v4444
    %v4466 = vpack.c.b16 %v4447, %v4446
    %v4467 = vpack.c.b16 %v4449, %v4448
    %v4468 = vpack.c.b16 %v4451, %v4450
    %v4469 = vpack.c.b16 %v4453, %v4452
    %4486 = vmatpush.bf16.msra.mxu0 %v4461
    %4487 = vmatpush.bf16.msra.mxu0 %v4460
    %4488 = vmatpush.bf16.msra.mxu0 %v4459
    %4489 = vmatpush.bf16.msra.mxu0 %v4458
    %4490 = vmatpush.bf16.msra.mxu0 %v4457
    %4491 = vmatpush.bf16.msra.mxu0 %v4456
    %4492 = vmatpush.bf16.msra.mxu0 %v4455
    %4493 = vmatpush.bf16.msra.mxu0 %v4454
    %4494 = vmatmul.bf16.gmra.mxu0 %v4328
    %v4495 = vpop.f32.mrf.mxu0
    %v4496 = vadd.f32 0.0, %v4495
    %v4497 = vpop.f32.mrf.mxu0
    %v4498 = vadd.f32 0.0, %v4497
    %4499 = vmatmul.bf16.gmra.mxu0 %v4330
    %v4500 = vpop.f32.mrf.mxu0
    %v4501 = vadd.f32 0.0, %v4500
    %v4502 = vpop.f32.mrf.mxu0
    %v4503 = vadd.f32 0.0, %v4502
    %4504 = vmatmul.bf16.gmra.mxu0 %v4332
    %v4505 = vpop.f32.mrf.mxu0
    %v4506 = vadd.f32 0.0, %v4505
    %v4507 = vpop.f32.mrf.mxu0
    %v4508 = vadd.f32 0.0, %v4507
    %4509 = vmatmul.bf16.gmra.mxu0 %v4334
    %v4510 = vpop.f32.mrf.mxu0
    %v4511 = vadd.f32 0.0, %v4510
    %v4512 = vpop.f32.mrf.mxu0
    %v4513 = vadd.f32 0.0, %v4512
    %4514 = vmatmul.bf16.gmra.mxu0 %v4336
    %v4515 = vpop.f32.mrf.mxu0
    %v4516 = vadd.f32 0.0, %v4515
    %v4517 = vpop.f32.mrf.mxu0
    %v4518 = vadd.f32 0.0, %v4517
    %4519 = vmatmul.bf16.gmra.mxu0 %v4338
    %v4520 = vpop.f32.mrf.mxu0
    %v4521 = vadd.f32 0.0, %v4520
    %v4522 = vpop.f32.mrf.mxu0
    %v4523 = vadd.f32 0.0, %v4522
    %4524 = vmatmul.bf16.gmra.mxu0 %v4340
    %v4525 = vpop.f32.mrf.mxu0
    %v4526 = vadd.f32 0.0, %v4525
    %v4527 = vpop.f32.mrf.mxu0
    %v4528 = vadd.f32 0.0, %v4527
    %4529 = vmatmul.bf16.gmra.mxu0 %v4342
    %v4530 = vpop.f32.mrf.mxu0
    %v4531 = vadd.f32 0.0, %v4530
    %v4532 = vpop.f32.mrf.mxu0
    %v4533 = vadd.f32 0.0, %v4532
    %4534 = vmatmul.bf16.gmra.mxu0 %v4344
    %v4535 = vpop.f32.mrf.mxu0
    %v4536 = vadd.f32 0.0, %v4535
    %v4537 = vpop.f32.mrf.mxu0
    %v4538 = vadd.f32 0.0, %v4537
    %4539 = vmatmul.bf16.gmra.mxu0 %v4346
    %v4540 = vpop.f32.mrf.mxu0
    %v4541 = vadd.f32 0.0, %v4540
    %v4542 = vpop.f32.mrf.mxu0
    %v4543 = vadd.f32 0.0, %v4542
    %4544 = vmatmul.bf16.gmra.mxu0 %v4348
    %v4545 = vpop.f32.mrf.mxu0
    %v4546 = vadd.f32 0.0, %v4545
    %v4547 = vpop.f32.mrf.mxu0
    %v4548 = vadd.f32 0.0, %v4547
    %4549 = vmatmul.bf16.gmra.mxu0 %v4350
    %v4550 = vpop.f32.mrf.mxu0
    %v4551 = vadd.f32 0.0, %v4550
    %v4552 = vpop.f32.mrf.mxu0
    %v4553 = vadd.f32 0.0, %v4552
    %4554 = vmatmul.bf16.gmra.mxu0 %v4352
    %v4555 = vpop.f32.mrf.mxu0
    %v4556 = vadd.f32 0.0, %v4555
    %v4557 = vpop.f32.mrf.mxu0
    %v4558 = vadd.f32 0.0, %v4557
    %4559 = vmatmul.bf16.gmra.mxu0 %v4354
    %v4560 = vpop.f32.mrf.mxu0
    %v4561 = vadd.f32 0.0, %v4560
    %v4562 = vpop.f32.mrf.mxu0
    %v4563 = vadd.f32 0.0, %v4562
    %4564 = vmatmul.bf16.gmra.mxu0 %v4356
    %v4565 = vpop.f32.mrf.mxu0
    %v4566 = vadd.f32 0.0, %v4565
    %v4567 = vpop.f32.mrf.mxu0
    %v4568 = vadd.f32 0.0, %v4567
    %4569 = vdwg.mxu0
    %4570 = vmatpush.bf16.msra.mxu0 %v4469
    %4571 = vmatpush.bf16.msra.mxu0 %v4468
    %4572 = vmatpush.bf16.msra.mxu0 %v4467
    %4573 = vmatpush.bf16.msra.mxu0 %v4466
    %4574 = vmatpush.bf16.msra.mxu0 %v4465
    %4575 = vmatpush.bf16.msra.mxu0 %v4464
    %4576 = vmatpush.bf16.msra.mxu0 %v4463
    %4577 = vmatpush.bf16.msra.mxu0 %v4462
    %4578 = vmatmul.bf16.gmra.mxu0 %v4329
    %v4579 = vpop.f32.mrf.mxu0
    %v4580 = vadd.f32 %v4496, %v4579
    %v4581 = vpop.f32.mrf.mxu0
    %v4582 = vadd.f32 %v4498, %v4581
    %4583 = vmatmul.bf16.gmra.mxu0 %v4331
    %v4584 = vpop.f32.mrf.mxu0
    %v4585 = vadd.f32 %v4501, %v4584
    %v4586 = vpop.f32.mrf.mxu0
    %v4587 = vadd.f32 %v4503, %v4586
    %4588 = vmatmul.bf16.gmra.mxu0 %v4333
    %v4589 = vpop.f32.mrf.mxu0
    %v4590 = vadd.f32 %v4506, %v4589
    %v4591 = vpop.f32.mrf.mxu0
    %v4592 = vadd.f32 %v4508, %v4591
    %4593 = vmatmul.bf16.gmra.mxu0 %v4335
    %v4594 = vpop.f32.mrf.mxu0
    %v4595 = vadd.f32 %v4511, %v4594
    %v4596 = vpop.f32.mrf.mxu0
    %v4597 = vadd.f32 %v4513, %v4596
    %4598 = vmatmul.bf16.gmra.mxu0 %v4337
    %v4599 = vpop.f32.mrf.mxu0
    %v4600 = vadd.f32 %v4516, %v4599
    %v4601 = vpop.f32.mrf.mxu0
    %v4602 = vadd.f32 %v4518, %v4601
    %4603 = vmatmul.bf16.gmra.mxu0 %v4339
    %v4604 = vpop.f32.mrf.mxu0
    %v4605 = vadd.f32 %v4521, %v4604
    %v4606 = vpop.f32.mrf.mxu0
    %v4607 = vadd.f32 %v4523, %v4606
    %4608 = vmatmul.bf16.gmra.mxu0 %v4341
    %v4609 = vpop.f32.mrf.mxu0
    %v4610 = vadd.f32 %v4526, %v4609
    %v4611 = vpop.f32.mrf.mxu0
    %v4612 = vadd.f32 %v4528, %v4611
    %4613 = vmatmul.bf16.gmra.mxu0 %v4343
    %v4614 = vpop.f32.mrf.mxu0
    %v4615 = vadd.f32 %v4531, %v4614
    %v4616 = vpop.f32.mrf.mxu0
    %v4617 = vadd.f32 %v4533, %v4616
    %4618 = vmatmul.bf16.gmra.mxu0 %v4345
    %v4619 = vpop.f32.mrf.mxu0
    %v4620 = vadd.f32 %v4536, %v4619
    %v4621 = vpop.f32.mrf.mxu0
    %v4622 = vadd.f32 %v4538, %v4621
    %4623 = vmatmul.bf16.gmra.mxu0 %v4347
    %v4624 = vpop.f32.mrf.mxu0
    %v4625 = vadd.f32 %v4541, %v4624
    %v4626 = vpop.f32.mrf.mxu0
    %v4627 = vadd.f32 %v4543, %v4626
    %4628 = vmatmul.bf16.gmra.mxu0 %v4349
    %v4629 = vpop.f32.mrf.mxu0
    %v4630 = vadd.f32 %v4546, %v4629
    %v4631 = vpop.f32.mrf.mxu0
    %v4632 = vadd.f32 %v4548, %v4631
    %4633 = vmatmul.bf16.gmra.mxu0 %v4351
    %v4634 = vpop.f32.mrf.mxu0
    %v4635 = vadd.f32 %v4551, %v4634
    %v4636 = vpop.f32.mrf.mxu0
    %v4637 = vadd.f32 %v4553, %v4636
    %4638 = vmatmul.bf16.gmra.mxu0 %v4353
    %v4639 = vpop.f32.mrf.mxu0
    %v4640 = vadd.f32 %v4556, %v4639
    %v4641 = vpop.f32.mrf.mxu0
    %v4642 = vadd.f32 %v4558, %v4641
    %4643 = vmatmul.bf16.gmra.mxu0 %v4355
    %v4644 = vpop.f32.mrf.mxu0
    %v4645 = vadd.f32 %v4561, %v4644
    %v4646 = vpop.f32.mrf.mxu0
    %v4647 = vadd.f32 %v4563, %v4646
    %4648 = vmatmul.bf16.gmra.mxu0 %v4357
    %v4649 = vpop.f32.mrf.mxu0
    %v4650 = vadd.f32 %v4566, %v4649
    %v4651 = vpop.f32.mrf.mxu0
    %v4652 = vadd.f32 %v4568, %v4651
    %4653 = vdwg.mxu0
    %v4654 = vld [vmem:[%s6] sm:$0xf]
    %v4655 = vld [vmem:[%s6 + $0x4] sm:$0xf]
    %v4656 = vld [vmem:[%s6 + $0x8] sm:$0xf]
    %v4657 = vld [vmem:[%s6 + $0xc] sm:$0xf]
    %v4658 = vld [vmem:[%s6 + $0x10] sm:$0xf]
    %v4659 = vld [vmem:[%s6 + $0x14] sm:$0xf]
    %v4660 = vld [vmem:[%s6 + $0x18] sm:$0xf]
    %v4661 = vld [vmem:[%s6 + $0x1c] sm:$0xf]
    %v4662 = vld [vmem:[%s6 + $0x20] sm:$0xf]
    %v4663 = vld [vmem:[%s6 + $0x24] sm:$0xf]
    %v4664 = vld [vmem:[%s6 + $0x28] sm:$0xf]
    %v4665 = vld [vmem:[%s6 + $0x2c] sm:$0xf]
    %v4666 = vld [vmem:[%s6 + $0x30] sm:$0xf]
    %v4667 = vld [vmem:[%s6 + $0x34] sm:$0xf]
    %v4668 = vld [vmem:[%s6 + $0x38] sm:$0xf]
    %v4669 = vld [vmem:[%s6 + $0x3c] sm:$0xf]
    %v4670 = vld [vmem:[%s6 + $0x40] sm:$0xf]
    %v4671 = vld [vmem:[%s6 + $0x44] sm:$0xf]
    %v4672 = vld [vmem:[%s6 + $0x48] sm:$0xf]
    %v4673 = vld [vmem:[%s6 + $0x4c] sm:$0xf]
    %v4674 = vld [vmem:[%s6 + $0x50] sm:$0xf]
    %v4675 = vld [vmem:[%s6 + $0x54] sm:$0xf]
    %v4676 = vld [vmem:[%s6 + $0x58] sm:$0xf]
    %v4677 = vld [vmem:[%s6 + $0x5c] sm:$0xf]
    %v4678 = vld [vmem:[%s6 + $0x60] sm:$0xf]
    %v4679 = vld [vmem:[%s6 + $0x64] sm:$0xf]
    %v4680 = vld [vmem:[%s6 + $0x68] sm:$0xf]
    %v4681 = vld [vmem:[%s6 + $0x6c] sm:$0xf]
    %v4682 = vld [vmem:[%s6 + $0x70] sm:$0xf]
    %v4683 = vld [vmem:[%s6 + $0x74] sm:$0xf]
    %v4684 = vld [vmem:[%s6 + $0x78] sm:$0xf]
    %v4685 = vld [vmem:[%s6 + $0x7c] sm:$0xf]
    %v4718 = vunpack.c.l.b16 %v4654
    %v4719 = vunpack.c.l.b16 %v4655
    %v4720 = vunpack.c.l.b16 %v4656
    %v4721 = vunpack.c.l.b16 %v4657
    %v4722 = vunpack.c.l.b16 %v4658
    %v4723 = vunpack.c.l.b16 %v4659
    %v4724 = vunpack.c.l.b16 %v4660
    %v4725 = vunpack.c.l.b16 %v4661
    %v4726 = vunpack.c.l.b16 %v4662
    %v4727 = vunpack.c.l.b16 %v4663
    %v4728 = vunpack.c.l.b16 %v4664
    %v4729 = vunpack.c.l.b16 %v4665
    %v4730 = vunpack.c.l.b16 %v4666
    %v4731 = vunpack.c.l.b16 %v4667
    %v4732 = vunpack.c.l.b16 %v4668
    %v4733 = vunpack.c.l.b16 %v4669
    %v4734 = vunpack.c.l.b16 %v4670
    %v4735 = vunpack.c.l.b16 %v4671
    %v4736 = vunpack.c.l.b16 %v4672
    %v4737 = vunpack.c.l.b16 %v4673
    %v4738 = vunpack.c.l.b16 %v4674
    %v4739 = vunpack.c.l.b16 %v4675
    %v4740 = vunpack.c.l.b16 %v4676
    %v4741 = vunpack.c.l.b16 %v4677
    %v4742 = vunpack.c.l.b16 %v4678
    %v4743 = vunpack.c.l.b16 %v4679
    %v4744 = vunpack.c.l.b16 %v4680
    %v4745 = vunpack.c.l.b16 %v4681
    %v4746 = vunpack.c.l.b16 %v4682
    %v4747 = vunpack.c.l.b16 %v4683
    %v4748 = vunpack.c.l.b16 %v4684
    %v4749 = vunpack.c.l.b16 %v4685
    %v4750 = vpack.c.b16 %v4719, %v4718
    %v4751 = vpack.c.b16 %v4721, %v4720
    %v4752 = vpack.c.b16 %v4723, %v4722
    %v4753 = vpack.c.b16 %v4725, %v4724
    %v4754 = vpack.c.b16 %v4727, %v4726
    %v4755 = vpack.c.b16 %v4729, %v4728
    %v4756 = vpack.c.b16 %v4731, %v4730
    %v4757 = vpack.c.b16 %v4733, %v4732
    %v4758 = vpack.c.b16 %v4735, %v4734
    %v4759 = vpack.c.b16 %v4737, %v4736
    %v4760 = vpack.c.b16 %v4739, %v4738
    %v4761 = vpack.c.b16 %v4741, %v4740
    %v4762 = vpack.c.b16 %v4743, %v4742
    %v4763 = vpack.c.b16 %v4745, %v4744
    %v4764 = vpack.c.b16 %v4747, %v4746
    %v4765 = vpack.c.b16 %v4749, %v4748
    %4782 = vmatpush.bf16.msra.mxu0 %v4757
    %4783 = vmatpush.bf16.msra.mxu0 %v4756
    %4784 = vmatpush.bf16.msra.mxu0 %v4755
    %4785 = vmatpush.bf16.msra.mxu0 %v4754
    %4786 = vmatpush.bf16.msra.mxu0 %v4753
    %4787 = vmatpush.bf16.msra.mxu0 %v4752
    %4788 = vmatpush.bf16.msra.mxu0 %v4751
    %4789 = vmatpush.bf16.msra.mxu0 %v4750
    %4790 = vmatmul.bf16.gmra.mxu0 %v4328
    %v4791 = vpop.f32.mrf.mxu0
    %v4792 = vadd.f32 0.0, %v4791
    %v4793 = vpop.f32.mrf.mxu0
    %v4794 = vadd.f32 0.0, %v4793
    %4795 = vmatmul.bf16.gmra.mxu0 %v4330
    %v4796 = vpop.f32.mrf.mxu0
    %v4797 = vadd.f32 0.0, %v4796
    %v4798 = vpop.f32.mrf.mxu0
    %v4799 = vadd.f32 0.0, %v4798
    %4800 = vmatmul.bf16.gmra.mxu0 %v4332
    %v4801 = vpop.f32.mrf.mxu0
    %v4802 = vadd.f32 0.0, %v4801
    %v4803 = vpop.f32.mrf.mxu0
    %v4804 = vadd.f32 0.0, %v4803
    %4805 = vmatmul.bf16.gmra.mxu0 %v4334
    %v4806 = vpop.f32.mrf.mxu0
    %v4807 = vadd.f32 0.0, %v4806
    %v4808 = vpop.f32.mrf.mxu0
    %v4809 = vadd.f32 0.0, %v4808
    %4810 = vmatmul.bf16.gmra.mxu0 %v4336
    %v4811 = vpop.f32.mrf.mxu0
    %v4812 = vadd.f32 0.0, %v4811
    %v4813 = vpop.f32.mrf.mxu0
    %v4814 = vadd.f32 0.0, %v4813
    %4815 = vmatmul.bf16.gmra.mxu0 %v4338
    %v4816 = vpop.f32.mrf.mxu0
    %v4817 = vadd.f32 0.0, %v4816
    %v4818 = vpop.f32.mrf.mxu0
    %v4819 = vadd.f32 0.0, %v4818
    %4820 = vmatmul.bf16.gmra.mxu0 %v4340
    %v4821 = vpop.f32.mrf.mxu0
    %v4822 = vadd.f32 0.0, %v4821
    %v4823 = vpop.f32.mrf.mxu0
    %v4824 = vadd.f32 0.0, %v4823
    %4825 = vmatmul.bf16.gmra.mxu0 %v4342
    %v4826 = vpop.f32.mrf.mxu0
    %v4827 = vadd.f32 0.0, %v4826
    %v4828 = vpop.f32.mrf.mxu0
    %v4829 = vadd.f32 0.0, %v4828
    %4830 = vmatmul.bf16.gmra.mxu0 %v4344
    %v4831 = vpop.f32.mrf.mxu0
    %v4832 = vadd.f32 0.0, %v4831
    %v4833 = vpop.f32.mrf.mxu0
    %v4834 = vadd.f32 0.0, %v4833
    %4835 = vmatmul.bf16.gmra.mxu0 %v4346
    %v4836 = vpop.f32.mrf.mxu0
    %v4837 = vadd.f32 0.0, %v4836
    %v4838 = vpop.f32.mrf.mxu0
    %v4839 = vadd.f32 0.0, %v4838
    %4840 = vmatmul.bf16.gmra.mxu0 %v4348
    %v4841 = vpop.f32.mrf.mxu0
    %v4842 = vadd.f32 0.0, %v4841
    %v4843 = vpop.f32.mrf.mxu0
    %v4844 = vadd.f32 0.0, %v4843
    %4845 = vmatmul.bf16.gmra.mxu0 %v4350
    %v4846 = vpop.f32.mrf.mxu0
    %v4847 = vadd.f32 0.0, %v4846
    %v4848 = vpop.f32.mrf.mxu0
    %v4849 = vadd.f32 0.0, %v4848
    %4850 = vmatmul.bf16.gmra.mxu0 %v4352
    %v4851 = vpop.f32.mrf.mxu0
    %v4852 = vadd.f32 0.0, %v4851
    %v4853 = vpop.f32.mrf.mxu0
    %v4854 = vadd.f32 0.0, %v4853
    %4855 = vmatmul.bf16.gmra.mxu0 %v4354
    %v4856 = vpop.f32.mrf.mxu0
    %v4857 = vadd.f32 0.0, %v4856
    %v4858 = vpop.f32.mrf.mxu0
    %v4859 = vadd.f32 0.0, %v4858
    %4860 = vmatmul.bf16.gmra.mxu0 %v4356
    %v4861 = vpop.f32.mrf.mxu0
    %v4862 = vadd.f32 0.0, %v4861
    %v4863 = vpop.f32.mrf.mxu0
    %v4864 = vadd.f32 0.0, %v4863
    %4865 = vdwg.mxu0
    %4866 = vmatpush.bf16.msra.mxu0 %v4765
    %4867 = vmatpush.bf16.msra.mxu0 %v4764
    %4868 = vmatpush.bf16.msra.mxu0 %v4763
    %4869 = vmatpush.bf16.msra.mxu0 %v4762
    %4870 = vmatpush.bf16.msra.mxu0 %v4761
    %4871 = vmatpush.bf16.msra.mxu0 %v4760
    %4872 = vmatpush.bf16.msra.mxu0 %v4759
    %4873 = vmatpush.bf16.msra.mxu0 %v4758
    %4874 = vmatmul.bf16.gmra.mxu0 %v4329
    %v4875 = vpop.f32.mrf.mxu0
    %v4876 = vadd.f32 %v4792, %v4875
    %v4877 = vpop.f32.mrf.mxu0
    %v4878 = vadd.f32 %v4794, %v4877
    %4879 = vmatmul.bf16.gmra.mxu0 %v4331
    %v4880 = vpop.f32.mrf.mxu0
    %v4881 = vadd.f32 %v4797, %v4880
    %v4882 = vpop.f32.mrf.mxu0
    %v4883 = vadd.f32 %v4799, %v4882
    %4884 = vmatmul.bf16.gmra.mxu0 %v4333
    %v4885 = vpop.f32.mrf.mxu0
    %v4886 = vadd.f32 %v4802, %v4885
    %v4887 = vpop.f32.mrf.mxu0
    %v4888 = vadd.f32 %v4804, %v4887
    %4889 = vmatmul.bf16.gmra.mxu0 %v4335
    %v4890 = vpop.f32.mrf.mxu0
    %v4891 = vadd.f32 %v4807, %v4890
    %v4892 = vpop.f32.mrf.mxu0
    %v4893 = vadd.f32 %v4809, %v4892
    %4894 = vmatmul.bf16.gmra.mxu0 %v4337
    %v4895 = vpop.f32.mrf.mxu0
    %v4896 = vadd.f32 %v4812, %v4895
    %v4897 = vpop.f32.mrf.mxu0
    %v4898 = vadd.f32 %v4814, %v4897
    %4899 = vmatmul.bf16.gmra.mxu0 %v4339
    %v4900 = vpop.f32.mrf.mxu0
    %v4901 = vadd.f32 %v4817, %v4900
    %v4902 = vpop.f32.mrf.mxu0
    %v4903 = vadd.f32 %v4819, %v4902
    %4904 = vmatmul.bf16.gmra.mxu0 %v4341
    %v4905 = vpop.f32.mrf.mxu0
    %v4906 = vadd.f32 %v4822, %v4905
    %v4907 = vpop.f32.mrf.mxu0
    %v4908 = vadd.f32 %v4824, %v4907
    %4909 = vmatmul.bf16.gmra.mxu0 %v4343
    %v4910 = vpop.f32.mrf.mxu0
    %v4911 = vadd.f32 %v4827, %v4910
    %v4912 = vpop.f32.mrf.mxu0
    %v4913 = vadd.f32 %v4829, %v4912
    %4914 = vmatmul.bf16.gmra.mxu0 %v4345
    %v4915 = vpop.f32.mrf.mxu0
    %v4916 = vadd.f32 %v4832, %v4915
    %v4917 = vpop.f32.mrf.mxu0
    %v4918 = vadd.f32 %v4834, %v4917
    %4919 = vmatmul.bf16.gmra.mxu0 %v4347
    %v4920 = vpop.f32.mrf.mxu0
    %v4921 = vadd.f32 %v4837, %v4920
    %v4922 = vpop.f32.mrf.mxu0
    %v4923 = vadd.f32 %v4839, %v4922
    %4924 = vmatmul.bf16.gmra.mxu0 %v4349
    %v4925 = vpop.f32.mrf.mxu0
    %v4926 = vadd.f32 %v4842, %v4925
    %v4927 = vpop.f32.mrf.mxu0
    %v4928 = vadd.f32 %v4844, %v4927
    %4929 = vmatmul.bf16.gmra.mxu0 %v4351
    %v4930 = vpop.f32.mrf.mxu0
    %v4931 = vadd.f32 %v4847, %v4930
    %v4932 = vpop.f32.mrf.mxu0
    %v4933 = vadd.f32 %v4849, %v4932
    %4934 = vmatmul.bf16.gmra.mxu0 %v4353
    %v4935 = vpop.f32.mrf.mxu0
    %v4936 = vadd.f32 %v4852, %v4935
    %v4937 = vpop.f32.mrf.mxu0
    %v4938 = vadd.f32 %v4854, %v4937
    %4939 = vmatmul.bf16.gmra.mxu0 %v4355
    %v4940 = vpop.f32.mrf.mxu0
    %v4941 = vadd.f32 %v4857, %v4940
    %v4942 = vpop.f32.mrf.mxu0
    %v4943 = vadd.f32 %v4859, %v4942
    %4944 = vmatmul.bf16.gmra.mxu0 %v4357
    %v4945 = vpop.f32.mrf.mxu0
    %v4946 = vadd.f32 %v4862, %v4945
    %v4947 = vpop.f32.mrf.mxu0
    %v4948 = vadd.f32 %v4864, %v4947
    %4949 = vdwg.mxu0
    %v4950 = vmax.f32 %v4580, %v4876
    %v4951 = vmax.f32 %v4582, %v4878
    %v4952 = vmax.f32 %v4585, %v4881
    %v4953 = vmax.f32 %v4587, %v4883
    %v4954 = vmax.f32 %v4590, %v4886
    %v4955 = vmax.f32 %v4592, %v4888
    %v4956 = vmax.f32 %v4595, %v4891
    %v4957 = vmax.f32 %v4597, %v4893
    %v4958 = vmax.f32 %v4600, %v4896
    %v4959 = vmax.f32 %v4602, %v4898
    %v4960 = vmax.f32 %v4605, %v4901
    %v4961 = vmax.f32 %v4607, %v4903
    %v4962 = vmax.f32 %v4610, %v4906
    %v4963 = vmax.f32 %v4612, %v4908
    %v4964 = vmax.f32 %v4615, %v4911
    %v4965 = vmax.f32 %v4617, %v4913
    %v4966 = vmax.f32 %v4620, %v4916
    %v4967 = vmax.f32 %v4622, %v4918
    %v4968 = vmax.f32 %v4625, %v4921
    %v4969 = vmax.f32 %v4627, %v4923
    %v4970 = vmax.f32 %v4630, %v4926
    %v4971 = vmax.f32 %v4632, %v4928
    %v4972 = vmax.f32 %v4635, %v4931
    %v4973 = vmax.f32 %v4637, %v4933
    %v4974 = vmax.f32 %v4640, %v4936
    %v4975 = vmax.f32 %v4642, %v4938
    %v4976 = vmax.f32 %v4645, %v4941
    %v4977 = vmax.f32 %v4647, %v4943
    %v4978 = vmax.f32 %v4650, %v4946
    %v4979 = vmax.f32 %v4652, %v4948
    %v4980 = vpack.c.bf16 %v4951, %v4950
    %v4981 = vpack.c.bf16 %v4953, %v4952
    %v4982 = vpack.c.bf16 %v4955, %v4954
    %v4983 = vpack.c.bf16 %v4957, %v4956
    %v4984 = vpack.c.bf16 %v4959, %v4958
    %v4985 = vpack.c.bf16 %v4961, %v4960
    %v4986 = vpack.c.bf16 %v4963, %v4962
    %v4987 = vpack.c.bf16 %v4965, %v4964
    %v4988 = vpack.c.bf16 %v4967, %v4966
    %v4989 = vpack.c.bf16 %v4969, %v4968
    %v4990 = vpack.c.bf16 %v4971, %v4970
    %v4991 = vpack.c.bf16 %v4973, %v4972
    %v4992 = vpack.c.bf16 %v4975, %v4974
    %v4993 = vpack.c.bf16 %v4977, %v4976
    %v4994 = vpack.c.bf16 %v4979, %v4978
    %v4995 = vld [vmem:[%s7] sm:$0xff]
    %v4996 = vld [vmem:[%s7 + $0x8] sm:$0xff]
    %v4997 = vld [vmem:[%s7 + $0x10] sm:$0xff]
    %v4998 = vld [vmem:[%s7 + $0x18] sm:$0xff]
    %v4999 = vld [vmem:[%s7 + $0x20] sm:$0xff]
    %v5000 = vld [vmem:[%s7 + $0x28] sm:$0xff]
    %v5001 = vld [vmem:[%s7 + $0x30] sm:$0xff]
    %v5002 = vld [vmem:[%s7 + $0x38] sm:$0xff]
    %v5003 = vld [vmem:[%s7 + $0x40] sm:$0xff]
    %v5004 = vld [vmem:[%s7 + $0x48] sm:$0xff]
    %v5005 = vld [vmem:[%s7 + $0x50] sm:$0xff]
    %v5006 = vld [vmem:[%s7 + $0x58] sm:$0xff]
    %v5007 = vld [vmem:[%s7 + $0x60] sm:$0xff]
    %v5008 = vld [vmem:[%s7 + $0x68] sm:$0xff]
    %v5009 = vld [vmem:[%s7 + $0x70] sm:$0xff]
    %v5010 = vld [vmem:[%s7 + $0x78] sm:$0xff]
    %v5027 = vunpack.c.l.b16 %v4995
    %v5028 = vunpack.c.h.b16 %v4995
    %v5029 = vunpack.c.l.b16 %v4996
    %v5030 = vunpack.c.h.b16 %v4996
    %v5031 = vunpack.c.l.b16 %v4997
    %v5032 = vunpack.c.h.b16 %v4997
    %v5033 = vunpack.c.l.b16 %v4998
    %v5034 = vunpack.c.h.b16 %v4998
    %v5035 = vunpack.c.l.b16 %v4999
    %v5036 = vunpack.c.h.b16 %v4999
    %v5037 = vunpack.c.l.b16 %v5000
    %v5038 = vunpack.c.h.b16 %v5000
    %v5039 = vunpack.c.l.b16 %v5001
    %v5040 = vunpack.c.h.b16 %v5001
    %v5041 = vunpack.c.l.b16 %v5002
    %v5042 = vunpack.c.h.b16 %v5002
    %v5043 = vunpack.c.l.b16 %v5003
    %v5044 = vunpack.c.h.b16 %v5003
    %v5045 = vunpack.c.l.b16 %v5004
    %v5046 = vunpack.c.h.b16 %v5004
    %v5047 = vunpack.c.l.b16 %v5005
    %v5048 = vunpack.c.h.b16 %v5005
    %v5049 = vunpack.c.l.b16 %v5006
    %v5050 = vunpack.c.h.b16 %v5006
    %v5051 = vunpack.c.l.b16 %v5007
    %v5052 = vunpack.c.h.b16 %v5007
    %v5053 = vunpack.c.l.b16 %v5008
    %v5054 = vunpack.c.h.b16 %v5008
    %v5055 = vunpack.c.l.b16 %v5009
    %v5056 = vunpack.c.h.b16 %v5009
    %v5057 = vunpack.c.l.b16 %v5010
    %v5058 = vunpack.c.h.b16 %v5010
    %v5059 = vpack.c.b16 %v5029, %v5027
    %v5060 = vpack.c.b16 %v5030, %v5028
    %v5061 = vpack.c.b16 %v5033, %v5031
    %v5062 = vpack.c.b16 %v5034, %v5032
    %v5063 = vpack.c.b16 %v5037, %v5035
    %v5064 = vpack.c.b16 %v5038, %v5036
    %v5065 = vpack.c.b16 %v5041, %v5039
    %v5066 = vpack.c.b16 %v5042, %v5040
    %v5067 = vpack.c.b16 %v5045, %v5043
    %v5068 = vpack.c.b16 %v5046, %v5044
    %v5069 = vpack.c.b16 %v5049, %v5047
    %v5070 = vpack.c.b16 %v5050, %v5048
    %v5071 = vpack.c.b16 %v5053, %v5051
    %v5072 = vpack.c.b16 %v5054, %v5052
    %v5073 = vpack.c.b16 %v5057, %v5055
    %v5074 = vpack.c.b16 %v5058, %v5056
    %vm5083 = vcmask 900096
    %v5085 = vsel %vm5083, %v5060, 0
    %v5088 = vsel %vm5083, %v5062, 0
    %v5091 = vsel %vm5083, %v5064, 0
    %v5094 = vsel %vm5083, %v5066, 0
    %v5097 = vsel %vm5083, %v5068, 0
    %v5100 = vsel %vm5083, %v5070, 0
    %v5103 = vsel %vm5083, %v5072, 0
    %v5106 = vsel %vm5083, %v5074, 0
    %vm5108 = vcmask 1046528
    %v5110 = vsel %vm5108, %v4994, 0
    %5112 = vmatpush.bf16.msra.mxu0 %v4987
    %5113 = vmatpush.bf16.msra.mxu0 %v4986
    %5114 = vmatpush.bf16.msra.mxu0 %v4985
    %5115 = vmatpush.bf16.msra.mxu0 %v4984
    %5116 = vmatpush.bf16.msra.mxu0 %v4983
    %5117 = vmatpush.bf16.msra.mxu0 %v4982
    %5118 = vmatpush.bf16.msra.mxu0 %v4981
    %5119 = vmatpush.bf16.msra.mxu0 %v4980
    %5120 = vmatmul.bf16.gmra.mxu0 %v5059
    %v5121 = vpop.f32.mrf.mxu0
    %v5122 = vadd.f32 0.0, %v5121
    %v5123 = vpop.f32.mrf.mxu0
    %v5124 = vadd.f32 0.0, %v5123
    %5125 = vmatmul.bf16.gmra.mxu0 %v5061
    %v5126 = vpop.f32.mrf.mxu0
    %v5127 = vadd.f32 0.0, %v5126
    %v5128 = vpop.f32.mrf.mxu0
    %v5129 = vadd.f32 0.0, %v5128
    %5130 = vmatmul.bf16.gmra.mxu0 %v5063
    %v5131 = vpop.f32.mrf.mxu0
    %v5132 = vadd.f32 0.0, %v5131
    %v5133 = vpop.f32.mrf.mxu0
    %v5134 = vadd.f32 0.0, %v5133
    %5135 = vmatmul.bf16.gmra.mxu0 %v5065
    %v5136 = vpop.f32.mrf.mxu0
    %v5137 = vadd.f32 0.0, %v5136
    %v5138 = vpop.f32.mrf.mxu0
    %v5139 = vadd.f32 0.0, %v5138
    %5140 = vmatmul.bf16.gmra.mxu0 %v5067
    %v5141 = vpop.f32.mrf.mxu0
    %v5142 = vadd.f32 0.0, %v5141
    %v5143 = vpop.f32.mrf.mxu0
    %v5144 = vadd.f32 0.0, %v5143
    %5145 = vmatmul.bf16.gmra.mxu0 %v5069
    %v5146 = vpop.f32.mrf.mxu0
    %v5147 = vadd.f32 0.0, %v5146
    %v5148 = vpop.f32.mrf.mxu0
    %v5149 = vadd.f32 0.0, %v5148
    %5150 = vmatmul.bf16.gmra.mxu0 %v5071
    %v5151 = vpop.f32.mrf.mxu0
    %v5152 = vadd.f32 0.0, %v5151
    %v5153 = vpop.f32.mrf.mxu0
    %v5154 = vadd.f32 0.0, %v5153
    %5155 = vmatmul.bf16.gmra.mxu0 %v5073
    %v5156 = vpop.f32.mrf.mxu0
    %v5157 = vadd.f32 0.0, %v5156
    %v5158 = vpop.f32.mrf.mxu0
    %v5159 = vadd.f32 0.0, %v5158
    %5160 = vdwg.mxu0
    %5161 = vmatpush.bf16.msra.mxu0 0
    %5162 = vmatpush.bf16.msra.mxu0 %v5110
    %5163 = vmatpush.bf16.msra.mxu0 %v4993
    %5164 = vmatpush.bf16.msra.mxu0 %v4992
    %5165 = vmatpush.bf16.msra.mxu0 %v4991
    %5166 = vmatpush.bf16.msra.mxu0 %v4990
    %5167 = vmatpush.bf16.msra.mxu0 %v4989
    %5168 = vmatpush.bf16.msra.mxu0 %v4988
    %5169 = vmatmul.bf16.gmra.mxu0 %v5085
    %v5170 = vpop.f32.mrf.mxu0
    %v5171 = vadd.f32 %v5122, %v5170
    %v5172 = vpop.f32.mrf.mxu0
    %v5173 = vadd.f32 %v5124, %v5172
    %5174 = vmatmul.bf16.gmra.mxu0 %v5088
    %v5175 = vpop.f32.mrf.mxu0
    %v5176 = vadd.f32 %v5127, %v5175
    %v5177 = vpop.f32.mrf.mxu0
    %v5178 = vadd.f32 %v5129, %v5177
    %5179 = vmatmul.bf16.gmra.mxu0 %v5091
    %v5180 = vpop.f32.mrf.mxu0
    %v5181 = vadd.f32 %v5132, %v5180
    %v5182 = vpop.f32.mrf.mxu0
    %v5183 = vadd.f32 %v5134, %v5182
    %5184 = vmatmul.bf16.gmra.mxu0 %v5094
    %v5185 = vpop.f32.mrf.mxu0
    %v5186 = vadd.f32 %v5137, %v5185
    %v5187 = vpop.f32.mrf.mxu0
    %v5188 = vadd.f32 %v5139, %v5187
    %5189 = vmatmul.bf16.gmra.mxu0 %v5097
    %v5190 = vpop.f32.mrf.mxu0
    %v5191 = vadd.f32 %v5142, %v5190
    %v5192 = vpop.f32.mrf.mxu0
    %v5193 = vadd.f32 %v5144, %v5192
    %5194 = vmatmul.bf16.gmra.mxu0 %v5100
    %v5195 = vpop.f32.mrf.mxu0
    %v5196 = vadd.f32 %v5147, %v5195
    %v5197 = vpop.f32.mrf.mxu0
    %v5198 = vadd.f32 %v5149, %v5197
    %5199 = vmatmul.bf16.gmra.mxu0 %v5103
    %v5200 = vpop.f32.mrf.mxu0
    %v5201 = vadd.f32 %v5152, %v5200
    %v5202 = vpop.f32.mrf.mxu0
    %v5203 = vadd.f32 %v5154, %v5202
    %5204 = vmatmul.bf16.gmra.mxu0 %v5106
    %v5205 = vpop.f32.mrf.mxu0
    %v5206 = vadd.f32 %v5157, %v5205
    %v5207 = vpop.f32.mrf.mxu0
    %v5208 = vadd.f32 %v5159, %v5207
    %5209 = vdwg.mxu0
    %v5210 = vld [vmem:[%s8] sm:$0xff]
    %v5211 = vld [vmem:[%s8 + $0x8] sm:$0xff]
    %v5212 = vld [vmem:[%s8 + $0x10] sm:$0xff]
    %v5213 = vld [vmem:[%s8 + $0x18] sm:$0xff]
    %v5214 = vld [vmem:[%s8 + $0x20] sm:$0xff]
    %v5215 = vld [vmem:[%s8 + $0x28] sm:$0xff]
    %v5216 = vld [vmem:[%s8 + $0x30] sm:$0xff]
    %v5217 = vld [vmem:[%s8 + $0x38] sm:$0xff]
    %v5218 = vld [vmem:[%s8 + $0x40] sm:$0xff]
    %v5219 = vld [vmem:[%s8 + $0x48] sm:$0xff]
    %v5220 = vld [vmem:[%s8 + $0x50] sm:$0xff]
    %v5221 = vld [vmem:[%s8 + $0x58] sm:$0xff]
    %v5222 = vld [vmem:[%s8 + $0x60] sm:$0xff]
    %v5223 = vld [vmem:[%s8 + $0x68] sm:$0xff]
    %v5224 = vld [vmem:[%s8 + $0x70] sm:$0xff]
    %v5225 = vld [vmem:[%s8 + $0x78] sm:$0xff]
    %v5242 = vunpack.c.l.b16 %v5210
    %v5243 = vunpack.c.h.b16 %v5210
    %v5244 = vunpack.c.l.b16 %v5211
    %v5245 = vunpack.c.h.b16 %v5211
    %v5246 = vunpack.c.l.b16 %v5212
    %v5247 = vunpack.c.h.b16 %v5212
    %v5248 = vunpack.c.l.b16 %v5213
    %v5249 = vunpack.c.h.b16 %v5213
    %v5250 = vunpack.c.l.b16 %v5214
    %v5251 = vunpack.c.h.b16 %v5214
    %v5252 = vunpack.c.l.b16 %v5215
    %v5253 = vunpack.c.h.b16 %v5215
    %v5254 = vunpack.c.l.b16 %v5216
    %v5255 = vunpack.c.h.b16 %v5216
    %v5256 = vunpack.c.l.b16 %v5217
    %v5257 = vunpack.c.h.b16 %v5217
    %v5258 = vunpack.c.l.b16 %v5218
    %v5259 = vunpack.c.h.b16 %v5218
    %v5260 = vunpack.c.l.b16 %v5219
    %v5261 = vunpack.c.h.b16 %v5219
    %v5262 = vunpack.c.l.b16 %v5220
    %v5263 = vunpack.c.h.b16 %v5220
    %v5264 = vunpack.c.l.b16 %v5221
    %v5265 = vunpack.c.h.b16 %v5221
    %v5266 = vunpack.c.l.b16 %v5222
    %v5267 = vunpack.c.h.b16 %v5222
    %v5268 = vunpack.c.l.b16 %v5223
    %v5269 = vunpack.c.h.b16 %v5223
    %v5270 = vunpack.c.l.b16 %v5224
    %v5271 = vunpack.c.h.b16 %v5224
    %v5272 = vunpack.c.l.b16 %v5225
    %v5273 = vunpack.c.h.b16 %v5225
    %v5274 = vpack.c.b16 %v5244, %v5242
    %v5275 = vpack.c.b16 %v5245, %v5243
    %v5276 = vpack.c.b16 %v5248, %v5246
    %v5277 = vpack.c.b16 %v5249, %v5247
    %v5278 = vpack.c.b16 %v5252, %v5250
    %v5279 = vpack.c.b16 %v5253, %v5251
    %v5280 = vpack.c.b16 %v5256, %v5254
    %v5281 = vpack.c.b16 %v5257, %v5255
    %v5282 = vpack.c.b16 %v5260, %v5258
    %v5283 = vpack.c.b16 %v5261, %v5259
    %v5284 = vpack.c.b16 %v5264, %v5262
    %v5285 = vpack.c.b16 %v5265, %v5263
    %v5286 = vpack.c.b16 %v5268, %v5266
    %v5287 = vpack.c.b16 %v5269, %v5267
    %v5288 = vpack.c.b16 %v5272, %v5270
    %v5289 = vpack.c.b16 %v5273, %v5271
    %v5299 = vsel %vm5083, %v5275, 0
    %v5302 = vsel %vm5083, %v5277, 0
    %v5305 = vsel %vm5083, %v5279, 0
    %v5308 = vsel %vm5083, %v5281, 0
    %v5311 = vsel %vm5083, %v5283, 0
    %v5314 = vsel %vm5083, %v5285, 0
    %v5317 = vsel %vm5083, %v5287, 0
    %v5320 = vsel %vm5083, %v5289, 0
    %5322 = vmatpush.bf16.msra.mxu0 %v4987
    %5323 = vmatpush.bf16.msra.mxu0 %v4986
    %5324 = vmatpush.bf16.msra.mxu0 %v4985
    %5325 = vmatpush.bf16.msra.mxu0 %v4984
    %5326 = vmatpush.bf16.msra.mxu0 %v4983
    %5327 = vmatpush.bf16.msra.mxu0 %v4982
    %5328 = vmatpush.bf16.msra.mxu0 %v4981
    %5329 = vmatpush.bf16.msra.mxu0 %v4980
    %5330 = vmatmul.bf16.gmra.mxu0 %v5274
    %v5331 = vpop.f32.mrf.mxu0
    %v5332 = vadd.f32 0.0, %v5331
    %v5333 = vpop.f32.mrf.mxu0
    %v5334 = vadd.f32 0.0, %v5333
    %5335 = vmatmul.bf16.gmra.mxu0 %v5276
    %v5336 = vpop.f32.mrf.mxu0
    %v5337 = vadd.f32 0.0, %v5336
    %v5338 = vpop.f32.mrf.mxu0
    %v5339 = vadd.f32 0.0, %v5338
    %5340 = vmatmul.bf16.gmra.mxu0 %v5278
    %v5341 = vpop.f32.mrf.mxu0
    %v5342 = vadd.f32 0.0, %v5341
    %v5343 = vpop.f32.mrf.mxu0
    %v5344 = vadd.f32 0.0, %v5343
    %5345 = vmatmul.bf16.gmra.mxu0 %v5280
    %v5346 = vpop.f32.mrf.mxu0
    %v5347 = vadd.f32 0.0, %v5346
    %v5348 = vpop.f32.mrf.mxu0
    %v5349 = vadd.f32 0.0, %v5348
    %5350 = vmatmul.bf16.gmra.mxu0 %v5282
    %v5351 = vpop.f32.mrf.mxu0
    %v5352 = vadd.f32 0.0, %v5351
    %v5353 = vpop.f32.mrf.mxu0
    %v5354 = vadd.f32 0.0, %v5353
    %5355 = vmatmul.bf16.gmra.mxu0 %v5284
    %v5356 = vpop.f32.mrf.mxu0
    %v5357 = vadd.f32 0.0, %v5356
    %v5358 = vpop.f32.mrf.mxu0
    %v5359 = vadd.f32 0.0, %v5358
    %5360 = vmatmul.bf16.gmra.mxu0 %v5286
    %v5361 = vpop.f32.mrf.mxu0
    %v5362 = vadd.f32 0.0, %v5361
    %v5363 = vpop.f32.mrf.mxu0
    %v5364 = vadd.f32 0.0, %v5363
    %5365 = vmatmul.bf16.gmra.mxu0 %v5288
    %v5366 = vpop.f32.mrf.mxu0
    %v5367 = vadd.f32 0.0, %v5366
    %v5368 = vpop.f32.mrf.mxu0
    %v5369 = vadd.f32 0.0, %v5368
    %5370 = vdwg.mxu0
    %5371 = vmatpush.bf16.msra.mxu0 0
    %5372 = vmatpush.bf16.msra.mxu0 %v5110
    %5373 = vmatpush.bf16.msra.mxu0 %v4993
    %5374 = vmatpush.bf16.msra.mxu0 %v4992
    %5375 = vmatpush.bf16.msra.mxu0 %v4991
    %5376 = vmatpush.bf16.msra.mxu0 %v4990
    %5377 = vmatpush.bf16.msra.mxu0 %v4989
    %5378 = vmatpush.bf16.msra.mxu0 %v4988
    %5379 = vmatmul.bf16.gmra.mxu0 %v5299
    %v5380 = vpop.f32.mrf.mxu0
    %v5381 = vadd.f32 %v5332, %v5380
    %v5382 = vpop.f32.mrf.mxu0
    %v5383 = vadd.f32 %v5334, %v5382
    %5384 = vmatmul.bf16.gmra.mxu0 %v5302
    %v5385 = vpop.f32.mrf.mxu0
    %v5386 = vadd.f32 %v5337, %v5385
    %v5387 = vpop.f32.mrf.mxu0
    %v5388 = vadd.f32 %v5339, %v5387
    %5389 = vmatmul.bf16.gmra.mxu0 %v5305
    %v5390 = vpop.f32.mrf.mxu0
    %v5391 = vadd.f32 %v5342, %v5390
    %v5392 = vpop.f32.mrf.mxu0
    %v5393 = vadd.f32 %v5344, %v5392
    %5394 = vmatmul.bf16.gmra.mxu0 %v5308
    %v5395 = vpop.f32.mrf.mxu0
    %v5396 = vadd.f32 %v5347, %v5395
    %v5397 = vpop.f32.mrf.mxu0
    %v5398 = vadd.f32 %v5349, %v5397
    %5399 = vmatmul.bf16.gmra.mxu0 %v5311
    %v5400 = vpop.f32.mrf.mxu0
    %v5401 = vadd.f32 %v5352, %v5400
    %v5402 = vpop.f32.mrf.mxu0
    %v5403 = vadd.f32 %v5354, %v5402
    %5404 = vmatmul.bf16.gmra.mxu0 %v5314
    %v5405 = vpop.f32.mrf.mxu0
    %v5406 = vadd.f32 %v5357, %v5405
    %v5407 = vpop.f32.mrf.mxu0
    %v5408 = vadd.f32 %v5359, %v5407
    %5409 = vmatmul.bf16.gmra.mxu0 %v5317
    %v5410 = vpop.f32.mrf.mxu0
    %v5411 = vadd.f32 %v5362, %v5410
    %v5412 = vpop.f32.mrf.mxu0
    %v5413 = vadd.f32 %v5364, %v5412
    %5414 = vmatmul.bf16.gmra.mxu0 %v5320
    %v5415 = vpop.f32.mrf.mxu0
    %v5416 = vadd.f32 %v5367, %v5415
    %v5417 = vpop.f32.mrf.mxu0
    %v5418 = vadd.f32 %v5369, %v5417
    %5419 = vdwg.mxu0
    %v5420 = vmax.f32 %v5171, %v5381
    %v5421 = vmax.f32 %v5173, %v5383
    %v5422 = vmax.f32 %v5176, %v5386
    %v5423 = vmax.f32 %v5178, %v5388
    %v5424 = vmax.f32 %v5181, %v5391
    %v5425 = vmax.f32 %v5183, %v5393
    %v5426 = vmax.f32 %v5186, %v5396
    %v5427 = vmax.f32 %v5188, %v5398
    %v5428 = vmax.f32 %v5191, %v5401
    %v5429 = vmax.f32 %v5193, %v5403
    %v5430 = vmax.f32 %v5196, %v5406
    %v5431 = vmax.f32 %v5198, %v5408
    %v5432 = vmax.f32 %v5201, %v5411
    %v5433 = vmax.f32 %v5203, %v5413
    %v5434 = vmax.f32 %v5206, %v5416
    %v5435 = vmax.f32 %v5208, %v5418
    %v5436 = vpack.c.bf16 %v5420, %v5420
    %v5437 = vpack.c.bf16 %v5421, %v5421
    %v5438 = vpack.c.bf16 %v5422, %v5422
    %v5439 = vpack.c.bf16 %v5423, %v5423
    %v5440 = vpack.c.bf16 %v5424, %v5424
    %v5441 = vpack.c.bf16 %v5425, %v5425
    %v5442 = vpack.c.bf16 %v5426, %v5426
    %v5443 = vpack.c.bf16 %v5427, %v5427
    %v5444 = vpack.c.bf16 %v5428, %v5428
    %v5445 = vpack.c.bf16 %v5429, %v5429
    %v5446 = vpack.c.bf16 %v5430, %v5430
    %v5447 = vpack.c.bf16 %v5431, %v5431
    %v5448 = vpack.c.bf16 %v5432, %v5432
    %v5449 = vpack.c.bf16 %v5433, %v5433
    %v5450 = vpack.c.bf16 %v5434, %v5434
    %v5451 = vpack.c.bf16 %v5435, %v5435
    %5452 = vst [vmem:[#allocation3] sm:$0xf] %v5436
    %5453 = vst [vmem:[#allocation3 + $0x4] sm:$0xf] %v5437
    %5454 = vst [vmem:[#allocation3 + $0x8] sm:$0xf] %v5438
    %5455 = vst [vmem:[#allocation3 + $0xc] sm:$0xf] %v5439
    %5456 = vst [vmem:[#allocation3 + $0x10] sm:$0xf] %v5440
    %5457 = vst [vmem:[#allocation3 + $0x14] sm:$0xf] %v5441
    %5458 = vst [vmem:[#allocation3 + $0x18] sm:$0xf] %v5442
    %5459 = vst [vmem:[#allocation3 + $0x1c] sm:$0xf] %v5443
    %5460 = vst [vmem:[#allocation3 + $0x20] sm:$0xf] %v5444
    %5461 = vst [vmem:[#allocation3 + $0x24] sm:$0xf] %v5445
    %5462 = vst [vmem:[#allocation3 + $0x28] sm:$0xf] %v5446
    %5463 = vst [vmem:[#allocation3 + $0x2c] sm:$0xf] %v5447
    %5464 = vst [vmem:[#allocation3 + $0x30] sm:$0xf] %v5448
    %5465 = vst [vmem:[#allocation3 + $0x34] sm:$0xf] %v5449
    %5466 = vst [vmem:[#allocation3 + $0x38] sm:$0xf] %v5450
    %5467 = vst [vmem:[#allocation3 + $0x3c] sm:$0xf] %v5451
    %v5468 = vld [vmem:[#allocation3] sm:$0xf]
    %v5469 = vld [vmem:[#allocation3 + $0x4] sm:$0xf]
    %v5470 = vld [vmem:[#allocation3 + $0x8] sm:$0xf]
    %v5471 = vld [vmem:[#allocation3 + $0xc] sm:$0xf]
    %v5472 = vld [vmem:[#allocation3 + $0x10] sm:$0xf]
    %v5473 = vld [vmem:[#allocation3 + $0x14] sm:$0xf]
    %v5474 = vld [vmem:[#allocation3 + $0x18] sm:$0xf]
    %v5475 = vld [vmem:[#allocation3 + $0x1c] sm:$0xf]
    %v5476 = vld [vmem:[#allocation3 + $0x20] sm:$0xf]
    %v5477 = vld [vmem:[#allocation3 + $0x24] sm:$0xf]
    %v5478 = vld [vmem:[#allocation3 + $0x28] sm:$0xf]
    %v5479 = vld [vmem:[#allocation3 + $0x2c] sm:$0xf]
    %v5480 = vld [vmem:[#allocation3 + $0x30] sm:$0xf]
    %v5481 = vld [vmem:[#allocation3 + $0x34] sm:$0xf]
    %v5482 = vld [vmem:[#allocation3 + $0x38] sm:$0xf]
    %v5483 = vld [vmem:[#allocation3 + $0x3c] sm:$0x7]
    %v5484 = vld [vmem:[%s10] sm:$0xf]
    %v5485 = vld [vmem:[%s10 + $0x4] sm:$0xf]
    %v5486 = vld [vmem:[%s10 + $0x8] sm:$0xf]
    %v5487 = vld [vmem:[%s10 + $0xc] sm:$0xf]
    %v5488 = vld [vmem:[%s10 + $0x10] sm:$0xf]
    %v5489 = vld [vmem:[%s10 + $0x14] sm:$0xf]
    %v5490 = vld [vmem:[%s10 + $0x18] sm:$0xf]
    %v5491 = vld [vmem:[%s10 + $0x1c] sm:$0xf]
    %v5492 = vld [vmem:[%s10 + $0x20] sm:$0xf]
    %v5493 = vld [vmem:[%s10 + $0x24] sm:$0xf]
    %v5494 = vld [vmem:[%s10 + $0x28] sm:$0xf]
    %v5495 = vld [vmem:[%s10 + $0x2c] sm:$0xf]
    %v5496 = vld [vmem:[%s10 + $0x30] sm:$0xf]
    %v5497 = vld [vmem:[%s10 + $0x34] sm:$0xf]
    %v5498 = vld [vmem:[%s10 + $0x38] sm:$0xf]
    %v5499 = vld [vmem:[%s10 + $0x3c] sm:$0xf]
    %v5500 = vld [vmem:[#allocation3 + $0x3c] sm:$0xf]
    %s5501 = scalar_lea.vmem %s10, 64
    %v5502 = vld [vmem:[%s5501] sm:$0xf]
    %v5503 = vld [vmem:[%s5501 + $0x4] sm:$0xf]
    %v5504 = vld [vmem:[%s5501 + $0x8] sm:$0xf]
    %v5505 = vld [vmem:[%s5501 + $0xc] sm:$0xf]
    %v5506 = vld [vmem:[%s5501 + $0x10] sm:$0xf]
    %v5507 = vld [vmem:[%s5501 + $0x14] sm:$0xf]
    %v5508 = vld [vmem:[%s5501 + $0x18] sm:$0xf]
    %v5509 = vld [vmem:[%s5501 + $0x1c] sm:$0xf]
    %v5510 = vld [vmem:[%s5501 + $0x20] sm:$0xf]
    %v5511 = vld [vmem:[%s5501 + $0x24] sm:$0xf]
    %v5512 = vld [vmem:[%s5501 + $0x28] sm:$0xf]
    %v5513 = vld [vmem:[%s5501 + $0x2c] sm:$0xf]
    %v5514 = vld [vmem:[%s5501 + $0x30] sm:$0xf]
    %v5515 = vld [vmem:[%s5501 + $0x34] sm:$0xf]
    %v5516 = vld [vmem:[%s5501 + $0x38] sm:$0xf]
    %v5517 = vld [vmem:[%s5501 + $0x3c] sm:$0xf]
    %v5534 = vunpack.c.l.b16 %v5468
    %v5535 = vunpack.c.l.b16 %v5469
    %v5536 = vunpack.c.l.b16 %v5470
    %v5537 = vunpack.c.l.b16 %v5471
    %v5538 = vunpack.c.l.b16 %v5472
    %v5539 = vunpack.c.l.b16 %v5473
    %v5540 = vunpack.c.l.b16 %v5474
    %v5541 = vunpack.c.l.b16 %v5475
    %v5542 = vunpack.c.l.b16 %v5476
    %v5543 = vunpack.c.l.b16 %v5477
    %v5544 = vunpack.c.l.b16 %v5478
    %v5545 = vunpack.c.l.b16 %v5479
    %v5546 = vunpack.c.l.b16 %v5480
    %v5547 = vunpack.c.l.b16 %v5481
    %v5548 = vunpack.c.l.b16 %v5482
    %v5549 = vunpack.c.l.b16 %v5500
    %v5550 = vpack.c.b16 %v5535, %v5534
    %v5551 = vpack.c.b16 %v5537, %v5536
    %v5552 = vpack.c.b16 %v5539, %v5538
    %v5553 = vpack.c.b16 %v5541, %v5540
    %v5554 = vpack.c.b16 %v5543, %v5542
    %v5555 = vpack.c.b16 %v5545, %v5544
    %v5556 = vpack.c.b16 %v5547, %v5546
    %v5557 = vpack.c.b16 %v5549, %v5548
    %v5559 = vshrl.u32 %v5550, 16
    %v5561 = vshll.u32 %v5550, 16
    %v5563 = vrot.slane %v5561, 1
    %v5564 = vor.u32 %v5559, %v5563
    %v5566 = vshll.u32 %v5551, 16
    %v5568 = vrot.slane %v5566, 1
    %v5569 = vsel %vm224, %v5564, %v5568
    %v5570 = vshrl.u32 %v5551, 16
    %v5572 = vor.u32 %v5570, %v5568
    %v5574 = vshll.u32 %v5552, 16
    %v5576 = vrot.slane %v5574, 1
    %v5577 = vsel %vm224, %v5572, %v5576
    %v5578 = vshrl.u32 %v5552, 16
    %v5580 = vor.u32 %v5578, %v5576
    %v5582 = vshll.u32 %v5553, 16
    %v5584 = vrot.slane %v5582, 1
    %v5585 = vsel %vm224, %v5580, %v5584
    %v5586 = vshrl.u32 %v5553, 16
    %v5588 = vor.u32 %v5586, %v5584
    %v5590 = vshll.u32 %v5554, 16
    %v5592 = vrot.slane %v5590, 1
    %v5593 = vsel %vm224, %v5588, %v5592
    %v5594 = vshrl.u32 %v5554, 16
    %v5596 = vor.u32 %v5594, %v5592
    %v5598 = vshll.u32 %v5555, 16
    %v5600 = vrot.slane %v5598, 1
    %v5601 = vsel %vm224, %v5596, %v5600
    %v5602 = vshrl.u32 %v5555, 16
    %v5604 = vor.u32 %v5602, %v5600
    %v5606 = vshll.u32 %v5556, 16
    %v5608 = vrot.slane %v5606, 1
    %v5609 = vsel %vm224, %v5604, %v5608
    %v5610 = vshrl.u32 %v5556, 16
    %v5612 = vor.u32 %v5610, %v5608
    %v5614 = vshll.u32 %v5557, 16
    %v5616 = vrot.slane %v5614, 1
    %v5617 = vsel %vm224, %v5612, %v5616
    %v5618 = vshrl.u32 %v5557, 16
    %v5620 = vor.u32 %v5618, %v5616
    %v5645 = vunpack.c.l.b16 %v5502
    %v5646 = vunpack.c.l.b16 %v5503
    %v5647 = vunpack.c.l.b16 %v5504
    %v5648 = vunpack.c.l.b16 %v5505
    %v5649 = vunpack.c.l.b16 %v5506
    %v5650 = vunpack.c.l.b16 %v5507
    %v5651 = vunpack.c.l.b16 %v5508
    %v5652 = vunpack.c.l.b16 %v5509
    %v5653 = vunpack.c.l.b16 %v5510
    %v5654 = vunpack.c.l.b16 %v5511
    %v5655 = vunpack.c.l.b16 %v5512
    %v5656 = vunpack.c.l.b16 %v5513
    %v5657 = vunpack.c.l.b16 %v5514
    %v5658 = vunpack.c.l.b16 %v5515
    %v5659 = vunpack.c.l.b16 %v5516
    %v5660 = vunpack.c.l.b16 %v5517
    %v5661 = vpack.c.b16 %v5646, %v5645
    %v5662 = vpack.c.b16 %v5648, %v5647
    %v5663 = vpack.c.b16 %v5650, %v5649
    %v5664 = vpack.c.b16 %v5652, %v5651
    %v5665 = vpack.c.b16 %v5654, %v5653
    %v5666 = vpack.c.b16 %v5656, %v5655
    %v5667 = vpack.c.b16 %v5658, %v5657
    %v5668 = vpack.c.b16 %v5660, %v5659
    %5677 = vmatpush.bf16.msra.mxu0 %v5668
    %5678 = vmatpush.bf16.msra.mxu0 %v5667
    %5679 = vmatpush.bf16.msra.mxu0 %v5666
    %5680 = vmatpush.bf16.msra.mxu0 %v5665
    %5681 = vmatpush.bf16.msra.mxu0 %v5664
    %5682 = vmatpush.bf16.msra.mxu0 %v5663
    %5683 = vmatpush.bf16.msra.mxu0 %v5662
    %5684 = vmatpush.bf16.msra.mxu0 %v5661
    %5685 = vmatmul.bf16.gmra.mxu0 %v5569
    %v5686 = vpop.f32.mrf.mxu0
    %v5687 = vadd.f32 0.0, %v5686
    %v5688 = vpop.f32.mrf.mxu0
    %v5689 = vadd.f32 0.0, %v5688
    %5690 = vmatmul.bf16.gmra.mxu0 %v5577
    %v5691 = vpop.f32.mrf.mxu0
    %v5692 = vadd.f32 0.0, %v5691
    %v5693 = vpop.f32.mrf.mxu0
    %v5694 = vadd.f32 0.0, %v5693
    %5695 = vmatmul.bf16.gmra.mxu0 %v5585
    %v5696 = vpop.f32.mrf.mxu0
    %v5697 = vadd.f32 0.0, %v5696
    %v5698 = vpop.f32.mrf.mxu0
    %v5699 = vadd.f32 0.0, %v5698
    %5700 = vmatmul.bf16.gmra.mxu0 %v5593
    %v5701 = vpop.f32.mrf.mxu0
    %v5702 = vadd.f32 0.0, %v5701
    %v5703 = vpop.f32.mrf.mxu0
    %v5704 = vadd.f32 0.0, %v5703
    %5705 = vmatmul.bf16.gmra.mxu0 %v5601
    %v5706 = vpop.f32.mrf.mxu0
    %v5707 = vadd.f32 0.0, %v5706
    %v5708 = vpop.f32.mrf.mxu0
    %v5709 = vadd.f32 0.0, %v5708
    %5710 = vmatmul.bf16.gmra.mxu0 %v5609
    %v5711 = vpop.f32.mrf.mxu0
    %v5712 = vadd.f32 0.0, %v5711
    %v5713 = vpop.f32.mrf.mxu0
    %v5714 = vadd.f32 0.0, %v5713
    %5715 = vmatmul.bf16.gmra.mxu0 %v5617
    %v5716 = vpop.f32.mrf.mxu0
    %v5717 = vadd.f32 0.0, %v5716
    %v5718 = vpop.f32.mrf.mxu0
    %v5719 = vadd.f32 0.0, %v5718
    %5720 = vmatmul.bf16.gmra.mxu0 %v5620
    %v5721 = vpop.f32.mrf.mxu0
    %v5722 = vadd.f32 0.0, %v5721
    %v5723 = vpop.f32.mrf.mxu0
    %v5724 = vadd.f32 0.0, %v5723
    %5725 = vdwg.mxu0
    %v5727 = vunpack.c.l.b16 %v5483
    %v5728 = vpack.c.b16 %v5727, %v5548
    %v5753 = vunpack.c.l.b16 %v5484
    %v5754 = vunpack.c.l.b16 %v5485
    %v5755 = vunpack.c.l.b16 %v5486
    %v5756 = vunpack.c.l.b16 %v5487
    %v5757 = vunpack.c.l.b16 %v5488
    %v5758 = vunpack.c.l.b16 %v5489
    %v5759 = vunpack.c.l.b16 %v5490
    %v5760 = vunpack.c.l.b16 %v5491
    %v5761 = vunpack.c.l.b16 %v5492
    %v5762 = vunpack.c.l.b16 %v5493
    %v5763 = vunpack.c.l.b16 %v5494
    %v5764 = vunpack.c.l.b16 %v5495
    %v5765 = vunpack.c.l.b16 %v5496
    %v5766 = vunpack.c.l.b16 %v5497
    %v5767 = vunpack.c.l.b16 %v5498
    %v5768 = vunpack.c.l.b16 %v5499
    %v5769 = vpack.c.b16 %v5754, %v5753
    %v5770 = vpack.c.b16 %v5756, %v5755
    %v5771 = vpack.c.b16 %v5758, %v5757
    %v5772 = vpack.c.b16 %v5760, %v5759
    %v5773 = vpack.c.b16 %v5762, %v5761
    %v5774 = vpack.c.b16 %v5764, %v5763
    %v5775 = vpack.c.b16 %v5766, %v5765
    %v5776 = vpack.c.b16 %v5768, %v5767
    %5785 = vmatpush.bf16.msra.mxu0 %v5776
    %5786 = vmatpush.bf16.msra.mxu0 %v5775
    %5787 = vmatpush.bf16.msra.mxu0 %v5774
    %5788 = vmatpush.bf16.msra.mxu0 %v5773
    %5789 = vmatpush.bf16.msra.mxu0 %v5772
    %5790 = vmatpush.bf16.msra.mxu0 %v5771
    %5791 = vmatpush.bf16.msra.mxu0 %v5770
    %5792 = vmatpush.bf16.msra.mxu0 %v5769
    %5793 = vmatmul.bf16.gmra.mxu0 %v5550
    %v5794 = vpop.f32.mrf.mxu0
    %v5795 = vadd.f32 %v5687, %v5794
    %v5796 = vpop.f32.mrf.mxu0
    %v5797 = vadd.f32 %v5689, %v5796
    %5798 = vmatmul.bf16.gmra.mxu0 %v5551
    %v5799 = vpop.f32.mrf.mxu0
    %v5800 = vadd.f32 %v5692, %v5799
    %v5801 = vpop.f32.mrf.mxu0
    %v5802 = vadd.f32 %v5694, %v5801
    %5803 = vmatmul.bf16.gmra.mxu0 %v5552
    %v5804 = vpop.f32.mrf.mxu0
    %v5805 = vadd.f32 %v5697, %v5804
    %v5806 = vpop.f32.mrf.mxu0
    %v5807 = vadd.f32 %v5699, %v5806
    %5808 = vmatmul.bf16.gmra.mxu0 %v5553
    %v5809 = vpop.f32.mrf.mxu0
    %v5810 = vadd.f32 %v5702, %v5809
    %v5811 = vpop.f32.mrf.mxu0
    %v5812 = vadd.f32 %v5704, %v5811
    %5813 = vmatmul.bf16.gmra.mxu0 %v5554
    %v5814 = vpop.f32.mrf.mxu0
    %v5815 = vadd.f32 %v5707, %v5814
    %v5816 = vpop.f32.mrf.mxu0
    %v5817 = vadd.f32 %v5709, %v5816
    %5818 = vmatmul.bf16.gmra.mxu0 %v5555
    %v5819 = vpop.f32.mrf.mxu0
    %v5820 = vadd.f32 %v5712, %v5819
    %v5821 = vpop.f32.mrf.mxu0
    %v5822 = vadd.f32 %v5714, %v5821
    %5823 = vmatmul.bf16.gmra.mxu0 %v5556
    %v5824 = vpop.f32.mrf.mxu0
    %v5825 = vadd.f32 %v5717, %v5824
    %v5826 = vpop.f32.mrf.mxu0
    %v5827 = vadd.f32 %v5719, %v5826
    %5828 = vmatmul.bf16.gmra.mxu0 %v5728
    %v5829 = vpop.f32.mrf.mxu0
    %v5830 = vadd.f32 %v5722, %v5829
    %v5831 = vpop.f32.mrf.mxu0
    %v5832 = vadd.f32 %v5724, %v5831
    %5833 = vdwg.mxu0
    %v5834 = vld [vmem:[#allocation3] sm:$0xe]
    %s5835 = scalar_lea.vmem %s10, 128
    %v5836 = vld [vmem:[%s5835] sm:$0xf]
    %v5837 = vld [vmem:[%s5835 + $0x4] sm:$0xf]
    %v5838 = vld [vmem:[%s5835 + $0x8] sm:$0xf]
    %v5839 = vld [vmem:[%s5835 + $0xc] sm:$0xf]
    %v5840 = vld [vmem:[%s5835 + $0x10] sm:$0xf]
    %v5841 = vld [vmem:[%s5835 + $0x14] sm:$0xf]
    %v5842 = vld [vmem:[%s5835 + $0x18] sm:$0xf]
    %v5843 = vld [vmem:[%s5835 + $0x1c] sm:$0xf]
    %v5844 = vld [vmem:[%s5835 + $0x20] sm:$0xf]
    %v5845 = vld [vmem:[%s5835 + $0x24] sm:$0xf]
    %v5846 = vld [vmem:[%s5835 + $0x28] sm:$0xf]
    %v5847 = vld [vmem:[%s5835 + $0x2c] sm:$0xf]
    %v5848 = vld [vmem:[%s5835 + $0x30] sm:$0xf]
    %v5849 = vld [vmem:[%s5835 + $0x34] sm:$0xf]
    %v5850 = vld [vmem:[%s5835 + $0x38] sm:$0xf]
    %v5851 = vld [vmem:[%s5835 + $0x3c] sm:$0xf]
    %v5853 = vunpack.c.l.b16 %v5834
    %v5854 = vpack.c.b16 %v5535, %v5853
    %v5855 = vrot.slane %v5854, 1
    %v5856 = vrot.slane %v5551, 1
    %v5857 = vsel %vm894, %v5855, %v5856
    %v5858 = vrot.slane %v5552, 1
    %v5859 = vsel %vm894, %v5856, %v5858
    %v5860 = vrot.slane %v5553, 1
    %v5861 = vsel %vm894, %v5858, %v5860
    %v5862 = vrot.slane %v5554, 1
    %v5863 = vsel %vm894, %v5860, %v5862
    %v5864 = vrot.slane %v5555, 1
    %v5865 = vsel %vm894, %v5862, %v5864
    %v5866 = vrot.slane %v5556, 1
    %v5867 = vsel %vm894, %v5864, %v5866
    %v5868 = vrot.slane %v5557, 1
    %v5869 = vsel %vm894, %v5866, %v5868
    %v5894 = vunpack.c.l.b16 %v5836
    %v5895 = vunpack.c.l.b16 %v5837
    %v5896 = vunpack.c.l.b16 %v5838
    %v5897 = vunpack.c.l.b16 %v5839
    %v5898 = vunpack.c.l.b16 %v5840
    %v5899 = vunpack.c.l.b16 %v5841
    %v5900 = vunpack.c.l.b16 %v5842
    %v5901 = vunpack.c.l.b16 %v5843
    %v5902 = vunpack.c.l.b16 %v5844
    %v5903 = vunpack.c.l.b16 %v5845
    %v5904 = vunpack.c.l.b16 %v5846
    %v5905 = vunpack.c.l.b16 %v5847
    %v5906 = vunpack.c.l.b16 %v5848
    %v5907 = vunpack.c.l.b16 %v5849
    %v5908 = vunpack.c.l.b16 %v5850
    %v5909 = vunpack.c.l.b16 %v5851
    %v5910 = vpack.c.b16 %v5895, %v5894
    %v5911 = vpack.c.b16 %v5897, %v5896
    %v5912 = vpack.c.b16 %v5899, %v5898
    %v5913 = vpack.c.b16 %v5901, %v5900
    %v5914 = vpack.c.b16 %v5903, %v5902
    %v5915 = vpack.c.b16 %v5905, %v5904
    %v5916 = vpack.c.b16 %v5907, %v5906
    %v5917 = vpack.c.b16 %v5909, %v5908
    %5926 = vmatpush.bf16.msra.mxu0 %v5917
    %5927 = vmatpush.bf16.msra.mxu0 %v5916
    %5928 = vmatpush.bf16.msra.mxu0 %v5915
    %5929 = vmatpush.bf16.msra.mxu0 %v5914
    %5930 = vmatpush.bf16.msra.mxu0 %v5913
    %5931 = vmatpush.bf16.msra.mxu0 %v5912
    %5932 = vmatpush.bf16.msra.mxu0 %v5911
    %5933 = vmatpush.bf16.msra.mxu0 %v5910
    %5934 = vmatmul.bf16.gmra.mxu0 %v5857
    %v5935 = vpop.f32.mrf.mxu0
    %v5936 = vadd.f32 0.0, %v5935
    %v5937 = vpop.f32.mrf.mxu0
    %v5938 = vadd.f32 0.0, %v5937
    %5939 = vmatmul.bf16.gmra.mxu0 %v5859
    %v5940 = vpop.f32.mrf.mxu0
    %v5941 = vadd.f32 0.0, %v5940
    %v5942 = vpop.f32.mrf.mxu0
    %v5943 = vadd.f32 0.0, %v5942
    %5944 = vmatmul.bf16.gmra.mxu0 %v5861
    %v5945 = vpop.f32.mrf.mxu0
    %v5946 = vadd.f32 0.0, %v5945
    %v5947 = vpop.f32.mrf.mxu0
    %v5948 = vadd.f32 0.0, %v5947
    %5949 = vmatmul.bf16.gmra.mxu0 %v5863
    %v5950 = vpop.f32.mrf.mxu0
    %v5951 = vadd.f32 0.0, %v5950
    %v5952 = vpop.f32.mrf.mxu0
    %v5953 = vadd.f32 0.0, %v5952
    %5954 = vmatmul.bf16.gmra.mxu0 %v5865
    %v5955 = vpop.f32.mrf.mxu0
    %v5956 = vadd.f32 0.0, %v5955
    %v5957 = vpop.f32.mrf.mxu0
    %v5958 = vadd.f32 0.0, %v5957
    %5959 = vmatmul.bf16.gmra.mxu0 %v5867
    %v5960 = vpop.f32.mrf.mxu0
    %v5961 = vadd.f32 0.0, %v5960
    %v5962 = vpop.f32.mrf.mxu0
    %v5963 = vadd.f32 0.0, %v5962
    %5964 = vmatmul.bf16.gmra.mxu0 %v5869
    %v5965 = vpop.f32.mrf.mxu0
    %v5966 = vadd.f32 0.0, %v5965
    %v5967 = vpop.f32.mrf.mxu0
    %v5968 = vadd.f32 0.0, %v5967
    %5969 = vmatmul.bf16.gmra.mxu0 %v5868
    %v5970 = vpop.f32.mrf.mxu0
    %v5971 = vadd.f32 0.0, %v5970
    %v5972 = vpop.f32.mrf.mxu0
    %v5973 = vadd.f32 0.0, %v5972
    %5974 = vdwg.mxu0
    %v5975 = vadd.f32 %v5795, %v5936
    %v5976 = vadd.f32 %v5797, %v5938
    %v5977 = vadd.f32 %v5800, %v5941
    %v5978 = vadd.f32 %v5802, %v5943
    %v5979 = vadd.f32 %v5805, %v5946
    %v5980 = vadd.f32 %v5807, %v5948
    %v5981 = vadd.f32 %v5810, %v5951
    %v5982 = vadd.f32 %v5812, %v5953
    %v5983 = vadd.f32 %v5815, %v5956
    %v5984 = vadd.f32 %v5817, %v5958
    %v5985 = vadd.f32 %v5820, %v5961
    %v5986 = vadd.f32 %v5822, %v5963
    %v5987 = vadd.f32 %v5825, %v5966
    %v5988 = vadd.f32 %v5827, %v5968
    %v5989 = vadd.f32 %v5830, %v5971
    %v5990 = vadd.f32 %v5832, %v5973
    %v5991 = vld [vmem:[%s11] sm:$0x1]
    %v5993 = vperm.slane %v5991, 0
    %v5995 = vadd.f32 %v5975, %v5993
    %v5996 = vadd.f32 %v5976, %v5993
    %v5997 = vadd.f32 %v5977, %v5993
    %v5998 = vadd.f32 %v5978, %v5993
    %v5999 = vadd.f32 %v5979, %v5993
    %v6000 = vadd.f32 %v5980, %v5993
    %v6001 = vadd.f32 %v5981, %v5993
    %v6002 = vadd.f32 %v5982, %v5993
    %v6003 = vadd.f32 %v5983, %v5993
    %v6004 = vadd.f32 %v5984, %v5993
    %v6005 = vadd.f32 %v5985, %v5993
    %v6006 = vadd.f32 %v5986, %v5993
    %v6007 = vadd.f32 %v5987, %v5993
    %v6008 = vadd.f32 %v5988, %v5993
    %v6009 = vadd.f32 %v5989, %v5993
    %v6010 = vadd.f32 %v5990, %v5993
    %v6011 = vmax.f32 %v5995, 0.0
    %v6012 = vmax.f32 %v5996, 0.0
    %v6013 = vmax.f32 %v5997, 0.0
    %v6014 = vmax.f32 %v5998, 0.0
    %v6015 = vmax.f32 %v5999, 0.0
    %v6016 = vmax.f32 %v6000, 0.0
    %v6017 = vmax.f32 %v6001, 0.0
    %v6018 = vmax.f32 %v6002, 0.0
    %v6019 = vmax.f32 %v6003, 0.0
    %v6020 = vmax.f32 %v6004, 0.0
    %v6021 = vmax.f32 %v6005, 0.0
    %v6022 = vmax.f32 %v6006, 0.0
    %v6023 = vmax.f32 %v6007, 0.0
    %v6024 = vmax.f32 %v6008, 0.0
    %v6025 = vmax.f32 %v6009, 0.0
    %v6026 = vmax.f32 %v6010, 0.0
    %v6027 = vld [vmem:[#allocation4] sm:$0x1]
    %v6028 = vsel %vm1375, 0, %v6027
    %6029 = vst [vmem:[#allocation4] sm:$0x1] %v6028
    %v6030 = vld [vmem:[#allocation4 + $0x3c] sm:$0x8]
    %v6031 = vsel %vm1385, 0, %v6030
    %6032 = vst [vmem:[#allocation4 + $0x3c] sm:$0x8] %v6031
    %v6033 = vld [vmem:[%s18] sm:$0xff]
    %v6034 = vld [vmem:[%s18 + $0x8] sm:$0xff]
    %v6035 = vld [vmem:[%s18 + $0x10] sm:$0xff]
    %v6036 = vld [vmem:[%s18 + $0x18] sm:$0xff]
    %v6037 = vld [vmem:[%s18 + $0x20] sm:$0xff]
    %v6038 = vld [vmem:[%s18 + $0x28] sm:$0xff]
    %v6039 = vld [vmem:[%s18 + $0x30] sm:$0xff]
    %v6040 = vld [vmem:[%s18 + $0x38] sm:$0xff]
    %v6041 = vld [vmem:[%s18 + $0x40] sm:$0xff]
    %v6042 = vld [vmem:[%s18 + $0x48] sm:$0xff]
    %v6043 = vld [vmem:[%s18 + $0x50] sm:$0xff]
    %v6044 = vld [vmem:[%s18 + $0x58] sm:$0xff]
    %v6045 = vld [vmem:[%s18 + $0x60] sm:$0xff]
    %v6046 = vld [vmem:[%s18 + $0x68] sm:$0xff]
    %v6047 = vld [vmem:[%s18 + $0x70] sm:$0xff]
    %v6048 = vld [vmem:[%s18 + $0x78] sm:$0x3f]
    %6050 = vset.pattern.permute.xlu0 0
    %6051 = vperm.xlu0 %6050, %v6033
    %v6052 = vpop.permute.xlu0 %6051
    %6055 = vset.pattern.permute.xlu0 0
    %6056 = vperm.xlu0 %6055, %v6034
    %v6057 = vpop.permute.xlu0 %6056
    %6060 = vset.pattern.permute.xlu0 0
    %6061 = vperm.xlu0 %6060, %v6035
    %v6062 = vpop.permute.xlu0 %6061
    %6065 = vset.pattern.permute.xlu0 0
    %6066 = vperm.xlu0 %6065, %v6036
    %v6067 = vpop.permute.xlu0 %6066
    %6070 = vset.pattern.permute.xlu0 0
    %6071 = vperm.xlu0 %6070, %v6037
    %v6072 = vpop.permute.xlu0 %6071
    %6075 = vset.pattern.permute.xlu0 0
    %6076 = vperm.xlu0 %6075, %v6038
    %v6077 = vpop.permute.xlu0 %6076
    %6080 = vset.pattern.permute.xlu0 0
    %6081 = vperm.xlu0 %6080, %v6039
    %v6082 = vpop.permute.xlu0 %6081
    %6085 = vset.pattern.permute.xlu0 0
    %6086 = vperm.xlu0 %6085, %v6040
    %v6087 = vpop.permute.xlu0 %6086
    %6090 = vset.pattern.permute.xlu0 0
    %6091 = vperm.xlu0 %6090, %v6041
    %v6092 = vpop.permute.xlu0 %6091
    %6095 = vset.pattern.permute.xlu0 0
    %6096 = vperm.xlu0 %6095, %v6042
    %v6097 = vpop.permute.xlu0 %6096
    %6100 = vset.pattern.permute.xlu0 0
    %6101 = vperm.xlu0 %6100, %v6043
    %v6102 = vpop.permute.xlu0 %6101
    %6105 = vset.pattern.permute.xlu0 0
    %6106 = vperm.xlu0 %6105, %v6044
    %v6107 = vpop.permute.xlu0 %6106
    %6110 = vset.pattern.permute.xlu0 0
    %6111 = vperm.xlu0 %6110, %v6045
    %v6112 = vpop.permute.xlu0 %6111
    %6115 = vset.pattern.permute.xlu0 0
    %6116 = vperm.xlu0 %6115, %v6046
    %v6117 = vpop.permute.xlu0 %6116
    %6120 = vset.pattern.permute.xlu0 0
    %6121 = vperm.xlu0 %6120, %v6047
    %v6122 = vpop.permute.xlu0 %6121
    %6125 = vset.pattern.permute.xlu0 0
    %6126 = vperm.xlu0 %6125, %v6048
    %v6127 = vpop.permute.xlu0 %6126
    %v6129 = vmul.f32 %v6011, %v6052
    %v6130 = vmul.f32 %v6012, %v6057
    %v6131 = vmul.f32 %v6013, %v6062
    %v6132 = vmul.f32 %v6014, %v6067
    %v6133 = vmul.f32 %v6015, %v6072
    %v6134 = vmul.f32 %v6016, %v6077
    %v6135 = vmul.f32 %v6017, %v6082
    %v6136 = vmul.f32 %v6018, %v6087
    %v6137 = vmul.f32 %v6019, %v6092
    %v6138 = vmul.f32 %v6020, %v6097
    %v6139 = vmul.f32 %v6021, %v6102
    %v6140 = vmul.f32 %v6022, %v6107
    %v6141 = vmul.f32 %v6023, %v6112
    %v6142 = vmul.f32 %v6024, %v6117
    %v6143 = vmul.f32 %v6025, %v6122
    %v6144 = vmul.f32 %v6026, %v6127
    %v6145 = vpack.c.bf16 %v6129, %v6129
    %v6146 = vpack.c.bf16 %v6130, %v6130
    %v6147 = vpack.c.bf16 %v6131, %v6131
    %v6148 = vpack.c.bf16 %v6132, %v6132
    %v6149 = vpack.c.bf16 %v6133, %v6133
    %v6150 = vpack.c.bf16 %v6134, %v6134
    %v6151 = vpack.c.bf16 %v6135, %v6135
    %v6152 = vpack.c.bf16 %v6136, %v6136
    %v6153 = vpack.c.bf16 %v6137, %v6137
    %v6154 = vpack.c.bf16 %v6138, %v6138
    %v6155 = vpack.c.bf16 %v6139, %v6139
    %v6156 = vpack.c.bf16 %v6140, %v6140
    %v6157 = vpack.c.bf16 %v6141, %v6141
    %v6158 = vpack.c.bf16 %v6142, %v6142
    %v6159 = vpack.c.bf16 %v6143, %v6143
    %v6160 = vpack.c.bf16 %v6144, %v6144
    %v6162 = vshrl.u32 %v6145, 16
    %v6164 = vrot.slane %v6162, 7
    %v6165 = vshll.u32 %v6145, 16
    %v6167 = vor.u32 %v6164, %v6165
    %v6168 = vrot.slane %v6164, 4
    %v6170 = vshrl.u32 %v6146, 16
    %v6172 = vrot.slane %v6170, 7
    %v6173 = vshll.u32 %v6146, 16
    %v6175 = vor.u32 %v6172, %v6173
    %v6176 = vsel %vm1664, %v6168, %v6175
    %v6177 = vrot.slane %v6172, 4
    %v6179 = vshrl.u32 %v6147, 16
    %v6181 = vrot.slane %v6179, 7
    %v6182 = vshll.u32 %v6147, 16
    %v6184 = vor.u32 %v6181, %v6182
    %v6185 = vsel %vm1664, %v6177, %v6184
    %v6186 = vrot.slane %v6181, 4
    %v6188 = vshrl.u32 %v6148, 16
    %v6190 = vrot.slane %v6188, 7
    %v6191 = vshll.u32 %v6148, 16
    %v6193 = vor.u32 %v6190, %v6191
    %v6194 = vsel %vm1664, %v6186, %v6193
    %v6195 = vrot.slane %v6190, 4
    %v6197 = vshrl.u32 %v6149, 16
    %v6199 = vrot.slane %v6197, 7
    %v6200 = vshll.u32 %v6149, 16
    %v6202 = vor.u32 %v6199, %v6200
    %v6203 = vsel %vm1664, %v6195, %v6202
    %v6204 = vrot.slane %v6199, 4
    %v6206 = vshrl.u32 %v6150, 16
    %v6208 = vrot.slane %v6206, 7
    %v6209 = vshll.u32 %v6150, 16
    %v6211 = vor.u32 %v6208, %v6209
    %v6212 = vsel %vm1664, %v6204, %v6211
    %v6213 = vrot.slane %v6208, 4
    %v6215 = vshrl.u32 %v6151, 16
    %v6217 = vrot.slane %v6215, 7
    %v6218 = vshll.u32 %v6151, 16
    %v6220 = vor.u32 %v6217, %v6218
    %v6221 = vsel %vm1664, %v6213, %v6220
    %v6222 = vrot.slane %v6217, 4
    %v6224 = vshrl.u32 %v6152, 16
    %v6226 = vrot.slane %v6224, 7
    %v6227 = vshll.u32 %v6152, 16
    %v6229 = vor.u32 %v6226, %v6227
    %v6230 = vsel %vm1664, %v6222, %v6229
    %v6231 = vrot.slane %v6226, 4
    %v6233 = vshrl.u32 %v6153, 16
    %v6235 = vrot.slane %v6233, 7
    %v6236 = vshll.u32 %v6153, 16
    %v6238 = vor.u32 %v6235, %v6236
    %v6239 = vsel %vm1664, %v6231, %v6238
    %v6240 = vrot.slane %v6235, 4
    %v6242 = vshrl.u32 %v6154, 16
    %v6244 = vrot.slane %v6242, 7
    %v6245 = vshll.u32 %v6154, 16
    %v6247 = vor.u32 %v6244, %v6245
    %v6248 = vsel %vm1664, %v6240, %v6247
    %v6249 = vrot.slane %v6244, 4
    %v6251 = vshrl.u32 %v6155, 16
    %v6253 = vrot.slane %v6251, 7
    %v6254 = vshll.u32 %v6155, 16
    %v6256 = vor.u32 %v6253, %v6254
    %v6257 = vsel %vm1664, %v6249, %v6256
    %v6258 = vrot.slane %v6253, 4
    %v6260 = vshrl.u32 %v6156, 16
    %v6262 = vrot.slane %v6260, 7
    %v6263 = vshll.u32 %v6156, 16
    %v6265 = vor.u32 %v6262, %v6263
    %v6266 = vsel %vm1664, %v6258, %v6265
    %v6267 = vrot.slane %v6262, 4
    %v6269 = vshrl.u32 %v6157, 16
    %v6271 = vrot.slane %v6269, 7
    %v6272 = vshll.u32 %v6157, 16
    %v6274 = vor.u32 %v6271, %v6272
    %v6275 = vsel %vm1664, %v6267, %v6274
    %v6276 = vrot.slane %v6271, 4
    %v6278 = vshrl.u32 %v6158, 16
    %v6280 = vrot.slane %v6278, 7
    %v6281 = vshll.u32 %v6158, 16
    %v6283 = vor.u32 %v6280, %v6281
    %v6284 = vsel %vm1664, %v6276, %v6283
    %v6285 = vrot.slane %v6280, 4
    %v6287 = vshrl.u32 %v6159, 16
    %v6289 = vrot.slane %v6287, 7
    %v6290 = vshll.u32 %v6159, 16
    %v6292 = vor.u32 %v6289, %v6290
    %v6293 = vsel %vm1664, %v6285, %v6292
    %v6294 = vrot.slane %v6289, 4
    %v6296 = vshrl.u32 %v6160, 16
    %v6298 = vrot.slane %v6296, 7
    %v6299 = vshll.u32 %v6160, 16
    %v6301 = vor.u32 %v6298, %v6299
    %v6302 = vsel %vm1664, %v6294, %v6301
    %v6319 = vld [vmem:[#allocation4] sm:$0xf]
    %v6320 = vsel %vm1965, %v6167, %v6319
    %6321 = vst [vmem:[#allocation4] sm:$0xf] %v6320
    %6322 = vst [vmem:[#allocation4 + $0x4] sm:$0xf] %v6176
    %6323 = vst [vmem:[#allocation4 + $0x8] sm:$0xf] %v6185
    %6324 = vst [vmem:[#allocation4 + $0xc] sm:$0xf] %v6194
    %6325 = vst [vmem:[#allocation4 + $0x10] sm:$0xf] %v6203
    %6326 = vst [vmem:[#allocation4 + $0x14] sm:$0xf] %v6212
    %6327 = vst [vmem:[#allocation4 + $0x18] sm:$0xf] %v6221
    %6328 = vst [vmem:[#allocation4 + $0x1c] sm:$0xf] %v6230
    %6329 = vst [vmem:[#allocation4 + $0x20] sm:$0xf] %v6239
    %6330 = vst [vmem:[#allocation4 + $0x24] sm:$0xf] %v6248
    %6331 = vst [vmem:[#allocation4 + $0x28] sm:$0xf] %v6257
    %6332 = vst [vmem:[#allocation4 + $0x2c] sm:$0xf] %v6266
    %6333 = vst [vmem:[#allocation4 + $0x30] sm:$0xf] %v6275
    %6334 = vst [vmem:[#allocation4 + $0x34] sm:$0xf] %v6284
    %6335 = vst [vmem:[#allocation4 + $0x38] sm:$0xf] %v6293
    %v6336 = vld [vmem:[#allocation4 + $0x3c] sm:$0xf]
    %v6337 = vsel %vm2002, %v6302, %v6336
    %6338 = vst [vmem:[#allocation4 + $0x3c] sm:$0xf] %v6337
    %v6339 = vld [vmem:[#allocation4] sm:$0xf]
    %v6340 = vld [vmem:[#allocation4 + $0x4] sm:$0xf]
    %v6341 = vld [vmem:[#allocation4 + $0x8] sm:$0xf]
    %v6342 = vld [vmem:[#allocation4 + $0xc] sm:$0xf]
    %v6343 = vld [vmem:[#allocation4 + $0x10] sm:$0xf]
    %v6344 = vld [vmem:[#allocation4 + $0x14] sm:$0xf]
    %v6345 = vld [vmem:[#allocation4 + $0x18] sm:$0xf]
    %v6346 = vld [vmem:[#allocation4 + $0x1c] sm:$0xf]
    %v6347 = vld [vmem:[#allocation4 + $0x20] sm:$0xf]
    %v6348 = vld [vmem:[#allocation4 + $0x24] sm:$0xf]
    %v6349 = vld [vmem:[#allocation4 + $0x28] sm:$0xf]
    %v6350 = vld [vmem:[#allocation4 + $0x2c] sm:$0xf]
    %v6351 = vld [vmem:[#allocation4 + $0x30] sm:$0xf]
    %v6352 = vld [vmem:[#allocation4 + $0x34] sm:$0xf]
    %v6353 = vld [vmem:[#allocation4 + $0x38] sm:$0xf]
    %v6354 = vld [vmem:[#allocation4 + $0x3c] sm:$0x7]
    %v6355 = vld [vmem:[%s12] sm:$0xf]
    %v6356 = vld [vmem:[%s12 + $0x4] sm:$0xf]
    %v6357 = vld [vmem:[%s12 + $0x8] sm:$0xf]
    %v6358 = vld [vmem:[%s12 + $0xc] sm:$0xf]
    %v6359 = vld [vmem:[%s12 + $0x10] sm:$0xf]
    %v6360 = vld [vmem:[%s12 + $0x14] sm:$0xf]
    %v6361 = vld [vmem:[%s12 + $0x18] sm:$0xf]
    %v6362 = vld [vmem:[%s12 + $0x1c] sm:$0xf]
    %v6363 = vld [vmem:[%s12 + $0x20] sm:$0xf]
    %v6364 = vld [vmem:[%s12 + $0x24] sm:$0xf]
    %v6365 = vld [vmem:[%s12 + $0x28] sm:$0xf]
    %v6366 = vld [vmem:[%s12 + $0x2c] sm:$0xf]
    %v6367 = vld [vmem:[%s12 + $0x30] sm:$0xf]
    %v6368 = vld [vmem:[%s12 + $0x34] sm:$0xf]
    %v6369 = vld [vmem:[%s12 + $0x38] sm:$0xf]
    %v6370 = vld [vmem:[%s12 + $0x3c] sm:$0xf]
    %v6371 = vld [vmem:[#allocation4 + $0x3c] sm:$0xf]
    %s6372 = scalar_lea.vmem %s12, 64
    %v6373 = vld [vmem:[%s6372] sm:$0xf]
    %v6374 = vld [vmem:[%s6372 + $0x4] sm:$0xf]
    %v6375 = vld [vmem:[%s6372 + $0x8] sm:$0xf]
    %v6376 = vld [vmem:[%s6372 + $0xc] sm:$0xf]
    %v6377 = vld [vmem:[%s6372 + $0x10] sm:$0xf]
    %v6378 = vld [vmem:[%s6372 + $0x14] sm:$0xf]
    %v6379 = vld [vmem:[%s6372 + $0x18] sm:$0xf]
    %v6380 = vld [vmem:[%s6372 + $0x1c] sm:$0xf]
    %v6381 = vld [vmem:[%s6372 + $0x20] sm:$0xf]
    %v6382 = vld [vmem:[%s6372 + $0x24] sm:$0xf]
    %v6383 = vld [vmem:[%s6372 + $0x28] sm:$0xf]
    %v6384 = vld [vmem:[%s6372 + $0x2c] sm:$0xf]
    %v6385 = vld [vmem:[%s6372 + $0x30] sm:$0xf]
    %v6386 = vld [vmem:[%s6372 + $0x34] sm:$0xf]
    %v6387 = vld [vmem:[%s6372 + $0x38] sm:$0xf]
    %v6388 = vld [vmem:[%s6372 + $0x3c] sm:$0xf]
    %v6405 = vunpack.c.l.b16 %v6339
    %v6406 = vunpack.c.l.b16 %v6340
    %v6407 = vunpack.c.l.b16 %v6341
    %v6408 = vunpack.c.l.b16 %v6342
    %v6409 = vunpack.c.l.b16 %v6343
    %v6410 = vunpack.c.l.b16 %v6344
    %v6411 = vunpack.c.l.b16 %v6345
    %v6412 = vunpack.c.l.b16 %v6346
    %v6413 = vunpack.c.l.b16 %v6347
    %v6414 = vunpack.c.l.b16 %v6348
    %v6415 = vunpack.c.l.b16 %v6349
    %v6416 = vunpack.c.l.b16 %v6350
    %v6417 = vunpack.c.l.b16 %v6351
    %v6418 = vunpack.c.l.b16 %v6352
    %v6419 = vunpack.c.l.b16 %v6353
    %v6420 = vunpack.c.l.b16 %v6371
    %v6421 = vpack.c.b16 %v6406, %v6405
    %v6422 = vpack.c.b16 %v6408, %v6407
    %v6423 = vpack.c.b16 %v6410, %v6409
    %v6424 = vpack.c.b16 %v6412, %v6411
    %v6425 = vpack.c.b16 %v6414, %v6413
    %v6426 = vpack.c.b16 %v6416, %v6415
    %v6427 = vpack.c.b16 %v6418, %v6417
    %v6428 = vpack.c.b16 %v6420, %v6419
    %v6430 = vshrl.u32 %v6421, 16
    %v6432 = vshll.u32 %v6421, 16
    %v6434 = vrot.slane %v6432, 1
    %v6435 = vor.u32 %v6430, %v6434
    %v6437 = vshll.u32 %v6422, 16
    %v6439 = vrot.slane %v6437, 1
    %v6440 = vsel %vm224, %v6435, %v6439
    %v6441 = vshrl.u32 %v6422, 16
    %v6443 = vor.u32 %v6441, %v6439
    %v6445 = vshll.u32 %v6423, 16
    %v6447 = vrot.slane %v6445, 1
    %v6448 = vsel %vm224, %v6443, %v6447
    %v6449 = vshrl.u32 %v6423, 16
    %v6451 = vor.u32 %v6449, %v6447
    %v6453 = vshll.u32 %v6424, 16
    %v6455 = vrot.slane %v6453, 1
    %v6456 = vsel %vm224, %v6451, %v6455
    %v6457 = vshrl.u32 %v6424, 16
    %v6459 = vor.u32 %v6457, %v6455
    %v6461 = vshll.u32 %v6425, 16
    %v6463 = vrot.slane %v6461, 1
    %v6464 = vsel %vm224, %v6459, %v6463
    %v6465 = vshrl.u32 %v6425, 16
    %v6467 = vor.u32 %v6465, %v6463
    %v6469 = vshll.u32 %v6426, 16
    %v6471 = vrot.slane %v6469, 1
    %v6472 = vsel %vm224, %v6467, %v6471
    %v6473 = vshrl.u32 %v6426, 16
    %v6475 = vor.u32 %v6473, %v6471
    %v6477 = vshll.u32 %v6427, 16
    %v6479 = vrot.slane %v6477, 1
    %v6480 = vsel %vm224, %v6475, %v6479
    %v6481 = vshrl.u32 %v6427, 16
    %v6483 = vor.u32 %v6481, %v6479
    %v6485 = vshll.u32 %v6428, 16
    %v6487 = vrot.slane %v6485, 1
    %v6488 = vsel %vm224, %v6483, %v6487
    %v6489 = vshrl.u32 %v6428, 16
    %v6491 = vor.u32 %v6489, %v6487
    %v6516 = vunpack.c.l.b16 %v6373
    %v6517 = vunpack.c.l.b16 %v6374
    %v6518 = vunpack.c.l.b16 %v6375
    %v6519 = vunpack.c.l.b16 %v6376
    %v6520 = vunpack.c.l.b16 %v6377
    %v6521 = vunpack.c.l.b16 %v6378
    %v6522 = vunpack.c.l.b16 %v6379
    %v6523 = vunpack.c.l.b16 %v6380
    %v6524 = vunpack.c.l.b16 %v6381
    %v6525 = vunpack.c.l.b16 %v6382
    %v6526 = vunpack.c.l.b16 %v6383
    %v6527 = vunpack.c.l.b16 %v6384
    %v6528 = vunpack.c.l.b16 %v6385
    %v6529 = vunpack.c.l.b16 %v6386
    %v6530 = vunpack.c.l.b16 %v6387
    %v6531 = vunpack.c.l.b16 %v6388
    %v6532 = vpack.c.b16 %v6517, %v6516
    %v6533 = vpack.c.b16 %v6519, %v6518
    %v6534 = vpack.c.b16 %v6521, %v6520
    %v6535 = vpack.c.b16 %v6523, %v6522
    %v6536 = vpack.c.b16 %v6525, %v6524
    %v6537 = vpack.c.b16 %v6527, %v6526
    %v6538 = vpack.c.b16 %v6529, %v6528
    %v6539 = vpack.c.b16 %v6531, %v6530
    %6548 = vmatpush.bf16.msra.mxu0 %v6539
    %6549 = vmatpush.bf16.msra.mxu0 %v6538
    %6550 = vmatpush.bf16.msra.mxu0 %v6537
    %6551 = vmatpush.bf16.msra.mxu0 %v6536
    %6552 = vmatpush.bf16.msra.mxu0 %v6535
    %6553 = vmatpush.bf16.msra.mxu0 %v6534
    %6554 = vmatpush.bf16.msra.mxu0 %v6533
    %6555 = vmatpush.bf16.msra.mxu0 %v6532
    %6556 = vmatmul.bf16.gmra.mxu0 %v6440
    %v6557 = vpop.f32.mrf.mxu0
    %v6558 = vadd.f32 0.0, %v6557
    %v6559 = vpop.f32.mrf.mxu0
    %v6560 = vadd.f32 0.0, %v6559
    %6561 = vmatmul.bf16.gmra.mxu0 %v6448
    %v6562 = vpop.f32.mrf.mxu0
    %v6563 = vadd.f32 0.0, %v6562
    %v6564 = vpop.f32.mrf.mxu0
    %v6565 = vadd.f32 0.0, %v6564
    %6566 = vmatmul.bf16.gmra.mxu0 %v6456
    %v6567 = vpop.f32.mrf.mxu0
    %v6568 = vadd.f32 0.0, %v6567
    %v6569 = vpop.f32.mrf.mxu0
    %v6570 = vadd.f32 0.0, %v6569
    %6571 = vmatmul.bf16.gmra.mxu0 %v6464
    %v6572 = vpop.f32.mrf.mxu0
    %v6573 = vadd.f32 0.0, %v6572
    %v6574 = vpop.f32.mrf.mxu0
    %v6575 = vadd.f32 0.0, %v6574
    %6576 = vmatmul.bf16.gmra.mxu0 %v6472
    %v6577 = vpop.f32.mrf.mxu0
    %v6578 = vadd.f32 0.0, %v6577
    %v6579 = vpop.f32.mrf.mxu0
    %v6580 = vadd.f32 0.0, %v6579
    %6581 = vmatmul.bf16.gmra.mxu0 %v6480
    %v6582 = vpop.f32.mrf.mxu0
    %v6583 = vadd.f32 0.0, %v6582
    %v6584 = vpop.f32.mrf.mxu0
    %v6585 = vadd.f32 0.0, %v6584
    %6586 = vmatmul.bf16.gmra.mxu0 %v6488
    %v6587 = vpop.f32.mrf.mxu0
    %v6588 = vadd.f32 0.0, %v6587
    %v6589 = vpop.f32.mrf.mxu0
    %v6590 = vadd.f32 0.0, %v6589
    %6591 = vmatmul.bf16.gmra.mxu0 %v6491
    %v6592 = vpop.f32.mrf.mxu0
    %v6593 = vadd.f32 0.0, %v6592
    %v6594 = vpop.f32.mrf.mxu0
    %v6595 = vadd.f32 0.0, %v6594
    %6596 = vdwg.mxu0
    %v6598 = vunpack.c.l.b16 %v6354
    %v6599 = vpack.c.b16 %v6598, %v6419
    %v6624 = vunpack.c.l.b16 %v6355
    %v6625 = vunpack.c.l.b16 %v6356
    %v6626 = vunpack.c.l.b16 %v6357
    %v6627 = vunpack.c.l.b16 %v6358
    %v6628 = vunpack.c.l.b16 %v6359
    %v6629 = vunpack.c.l.b16 %v6360
    %v6630 = vunpack.c.l.b16 %v6361
    %v6631 = vunpack.c.l.b16 %v6362
    %v6632 = vunpack.c.l.b16 %v6363
    %v6633 = vunpack.c.l.b16 %v6364
    %v6634 = vunpack.c.l.b16 %v6365
    %v6635 = vunpack.c.l.b16 %v6366
    %v6636 = vunpack.c.l.b16 %v6367
    %v6637 = vunpack.c.l.b16 %v6368
    %v6638 = vunpack.c.l.b16 %v6369
    %v6639 = vunpack.c.l.b16 %v6370
    %v6640 = vpack.c.b16 %v6625, %v6624
    %v6641 = vpack.c.b16 %v6627, %v6626
    %v6642 = vpack.c.b16 %v6629, %v6628
    %v6643 = vpack.c.b16 %v6631, %v6630
    %v6644 = vpack.c.b16 %v6633, %v6632
    %v6645 = vpack.c.b16 %v6635, %v6634
    %v6646 = vpack.c.b16 %v6637, %v6636
    %v6647 = vpack.c.b16 %v6639, %v6638
    %6656 = vmatpush.bf16.msra.mxu0 %v6647
    %6657 = vmatpush.bf16.msra.mxu0 %v6646
    %6658 = vmatpush.bf16.msra.mxu0 %v6645
    %6659 = vmatpush.bf16.msra.mxu0 %v6644
    %6660 = vmatpush.bf16.msra.mxu0 %v6643
    %6661 = vmatpush.bf16.msra.mxu0 %v6642
    %6662 = vmatpush.bf16.msra.mxu0 %v6641
    %6663 = vmatpush.bf16.msra.mxu0 %v6640
    %6664 = vmatmul.bf16.gmra.mxu0 %v6421
    %v6665 = vpop.f32.mrf.mxu0
    %v6666 = vadd.f32 %v6558, %v6665
    %v6667 = vpop.f32.mrf.mxu0
    %v6668 = vadd.f32 %v6560, %v6667
    %6669 = vmatmul.bf16.gmra.mxu0 %v6422
    %v6670 = vpop.f32.mrf.mxu0
    %v6671 = vadd.f32 %v6563, %v6670
    %v6672 = vpop.f32.mrf.mxu0
    %v6673 = vadd.f32 %v6565, %v6672
    %6674 = vmatmul.bf16.gmra.mxu0 %v6423
    %v6675 = vpop.f32.mrf.mxu0
    %v6676 = vadd.f32 %v6568, %v6675
    %v6677 = vpop.f32.mrf.mxu0
    %v6678 = vadd.f32 %v6570, %v6677
    %6679 = vmatmul.bf16.gmra.mxu0 %v6424
    %v6680 = vpop.f32.mrf.mxu0
    %v6681 = vadd.f32 %v6573, %v6680
    %v6682 = vpop.f32.mrf.mxu0
    %v6683 = vadd.f32 %v6575, %v6682
    %6684 = vmatmul.bf16.gmra.mxu0 %v6425
    %v6685 = vpop.f32.mrf.mxu0
    %v6686 = vadd.f32 %v6578, %v6685
    %v6687 = vpop.f32.mrf.mxu0
    %v6688 = vadd.f32 %v6580, %v6687
    %6689 = vmatmul.bf16.gmra.mxu0 %v6426
    %v6690 = vpop.f32.mrf.mxu0
    %v6691 = vadd.f32 %v6583, %v6690
    %v6692 = vpop.f32.mrf.mxu0
    %v6693 = vadd.f32 %v6585, %v6692
    %6694 = vmatmul.bf16.gmra.mxu0 %v6427
    %v6695 = vpop.f32.mrf.mxu0
    %v6696 = vadd.f32 %v6588, %v6695
    %v6697 = vpop.f32.mrf.mxu0
    %v6698 = vadd.f32 %v6590, %v6697
    %6699 = vmatmul.bf16.gmra.mxu0 %v6599
    %v6700 = vpop.f32.mrf.mxu0
    %v6701 = vadd.f32 %v6593, %v6700
    %v6702 = vpop.f32.mrf.mxu0
    %v6703 = vadd.f32 %v6595, %v6702
    %6704 = vdwg.mxu0
    %v6705 = vld [vmem:[#allocation4] sm:$0xe]
    %s6706 = scalar_lea.vmem %s12, 128
    %v6707 = vld [vmem:[%s6706] sm:$0xf]
    %v6708 = vld [vmem:[%s6706 + $0x4] sm:$0xf]
    %v6709 = vld [vmem:[%s6706 + $0x8] sm:$0xf]
    %v6710 = vld [vmem:[%s6706 + $0xc] sm:$0xf]
    %v6711 = vld [vmem:[%s6706 + $0x10] sm:$0xf]
    %v6712 = vld [vmem:[%s6706 + $0x14] sm:$0xf]
    %v6713 = vld [vmem:[%s6706 + $0x18] sm:$0xf]
    %v6714 = vld [vmem:[%s6706 + $0x1c] sm:$0xf]
    %v6715 = vld [vmem:[%s6706 + $0x20] sm:$0xf]
    %v6716 = vld [vmem:[%s6706 + $0x24] sm:$0xf]
    %v6717 = vld [vmem:[%s6706 + $0x28] sm:$0xf]
    %v6718 = vld [vmem:[%s6706 + $0x2c] sm:$0xf]
    %v6719 = vld [vmem:[%s6706 + $0x30] sm:$0xf]
    %v6720 = vld [vmem:[%s6706 + $0x34] sm:$0xf]
    %v6721 = vld [vmem:[%s6706 + $0x38] sm:$0xf]
    %v6722 = vld [vmem:[%s6706 + $0x3c] sm:$0xf]
    %v6724 = vunpack.c.l.b16 %v6705
    %v6725 = vpack.c.b16 %v6406, %v6724
    %v6726 = vrot.slane %v6725, 1
    %v6727 = vrot.slane %v6422, 1
    %v6728 = vsel %vm894, %v6726, %v6727
    %v6729 = vrot.slane %v6423, 1
    %v6730 = vsel %vm894, %v6727, %v6729
    %v6731 = vrot.slane %v6424, 1
    %v6732 = vsel %vm894, %v6729, %v6731
    %v6733 = vrot.slane %v6425, 1
    %v6734 = vsel %vm894, %v6731, %v6733
    %v6735 = vrot.slane %v6426, 1
    %v6736 = vsel %vm894, %v6733, %v6735
    %v6737 = vrot.slane %v6427, 1
    %v6738 = vsel %vm894, %v6735, %v6737
    %v6739 = vrot.slane %v6428, 1
    %v6740 = vsel %vm894, %v6737, %v6739
    %v6765 = vunpack.c.l.b16 %v6707
    %v6766 = vunpack.c.l.b16 %v6708
    %v6767 = vunpack.c.l.b16 %v6709
    %v6768 = vunpack.c.l.b16 %v6710
    %v6769 = vunpack.c.l.b16 %v6711
    %v6770 = vunpack.c.l.b16 %v6712
    %v6771 = vunpack.c.l.b16 %v6713
    %v6772 = vunpack.c.l.b16 %v6714
    %v6773 = vunpack.c.l.b16 %v6715
    %v6774 = vunpack.c.l.b16 %v6716
    %v6775 = vunpack.c.l.b16 %v6717
    %v6776 = vunpack.c.l.b16 %v6718
    %v6777 = vunpack.c.l.b16 %v6719
    %v6778 = vunpack.c.l.b16 %v6720
    %v6779 = vunpack.c.l.b16 %v6721
    %v6780 = vunpack.c.l.b16 %v6722
    %v6781 = vpack.c.b16 %v6766, %v6765
    %v6782 = vpack.c.b16 %v6768, %v6767
    %v6783 = vpack.c.b16 %v6770, %v6769
    %v6784 = vpack.c.b16 %v6772, %v6771
    %v6785 = vpack.c.b16 %v6774, %v6773
    %v6786 = vpack.c.b16 %v6776, %v6775
    %v6787 = vpack.c.b16 %v6778, %v6777
    %v6788 = vpack.c.b16 %v6780, %v6779
    %6797 = vmatpush.bf16.msra.mxu0 %v6788
    %6798 = vmatpush.bf16.msra.mxu0 %v6787
    %6799 = vmatpush.bf16.msra.mxu0 %v6786
    %6800 = vmatpush.bf16.msra.mxu0 %v6785
    %6801 = vmatpush.bf16.msra.mxu0 %v6784
    %6802 = vmatpush.bf16.msra.mxu0 %v6783
    %6803 = vmatpush.bf16.msra.mxu0 %v6782
    %6804 = vmatpush.bf16.msra.mxu0 %v6781
    %6805 = vmatmul.bf16.gmra.mxu0 %v6728
    %v6806 = vpop.f32.mrf.mxu0
    %v6807 = vadd.f32 0.0, %v6806
    %v6808 = vpop.f32.mrf.mxu0
    %v6809 = vadd.f32 0.0, %v6808
    %6810 = vmatmul.bf16.gmra.mxu0 %v6730
    %v6811 = vpop.f32.mrf.mxu0
    %v6812 = vadd.f32 0.0, %v6811
    %v6813 = vpop.f32.mrf.mxu0
    %v6814 = vadd.f32 0.0, %v6813
    %6815 = vmatmul.bf16.gmra.mxu0 %v6732
    %v6816 = vpop.f32.mrf.mxu0
    %v6817 = vadd.f32 0.0, %v6816
    %v6818 = vpop.f32.mrf.mxu0
    %v6819 = vadd.f32 0.0, %v6818
    %6820 = vmatmul.bf16.gmra.mxu0 %v6734
    %v6821 = vpop.f32.mrf.mxu0
    %v6822 = vadd.f32 0.0, %v6821
    %v6823 = vpop.f32.mrf.mxu0
    %v6824 = vadd.f32 0.0, %v6823
    %6825 = vmatmul.bf16.gmra.mxu0 %v6736
    %v6826 = vpop.f32.mrf.mxu0
    %v6827 = vadd.f32 0.0, %v6826
    %v6828 = vpop.f32.mrf.mxu0
    %v6829 = vadd.f32 0.0, %v6828
    %6830 = vmatmul.bf16.gmra.mxu0 %v6738
    %v6831 = vpop.f32.mrf.mxu0
    %v6832 = vadd.f32 0.0, %v6831
    %v6833 = vpop.f32.mrf.mxu0
    %v6834 = vadd.f32 0.0, %v6833
    %6835 = vmatmul.bf16.gmra.mxu0 %v6740
    %v6836 = vpop.f32.mrf.mxu0
    %v6837 = vadd.f32 0.0, %v6836
    %v6838 = vpop.f32.mrf.mxu0
    %v6839 = vadd.f32 0.0, %v6838
    %6840 = vmatmul.bf16.gmra.mxu0 %v6739
    %v6841 = vpop.f32.mrf.mxu0
    %v6842 = vadd.f32 0.0, %v6841
    %v6843 = vpop.f32.mrf.mxu0
    %v6844 = vadd.f32 0.0, %v6843
    %6845 = vdwg.mxu0
    %v6846 = vadd.f32 %v6666, %v6807
    %v6847 = vadd.f32 %v6668, %v6809
    %v6848 = vadd.f32 %v6671, %v6812
    %v6849 = vadd.f32 %v6673, %v6814
    %v6850 = vadd.f32 %v6676, %v6817
    %v6851 = vadd.f32 %v6678, %v6819
    %v6852 = vadd.f32 %v6681, %v6822
    %v6853 = vadd.f32 %v6683, %v6824
    %v6854 = vadd.f32 %v6686, %v6827
    %v6855 = vadd.f32 %v6688, %v6829
    %v6856 = vadd.f32 %v6691, %v6832
    %v6857 = vadd.f32 %v6693, %v6834
    %v6858 = vadd.f32 %v6696, %v6837
    %v6859 = vadd.f32 %v6698, %v6839
    %v6860 = vadd.f32 %v6701, %v6842
    %v6861 = vadd.f32 %v6703, %v6844
    %v6862 = vld [vmem:[%s13] sm:$0x1]
    %v6864 = vperm.slane %v6862, 0
    %v6866 = vadd.f32 %v6846, %v6864
    %v6867 = vadd.f32 %v6847, %v6864
    %v6868 = vadd.f32 %v6848, %v6864
    %v6869 = vadd.f32 %v6849, %v6864
    %v6870 = vadd.f32 %v6850, %v6864
    %v6871 = vadd.f32 %v6851, %v6864
    %v6872 = vadd.f32 %v6852, %v6864
    %v6873 = vadd.f32 %v6853, %v6864
    %v6874 = vadd.f32 %v6854, %v6864
    %v6875 = vadd.f32 %v6855, %v6864
    %v6876 = vadd.f32 %v6856, %v6864
    %v6877 = vadd.f32 %v6857, %v6864
    %v6878 = vadd.f32 %v6858, %v6864
    %v6879 = vadd.f32 %v6859, %v6864
    %v6880 = vadd.f32 %v6860, %v6864
    %v6881 = vadd.f32 %v6861, %v6864
    %v6882 = vmax.f32 %v6866, 0.0
    %v6883 = vmax.f32 %v6867, 0.0
    %v6884 = vmax.f32 %v6868, 0.0
    %v6885 = vmax.f32 %v6869, 0.0
    %v6886 = vmax.f32 %v6870, 0.0
    %v6887 = vmax.f32 %v6871, 0.0
    %v6888 = vmax.f32 %v6872, 0.0
    %v6889 = vmax.f32 %v6873, 0.0
    %v6890 = vmax.f32 %v6874, 0.0
    %v6891 = vmax.f32 %v6875, 0.0
    %v6892 = vmax.f32 %v6876, 0.0
    %v6893 = vmax.f32 %v6877, 0.0
    %v6894 = vmax.f32 %v6878, 0.0
    %v6895 = vmax.f32 %v6879, 0.0
    %v6896 = vmax.f32 %v6880, 0.0
    %v6897 = vmax.f32 %v6881, 0.0
    %v6898 = vpack.c.bf16 %v6883, %v6882
    %v6899 = vpack.c.bf16 %v6885, %v6884
    %v6900 = vpack.c.bf16 %v6887, %v6886
    %v6901 = vpack.c.bf16 %v6889, %v6888
    %v6902 = vpack.c.bf16 %v6891, %v6890
    %v6903 = vpack.c.bf16 %v6893, %v6892
    %v6904 = vpack.c.bf16 %v6895, %v6894
    %v6905 = vpack.c.bf16 %v6897, %v6896
    %v6906 = vld [vmem:[%s14] sm:$0xf]
    %v6907 = vld [vmem:[%s14 + $0x4] sm:$0xf]
    %v6908 = vld [vmem:[%s14 + $0x8] sm:$0xf]
    %v6909 = vld [vmem:[%s14 + $0xc] sm:$0xf]
    %v6910 = vld [vmem:[%s14 + $0x10] sm:$0xf]
    %v6911 = vld [vmem:[%s14 + $0x14] sm:$0xf]
    %v6912 = vld [vmem:[%s14 + $0x18] sm:$0xf]
    %v6913 = vld [vmem:[%s14 + $0x1c] sm:$0xf]
    %v6914 = vld [vmem:[%s14 + $0x20] sm:$0xf]
    %v6915 = vld [vmem:[%s14 + $0x24] sm:$0xf]
    %v6916 = vld [vmem:[%s14 + $0x28] sm:$0xf]
    %v6917 = vld [vmem:[%s14 + $0x2c] sm:$0xf]
    %v6918 = vld [vmem:[%s14 + $0x30] sm:$0xf]
    %v6919 = vld [vmem:[%s14 + $0x34] sm:$0xf]
    %v6920 = vld [vmem:[%s14 + $0x38] sm:$0xf]
    %v6921 = vld [vmem:[%s14 + $0x3c] sm:$0xf]
    %v6938 = vunpack.c.l.b16 %v6906
    %v6939 = vunpack.c.l.b16 %v6907
    %v6940 = vunpack.c.l.b16 %v6908
    %v6941 = vunpack.c.l.b16 %v6909
    %v6942 = vunpack.c.l.b16 %v6910
    %v6943 = vunpack.c.l.b16 %v6911
    %v6944 = vunpack.c.l.b16 %v6912
    %v6945 = vunpack.c.l.b16 %v6913
    %v6946 = vunpack.c.l.b16 %v6914
    %v6947 = vunpack.c.l.b16 %v6915
    %v6948 = vunpack.c.l.b16 %v6916
    %v6949 = vunpack.c.l.b16 %v6917
    %v6950 = vunpack.c.l.b16 %v6918
    %v6951 = vunpack.c.l.b16 %v6919
    %v6952 = vunpack.c.l.b16 %v6920
    %v6953 = vunpack.c.l.b16 %v6921
    %v6954 = vpack.c.b16 %v6939, %v6938
    %v6955 = vpack.c.b16 %v6941, %v6940
    %v6956 = vpack.c.b16 %v6943, %v6942
    %v6957 = vpack.c.b16 %v6945, %v6944
    %v6958 = vpack.c.b16 %v6947, %v6946
    %v6959 = vpack.c.b16 %v6949, %v6948
    %v6960 = vpack.c.b16 %v6951, %v6950
    %v6961 = vpack.c.b16 %v6953, %v6952
    %6970 = vmatpush.bf16.msra.mxu0 %v6961
    %6971 = vmatpush.bf16.msra.mxu0 %v6960
    %6972 = vmatpush.bf16.msra.mxu0 %v6959
    %6973 = vmatpush.bf16.msra.mxu0 %v6958
    %6974 = vmatpush.bf16.msra.mxu0 %v6957
    %6975 = vmatpush.bf16.msra.mxu0 %v6956
    %6976 = vmatpush.bf16.msra.mxu0 %v6955
    %6977 = vmatpush.bf16.msra.mxu0 %v6954
    %6978 = vmatmul.bf16.gmra.mxu0 %v6898
    %v6979 = vpop.f32.mrf.mxu0
    %v6980 = vadd.f32 0.0, %v6979
    %v6981 = vpop.f32.mrf.mxu0
    %v6982 = vadd.f32 0.0, %v6981
    %6983 = vmatmul.bf16.gmra.mxu0 %v6899
    %v6984 = vpop.f32.mrf.mxu0
    %v6985 = vadd.f32 0.0, %v6984
    %v6986 = vpop.f32.mrf.mxu0
    %v6987 = vadd.f32 0.0, %v6986
    %6988 = vmatmul.bf16.gmra.mxu0 %v6900
    %v6989 = vpop.f32.mrf.mxu0
    %v6990 = vadd.f32 0.0, %v6989
    %v6991 = vpop.f32.mrf.mxu0
    %v6992 = vadd.f32 0.0, %v6991
    %6993 = vmatmul.bf16.gmra.mxu0 %v6901
    %v6994 = vpop.f32.mrf.mxu0
    %v6995 = vadd.f32 0.0, %v6994
    %v6996 = vpop.f32.mrf.mxu0
    %v6997 = vadd.f32 0.0, %v6996
    %6998 = vmatmul.bf16.gmra.mxu0 %v6902
    %v6999 = vpop.f32.mrf.mxu0
    %v7000 = vadd.f32 0.0, %v6999
    %v7001 = vpop.f32.mrf.mxu0
    %v7002 = vadd.f32 0.0, %v7001
    %7003 = vmatmul.bf16.gmra.mxu0 %v6903
    %v7004 = vpop.f32.mrf.mxu0
    %v7005 = vadd.f32 0.0, %v7004
    %v7006 = vpop.f32.mrf.mxu0
    %v7007 = vadd.f32 0.0, %v7006
    %7008 = vmatmul.bf16.gmra.mxu0 %v6904
    %v7009 = vpop.f32.mrf.mxu0
    %v7010 = vadd.f32 0.0, %v7009
    %v7011 = vpop.f32.mrf.mxu0
    %v7012 = vadd.f32 0.0, %v7011
    %7013 = vmatmul.bf16.gmra.mxu0 %v6905
    %v7014 = vpop.f32.mrf.mxu0
    %v7015 = vadd.f32 0.0, %v7014
    %v7016 = vpop.f32.mrf.mxu0
    %v7017 = vadd.f32 0.0, %v7016
    %7018 = vdwg.mxu0
    %v7019 = vld [vmem:[%s15] sm:$0xf]
    %v7020 = vld [vmem:[%s15 + $0x4] sm:$0xf]
    %v7021 = vld [vmem:[%s15 + $0x8] sm:$0xf]
    %v7022 = vld [vmem:[%s15 + $0xc] sm:$0xf]
    %v7023 = vld [vmem:[%s15 + $0x10] sm:$0xf]
    %v7024 = vld [vmem:[%s15 + $0x14] sm:$0xf]
    %v7025 = vld [vmem:[%s15 + $0x18] sm:$0xf]
    %v7026 = vld [vmem:[%s15 + $0x1c] sm:$0xf]
    %v7027 = vld [vmem:[%s15 + $0x20] sm:$0xf]
    %v7028 = vld [vmem:[%s15 + $0x24] sm:$0xf]
    %v7029 = vld [vmem:[%s15 + $0x28] sm:$0xf]
    %v7030 = vld [vmem:[%s15 + $0x2c] sm:$0xf]
    %v7031 = vld [vmem:[%s15 + $0x30] sm:$0xf]
    %v7032 = vld [vmem:[%s15 + $0x34] sm:$0xf]
    %v7033 = vld [vmem:[%s15 + $0x38] sm:$0xf]
    %v7034 = vld [vmem:[%s15 + $0x3c] sm:$0xf]
    %v7051 = vunpack.c.l.b16 %v7019
    %v7052 = vunpack.c.l.b16 %v7020
    %v7053 = vunpack.c.l.b16 %v7021
    %v7054 = vunpack.c.l.b16 %v7022
    %v7055 = vunpack.c.l.b16 %v7023
    %v7056 = vunpack.c.l.b16 %v7024
    %v7057 = vunpack.c.l.b16 %v7025
    %v7058 = vunpack.c.l.b16 %v7026
    %v7059 = vunpack.c.l.b16 %v7027
    %v7060 = vunpack.c.l.b16 %v7028
    %v7061 = vunpack.c.l.b16 %v7029
    %v7062 = vunpack.c.l.b16 %v7030
    %v7063 = vunpack.c.l.b16 %v7031
    %v7064 = vunpack.c.l.b16 %v7032
    %v7065 = vunpack.c.l.b16 %v7033
    %v7066 = vunpack.c.l.b16 %v7034
    %v7067 = vpack.c.b16 %v7052, %v7051
    %v7068 = vpack.c.b16 %v7054, %v7053
    %v7069 = vpack.c.b16 %v7056, %v7055
    %v7070 = vpack.c.b16 %v7058, %v7057
    %v7071 = vpack.c.b16 %v7060, %v7059
    %v7072 = vpack.c.b16 %v7062, %v7061
    %v7073 = vpack.c.b16 %v7064, %v7063
    %v7074 = vpack.c.b16 %v7066, %v7065
    %7083 = vmatpush.bf16.msra.mxu0 %v7074
    %7084 = vmatpush.bf16.msra.mxu0 %v7073
    %7085 = vmatpush.bf16.msra.mxu0 %v7072
    %7086 = vmatpush.bf16.msra.mxu0 %v7071
    %7087 = vmatpush.bf16.msra.mxu0 %v7070
    %7088 = vmatpush.bf16.msra.mxu0 %v7069
    %7089 = vmatpush.bf16.msra.mxu0 %v7068
    %7090 = vmatpush.bf16.msra.mxu0 %v7067
    %7091 = vmatmul.bf16.gmra.mxu0 %v6898
    %v7092 = vpop.f32.mrf.mxu0
    %v7093 = vadd.f32 0.0, %v7092
    %v7094 = vpop.f32.mrf.mxu0
    %v7095 = vadd.f32 0.0, %v7094
    %7096 = vmatmul.bf16.gmra.mxu0 %v6899
    %v7097 = vpop.f32.mrf.mxu0
    %v7098 = vadd.f32 0.0, %v7097
    %v7099 = vpop.f32.mrf.mxu0
    %v7100 = vadd.f32 0.0, %v7099
    %7101 = vmatmul.bf16.gmra.mxu0 %v6900
    %v7102 = vpop.f32.mrf.mxu0
    %v7103 = vadd.f32 0.0, %v7102
    %v7104 = vpop.f32.mrf.mxu0
    %v7105 = vadd.f32 0.0, %v7104
    %7106 = vmatmul.bf16.gmra.mxu0 %v6901
    %v7107 = vpop.f32.mrf.mxu0
    %v7108 = vadd.f32 0.0, %v7107
    %v7109 = vpop.f32.mrf.mxu0
    %v7110 = vadd.f32 0.0, %v7109
    %7111 = vmatmul.bf16.gmra.mxu0 %v6902
    %v7112 = vpop.f32.mrf.mxu0
    %v7113 = vadd.f32 0.0, %v7112
    %v7114 = vpop.f32.mrf.mxu0
    %v7115 = vadd.f32 0.0, %v7114
    %7116 = vmatmul.bf16.gmra.mxu0 %v6903
    %v7117 = vpop.f32.mrf.mxu0
    %v7118 = vadd.f32 0.0, %v7117
    %v7119 = vpop.f32.mrf.mxu0
    %v7120 = vadd.f32 0.0, %v7119
    %7121 = vmatmul.bf16.gmra.mxu0 %v6904
    %v7122 = vpop.f32.mrf.mxu0
    %v7123 = vadd.f32 0.0, %v7122
    %v7124 = vpop.f32.mrf.mxu0
    %v7125 = vadd.f32 0.0, %v7124
    %7126 = vmatmul.bf16.gmra.mxu0 %v6905
    %v7127 = vpop.f32.mrf.mxu0
    %v7128 = vadd.f32 0.0, %v7127
    %v7129 = vpop.f32.mrf.mxu0
    %v7130 = vadd.f32 0.0, %v7129
    %7131 = vdwg.mxu0
    %v7132 = vmax.f32 %v6980, %v7093
    %v7133 = vmax.f32 %v6982, %v7095
    %v7134 = vmax.f32 %v6985, %v7098
    %v7135 = vmax.f32 %v6987, %v7100
    %v7136 = vmax.f32 %v6990, %v7103
    %v7137 = vmax.f32 %v6992, %v7105
    %v7138 = vmax.f32 %v6995, %v7108
    %v7139 = vmax.f32 %v6997, %v7110
    %v7140 = vmax.f32 %v7000, %v7113
    %v7141 = vmax.f32 %v7002, %v7115
    %v7142 = vmax.f32 %v7005, %v7118
    %v7143 = vmax.f32 %v7007, %v7120
    %v7144 = vmax.f32 %v7010, %v7123
    %v7145 = vmax.f32 %v7012, %v7125
    %v7146 = vmax.f32 %v7015, %v7128
    %v7147 = vmax.f32 %v7017, %v7130
    %v7148 = vpack.c.bf16 %v7133, %v7132
    %v7149 = vpack.c.bf16 %v7135, %v7134
    %v7150 = vpack.c.bf16 %v7137, %v7136
    %v7151 = vpack.c.bf16 %v7139, %v7138
    %v7152 = vpack.c.bf16 %v7141, %v7140
    %v7153 = vpack.c.bf16 %v7143, %v7142
    %v7154 = vpack.c.bf16 %v7145, %v7144
    %v7155 = vpack.c.bf16 %v7147, %v7146
    %v7156 = vld [vmem:[%s16] sm:$0xf]
    %v7157 = vld [vmem:[%s16 + $0x4] sm:$0xf]
    %v7158 = vld [vmem:[%s16 + $0x8] sm:$0xf]
    %v7159 = vld [vmem:[%s16 + $0xc] sm:$0xf]
    %v7160 = vld [vmem:[%s16 + $0x10] sm:$0xf]
    %v7161 = vld [vmem:[%s16 + $0x14] sm:$0xf]
    %v7162 = vld [vmem:[%s16 + $0x18] sm:$0xf]
    %v7170 = vunpack.c.l.b16 %v7156
    %v7171 = vunpack.c.l.b16 %v7157
    %v7172 = vunpack.c.l.b16 %v7158
    %v7173 = vunpack.c.l.b16 %v7159
    %v7174 = vunpack.c.l.b16 %v7160
    %v7175 = vunpack.c.l.b16 %v7161
    %v7176 = vunpack.c.l.b16 %v7162
    %v7177 = vpack.c.b16 %v7171, %v7170
    %v7178 = vpack.c.b16 %v7173, %v7172
    %v7179 = vpack.c.b16 %v7175, %v7174
    %v7180 = vpack.c.b16 %v7176, %v7176
    %vm7181 = vcmask 1031168
    %v7183 = vsel %vm7181, %v7177, 0
    %v7186 = vsel %vm7181, %v7178, 0
    %v7189 = vsel %vm7181, %v7179, 0
    %v7192 = vsel %vm7181, %v7180, 0
    %v7195 = vsel %vm5108, %v7155, 0
    %7197 = vmatpush.bf16.msra.mxu0 %v7195
    %7198 = vmatpush.bf16.msra.mxu0 %v7154
    %7199 = vmatpush.bf16.msra.mxu0 %v7153
    %7200 = vmatpush.bf16.msra.mxu0 %v7152
    %7201 = vmatpush.bf16.msra.mxu0 %v7151
    %7202 = vmatpush.bf16.msra.mxu0 %v7150
    %7203 = vmatpush.bf16.msra.mxu0 %v7149
    %7204 = vmatpush.bf16.msra.mxu0 %v7148
    %7205 = vmatmul.bf16.gmra.mxu0 %v7183
    %v7206 = vpop.f32.mrf.mxu0
    %v7207 = vadd.f32 0.0, %v7206
    %v7208 = vpop.f32.mrf.mxu0
    %v7209 = vadd.f32 0.0, %v7208
    %7210 = vmatmul.bf16.gmra.mxu0 %v7186
    %v7211 = vpop.f32.mrf.mxu0
    %v7212 = vadd.f32 0.0, %v7211
    %v7213 = vpop.f32.mrf.mxu0
    %v7214 = vadd.f32 0.0, %v7213
    %7215 = vmatmul.bf16.gmra.mxu0 %v7189
    %v7216 = vpop.f32.mrf.mxu0
    %v7217 = vadd.f32 0.0, %v7216
    %v7218 = vpop.f32.mrf.mxu0
    %v7219 = vadd.f32 0.0, %v7218
    %7220 = vmatmul.bf16.gmra.mxu0 %v7192
    %v7221 = vpop.f32.mrf.mxu0
    %v7222 = vadd.f32 0.0, %v7221
    %v7223 = vpop.f32.mrf.mxu0
    %7224 = vdwg.mxu0
    %v7225 = vld [vmem:[%s17] sm:$0xf]
    %v7226 = vld [vmem:[%s17 + $0x4] sm:$0xf]
    %v7227 = vld [vmem:[%s17 + $0x8] sm:$0xf]
    %v7228 = vld [vmem:[%s17 + $0xc] sm:$0xf]
    %v7229 = vld [vmem:[%s17 + $0x10] sm:$0xf]
    %v7230 = vld [vmem:[%s17 + $0x14] sm:$0xf]
    %v7231 = vld [vmem:[%s17 + $0x18] sm:$0xf]
    %v7239 = vunpack.c.l.b16 %v7225
    %v7240 = vunpack.c.l.b16 %v7226
    %v7241 = vunpack.c.l.b16 %v7227
    %v7242 = vunpack.c.l.b16 %v7228
    %v7243 = vunpack.c.l.b16 %v7229
    %v7244 = vunpack.c.l.b16 %v7230
    %v7245 = vunpack.c.l.b16 %v7231
    %v7246 = vpack.c.b16 %v7240, %v7239
    %v7247 = vpack.c.b16 %v7242, %v7241
    %v7248 = vpack.c.b16 %v7244, %v7243
    %v7249 = vpack.c.b16 %v7245, %v7245
    %v7251 = vsel %vm7181, %v7246, 0
    %v7254 = vsel %vm7181, %v7247, 0
    %v7257 = vsel %vm7181, %v7248, 0
    %v7260 = vsel %vm7181, %v7249, 0
    %7262 = vmatpush.bf16.msra.mxu0 %v7195
    %7263 = vmatpush.bf16.msra.mxu0 %v7154
    %7264 = vmatpush.bf16.msra.mxu0 %v7153
    %7265 = vmatpush.bf16.msra.mxu0 %v7152
    %7266 = vmatpush.bf16.msra.mxu0 %v7151
    %7267 = vmatpush.bf16.msra.mxu0 %v7150
    %7268 = vmatpush.bf16.msra.mxu0 %v7149
    %7269 = vmatpush.bf16.msra.mxu0 %v7148
    %7270 = vmatmul.bf16.gmra.mxu0 %v7251
    %v7271 = vpop.f32.mrf.mxu0
    %v7272 = vadd.f32 0.0, %v7271
    %v7273 = vpop.f32.mrf.mxu0
    %v7274 = vadd.f32 0.0, %v7273
    %7275 = vmatmul.bf16.gmra.mxu0 %v7254
    %v7276 = vpop.f32.mrf.mxu0
    %v7277 = vadd.f32 0.0, %v7276
    %v7278 = vpop.f32.mrf.mxu0
    %v7279 = vadd.f32 0.0, %v7278
    %7280 = vmatmul.bf16.gmra.mxu0 %v7257
    %v7281 = vpop.f32.mrf.mxu0
    %v7282 = vadd.f32 0.0, %v7281
    %v7283 = vpop.f32.mrf.mxu0
    %v7284 = vadd.f32 0.0, %v7283
    %7285 = vmatmul.bf16.gmra.mxu0 %v7260
    %v7286 = vpop.f32.mrf.mxu0
    %v7287 = vadd.f32 0.0, %v7286
    %v7288 = vpop.f32.mrf.mxu0
    %7289 = vdwg.mxu0
    %v7290 = vmax.f32 %v7207, %v7272
    %v7291 = vmax.f32 %v7209, %v7274
    %v7292 = vmax.f32 %v7212, %v7277
    %v7293 = vmax.f32 %v7214, %v7279
    %v7294 = vmax.f32 %v7217, %v7282
    %v7295 = vmax.f32 %v7219, %v7284
    %v7296 = vmax.f32 %v7222, %v7287
    %v7297 = vpack.c.bf16 %v7290, %v7290
    %v7298 = vpack.c.bf16 %v7291, %v7291
    %v7299 = vpack.c.bf16 %v7292, %v7292
    %v7300 = vpack.c.bf16 %v7293, %v7293
    %v7301 = vpack.c.bf16 %v7294, %v7294
    %v7302 = vpack.c.bf16 %v7295, %v7295
    %v7303 = vpack.c.bf16 %v7296, %v7296
    %v7304 = vld [vmem:[%s19] sm:$0xf]
    %v7305 = vld [vmem:[%s19 + $0x4] sm:$0xf]
    %v7306 = vld [vmem:[%s19 + $0x8] sm:$0xf]
    %v7307 = vld [vmem:[%s19 + $0xc] sm:$0xf]
    %v7308 = vld [vmem:[%s19 + $0x10] sm:$0xf]
    %v7309 = vld [vmem:[%s19 + $0x14] sm:$0xf]
    %v7310 = vld [vmem:[%s19 + $0x18] sm:$0xf]
    %v7311 = vld [vmem:[%s19 + $0x1c] sm:$0xf]
    %s7312 = scalar_lea.vmem %s19, 32
    %v7313 = vld [vmem:[%s7312] sm:$0xf]
    %v7314 = vld [vmem:[%s7312 + $0x4] sm:$0xf]
    %v7315 = vld [vmem:[%s7312 + $0x8] sm:$0xf]
    %v7316 = vld [vmem:[%s7312 + $0xc] sm:$0xf]
    %v7317 = vld [vmem:[%s7312 + $0x10] sm:$0xf]
    %v7318 = vld [vmem:[%s7312 + $0x14] sm:$0xf]
    %v7319 = vld [vmem:[%s7312 + $0x18] sm:$0xf]
    %v7320 = vld [vmem:[%s7312 + $0x1c] sm:$0xf]
    %v7329 = vunpack.c.l.b16 %v7313
    %v7330 = vunpack.c.l.b16 %v7314
    %v7331 = vunpack.c.l.b16 %v7315
    %v7332 = vunpack.c.l.b16 %v7316
    %v7333 = vunpack.c.l.b16 %v7317
    %v7334 = vunpack.c.l.b16 %v7318
    %v7335 = vunpack.c.l.b16 %v7319
    %v7336 = vunpack.c.l.b16 %v7320
    %v7337 = vpack.c.b16 %v7330, %v7329
    %v7338 = vpack.c.b16 %v7332, %v7331
    %v7339 = vpack.c.b16 %v7334, %v7333
    %v7340 = vpack.c.b16 %v7336, %v7335
    %vm7345 = vcmask 523264
    %v7347 = vsel %vm7345, %v7298, 0
    %7349 = vmatpush.bf16.msra.mxu0 0
    %7350 = vmatpush.bf16.msra.mxu0 0
    %7351 = vmatpush.bf16.msra.mxu0 0
    %7352 = vmatpush.bf16.msra.mxu0 0
    %7353 = vmatpush.bf16.msra.mxu0 %v7340
    %7354 = vmatpush.bf16.msra.mxu0 %v7339
    %7355 = vmatpush.bf16.msra.mxu0 %v7338
    %7356 = vmatpush.bf16.msra.mxu0 %v7337
    %7357 = vmatmul.bf16.gmra.mxu0 %v7347
    %v7358 = vpop.f32.mrf.mxu0
    %v7359 = vadd.f32 0.0, %v7358
    %v7360 = vpop.f32.mrf.mxu0
    %7361 = vdwg.mxu0
    %v7370 = vunpack.c.l.b16 %v7304
    %v7371 = vunpack.c.l.b16 %v7305
    %v7372 = vunpack.c.l.b16 %v7306
    %v7373 = vunpack.c.l.b16 %v7307
    %v7374 = vunpack.c.l.b16 %v7308
    %v7375 = vunpack.c.l.b16 %v7309
    %v7376 = vunpack.c.l.b16 %v7310
    %v7377 = vunpack.c.l.b16 %v7311
    %v7378 = vpack.c.b16 %v7371, %v7370
    %v7379 = vpack.c.b16 %v7373, %v7372
    %v7380 = vpack.c.b16 %v7375, %v7374
    %v7381 = vpack.c.b16 %v7377, %v7376
    %v7387 = vsel %vm7345, %v7297, 0
    %7389 = vmatpush.bf16.msra.mxu0 0
    %7390 = vmatpush.bf16.msra.mxu0 0
    %7391 = vmatpush.bf16.msra.mxu0 0
    %7392 = vmatpush.bf16.msra.mxu0 0
    %7393 = vmatpush.bf16.msra.mxu0 %v7381
    %7394 = vmatpush.bf16.msra.mxu0 %v7380
    %7395 = vmatpush.bf16.msra.mxu0 %v7379
    %7396 = vmatpush.bf16.msra.mxu0 %v7378
    %7397 = vmatmul.bf16.gmra.mxu0 %v7387
    %v7398 = vpop.f32.mrf.mxu0
    %v7399 = vadd.f32 %v7359, %v7398
    %v7400 = vpop.f32.mrf.mxu0
    %7401 = vdwg.mxu0
    %s7402 = scalar_lea.vmem %s19, 64
    %v7403 = vld [vmem:[%s7402] sm:$0xf]
    %v7404 = vld [vmem:[%s7402 + $0x4] sm:$0xf]
    %v7405 = vld [vmem:[%s7402 + $0x8] sm:$0xf]
    %v7406 = vld [vmem:[%s7402 + $0xc] sm:$0xf]
    %v7407 = vld [vmem:[%s7402 + $0x10] sm:$0xf]
    %v7408 = vld [vmem:[%s7402 + $0x14] sm:$0xf]
    %v7409 = vld [vmem:[%s7402 + $0x18] sm:$0xf]
    %v7410 = vld [vmem:[%s7402 + $0x1c] sm:$0xf]
    %v7419 = vunpack.c.l.b16 %v7403
    %v7420 = vunpack.c.l.b16 %v7404
    %v7421 = vunpack.c.l.b16 %v7405
    %v7422 = vunpack.c.l.b16 %v7406
    %v7423 = vunpack.c.l.b16 %v7407
    %v7424 = vunpack.c.l.b16 %v7408
    %v7425 = vunpack.c.l.b16 %v7409
    %v7426 = vunpack.c.l.b16 %v7410
    %v7427 = vpack.c.b16 %v7420, %v7419
    %v7428 = vpack.c.b16 %v7422, %v7421
    %v7429 = vpack.c.b16 %v7424, %v7423
    %v7430 = vpack.c.b16 %v7426, %v7425
    %v7436 = vsel %vm7345, %v7299, 0
    %7438 = vmatpush.bf16.msra.mxu0 0
    %7439 = vmatpush.bf16.msra.mxu0 0
    %7440 = vmatpush.bf16.msra.mxu0 0
    %7441 = vmatpush.bf16.msra.mxu0 0
    %7442 = vmatpush.bf16.msra.mxu0 %v7430
    %7443 = vmatpush.bf16.msra.mxu0 %v7429
    %7444 = vmatpush.bf16.msra.mxu0 %v7428
    %7445 = vmatpush.bf16.msra.mxu0 %v7427
    %7446 = vmatmul.bf16.gmra.mxu0 %v7436
    %v7447 = vpop.f32.mrf.mxu0
    %v7448 = vadd.f32 0.0, %v7447
    %v7449 = vpop.f32.mrf.mxu0
    %7450 = vdwg.mxu0
    %v7451 = vadd.f32 %v7399, %v7448
    %s7452 = scalar_lea.vmem %s19, 96
    %v7453 = vld [vmem:[%s7452] sm:$0xf]
    %v7454 = vld [vmem:[%s7452 + $0x4] sm:$0xf]
    %v7455 = vld [vmem:[%s7452 + $0x8] sm:$0xf]
    %v7456 = vld [vmem:[%s7452 + $0xc] sm:$0xf]
    %v7457 = vld [vmem:[%s7452 + $0x10] sm:$0xf]
    %v7458 = vld [vmem:[%s7452 + $0x14] sm:$0xf]
    %v7459 = vld [vmem:[%s7452 + $0x18] sm:$0xf]
    %v7460 = vld [vmem:[%s7452 + $0x1c] sm:$0xf]
    %v7469 = vunpack.c.l.b16 %v7453
    %v7470 = vunpack.c.l.b16 %v7454
    %v7471 = vunpack.c.l.b16 %v7455
    %v7472 = vunpack.c.l.b16 %v7456
    %v7473 = vunpack.c.l.b16 %v7457
    %v7474 = vunpack.c.l.b16 %v7458
    %v7475 = vunpack.c.l.b16 %v7459
    %v7476 = vunpack.c.l.b16 %v7460
    %v7477 = vpack.c.b16 %v7470, %v7469
    %v7478 = vpack.c.b16 %v7472, %v7471
    %v7479 = vpack.c.b16 %v7474, %v7473
    %v7480 = vpack.c.b16 %v7476, %v7475
    %v7486 = vsel %vm7345, %v7300, 0
    %7488 = vmatpush.bf16.msra.mxu0 0
    %7489 = vmatpush.bf16.msra.mxu0 0
    %7490 = vmatpush.bf16.msra.mxu0 0
    %7491 = vmatpush.bf16.msra.mxu0 0
    %7492 = vmatpush.bf16.msra.mxu0 %v7480
    %7493 = vmatpush.bf16.msra.mxu0 %v7479
    %7494 = vmatpush.bf16.msra.mxu0 %v7478
    %7495 = vmatpush.bf16.msra.mxu0 %v7477
    %7496 = vmatmul.bf16.gmra.mxu0 %v7486
    %v7497 = vpop.f32.mrf.mxu0
    %v7498 = vadd.f32 0.0, %v7497
    %v7499 = vpop.f32.mrf.mxu0
    %7500 = vdwg.mxu0
    %v7501 = vadd.f32 %v7451, %v7498
    %s7502 = scalar_lea.vmem %s19, 128
    %v7503 = vld [vmem:[%s7502] sm:$0xf]
    %v7504 = vld [vmem:[%s7502 + $0x4] sm:$0xf]
    %v7505 = vld [vmem:[%s7502 + $0x8] sm:$0xf]
    %v7506 = vld [vmem:[%s7502 + $0xc] sm:$0xf]
    %v7507 = vld [vmem:[%s7502 + $0x10] sm:$0xf]
    %v7508 = vld [vmem:[%s7502 + $0x14] sm:$0xf]
    %v7509 = vld [vmem:[%s7502 + $0x18] sm:$0xf]
    %v7510 = vld [vmem:[%s7502 + $0x1c] sm:$0xf]
    %v7519 = vunpack.c.l.b16 %v7503
    %v7520 = vunpack.c.l.b16 %v7504
    %v7521 = vunpack.c.l.b16 %v7505
    %v7522 = vunpack.c.l.b16 %v7506
    %v7523 = vunpack.c.l.b16 %v7507
    %v7524 = vunpack.c.l.b16 %v7508
    %v7525 = vunpack.c.l.b16 %v7509
    %v7526 = vunpack.c.l.b16 %v7510
    %v7527 = vpack.c.b16 %v7520, %v7519
    %v7528 = vpack.c.b16 %v7522, %v7521
    %v7529 = vpack.c.b16 %v7524, %v7523
    %v7530 = vpack.c.b16 %v7526, %v7525
    %v7536 = vsel %vm7345, %v7301, 0
    %7538 = vmatpush.bf16.msra.mxu0 0
    %7539 = vmatpush.bf16.msra.mxu0 0
    %7540 = vmatpush.bf16.msra.mxu0 0
    %7541 = vmatpush.bf16.msra.mxu0 0
    %7542 = vmatpush.bf16.msra.mxu0 %v7530
    %7543 = vmatpush.bf16.msra.mxu0 %v7529
    %7544 = vmatpush.bf16.msra.mxu0 %v7528
    %7545 = vmatpush.bf16.msra.mxu0 %v7527
    %7546 = vmatmul.bf16.gmra.mxu0 %v7536
    %v7547 = vpop.f32.mrf.mxu0
    %v7548 = vadd.f32 0.0, %v7547
    %v7549 = vpop.f32.mrf.mxu0
    %7550 = vdwg.mxu0
    %v7551 = vadd.f32 %v7501, %v7548
    %s7552 = scalar_lea.vmem %s19, 160
    %v7553 = vld [vmem:[%s7552] sm:$0xf]
    %v7554 = vld [vmem:[%s7552 + $0x4] sm:$0xf]
    %v7555 = vld [vmem:[%s7552 + $0x8] sm:$0xf]
    %v7556 = vld [vmem:[%s7552 + $0xc] sm:$0xf]
    %v7557 = vld [vmem:[%s7552 + $0x10] sm:$0xf]
    %v7558 = vld [vmem:[%s7552 + $0x14] sm:$0xf]
    %v7559 = vld [vmem:[%s7552 + $0x18] sm:$0xf]
    %v7560 = vld [vmem:[%s7552 + $0x1c] sm:$0xf]
    %v7569 = vunpack.c.l.b16 %v7553
    %v7570 = vunpack.c.l.b16 %v7554
    %v7571 = vunpack.c.l.b16 %v7555
    %v7572 = vunpack.c.l.b16 %v7556
    %v7573 = vunpack.c.l.b16 %v7557
    %v7574 = vunpack.c.l.b16 %v7558
    %v7575 = vunpack.c.l.b16 %v7559
    %v7576 = vunpack.c.l.b16 %v7560
    %v7577 = vpack.c.b16 %v7570, %v7569
    %v7578 = vpack.c.b16 %v7572, %v7571
    %v7579 = vpack.c.b16 %v7574, %v7573
    %v7580 = vpack.c.b16 %v7576, %v7575
    %v7586 = vsel %vm7345, %v7302, 0
    %7588 = vmatpush.bf16.msra.mxu0 0
    %7589 = vmatpush.bf16.msra.mxu0 0
    %7590 = vmatpush.bf16.msra.mxu0 0
    %7591 = vmatpush.bf16.msra.mxu0 0
    %7592 = vmatpush.bf16.msra.mxu0 %v7580
    %7593 = vmatpush.bf16.msra.mxu0 %v7579
    %7594 = vmatpush.bf16.msra.mxu0 %v7578
    %7595 = vmatpush.bf16.msra.mxu0 %v7577
    %7596 = vmatmul.bf16.gmra.mxu0 %v7586
    %v7597 = vpop.f32.mrf.mxu0
    %v7598 = vadd.f32 0.0, %v7597
    %v7599 = vpop.f32.mrf.mxu0
    %7600 = vdwg.mxu0
    %v7601 = vadd.f32 %v7551, %v7598
    %s7602 = scalar_lea.vmem %s19, 192
    %v7603 = vld [vmem:[%s7602] sm:$0xf]
    %v7604 = vld [vmem:[%s7602 + $0x4] sm:$0xf]
    %v7605 = vld [vmem:[%s7602 + $0x8] sm:$0xf]
    %v7606 = vld [vmem:[%s7602 + $0xc] sm:$0xf]
    %v7607 = vld [vmem:[%s7602 + $0x10] sm:$0xf]
    %v7608 = vld [vmem:[%s7602 + $0x14] sm:$0xf]
    %v7609 = vld [vmem:[%s7602 + $0x18] sm:$0xf]
    %v7610 = vld [vmem:[%s7602 + $0x1c] sm:$0xf]
    %v7619 = vunpack.c.l.b16 %v7603
    %v7620 = vunpack.c.l.b16 %v7604
    %v7621 = vunpack.c.l.b16 %v7605
    %v7622 = vunpack.c.l.b16 %v7606
    %v7623 = vunpack.c.l.b16 %v7607
    %v7624 = vunpack.c.l.b16 %v7608
    %v7625 = vunpack.c.l.b16 %v7609
    %v7626 = vunpack.c.l.b16 %v7610
    %v7627 = vpack.c.b16 %v7620, %v7619
    %v7628 = vpack.c.b16 %v7622, %v7621
    %v7629 = vpack.c.b16 %v7624, %v7623
    %v7630 = vpack.c.b16 %v7626, %v7625
    %v7636 = vsel %vm7345, %v7303, 0
    %7638 = vmatpush.bf16.msra.mxu0 0
    %7639 = vmatpush.bf16.msra.mxu0 0
    %7640 = vmatpush.bf16.msra.mxu0 0
    %7641 = vmatpush.bf16.msra.mxu0 0
    %7642 = vmatpush.bf16.msra.mxu0 %v7630
    %7643 = vmatpush.bf16.msra.mxu0 %v7629
    %7644 = vmatpush.bf16.msra.mxu0 %v7628
    %7645 = vmatpush.bf16.msra.mxu0 %v7627
    %7646 = vmatmul.bf16.gmra.mxu0 %v7636
    %v7647 = vpop.f32.mrf.mxu0
    %v7648 = vadd.f32 0.0, %v7647
    %v7649 = vpop.f32.mrf.mxu0
    %7650 = vdwg.mxu0
    %v7651 = vadd.f32 %v7601, %v7648
    %v7652 = vld [vmem:[%s20] sm:$0x1]
    %v7654 = vperm.slane %v7652, 0
    %v7656 = vadd.f32 %v7651, %v7654
    %7657 = vst [vmem:[%s21] sm:$0xff] %v7656
    // Predicated region
    $region90: #{forward.1} parent=1 // pred_check
      _
    $region91: #{forward.1} parent=1 // pred_check_branch
      %7659 = sbr.rel (0) target = $region93
    $region92: #{forward.1} parent=1 // pred_region
      _
    $region93: #{forward.1} parent=1 // pred_fallthru
      _
    // Predicated region
    $region94: #{forward.1} parent=1 // pred_check
      _
    $region95: #{forward.1} parent=1 // pred_check_branch
      %7661 = sbr.rel (0) target = $region97
    $region96: #{forward.1} parent=1 // pred_region
      _
    $region97: #{forward.1} parent=1 // pred_fallthru
      _
    %7662 = vsyncpa [#allocation6], 1

</llo_original>
